<compile_context>
chip_gen: v7x
topology: tpu7x:2x2x1
jax: 0.10.0
libtpu: 0.0.40
codegen_flags: <defaults>
</compile_context>

<pallas_src>
import jax
import jax.numpy as jnp
import numpy as np
from jax.experimental import pallas as pl
from jax.experimental.pallas import tpu as pltpu

EPS = 1e-5


def _round_up(v, m):
    return (v + m - 1) // m * m


def _write_padded_bn(pad_ref, x_ref, scale_ref, shift_ref):
    """Zero the 1-pixel halo (plus sublane-alignment tail) of the padded scratch
    and write the BN'd activation (one FMA/elem, precomputed scale/shift) into
    its interior."""
    _, H, W, C = x_ref.shape
    Wp = pad_ref.shape[2]
    pad_ref[:, 0:1, :, :] = jnp.zeros((1, 1, Wp, C), jnp.float32)
    pad_ref[:, H + 1:H + 2, :, :] = jnp.zeros((1, 1, Wp, C), jnp.float32)
    pad_ref[:, :, 0:1, :] = jnp.zeros((1, H + 2, 1, C), jnp.float32)
    pad_ref[:, :, W + 1:Wp, :] = jnp.zeros((1, H + 2, Wp - (W + 1), C),
                                           jnp.float32)
    pad_ref[:, 1:H + 1, 1:W + 1, :] = (
        x_ref[...] * scale_ref[...] + shift_ref[...])


def _conv3x3_relu(pad_ref, w_ref, H, W):
    """3x3 / stride-1 conv of the padded activation against bf16 weights
    w_ref (9, Cin, Cout): 9 shifted-window bf16 dots, f32 accumulation
    (im2col-free).  Returns relu(conv) as (1, H, W, Cout) f32.
    On v7x the accumulation can land in the MRB; on v5e/v6e a strip-wise single
    K=9*C matmul would trade these adds for one bigger dot."""
    C = pad_ref.shape[-1]
    Co = w_ref.shape[-1]
    acc = jnp.zeros((H * W, Co), jnp.float32)
    for dh in range(3):
        for dw in range(3):
            win = pad_ref[:, dh:dh + H, dw:dw + W, :]           # (1,H,W,C) f32
            win = win.reshape(H * W, C).astype(jnp.bfloat16)    # bf16 MXU operand
            acc = acc + jnp.dot(win, w_ref[dh * 3 + dw],
                                preferred_element_type=jnp.float32)
    return jnp.maximum(acc, 0.0).reshape(1, H, W, Co)


def _bn_conv_relu_kernel(x_ref, scale_ref, shift_ref, w_ref, o_ref, pad_ref):
    _, H, W, _ = x_ref.shape
    _write_padded_bn(pad_ref, x_ref, scale_ref, shift_ref)
    o_ref[...] = _conv3x3_relu(pad_ref, w_ref, H, W).astype(o_ref.dtype)


def _bn_conv_relu_add_kernel(x_ref, scale_ref, shift_ref, w_ref, id_ref, o_ref,
                             pad_ref):
    _, H, W, _ = x_ref.shape
    _write_padded_bn(pad_ref, x_ref, scale_ref, shift_ref)
    out = _conv3x3_relu(pad_ref, w_ref, H, W) + id_ref[...]   # residual fused
    o_ref[...] = out.astype(o_ref.dtype)


def _bn_conv_relu(x, scale, shift, w9, identity=None):
    """Batch-tiled fused scale/shift-BN + conv3x3 + ReLU (+ residual) kernel.

    x: (N,H,W,C) f32; scale/shift: (1,1,1,C) f32; w9: (9,C,Co) bf16;
    identity: optional (N,H,W,Co) f32 added to the activation output.
    """
    N, H, W, C = x.shape
    Co = w9.shape[-1]
    Wp = _round_up(W + 2, 8)           # sublane-aligned padded scratch width

    tile = lambda n: (n, 0, 0, 0)
    bcast = lambda n: (0, 0, 0, 0)

    in_specs = [
        pl.BlockSpec((1, H, W, C), tile),                # activation tile
        pl.BlockSpec((1, 1, 1, C), bcast),               # BN scale
        pl.BlockSpec((1, 1, 1, C), bcast),               # BN shift
        pl.BlockSpec((9, C, Co), lambda n: (0, 0, 0)),   # conv weights (bf16)
    ]
    args = [x, scale, shift, w9]
    if identity is None:
        kernel = _bn_conv_relu_kernel
    else:
        kernel = _bn_conv_relu_add_kernel
        in_specs.append(pl.BlockSpec((1, H, W, Co), tile))
        args.append(identity)

    flops = 2 * N * H * W * 9 * C * Co + 8 * N * H * W * max(C, Co)
    bytes_accessed = 4 * N * H * W * (C + Co) + 2 * 9 * C * Co + 8 * C
    if identity is not None:
        bytes_accessed += 4 * N * H * W * Co

    return pl.pallas_call(
        kernel,
        out_shape=jax.ShapeDtypeStruct((N, H, W, Co), jnp.float32),
        grid_spec=pltpu.PrefetchScalarGridSpec(
            num_scalar_prefetch=0,
            grid=(N,),
            in_specs=in_specs,
            out_specs=pl.BlockSpec((1, H, W, Co), tile),
            scratch_shapes=[
                pltpu.VMEM((1, H + 2, Wp, C), jnp.float32),   # padded activation
            ],
        ),
        compiler_params=pltpu.CompilerParams(
            dimension_semantics=("parallel",),        # megacore sharding on v7x
            vmem_limit_bytes=32 * 1024 * 1024,        # explicit (v5e default is 16 MiB)
        ),
        cost_estimate=pl.CostEstimate(
            flops=flops, transcendentals=0, bytes_accessed=bytes_accessed),
    )(*args)


def _bn_fold(t, gamma, beta):
    """PyTorch training-mode BatchNorm2d over (N,H,W) folded to per-channel
    scale/shift (two-pass biased variance, clamped >= 0), computed in plain XLA
    so the conv kernels stay fully tileable."""
    m = jnp.mean(t, axis=(0, 1, 2), keepdims=True)
    var = jnp.mean(jnp.square(t - m), axis=(0, 1, 2), keepdims=True)
    var = jnp.maximum(var, 0.0)
    scale = gamma.reshape(1, 1, 1, -1) * jax.lax.rsqrt(var + EPS)
    shift = beta.reshape(1, 1, 1, -1) - m * scale
    return scale, shift


@jax.jit
def pre_basic_block_nchw(x_nchw, g1, b1, w1, g2, b2, w2):
    """x_nchw: (N,C,H,W); w1/w2: HWIO (3,3,C,C); g/b: (C,).  Returns NCHW f32."""
    x = jnp.transpose(x_nchw, (0, 2, 3, 1)).astype(jnp.float32)   # NCHW -> NHWC
    N, H, W, C = x.shape
    Co = w1.shape[-1]
    assert w1.shape == (3, 3, C, Co) and w2.shape == (3, 3, Co, Co) and Co == C

    # HWIO -> (9, Cin, Cout) bf16, tap-major to match the kernel's dh/dw order.
    w1f = w1.reshape(9, C, Co).astype(jnp.bfloat16)
    w2f = w2.reshape(9, Co, Co).astype(jnp.bfloat16)

    s1, t1 = _bn_fold(x, g1, b1)                          # bn1 stats (XLA)
    h1 = _bn_conv_relu(x, s1, t1, w1f)                    # relu(conv1(bn1(x)))
    s2, t2 = _bn_fold(h1, g2, b2)                         # bn2 stats (XLA)
    out = _bn_conv_relu(h1, s2, t2, w2f, identity=x)      # relu(conv2(bn2(.))) + x
    return jnp.transpose(out, (0, 3, 1, 2))               # NHWC -> NCHW


def reference_nchw(x_nchw, g1, b1, w1, g2, b2, w2):
    """Pure-JAX f32 reference with the PyTorch module's semantics."""
    x = jnp.transpose(x_nchw, (0, 2, 3, 1)).astype(jnp.float32)

    def bn(t, g, b):
        m = t.mean(axis=(0, 1, 2), keepdims=True)
        v = ((t - m) ** 2).mean(axis=(0, 1, 2), keepdims=True)
        return (t - m) * jax.lax.rsqrt(v + EPS) * g.reshape(1, 1, 1, -1) \
            + b.reshape(1, 1, 1, -1)

    def conv(t, w):
        return jax.lax.conv_general_dilated(
            t, w, window_strides=(1, 1), padding=((1, 1), (1, 1)),
            dimension_numbers=("NHWC", "HWIO", "NHWC"))

    h = jnp.maximum(conv(bn(x, g1, b1), w1), 0.0)
    h = jnp.maximum(conv(bn(h, g2, b2), w2), 0.0)
    return jnp.transpose(h + x, (0, 3, 1, 2))


if __name__ == "__main__":
    # inplanes = planes = 4, stride = 1, downsample = None
    N, C, H, W = 2, 4, 16, 16
    key = jax.random.PRNGKey(0)
    kx, k1, k2, k3, k4, k5, k6 = jax.random.split(key, 7)
    x = jax.random.normal(kx, (N, C, H, W), jnp.float32)
    w1 = 0.2 * jax.random.normal(k1, (3, 3, C, C), jnp.float32)   # conv1, HWIO
    w2 = 0.2 * jax.random.normal(k2, (3, 3, C, C), jnp.float32)   # conv2, HWIO
    g1 = 1.0 + 0.1 * jax.random.normal(k3, (C,), jnp.float32)     # bn1 gamma
    b1 = 0.1 * jax.random.normal(k4, (C,), jnp.float32)           # bn1 beta
    g2 = 1.0 + 0.1 * jax.random.normal(k5, (C,), jnp.float32)     # bn2 gamma
    b2 = 0.1 * jax.random.normal(k6, (C,), jnp.float32)           # bn2 beta

    out = jax.block_until_ready(pre_basic_block_nchw(x, g1, b1, w1, g2, b2, w2))
    ref = reference_nchw(x, g1, b1, w1, g2, b2, w2)
    # Tolerance accounts for the deliberate bf16 MXU-operand cast (per review);
    # BN/ReLU/residual math and accumulation remain f32.
    np.testing.assert_allclose(np.asarray(out), np.asarray(ref),
                               rtol=5e-2, atol=5e-2)
    print("KERNEL_OK")
</pallas_src>

<mosaic_0001>
module attributes {stable_mosaic.version = 11 : i64} {
  func.func @_bn_conv_relu_kernel(%arg0: i32, %arg1: memref<1x16x16x4xf32, #tpu.memory_space<vmem>>, %arg2: memref<1x1x1x4xf32, #tpu.memory_space<vmem>>, %arg3: memref<1x1x1x4xf32, #tpu.memory_space<vmem>>, %arg4: memref<9x4x4xbf16, #tpu.memory_space<vmem>>, %arg5: memref<1x16x16x4xf32, #tpu.memory_space<vmem>>, %arg6: memref<1x18x24x4xf32, #tpu.memory_space<vmem>>) attributes {dimension_semantics = [#tpu.dimension_semantics<parallel>], iteration_bounds = array<i64: 2>, scalar_prefetch = 0 : i64, scratch_operands = 1 : i64, tpu.core_type = #tpu.core_type<tc>, window_params = [{transform_indices = @transform_0, window_bounds = array<i64: 1, 16, 16, 4>}, {pipeline_mode = #tpu.pipeline_mode<synchronous>, transform_indices = @transform_1, window_bounds = array<i64: 1, 1, 1, 4>}, {pipeline_mode = #tpu.pipeline_mode<synchronous>, transform_indices = @transform_2, window_bounds = array<i64: 1, 1, 1, 4>}, {pipeline_mode = #tpu.pipeline_mode<synchronous>, transform_indices = @transform_3, window_bounds = array<i64: 9, 4, 4>}, {transform_indices = @transform_4, window_bounds = array<i64: 1, 16, 16, 4>}]} {
    %cst = arith.constant 0.000000e+00 : f32
    %0 = vector.broadcast %cst : f32 to vector<1x1x24x4xf32>
    %c0 = arith.constant 0 : index
    %c0_0 = arith.constant 0 : index
    %c0_1 = arith.constant 0 : index
    %c0_2 = arith.constant 0 : index
    %1 = vector.load %arg6[%c0, %c0_0, %c0_1, %c0_2] : memref<1x18x24x4xf32, #tpu.memory_space<vmem>>, vector<1x1x24x4xf32>
    tpu.vector_store %arg6[%c0, %c0_0, %c0_1, %c0_2], %0 {strides = array<i32>} : memref<1x18x24x4xf32, #tpu.memory_space<vmem>>, vector<1x1x24x4xf32>,
    %cst_3 = arith.constant 0.000000e+00 : f32
    %2 = vector.broadcast %cst_3 : f32 to vector<1x1x24x4xf32>
    %c0_4 = arith.constant 0 : index
    %c17 = arith.constant 17 : index
    %c0_5 = arith.constant 0 : index
    %c0_6 = arith.constant 0 : index
    %3 = vector.load %arg6[%c0_4, %c17, %c0_5, %c0_6] : memref<1x18x24x4xf32, #tpu.memory_space<vmem>>, vector<1x1x24x4xf32>
    tpu.vector_store %arg6[%c0_4, %c17, %c0_5, %c0_6], %2 {strides = array<i32>} : memref<1x18x24x4xf32, #tpu.memory_space<vmem>>, vector<1x1x24x4xf32>,
    %cst_7 = arith.constant 0.000000e+00 : f32
    %4 = vector.broadcast %cst_7 : f32 to vector<1x18x1x4xf32>
    %c0_8 = arith.constant 0 : index
    %c0_9 = arith.constant 0 : index
    %c0_10 = arith.constant 0 : index
    %c0_11 = arith.constant 0 : index
    %5 = vector.load %arg6[%c0_8, %c0_9, %c0_10, %c0_11] : memref<1x18x24x4xf32, #tpu.memory_space<vmem>>, vector<1x18x1x4xf32>
    tpu.vector_store %arg6[%c0_8, %c0_9, %c0_10, %c0_11], %4 {strides = array<i32>} : memref<1x18x24x4xf32, #tpu.memory_space<vmem>>, vector<1x18x1x4xf32>,
    %cst_12 = arith.constant 0.000000e+00 : f32
    %6 = vector.broadcast %cst_12 : f32 to vector<1x18x7x4xf32>
    %c0_13 = arith.constant 0 : index
    %c0_14 = arith.constant 0 : index
    %c17_15 = arith.constant 17 : index
    %c0_16 = arith.constant 0 : index
    %7 = vector.load %arg6[%c0_13, %c0_14, %c17_15, %c0_16] : memref<1x18x24x4xf32, #tpu.memory_space<vmem>>, vector<1x18x7x4xf32>
    tpu.vector_store %arg6[%c0_13, %c0_14, %c17_15, %c0_16], %6 {strides = array<i32>} : memref<1x18x24x4xf32, #tpu.memory_space<vmem>>, vector<1x18x7x4xf32>,
    %c0_17 = arith.constant 0 : index
    %c0_18 = arith.constant 0 : index
    %c0_19 = arith.constant 0 : index
    %c0_20 = arith.constant 0 : index
    %8 = vector.load %arg1[%c0_17, %c0_18, %c0_19, %c0_20] : memref<1x16x16x4xf32, #tpu.memory_space<vmem>>, vector<1x16x16x4xf32>
    %c0_21 = arith.constant 0 : index
    %c0_22 = arith.constant 0 : index
    %c0_23 = arith.constant 0 : index
    %c0_24 = arith.constant 0 : index
    %9 = vector.load %arg2[%c0_21, %c0_22, %c0_23, %c0_24] : memref<1x1x1x4xf32, #tpu.memory_space<vmem>>, vector<1x1x1x4xf32>
    %10 = vector.broadcast %9 : vector<1x1x1x4xf32> to vector<1x16x16x4xf32>
    %11 = arith.mulf %8, %10 : vector<1x16x16x4xf32>
    %c0_25 = arith.constant 0 : index
    %c0_26 = arith.constant 0 : index
    %c0_27 = arith.constant 0 : index
    %c0_28 = arith.constant 0 : index
    %12 = vector.load %arg3[%c0_25, %c0_26, %c0_27, %c0_28] : memref<1x1x1x4xf32, #tpu.memory_space<vmem>>, vector<1x1x1x4xf32>
    %13 = vector.broadcast %12 : vector<1x1x1x4xf32> to vector<1x16x16x4xf32>
    %14 = arith.addf %11, %13 : vector<1x16x16x4xf32>
    %c0_29 = arith.constant 0 : index
    %c1 = arith.constant 1 : index
    %c1_30 = arith.constant 1 : index
    %c0_31 = arith.constant 0 : index
    %15 = vector.load %arg6[%c0_29, %c1, %c1_30, %c0_31] : memref<1x18x24x4xf32, #tpu.memory_space<vmem>>, vector<1x16x16x4xf32>
    tpu.vector_store %arg6[%c0_29, %c1, %c1_30, %c0_31], %14 {strides = array<i32>} : memref<1x18x24x4xf32, #tpu.memory_space<vmem>>, vector<1x16x16x4xf32>,
    %cst_32 = arith.constant 0.000000e+00 : f32
    %16 = vector.broadcast %cst_32 : f32 to vector<256x4xf32>
    %c0_33 = arith.constant 0 : index
    %c0_34 = arith.constant 0 : index
    %c0_35 = arith.constant 0 : index
    %c0_36 = arith.constant 0 : index
    %17 = vector.load %arg6[%c0_33, %c0_34, %c0_35, %c0_36] : memref<1x18x24x4xf32, #tpu.memory_space<vmem>>, vector<1x16x16x4xf32>
    %18 = vector.shape_cast %17 : vector<1x16x16x4xf32> to vector<256x4xf32>
    %19 = arith.truncf %18 : vector<256x4xf32> to vector<256x4xbf16>
    %c0_37 = arith.constant 0 : index
    %c0_38 = arith.constant 0 : index
    %c0_39 = arith.constant 0 : index
    %20 = vector.load %arg4[%c0_37, %c0_38, %c0_39] : memref<9x4x4xbf16, #tpu.memory_space<vmem>>, vector<1x4x4xbf16>
    %21 = vector.shape_cast %20 : vector<1x4x4xbf16> to vector<4x4xbf16>
    %cst_40 = arith.constant dense<0.000000e+00> : vector<256x4xf32>
    %22 = tpu.matmul %19, %21, %cst_40 {dimension_numbers = #tpu.dot_dimension_numbers<[1], [0], [0], [1], [0, 0, 1, 1], [], []>} : vector<256x4xbf16>, vector<4x4xbf16>, vector<256x4xf32> -> vector<256x4xf32>
    %23 = arith.addf %16, %22 : vector<256x4xf32>
    %c0_41 = arith.constant 0 : index
    %c0_42 = arith.constant 0 : index
    %c1_43 = arith.constant 1 : index
    %c0_44 = arith.constant 0 : index
    %24 = vector.load %arg6[%c0_41, %c0_42, %c1_43, %c0_44] : memref<1x18x24x4xf32, #tpu.memory_space<vmem>>, vector<1x16x16x4xf32>
    %25 = vector.shape_cast %24 : vector<1x16x16x4xf32> to vector<256x4xf32>
    %26 = arith.truncf %25 : vector<256x4xf32> to vector<256x4xbf16>
    %c1_45 = arith.constant 1 : index
    %c0_46 = arith.constant 0 : index
    %c0_47 = arith.constant 0 : index
    %27 = vector.load %arg4[%c1_45, %c0_46, %c0_47] : memref<9x4x4xbf16, #tpu.memory_space<vmem>>, vector<1x4x4xbf16>
    %28 = vector.shape_cast %27 : vector<1x4x4xbf16> to vector<4x4xbf16>
    %cst_48 = arith.constant dense<0.000000e+00> : vector<256x4xf32>
    %29 = tpu.matmul %26, %28, %cst_48 {dimension_numbers = #tpu.dot_dimension_numbers<[1], [0], [0], [1], [0, 0, 1, 1], [], []>} : vector<256x4xbf16>, vector<4x4xbf16>, vector<256x4xf32> -> vector<256x4xf32>
    %30 = arith.addf %23, %29 : vector<256x4xf32>
    %c0_49 = arith.constant 0 : index
    %c0_50 = arith.constant 0 : index
    %c2 = arith.constant 2 : index
    %c0_51 = arith.constant 0 : index
    %31 = vector.load %arg6[%c0_49, %c0_50, %c2, %c0_51] : memref<1x18x24x4xf32, #tpu.memory_space<vmem>>, vector<1x16x16x4xf32>
    %32 = vector.shape_cast %31 : vector<1x16x16x4xf32> to vector<256x4xf32>
    %33 = arith.truncf %32 : vector<256x4xf32> to vector<256x4xbf16>
    %c2_52 = arith.constant 2 : index
    %c0_53 = arith.constant 0 : index
    %c0_54 = arith.constant 0 : index
    %34 = vector.load %arg4[%c2_52, %c0_53, %c0_54] : memref<9x4x4xbf16, #tpu.memory_space<vmem>>, vector<1x4x4xbf16>
    %35 = vector.shape_cast %34 : vector<1x4x4xbf16> to vector<4x4xbf16>
    %cst_55 = arith.constant dense<0.000000e+00> : vector<256x4xf32>
    %36 = tpu.matmul %33, %35, %cst_55 {dimension_numbers = #tpu.dot_dimension_numbers<[1], [0], [0], [1], [0, 0, 1, 1], [], []>} : vector<256x4xbf16>, vector<4x4xbf16>, vector<256x4xf32> -> vector<256x4xf32>
    %37 = arith.addf %30, %36 : vector<256x4xf32>
    %c0_56 = arith.constant 0 : index
    %c1_57 = arith.constant 1 : index
    %c0_58 = arith.constant 0 : index
    %c0_59 = arith.constant 0 : index
    %38 = vector.load %arg6[%c0_56, %c1_57, %c0_58, %c0_59] : memref<1x18x24x4xf32, #tpu.memory_space<vmem>>, vector<1x16x16x4xf32>
    %39 = vector.shape_cast %38 : vector<1x16x16x4xf32> to vector<256x4xf32>
    %40 = arith.truncf %39 : vector<256x4xf32> to vector<256x4xbf16>
    %c3 = arith.constant 3 : index
    %c0_60 = arith.constant 0 : index
    %c0_61 = arith.constant 0 : index
    %41 = vector.load %arg4[%c3, %c0_60, %c0_61] : memref<9x4x4xbf16, #tpu.memory_space<vmem>>, vector<1x4x4xbf16>
    %42 = vector.shape_cast %41 : vector<1x4x4xbf16> to vector<4x4xbf16>
    %cst_62 = arith.constant dense<0.000000e+00> : vector<256x4xf32>
    %43 = tpu.matmul %40, %42, %cst_62 {dimension_numbers = #tpu.dot_dimension_numbers<[1], [0], [0], [1], [0, 0, 1, 1], [], []>} : vector<256x4xbf16>, vector<4x4xbf16>, vector<256x4xf32> -> vector<256x4xf32>
    %44 = arith.addf %37, %43 : vector<256x4xf32>
    %c0_63 = arith.constant 0 : index
    %c1_64 = arith.constant 1 : index
    %c1_65 = arith.constant 1 : index
    %c0_66 = arith.constant 0 : index
    %45 = vector.load %arg6[%c0_63, %c1_64, %c1_65, %c0_66] : memref<1x18x24x4xf32, #tpu.memory_space<vmem>>, vector<1x16x16x4xf32>
    %46 = vector.shape_cast %45 : vector<1x16x16x4xf32> to vector<256x4xf32>
    %47 = arith.truncf %46 : vector<256x4xf32> to vector<256x4xbf16>
    %c4 = arith.constant 4 : index
    %c0_67 = arith.constant 0 : index
    %c0_68 = arith.constant 0 : index
    %48 = vector.load %arg4[%c4, %c0_67, %c0_68] : memref<9x4x4xbf16, #tpu.memory_space<vmem>>, vector<1x4x4xbf16>
    %49 = vector.shape_cast %48 : vector<1x4x4xbf16> to vector<4x4xbf16>
    %cst_69 = arith.constant dense<0.000000e+00> : vector<256x4xf32>
    %50 = tpu.matmul %47, %49, %cst_69 {dimension_numbers = #tpu.dot_dimension_numbers<[1], [0], [0], [1], [0, 0, 1, 1], [], []>} : vector<256x4xbf16>, vector<4x4xbf16>, vector<256x4xf32> -> vector<256x4xf32>
    %51 = arith.addf %44, %50 : vector<256x4xf32>
    %c0_70 = arith.constant 0 : index
    %c1_71 = arith.constant 1 : index
    %c2_72 = arith.constant 2 : index
    %c0_73 = arith.constant 0 : index
    %52 = vector.load %arg6[%c0_70, %c1_71, %c2_72, %c0_73] : memref<1x18x24x4xf32, #tpu.memory_space<vmem>>, vector<1x16x16x4xf32>
    %53 = vector.shape_cast %52 : vector<1x16x16x4xf32> to vector<256x4xf32>
    %54 = arith.truncf %53 : vector<256x4xf32> to vector<256x4xbf16>
    %c5 = arith.constant 5 : index
    %c0_74 = arith.constant 0 : index
    %c0_75 = arith.constant 0 : index
    %55 = vector.load %arg4[%c5, %c0_74, %c0_75] : memref<9x4x4xbf16, #tpu.memory_space<vmem>>, vector<1x4x4xbf16>
    %56 = vector.shape_cast %55 : vector<1x4x4xbf16> to vector<4x4xbf16>
    %cst_76 = arith.constant dense<0.000000e+00> : vector<256x4xf32>
    %57 = tpu.matmul %54, %56, %cst_76 {dimension_numbers = #tpu.dot_dimension_numbers<[1], [0], [0], [1], [0, 0, 1, 1], [], []>} : vector<256x4xbf16>, vector<4x4xbf16>, vector<256x4xf32> -> vector<256x4xf32>
    %58 = arith.addf %51, %57 : vector<256x4xf32>
    %c0_77 = arith.constant 0 : index
    %c2_78 = arith.constant 2 : index
    %c0_79 = arith.constant 0 : index
    %c0_80 = arith.constant 0 : index
    %59 = vector.load %arg6[%c0_77, %c2_78, %c0_79, %c0_80] : memref<1x18x24x4xf32, #tpu.memory_space<vmem>>, vector<1x16x16x4xf32>
    %60 = vector.shape_cast %59 : vector<1x16x16x4xf32> to vector<256x4xf32>
    %61 = arith.truncf %60 : vector<256x4xf32> to vector<256x4xbf16>
    %c6 = arith.constant 6 : index
    %c0_81 = arith.constant 0 : index
    %c0_82 = arith.constant 0 : index
    %62 = vector.load %arg4[%c6, %c0_81, %c0_82] : memref<9x4x4xbf16, #tpu.memory_space<vmem>>, vector<1x4x4xbf16>
    %63 = vector.shape_cast %62 : vector<1x4x4xbf16> to vector<4x4xbf16>
    %cst_83 = arith.constant dense<0.000000e+00> : vector<256x4xf32>
    %64 = tpu.matmul %61, %63, %cst_83 {dimension_numbers = #tpu.dot_dimension_numbers<[1], [0], [0], [1], [0, 0, 1, 1], [], []>} : vector<256x4xbf16>, vector<4x4xbf16>, vector<256x4xf32> -> vector<256x4xf32>
    %65 = arith.addf %58, %64 : vector<256x4xf32>
    %c0_84 = arith.constant 0 : index
    %c2_85 = arith.constant 2 : index
    %c1_86 = arith.constant 1 : index
    %c0_87 = arith.constant 0 : index
    %66 = vector.load %arg6[%c0_84, %c2_85, %c1_86, %c0_87] : memref<1x18x24x4xf32, #tpu.memory_space<vmem>>, vector<1x16x16x4xf32>
    %67 = vector.shape_cast %66 : vector<1x16x16x4xf32> to vector<256x4xf32>
    %68 = arith.truncf %67 : vector<256x4xf32> to vector<256x4xbf16>
    %c7 = arith.constant 7 : index
    %c0_88 = arith.constant 0 : index
    %c0_89 = arith.constant 0 : index
    %69 = vector.load %arg4[%c7, %c0_88, %c0_89] : memref<9x4x4xbf16, #tpu.memory_space<vmem>>, vector<1x4x4xbf16>
    %70 = vector.shape_cast %69 : vector<1x4x4xbf16> to vector<4x4xbf16>
    %cst_90 = arith.constant dense<0.000000e+00> : vector<256x4xf32>
    %71 = tpu.matmul %68, %70, %cst_90 {dimension_numbers = #tpu.dot_dimension_numbers<[1], [0], [0], [1], [0, 0, 1, 1], [], []>} : vector<256x4xbf16>, vector<4x4xbf16>, vector<256x4xf32> -> vector<256x4xf32>
    %72 = arith.addf %65, %71 : vector<256x4xf32>
    %c0_91 = arith.constant 0 : index
    %c2_92 = arith.constant 2 : index
    %c2_93 = arith.constant 2 : index
    %c0_94 = arith.constant 0 : index
    %73 = vector.load %arg6[%c0_91, %c2_92, %c2_93, %c0_94] : memref<1x18x24x4xf32, #tpu.memory_space<vmem>>, vector<1x16x16x4xf32>
    %74 = vector.shape_cast %73 : vector<1x16x16x4xf32> to vector<256x4xf32>
    %75 = arith.truncf %74 : vector<256x4xf32> to vector<256x4xbf16>
    %c8 = arith.constant 8 : index
    %c0_95 = arith.constant 0 : index
    %c0_96 = arith.constant 0 : index
    %76 = vector.load %arg4[%c8, %c0_95, %c0_96] : memref<9x4x4xbf16, #tpu.memory_space<vmem>>, vector<1x4x4xbf16>
    %77 = vector.shape_cast %76 : vector<1x4x4xbf16> to vector<4x4xbf16>
    %cst_97 = arith.constant dense<0.000000e+00> : vector<256x4xf32>
    %78 = tpu.matmul %75, %77, %cst_97 {dimension_numbers = #tpu.dot_dimension_numbers<[1], [0], [0], [1], [0, 0, 1, 1], [], []>} : vector<256x4xbf16>, vector<4x4xbf16>, vector<256x4xf32> -> vector<256x4xf32>
    %79 = arith.addf %72, %78 : vector<256x4xf32>
    %cst_98 = arith.constant 0.000000e+00 : f32
    %80 = vector.broadcast %cst_98 : f32 to vector<256x4xf32>
    %81 = arith.maximumf %79, %80 : vector<256x4xf32>
    %82 = vector.shape_cast %81 : vector<256x4xf32> to vector<1x16x16x4xf32>
    %c0_99 = arith.constant 0 : index
    %c0_100 = arith.constant 0 : index
    %c0_101 = arith.constant 0 : index
    %c0_102 = arith.constant 0 : index
    %83 = vector.load %arg5[%c0_99, %c0_100, %c0_101, %c0_102] : memref<1x16x16x4xf32, #tpu.memory_space<vmem>>, vector<1x16x16x4xf32>
    tpu.vector_store %arg5[%c0_99, %c0_100, %c0_101, %c0_102], %82 {strides = array<i32>} : memref<1x16x16x4xf32, #tpu.memory_space<vmem>>, vector<1x16x16x4xf32>,
    return
  }
  func.func @transform_0(%arg0: i32) -> (i32, i32, i32, i32) {
    %c0_i32 = arith.constant 0 : i32
    %c0_i32_0 = arith.constant 0 : i32
    %c0_i32_1 = arith.constant 0 : i32
    %c0_i32_2 = arith.constant 0 : i32
    return %arg0, %c0_i32, %c0_i32_0, %c0_i32_1 : i32, i32, i32, i32
  }
  func.func @transform_1(%arg0: i32) -> (i32, i32, i32, i32) {
    %c0_i32 = arith.constant 0 : i32
    %c0_i32_0 = arith.constant 0 : i32
    %c0_i32_1 = arith.constant 0 : i32
    %c0_i32_2 = arith.constant 0 : i32
    %c0_i32_3 = arith.constant 0 : i32
    return %c0_i32, %c0_i32_0, %c0_i32_1, %c0_i32_2 : i32, i32, i32, i32
  }
  func.func @transform_2(%arg0: i32) -> (i32, i32, i32, i32) {
    %c0_i32 = arith.constant 0 : i32
    %c0_i32_0 = arith.constant 0 : i32
    %c0_i32_1 = arith.constant 0 : i32
    %c0_i32_2 = arith.constant 0 : i32
    %c0_i32_3 = arith.constant 0 : i32
    return %c0_i32, %c0_i32_0, %c0_i32_1, %c0_i32_2 : i32, i32, i32, i32
  }
  func.func @transform_3(%arg0: i32) -> (i32, i32, i32) {
    %c0_i32 = arith.constant 0 : i32
    %c0_i32_0 = arith.constant 0 : i32
    %c0_i32_1 = arith.constant 0 : i32
    %c0_i32_2 = arith.constant 0 : i32
    return %c0_i32, %c0_i32_0, %c0_i32_1 : i32, i32, i32
  }
  func.func @transform_4(%arg0: i32) -> (i32, i32, i32, i32) {
    %c0_i32 = arith.constant 0 : i32
    %c0_i32_0 = arith.constant 0 : i32
    %c0_i32_1 = arith.constant 0 : i32
    %c0_i32_2 = arith.constant 0 : i32
    return %arg0, %c0_i32, %c0_i32_0, %c0_i32_1 : i32, i32, i32, i32
  }
}

module attributes {stable_mosaic.version = 11 : i64} {
  func.func @_bn_conv_relu_add_kernel(%arg0: i32, %arg1: memref<1x16x16x4xf32, #tpu.memory_space<vmem>>, %arg2: memref<1x1x1x4xf32, #tpu.memory_space<vmem>>, %arg3: memref<1x1x1x4xf32, #tpu.memory_space<vmem>>, %arg4: memref<9x4x4xbf16, #tpu.memory_space<vmem>>, %arg5: memref<1x16x16x4xf32, #tpu.memory_space<vmem>>, %arg6: memref<1x16x16x4xf32, #tpu.memory_space<vmem>>, %arg7: memref<1x18x24x4xf32, #tpu.memory_space<vmem>>) attributes {dimension_semantics = [#tpu.dimension_semantics<parallel>], iteration_bounds = array<i64: 2>, scalar_prefetch = 0 : i64, scratch_operands = 1 : i64, tpu.core_type = #tpu.core_type<tc>, window_params = [{transform_indices = @transform_0, window_bounds = array<i64: 1, 16, 16, 4>}, {pipeline_mode = #tpu.pipeline_mode<synchronous>, transform_indices = @transform_1, window_bounds = array<i64: 1, 1, 1, 4>}, {pipeline_mode = #tpu.pipeline_mode<synchronous>, transform_indices = @transform_2, window_bounds = array<i64: 1, 1, 1, 4>}, {pipeline_mode = #tpu.pipeline_mode<synchronous>, transform_indices = @transform_3, window_bounds = array<i64: 9, 4, 4>}, {transform_indices = @transform_4, window_bounds = array<i64: 1, 16, 16, 4>}, {transform_indices = @transform_5, window_bounds = array<i64: 1, 16, 16, 4>}]} {
    %cst = arith.constant 0.000000e+00 : f32
    %0 = vector.broadcast %cst : f32 to vector<1x1x24x4xf32>
    %c0 = arith.constant 0 : index
    %c0_0 = arith.constant 0 : index
    %c0_1 = arith.constant 0 : index
    %c0_2 = arith.constant 0 : index
    %1 = vector.load %arg7[%c0, %c0_0, %c0_1, %c0_2] : memref<1x18x24x4xf32, #tpu.memory_space<vmem>>, vector<1x1x24x4xf32>
    tpu.vector_store %arg7[%c0, %c0_0, %c0_1, %c0_2], %0 {strides = array<i32>} : memref<1x18x24x4xf32, #tpu.memory_space<vmem>>, vector<1x1x24x4xf32>,
    %cst_3 = arith.constant 0.000000e+00 : f32
    %2 = vector.broadcast %cst_3 : f32 to vector<1x1x24x4xf32>
    %c0_4 = arith.constant 0 : index
    %c17 = arith.constant 17 : index
    %c0_5 = arith.constant 0 : index
    %c0_6 = arith.constant 0 : index
    %3 = vector.load %arg7[%c0_4, %c17, %c0_5, %c0_6] : memref<1x18x24x4xf32, #tpu.memory_space<vmem>>, vector<1x1x24x4xf32>
    tpu.vector_store %arg7[%c0_4, %c17, %c0_5, %c0_6], %2 {strides = array<i32>} : memref<1x18x24x4xf32, #tpu.memory_space<vmem>>, vector<1x1x24x4xf32>,
    %cst_7 = arith.constant 0.000000e+00 : f32
    %4 = vector.broadcast %cst_7 : f32 to vector<1x18x1x4xf32>
    %c0_8 = arith.constant 0 : index
    %c0_9 = arith.constant 0 : index
    %c0_10 = arith.constant 0 : index
    %c0_11 = arith.constant 0 : index
    %5 = vector.load %arg7[%c0_8, %c0_9, %c0_10, %c0_11] : memref<1x18x24x4xf32, #tpu.memory_space<vmem>>, vector<1x18x1x4xf32>
    tpu.vector_store %arg7[%c0_8, %c0_9, %c0_10, %c0_11], %4 {strides = array<i32>} : memref<1x18x24x4xf32, #tpu.memory_space<vmem>>, vector<1x18x1x4xf32>,
    %cst_12 = arith.constant 0.000000e+00 : f32
    %6 = vector.broadcast %cst_12 : f32 to vector<1x18x7x4xf32>
    %c0_13 = arith.constant 0 : index
    %c0_14 = arith.constant 0 : index
    %c17_15 = arith.constant 17 : index
    %c0_16 = arith.constant 0 : index
    %7 = vector.load %arg7[%c0_13, %c0_14, %c17_15, %c0_16] : memref<1x18x24x4xf32, #tpu.memory_space<vmem>>, vector<1x18x7x4xf32>
    tpu.vector_store %arg7[%c0_13, %c0_14, %c17_15, %c0_16], %6 {strides = array<i32>} : memref<1x18x24x4xf32, #tpu.memory_space<vmem>>, vector<1x18x7x4xf32>,
    %c0_17 = arith.constant 0 : index
    %c0_18 = arith.constant 0 : index
    %c0_19 = arith.constant 0 : index
    %c0_20 = arith.constant 0 : index
    %8 = vector.load %arg1[%c0_17, %c0_18, %c0_19, %c0_20] : memref<1x16x16x4xf32, #tpu.memory_space<vmem>>, vector<1x16x16x4xf32>
    %c0_21 = arith.constant 0 : index
    %c0_22 = arith.constant 0 : index
    %c0_23 = arith.constant 0 : index
    %c0_24 = arith.constant 0 : index
    %9 = vector.load %arg2[%c0_21, %c0_22, %c0_23, %c0_24] : memref<1x1x1x4xf32, #tpu.memory_space<vmem>>, vector<1x1x1x4xf32>
    %10 = vector.broadcast %9 : vector<1x1x1x4xf32> to vector<1x16x16x4xf32>
    %11 = arith.mulf %8, %10 : vector<1x16x16x4xf32>
    %c0_25 = arith.constant 0 : index
    %c0_26 = arith.constant 0 : index
    %c0_27 = arith.constant 0 : index
    %c0_28 = arith.constant 0 : index
    %12 = vector.load %arg3[%c0_25, %c0_26, %c0_27, %c0_28] : memref<1x1x1x4xf32, #tpu.memory_space<vmem>>, vector<1x1x1x4xf32>
    %13 = vector.broadcast %12 : vector<1x1x1x4xf32> to vector<1x16x16x4xf32>
    %14 = arith.addf %11, %13 : vector<1x16x16x4xf32>
    %c0_29 = arith.constant 0 : index
    %c1 = arith.constant 1 : index
    %c1_30 = arith.constant 1 : index
    %c0_31 = arith.constant 0 : index
    %15 = vector.load %arg7[%c0_29, %c1, %c1_30, %c0_31] : memref<1x18x24x4xf32, #tpu.memory_space<vmem>>, vector<1x16x16x4xf32>
    tpu.vector_store %arg7[%c0_29, %c1, %c1_30, %c0_31], %14 {strides = array<i32>} : memref<1x18x24x4xf32, #tpu.memory_space<vmem>>, vector<1x16x16x4xf32>,
    %cst_32 = arith.constant 0.000000e+00 : f32
    %16 = vector.broadcast %cst_32 : f32 to vector<256x4xf32>
    %c0_33 = arith.constant 0 : index
    %c0_34 = arith.constant 0 : index
    %c0_35 = arith.constant 0 : index
    %c0_36 = arith.constant 0 : index
    %17 = vector.load %arg7[%c0_33, %c0_34, %c0_35, %c0_36] : memref<1x18x24x4xf32, #tpu.memory_space<vmem>>, vector<1x16x16x4xf32>
    %18 = vector.shape_cast %17 : vector<1x16x16x4xf32> to vector<256x4xf32>
    %19 = arith.truncf %18 : vector<256x4xf32> to vector<256x4xbf16>
    %c0_37 = arith.constant 0 : index
    %c0_38 = arith.constant 0 : index
    %c0_39 = arith.constant 0 : index
    %20 = vector.load %arg4[%c0_37, %c0_38, %c0_39] : memref<9x4x4xbf16, #tpu.memory_space<vmem>>, vector<1x4x4xbf16>
    %21 = vector.shape_cast %20 : vector<1x4x4xbf16> to vector<4x4xbf16>
    %cst_40 = arith.constant dense<0.000000e+00> : vector<256x4xf32>
    %22 = tpu.matmul %19, %21, %cst_40 {dimension_numbers = #tpu.dot_dimension_numbers<[1], [0], [0], [1], [0, 0, 1, 1], [], []>} : vector<256x4xbf16>, vector<4x4xbf16>, vector<256x4xf32> -> vector<256x4xf32>
    %23 = arith.addf %16, %22 : vector<256x4xf32>
    %c0_41 = arith.constant 0 : index
    %c0_42 = arith.constant 0 : index
    %c1_43 = arith.constant 1 : index
    %c0_44 = arith.constant 0 : index
    %24 = vector.load %arg7[%c0_41, %c0_42, %c1_43, %c0_44] : memref<1x18x24x4xf32, #tpu.memory_space<vmem>>, vector<1x16x16x4xf32>
    %25 = vector.shape_cast %24 : vector<1x16x16x4xf32> to vector<256x4xf32>
    %26 = arith.truncf %25 : vector<256x4xf32> to vector<256x4xbf16>
    %c1_45 = arith.constant 1 : index
    %c0_46 = arith.constant 0 : index
    %c0_47 = arith.constant 0 : index
    %27 = vector.load %arg4[%c1_45, %c0_46, %c0_47] : memref<9x4x4xbf16, #tpu.memory_space<vmem>>, vector<1x4x4xbf16>
    %28 = vector.shape_cast %27 : vector<1x4x4xbf16> to vector<4x4xbf16>
    %cst_48 = arith.constant dense<0.000000e+00> : vector<256x4xf32>
    %29 = tpu.matmul %26, %28, %cst_48 {dimension_numbers = #tpu.dot_dimension_numbers<[1], [0], [0], [1], [0, 0, 1, 1], [], []>} : vector<256x4xbf16>, vector<4x4xbf16>, vector<256x4xf32> -> vector<256x4xf32>
    %30 = arith.addf %23, %29 : vector<256x4xf32>
    %c0_49 = arith.constant 0 : index
    %c0_50 = arith.constant 0 : index
    %c2 = arith.constant 2 : index
    %c0_51 = arith.constant 0 : index
    %31 = vector.load %arg7[%c0_49, %c0_50, %c2, %c0_51] : memref<1x18x24x4xf32, #tpu.memory_space<vmem>>, vector<1x16x16x4xf32>
    %32 = vector.shape_cast %31 : vector<1x16x16x4xf32> to vector<256x4xf32>
    %33 = arith.truncf %32 : vector<256x4xf32> to vector<256x4xbf16>
    %c2_52 = arith.constant 2 : index
    %c0_53 = arith.constant 0 : index
    %c0_54 = arith.constant 0 : index
    %34 = vector.load %arg4[%c2_52, %c0_53, %c0_54] : memref<9x4x4xbf16, #tpu.memory_space<vmem>>, vector<1x4x4xbf16>
    %35 = vector.shape_cast %34 : vector<1x4x4xbf16> to vector<4x4xbf16>
    %cst_55 = arith.constant dense<0.000000e+00> : vector<256x4xf32>
    %36 = tpu.matmul %33, %35, %cst_55 {dimension_numbers = #tpu.dot_dimension_numbers<[1], [0], [0], [1], [0, 0, 1, 1], [], []>} : vector<256x4xbf16>, vector<4x4xbf16>, vector<256x4xf32> -> vector<256x4xf32>
    %37 = arith.addf %30, %36 : vector<256x4xf32>
    %c0_56 = arith.constant 0 : index
    %c1_57 = arith.constant 1 : index
    %c0_58 = arith.constant 0 : index
    %c0_59 = arith.constant 0 : index
    %38 = vector.load %arg7[%c0_56, %c1_57, %c0_58, %c0_59] : memref<1x18x24x4xf32, #tpu.memory_space<vmem>>, vector<1x16x16x4xf32>
    %39 = vector.shape_cast %38 : vector<1x16x16x4xf32> to vector<256x4xf32>
    %40 = arith.truncf %39 : vector<256x4xf32> to vector<256x4xbf16>
    %c3 = arith.constant 3 : index
    %c0_60 = arith.constant 0 : index
    %c0_61 = arith.constant 0 : index
    %41 = vector.load %arg4[%c3, %c0_60, %c0_61] : memref<9x4x4xbf16, #tpu.memory_space<vmem>>, vector<1x4x4xbf16>
    %42 = vector.shape_cast %41 : vector<1x4x4xbf16> to vector<4x4xbf16>
    %cst_62 = arith.constant dense<0.000000e+00> : vector<256x4xf32>
    %43 = tpu.matmul %40, %42, %cst_62 {dimension_numbers = #tpu.dot_dimension_numbers<[1], [0], [0], [1], [0, 0, 1, 1], [], []>} : vector<256x4xbf16>, vector<4x4xbf16>, vector<256x4xf32> -> vector<256x4xf32>
    %44 = arith.addf %37, %43 : vector<256x4xf32>
    %c0_63 = arith.constant 0 : index
    %c1_64 = arith.constant 1 : index
    %c1_65 = arith.constant 1 : index
    %c0_66 = arith.constant 0 : index
    %45 = vector.load %arg7[%c0_63, %c1_64, %c1_65, %c0_66] : memref<1x18x24x4xf32, #tpu.memory_space<vmem>>, vector<1x16x16x4xf32>
    %46 = vector.shape_cast %45 : vector<1x16x16x4xf32> to vector<256x4xf32>
    %47 = arith.truncf %46 : vector<256x4xf32> to vector<256x4xbf16>
    %c4 = arith.constant 4 : index
    %c0_67 = arith.constant 0 : index
    %c0_68 = arith.constant 0 : index
    %48 = vector.load %arg4[%c4, %c0_67, %c0_68] : memref<9x4x4xbf16, #tpu.memory_space<vmem>>, vector<1x4x4xbf16>
    %49 = vector.shape_cast %48 : vector<1x4x4xbf16> to vector<4x4xbf16>
    %cst_69 = arith.constant dense<0.000000e+00> : vector<256x4xf32>
    %50 = tpu.matmul %47, %49, %cst_69 {dimension_numbers = #tpu.dot_dimension_numbers<[1], [0], [0], [1], [0, 0, 1, 1], [], []>} : vector<256x4xbf16>, vector<4x4xbf16>, vector<256x4xf32> -> vector<256x4xf32>
    %51 = arith.addf %44, %50 : vector<256x4xf32>
    %c0_70 = arith.constant 0 : index
    %c1_71 = arith.constant 1 : index
    %c2_72 = arith.constant 2 : index
    %c0_73 = arith.constant 0 : index
    %52 = vector.load %arg7[%c0_70, %c1_71, %c2_72, %c0_73] : memref<1x18x24x4xf32, #tpu.memory_space<vmem>>, vector<1x16x16x4xf32>
    %53 = vector.shape_cast %52 : vector<1x16x16x4xf32> to vector<256x4xf32>
    %54 = arith.truncf %53 : vector<256x4xf32> to vector<256x4xbf16>
    %c5 = arith.constant 5 : index
    %c0_74 = arith.constant 0 : index
    %c0_75 = arith.constant 0 : index
    %55 = vector.load %arg4[%c5, %c0_74, %c0_75] : memref<9x4x4xbf16, #tpu.memory_space<vmem>>, vector<1x4x4xbf16>
    %56 = vector.shape_cast %55 : vector<1x4x4xbf16> to vector<4x4xbf16>
    %cst_76 = arith.constant dense<0.000000e+00> : vector<256x4xf32>
    %57 = tpu.matmul %54, %56, %cst_76 {dimension_numbers = #tpu.dot_dimension_numbers<[1], [0], [0], [1], [0, 0, 1, 1], [], []>} : vector<256x4xbf16>, vector<4x4xbf16>, vector<256x4xf32> -> vector<256x4xf32>
    %58 = arith.addf %51, %57 : vector<256x4xf32>
    %c0_77 = arith.constant 0 : index
    %c2_78 = arith.constant 2 : index
    %c0_79 = arith.constant 0 : index
    %c0_80 = arith.constant 0 : index
    %59 = vector.load %arg7[%c0_77, %c2_78, %c0_79, %c0_80] : memref<1x18x24x4xf32, #tpu.memory_space<vmem>>, vector<1x16x16x4xf32>
    %60 = vector.shape_cast %59 : vector<1x16x16x4xf32> to vector<256x4xf32>
    %61 = arith.truncf %60 : vector<256x4xf32> to vector<256x4xbf16>
    %c6 = arith.constant 6 : index
    %c0_81 = arith.constant 0 : index
    %c0_82 = arith.constant 0 : index
    %62 = vector.load %arg4[%c6, %c0_81, %c0_82] : memref<9x4x4xbf16, #tpu.memory_space<vmem>>, vector<1x4x4xbf16>
    %63 = vector.shape_cast %62 : vector<1x4x4xbf16> to vector<4x4xbf16>
    %cst_83 = arith.constant dense<0.000000e+00> : vector<256x4xf32>
    %64 = tpu.matmul %61, %63, %cst_83 {dimension_numbers = #tpu.dot_dimension_numbers<[1], [0], [0], [1], [0, 0, 1, 1], [], []>} : vector<256x4xbf16>, vector<4x4xbf16>, vector<256x4xf32> -> vector<256x4xf32>
    %65 = arith.addf %58, %64 : vector<256x4xf32>
    %c0_84 = arith.constant 0 : index
    %c2_85 = arith.constant 2 : index
    %c1_86 = arith.constant 1 : index
    %c0_87 = arith.constant 0 : index
    %66 = vector.load %arg7[%c0_84, %c2_85, %c1_86, %c0_87] : memref<1x18x24x4xf32, #tpu.memory_space<vmem>>, vector<1x16x16x4xf32>
    %67 = vector.shape_cast %66 : vector<1x16x16x4xf32> to vector<256x4xf32>
    %68 = arith.truncf %67 : vector<256x4xf32> to vector<256x4xbf16>
    %c7 = arith.constant 7 : index
    %c0_88 = arith.constant 0 : index
    %c0_89 = arith.constant 0 : index
    %69 = vector.load %arg4[%c7, %c0_88, %c0_89] : memref<9x4x4xbf16, #tpu.memory_space<vmem>>, vector<1x4x4xbf16>
    %70 = vector.shape_cast %69 : vector<1x4x4xbf16> to vector<4x4xbf16>
    %cst_90 = arith.constant dense<0.000000e+00> : vector<256x4xf32>
    %71 = tpu.matmul %68, %70, %cst_90 {dimension_numbers = #tpu.dot_dimension_numbers<[1], [0], [0], [1], [0, 0, 1, 1], [], []>} : vector<256x4xbf16>, vector<4x4xbf16>, vector<256x4xf32> -> vector<256x4xf32>
    %72 = arith.addf %65, %71 : vector<256x4xf32>
    %c0_91 = arith.constant 0 : index
    %c2_92 = arith.constant 2 : index
    %c2_93 = arith.constant 2 : index
    %c0_94 = arith.constant 0 : index
    %73 = vector.load %arg7[%c0_91, %c2_92, %c2_93, %c0_94] : memref<1x18x24x4xf32, #tpu.memory_space<vmem>>, vector<1x16x16x4xf32>
    %74 = vector.shape_cast %73 : vector<1x16x16x4xf32> to vector<256x4xf32>
    %75 = arith.truncf %74 : vector<256x4xf32> to vector<256x4xbf16>
    %c8 = arith.constant 8 : index
    %c0_95 = arith.constant 0 : index
    %c0_96 = arith.constant 0 : index
    %76 = vector.load %arg4[%c8, %c0_95, %c0_96] : memref<9x4x4xbf16, #tpu.memory_space<vmem>>, vector<1x4x4xbf16>
    %77 = vector.shape_cast %76 : vector<1x4x4xbf16> to vector<4x4xbf16>
    %cst_97 = arith.constant dense<0.000000e+00> : vector<256x4xf32>
    %78 = tpu.matmul %75, %77, %cst_97 {dimension_numbers = #tpu.dot_dimension_numbers<[1], [0], [0], [1], [0, 0, 1, 1], [], []>} : vector<256x4xbf16>, vector<4x4xbf16>, vector<256x4xf32> -> vector<256x4xf32>
    %79 = arith.addf %72, %78 : vector<256x4xf32>
    %cst_98 = arith.constant 0.000000e+00 : f32
    %80 = vector.broadcast %cst_98 : f32 to vector<256x4xf32>
    %81 = arith.maximumf %79, %80 : vector<256x4xf32>
    %82 = vector.shape_cast %81 : vector<256x4xf32> to vector<1x16x16x4xf32>
    %c0_99 = arith.constant 0 : index
    %c0_100 = arith.constant 0 : index
    %c0_101 = arith.constant 0 : index
    %c0_102 = arith.constant 0 : index
    %83 = vector.load %arg5[%c0_99, %c0_100, %c0_101, %c0_102] : memref<1x16x16x4xf32, #tpu.memory_space<vmem>>, vector<1x16x16x4xf32>
    %84 = arith.addf %82, %83 : vector<1x16x16x4xf32>
    %c0_103 = arith.constant 0 : index
    %c0_104 = arith.constant 0 : index
    %c0_105 = arith.constant 0 : index
    %c0_106 = arith.constant 0 : index
    %85 = vector.load %arg6[%c0_103, %c0_104, %c0_105, %c0_106] : memref<1x16x16x4xf32, #tpu.memory_space<vmem>>, vector<1x16x16x4xf32>
    tpu.vector_store %arg6[%c0_103, %c0_104, %c0_105, %c0_106], %84 {strides = array<i32>} : memref<1x16x16x4xf32, #tpu.memory_space<vmem>>, vector<1x16x16x4xf32>,
    return
  }
  func.func @transform_0(%arg0: i32) -> (i32, i32, i32, i32) {
    %c0_i32 = arith.constant 0 : i32
    %c0_i32_0 = arith.constant 0 : i32
    %c0_i32_1 = arith.constant 0 : i32
    %c0_i32_2 = arith.constant 0 : i32
    return %arg0, %c0_i32, %c0_i32_0, %c0_i32_1 : i32, i32, i32, i32
  }
  func.func @transform_1(%arg0: i32) -> (i32, i32, i32, i32) {
    %c0_i32 = arith.constant 0 : i32
    %c0_i32_0 = arith.constant 0 : i32
    %c0_i32_1 = arith.constant 0 : i32
    %c0_i32_2 = arith.constant 0 : i32
    %c0_i32_3 = arith.constant 0 : i32
    return %c0_i32, %c0_i32_0, %c0_i32_1, %c0_i32_2 : i32, i32, i32, i32
  }
  func.func @transform_2(%arg0: i32) -> (i32, i32, i32, i32) {
    %c0_i32 = arith.constant 0 : i32
    %c0_i32_0 = arith.constant 0 : i32
    %c0_i32_1 = arith.constant 0 : i32
    %c0_i32_2 = arith.constant 0 : i32
    %c0_i32_3 = arith.constant 0 : i32
    return %c0_i32, %c0_i32_0, %c0_i32_1, %c0_i32_2 : i32, i32, i32, i32
  }
  func.func @transform_3(%arg0: i32) -> (i32, i32, i32) {
    %c0_i32 = arith.constant 0 : i32
    %c0_i32_0 = arith.constant 0 : i32
    %c0_i32_1 = arith.constant 0 : i32
    %c0_i32_2 = arith.constant 0 : i32
    return %c0_i32, %c0_i32_0, %c0_i32_1 : i32, i32, i32
  }
  func.func @transform_4(%arg0: i32) -> (i32, i32, i32, i32) {
    %c0_i32 = arith.constant 0 : i32
    %c0_i32_0 = arith.constant 0 : i32
    %c0_i32_1 = arith.constant 0 : i32
    %c0_i32_2 = arith.constant 0 : i32
    return %arg0, %c0_i32, %c0_i32_0, %c0_i32_1 : i32, i32, i32, i32
  }
  func.func @transform_5(%arg0: i32) -> (i32, i32, i32, i32) {
    %c0_i32 = arith.constant 0 : i32
    %c0_i32_0 = arith.constant 0 : i32
    %c0_i32_1 = arith.constant 0 : i32
    %c0_i32_2 = arith.constant 0 : i32
    return %arg0, %c0_i32, %c0_i32_0, %c0_i32_1 : i32, i32, i32, i32
  }
}

</mosaic_0001>

<llo_original>
// kernel: pre_basic_block_nchw.2
$region0: #{pre_basic_block_nchw.2}
  #allocation0 [shape = 'u32[]', space=smem, size = 0x4, offset = 0x4, fixed_abs, tag = 'smem constant byte address 0x4 - core index']
  #allocation1 [shape = 'u32[144,128]{1,0:T(1,128)}', space=vmem, size = 0x12000, scoped, tag = 'internal scratch']
  #allocation2 [shape = 'f32[1,18,24,4]{3,2,1,0:T(8,128)}', space=vmem, size = 0x36000, scoped, tag = 'scratch operand']
  %s0 = inlined_call_operand.vmem [shape: f32[2,16,16,4], index: 0, kind: input, shape index: {}]
  %s1 = inlined_call_operand.vmem [shape: f32[1,1,1,4], index: 1, kind: input, shape index: {}]
  %s2 = inlined_call_operand.vmem [shape: f32[1,1,1,4], index: 2, kind: input, shape index: {}]
  %s3 = inlined_call_operand.vmem [shape: bf16[9,4,4], index: 3, kind: input, shape index: {}]
  %s4 = inlined_call_operand.vmem [shape: f32[2,16,16,4], index: 4, kind: output, shape index: {}]
  %s5 = sld [smem:[#allocation0]]
  $region49: #{pre_basic_block_nchw.2} parent=0
    _
  %s7 = ssub.s32 1, %s5
  %s8 = scalar_select 0, %s7, %s5
  loop: start=0, step=1, limit=4
  $region2: #{pre_basic_block_nchw.2} parent=0 // loop_pre_header
    _
  $region3: #{pre_basic_block_nchw.2} parent=0 // loop_header
    %s10 = sphi 0, %s14
    %p11 = scmp.ge.s32.totalorder %s10, 4
    %s20 = sphi 0, %s22
    %s23 = sphi 0, %s20
    %s24 = sphi 0, %s23
    %s40 = sphi 0, %s24
    %s44 = sphi 0, %s44
    %s46 = sphi 0, %s44
    %s47 = sphi 0, %s46
    %s61 = sphi 0, %s47
    %s65 = sphi 0, %s65
    %s67 = sphi 0, %s65
    %s68 = sphi 0, %s67
    %s82 = sphi 0, %s68
    %s86 = sphi 0, %s86
    %s88 = sphi 0, %s86
    %s89 = sphi 0, %s88
    %s103 = sphi 0, %s89
    %s109 = sphi 0, %s111
    %s112 = sphi 0, %s109
    %s113 = sphi 0, %s112
    %s129 = sphi 0, %s113
  $region4: #{pre_basic_block_nchw.2} parent=0 // loop_header_branch
    %13 = sbr.rel (%p11) target = $region8
  $region5: #{pre_basic_block_nchw.2} parent=0 // loop_body
    %s15 = ssub.s32 %s10, 1
    %s16 = ssub.s32 %s10, 2
    %s17 = sadd.s32 %s10, 1
    %s18 = ssub.s32 %s10, %s17
    %p19 = scmp.eq.s32.totalorder %s18, 0
    %s21 = sadd.s32 %s20, 1
    %s22 = scalar_select %p19, %s20, %s21
    %p25 = pneg %p19
    %p26 = scmp.eq.s32.totalorder %s10, 1
    %p27 = por %p25, %p26
    %p28 = scmp.ne.s32.totalorder %s20, %s23
    %p29 = scmp.eq.s32.totalorder %s10, 0
    %p30 = por %p28, %p29
    %p31 = scmp.ne.s32.totalorder %s20, %s23
    %p32 = scmp.eq.s32.totalorder %s15, 1
    %p33 = por %p31, %p32
    %p34 = scmp.ne.s32.totalorder %s23, %s24
    %p35 = scmp.eq.s32.totalorder %s15, 0
    %p36 = por %p34, %p35
    %p37 = scmp.ne.s32.totalorder %s23, %s24
    %p38 = scmp.eq.s32.totalorder %s16, 1
    %p39 = por %p37, %p38
    %p41 = scmp.ne.s32.totalorder %s24, %s40
    %p42 = scmp.eq.s32.totalorder %s16, 0
    %p43 = por %p41, %p42
    %s45 = sadd.s32 %s44, 1
    %p48 = scmp.eq.s32.totalorder %s10, 1
    %p49 = scmp.ne.s32.totalorder %s44, %s46
    %p50 = scmp.eq.s32.totalorder %s10, 0
    %p51 = por %p49, %p50
    %p52 = scmp.ne.s32.totalorder %s44, %s46
    %p53 = scmp.eq.s32.totalorder %s15, 1
    %p54 = por %p52, %p53
    %p55 = scmp.ne.s32.totalorder %s46, %s47
    %p56 = scmp.eq.s32.totalorder %s15, 0
    %p57 = por %p55, %p56
    %p58 = scmp.ne.s32.totalorder %s46, %s47
    %p59 = scmp.eq.s32.totalorder %s16, 1
    %p60 = por %p58, %p59
    %p62 = scmp.ne.s32.totalorder %s47, %s61
    %p63 = scmp.eq.s32.totalorder %s16, 0
    %p64 = por %p62, %p63
    %s66 = sadd.s32 %s65, 1
    %p69 = scmp.eq.s32.totalorder %s10, 1
    %p70 = scmp.ne.s32.totalorder %s65, %s67
    %p71 = scmp.eq.s32.totalorder %s10, 0
    %p72 = por %p70, %p71
    %p73 = scmp.ne.s32.totalorder %s65, %s67
    %p74 = scmp.eq.s32.totalorder %s15, 1
    %p75 = por %p73, %p74
    %p76 = scmp.ne.s32.totalorder %s67, %s68
    %p77 = scmp.eq.s32.totalorder %s15, 0
    %p78 = por %p76, %p77
    %p79 = scmp.ne.s32.totalorder %s67, %s68
    %p80 = scmp.eq.s32.totalorder %s16, 1
    %p81 = por %p79, %p80
    %p83 = scmp.ne.s32.totalorder %s68, %s82
    %p84 = scmp.eq.s32.totalorder %s16, 0
    %p85 = por %p83, %p84
    %s87 = sadd.s32 %s86, 1
    %p90 = scmp.eq.s32.totalorder %s10, 1
    %p91 = scmp.ne.s32.totalorder %s86, %s88
    %p92 = scmp.eq.s32.totalorder %s10, 0
    %p93 = por %p91, %p92
    %p94 = scmp.ne.s32.totalorder %s86, %s88
    %p95 = scmp.eq.s32.totalorder %s15, 1
    %p96 = por %p94, %p95
    %p97 = scmp.ne.s32.totalorder %s88, %s89
    %p98 = scmp.eq.s32.totalorder %s15, 0
    %p99 = por %p97, %p98
    %p100 = scmp.ne.s32.totalorder %s88, %s89
    %p101 = scmp.eq.s32.totalorder %s16, 1
    %p102 = por %p100, %p101
    %p104 = scmp.ne.s32.totalorder %s89, %s103
    %p105 = scmp.eq.s32.totalorder %s16, 0
    %p106 = por %p104, %p105
    %s107 = ssub.s32 %s10, %s17
    %p108 = scmp.eq.s32.totalorder %s107, 0
    %s110 = sadd.s32 %s109, 1
    %s111 = scalar_select %p108, %s109, %s110
    %p114 = pneg %p108
    %p115 = scmp.eq.s32.totalorder %s10, 1
    %p116 = por %p114, %p115
    %p117 = scmp.ne.s32.totalorder %s109, %s112
    %p118 = scmp.eq.s32.totalorder %s10, 0
    %p119 = por %p117, %p118
    %p120 = scmp.ne.s32.totalorder %s109, %s112
    %p121 = scmp.eq.s32.totalorder %s15, 1
    %p122 = por %p120, %p121
    %p123 = scmp.ne.s32.totalorder %s112, %s113
    %p124 = scmp.eq.s32.totalorder %s15, 0
    %p125 = por %p123, %p124
    %p126 = scmp.ne.s32.totalorder %s112, %s113
    %p127 = scmp.eq.s32.totalorder %s16, 1
    %p128 = por %p126, %p127
    %p130 = scmp.ne.s32.totalorder %s113, %s129
    %p131 = scmp.eq.s32.totalorder %s16, 0
    %p132 = por %p130, %p131
    %p133 = scmp.le.s32.totalorder 1, %s10
    %p134 = scmp.lt.s32.totalorder %s10, 3
    %p135 = pnand %p133, %p134
    %p136 = pneg %p135
    // Predicated region
    $region9: #{pre_basic_block_nchw.2} parent=5 // pred_check
      _
    $region10: #{pre_basic_block_nchw.2} parent=5 // pred_check_branch
      %138 = sbr.rel (%p135) target = $region12
    $region11: #{pre_basic_block_nchw.2} parent=5 // pred_region
      %s139 = ssub.s32 %s10, 1
      // Predicated region
      $region13: #{pre_basic_block_nchw.2} parent=11 // pred_check
        %p140 = pneg %p57
      $region14: #{pre_basic_block_nchw.2} parent=11 // pred_check_branch
        %142 = sbr.rel (%p140) target = $region16
      $region15: #{pre_basic_block_nchw.2} parent=11 // pred_region
        _
      $region16: #{pre_basic_block_nchw.2} parent=11 // pred_fallthru
        _
      // Predicated region
      $region17: #{pre_basic_block_nchw.2} parent=11 // pred_check
        %p143 = pneg %p78
      $region18: #{pre_basic_block_nchw.2} parent=11 // pred_check_branch
        %145 = sbr.rel (%p143) target = $region20
      $region19: #{pre_basic_block_nchw.2} parent=11 // pred_region
        _
      $region20: #{pre_basic_block_nchw.2} parent=11 // pred_fallthru
        _
      // Predicated region
      $region21: #{pre_basic_block_nchw.2} parent=11 // pred_check
        %p146 = pneg %p99
      $region22: #{pre_basic_block_nchw.2} parent=11 // pred_check_branch
        %148 = sbr.rel (%p146) target = $region24
      $region23: #{pre_basic_block_nchw.2} parent=11 // pred_region
        _
      $region24: #{pre_basic_block_nchw.2} parent=11 // pred_fallthru
        _
    $region12: #{pre_basic_block_nchw.2} parent=5 // pred_fallthru
      _
    %p149 = scmp.lt.s32.totalorder %s10, 2
    // Predicated region
    $region25: #{pre_basic_block_nchw.2} parent=5 // pred_check
      %p150 = pneg %p149
    $region26: #{pre_basic_block_nchw.2} parent=5 // pred_check_branch
      %152 = sbr.rel (%p150) target = $region28
    $region27: #{pre_basic_block_nchw.2} parent=5 // pred_region
      // Predicated region
      $region29: #{pre_basic_block_nchw.2} parent=27 // pred_check
        %p153 = pneg %p30
      $region30: #{pre_basic_block_nchw.2} parent=27 // pred_check_branch
        %155 = sbr.rel (%p153) target = $region32
      $region31: #{pre_basic_block_nchw.2} parent=27 // pred_region
        %p156 = scmp.lt.s32.totalorder %s10, 1
        %s157 = scalar_select %p156, %s10, 1
        %s158 = smul.addr %s157, 32
        %s159 = smul.addr %s158, 8
        %s160 = scalar_lea.vmem %s0, %s159
      $region32: #{pre_basic_block_nchw.2} parent=27 // pred_fallthru
        _
    $region28: #{pre_basic_block_nchw.2} parent=5 // pred_fallthru
      _
    %p161 = scmp.le.s32.totalorder 1, %s10
    %p162 = scmp.lt.s32.totalorder %s10, 3
    %p163 = pnand %p161, %p162
    %p164 = pneg %p163
    // Predicated region
    $region33: #{pre_basic_block_nchw.2} parent=5 // pred_check
      _
    $region34: #{pre_basic_block_nchw.2} parent=5 // pred_check_branch
      %166 = sbr.rel (%p163) target = $region36
    $region35: #{pre_basic_block_nchw.2} parent=5 // pred_region
      %s167 = ssub.s32 %s10, 1
      %p168 = scmp.lt.s32.totalorder %s15, 1
      %s169 = scalar_select %p168, %s15, 1
      %s170 = smul.addr %s169, 32
      %s171 = smul.addr %s170, 8
      %s172 = scalar_lea.vmem %s0, %s171
      %p173 = pneg %p36
      %p174 = pneg %p33
      %p175 = pneg %p57
      %p176 = pneg %p54
      %p177 = pneg %p78
      %p178 = pneg %p75
      %p179 = pneg %p99
      %p180 = pneg %p96
      %p181 = pneg %p125
      %p182 = pneg %p122
      %p183 = scmp.lt.s32.totalorder %s15, 1
      %s184 = scalar_select %p183, %s15, 1
      %s185 = smul.addr %s184, 32
      %s186 = smul.addr %s185, 8
      %s187 = scalar_lea.vmem %s4, %s186
      %p188 = scmp.lt.s32.totalorder %s15, 1
      %s189 = scalar_select %p188, %s15, 1
      %s190 = smul.addr %s189, 32
      %s191 = smul.addr %s190, 8
      %s192 = scalar_lea.vmem %s0, %s191
      %p193 = scmp.lt.s32.totalorder %s15, 1
      %s194 = scalar_select %p193, %s15, 1
      %s195 = smul.addr %s194, 32
      %s196 = smul.addr %s195, 8
      %s197 = scalar_lea.vmem %s4, %s196
      %vm199 = vcmask 31744
      %200 = vst.msk [vmem:[#allocation2] sm:$0xff] %vm199, 0.0
      %201 = vst.msk [vmem:[#allocation2 + $0x8] sm:$0xff] %vm199, 0.0
      %202 = vst.msk [vmem:[#allocation2 + $0x10] sm:$0xff] %vm199, 0.0
      %s203 = scalar_lea.vmem [#allocation2], 408
      %204 = vst.msk [vmem:[%s203] sm:$0xff] %vm199, 0.0
      %205 = vst.msk [vmem:[%s203 + $0x8] sm:$0xff] %vm199, 0.0
      %206 = vst.msk [vmem:[%s203 + $0x10] sm:$0xff] %vm199, 0.0
      %vm207 = vcmask 24576
      %208 = vst.msk [vmem:[#allocation2] sm:$0x1] %vm207, 0.0
      %209 = vst.msk [vmem:[#allocation2 + $0x18] sm:$0x1] %vm207, 0.0
      %210 = vst.msk [vmem:[#allocation2 + $0x30] sm:$0x1] %vm207, 0.0
      %211 = vst.msk [vmem:[#allocation2 + $0x48] sm:$0x1] %vm207, 0.0
      %212 = vst.msk [vmem:[#allocation2 + $0x60] sm:$0x1] %vm207, 0.0
      %213 = vst.msk [vmem:[#allocation2 + $0x78] sm:$0x1] %vm207, 0.0
      %214 = vst.msk [vmem:[#allocation2 + $0x90] sm:$0x1] %vm207, 0.0
      %215 = vst.msk [vmem:[#allocation2 + $0xa8] sm:$0x1] %vm207, 0.0
      %216 = vst.msk [vmem:[#allocation2 + $0xc0] sm:$0x1] %vm207, 0.0
      %217 = vst.msk [vmem:[#allocation2 + $0xd8] sm:$0x1] %vm207, 0.0
      %218 = vst.msk [vmem:[#allocation2 + $0xf0] sm:$0x1] %vm207, 0.0
      %219 = vst.msk [vmem:[#allocation2 + $0x108] sm:$0x1] %vm207, 0.0
      %220 = vst.msk [vmem:[#allocation2 + $0x120] sm:$0x1] %vm207, 0.0
      %221 = vst.msk [vmem:[#allocation2 + $0x138] sm:$0x1] %vm207, 0.0
      %222 = vst.msk [vmem:[#allocation2 + $0x150] sm:$0x1] %vm207, 0.0
      %223 = vst.msk [vmem:[#allocation2 + $0x168] sm:$0x1] %vm207, 0.0
      %224 = vst.msk [vmem:[#allocation2 + $0x180] sm:$0x1] %vm207, 0.0
      %225 = vst.msk [vmem:[#allocation2 + $0x198] sm:$0x1] %vm207, 0.0
      %vm226 = vcmask 30720
      %227 = vst.msk [vmem:[#allocation2 + $0x11] sm:$0x7f] %vm226, 0.0
      %228 = vst.msk [vmem:[#allocation2 + $0x29] sm:$0x7f] %vm226, 0.0
      %229 = vst.msk [vmem:[#allocation2 + $0x41] sm:$0x7f] %vm226, 0.0
      %230 = vst.msk [vmem:[#allocation2 + $0x59] sm:$0x7f] %vm226, 0.0
      %231 = vst.msk [vmem:[#allocation2 + $0x71] sm:$0x7f] %vm226, 0.0
      %232 = vst.msk [vmem:[#allocation2 + $0x89] sm:$0x7f] %vm226, 0.0
      %233 = vst.msk [vmem:[#allocation2 + $0xa1] sm:$0x7f] %vm226, 0.0
      %234 = vst.msk [vmem:[#allocation2 + $0xb9] sm:$0x7f] %vm226, 0.0
      %235 = vst.msk [vmem:[#allocation2 + $0xd1] sm:$0x7f] %vm226, 0.0
      %236 = vst.msk [vmem:[#allocation2 + $0xe9] sm:$0x7f] %vm226, 0.0
      %237 = vst.msk [vmem:[#allocation2 + $0x101] sm:$0x7f] %vm226, 0.0
      %238 = vst.msk [vmem:[#allocation2 + $0x119] sm:$0x7f] %vm226, 0.0
      %239 = vst.msk [vmem:[#allocation2 + $0x131] sm:$0x7f] %vm226, 0.0
      %240 = vst.msk [vmem:[#allocation2 + $0x149] sm:$0x7f] %vm226, 0.0
      %241 = vst.msk [vmem:[#allocation2 + $0x161] sm:$0x7f] %vm226, 0.0
      %242 = vst.msk [vmem:[#allocation2 + $0x179] sm:$0x7f] %vm226, 0.0
      %243 = vst.msk [vmem:[#allocation2 + $0x191] sm:$0x7f] %vm226, 0.0
      %244 = vst.msk [vmem:[#allocation2 + $0x1a9] sm:$0x7f] %vm226, 0.0
      %v245 = vld [vmem:[%s192] sm:$0xff]
      %v246 = vld [vmem:[%s192 + $0x8] sm:$0xff]
      %v247 = vld [vmem:[%s192 + $0x10] sm:$0xff]
      %v248 = vld [vmem:[%s192 + $0x18] sm:$0xff]
      %v249 = vld [vmem:[%s192 + $0x20] sm:$0xff]
      %v250 = vld [vmem:[%s192 + $0x28] sm:$0xff]
      %v251 = vld [vmem:[%s192 + $0x30] sm:$0xff]
      %v252 = vld [vmem:[%s192 + $0x38] sm:$0xff]
      %v253 = vld [vmem:[%s192 + $0x40] sm:$0xff]
      %v254 = vld [vmem:[%s192 + $0x48] sm:$0xff]
      %v255 = vld [vmem:[%s192 + $0x50] sm:$0xff]
      %v256 = vld [vmem:[%s192 + $0x58] sm:$0xff]
      %v257 = vld [vmem:[%s192 + $0x60] sm:$0xff]
      %v258 = vld [vmem:[%s192 + $0x68] sm:$0xff]
      %v259 = vld [vmem:[%s192 + $0x70] sm:$0xff]
      %v260 = vld [vmem:[%s192 + $0x78] sm:$0xff]
      %v261 = vld [vmem:[%s192 + $0x80] sm:$0xff]
      %v262 = vld [vmem:[%s192 + $0x88] sm:$0xff]
      %v263 = vld [vmem:[%s192 + $0x90] sm:$0xff]
      %v264 = vld [vmem:[%s192 + $0x98] sm:$0xff]
      %v265 = vld [vmem:[%s192 + $0xa0] sm:$0xff]
      %v266 = vld [vmem:[%s192 + $0xa8] sm:$0xff]
      %v267 = vld [vmem:[%s192 + $0xb0] sm:$0xff]
      %v268 = vld [vmem:[%s192 + $0xb8] sm:$0xff]
      %v269 = vld [vmem:[%s192 + $0xc0] sm:$0xff]
      %v270 = vld [vmem:[%s192 + $0xc8] sm:$0xff]
      %v271 = vld [vmem:[%s192 + $0xd0] sm:$0xff]
      %v272 = vld [vmem:[%s192 + $0xd8] sm:$0xff]
      %v273 = vld [vmem:[%s192 + $0xe0] sm:$0xff]
      %v274 = vld [vmem:[%s192 + $0xe8] sm:$0xff]
      %v275 = vld [vmem:[%s192 + $0xf0] sm:$0xff]
      %v276 = vld [vmem:[%s192 + $0xf8] sm:$0xff]
      %v277 = vld [vmem:[%s1] sm:$0x1]
      %v279 = vlaneseq
      %v280 = vshrl.u32 %v279, 7
      %v281 = vsub.s32 0, %v280
      %v282 = vrot.slane %v277, %v281
      %v284 = vmul.f32 %v245, %v282
      %v285 = vmul.f32 %v246, %v282
      %v286 = vmul.f32 %v247, %v282
      %v287 = vmul.f32 %v248, %v282
      %v288 = vmul.f32 %v249, %v282
      %v289 = vmul.f32 %v250, %v282
      %v290 = vmul.f32 %v251, %v282
      %v291 = vmul.f32 %v252, %v282
      %v292 = vmul.f32 %v253, %v282
      %v293 = vmul.f32 %v254, %v282
      %v294 = vmul.f32 %v255, %v282
      %v295 = vmul.f32 %v256, %v282
      %v296 = vmul.f32 %v257, %v282
      %v297 = vmul.f32 %v258, %v282
      %v298 = vmul.f32 %v259, %v282
      %v299 = vmul.f32 %v260, %v282
      %v300 = vmul.f32 %v261, %v282
      %v301 = vmul.f32 %v262, %v282
      %v302 = vmul.f32 %v263, %v282
      %v303 = vmul.f32 %v264, %v282
      %v304 = vmul.f32 %v265, %v282
      %v305 = vmul.f32 %v266, %v282
      %v306 = vmul.f32 %v267, %v282
      %v307 = vmul.f32 %v268, %v282
      %v308 = vmul.f32 %v269, %v282
      %v309 = vmul.f32 %v270, %v282
      %v310 = vmul.f32 %v271, %v282
      %v311 = vmul.f32 %v272, %v282
      %v312 = vmul.f32 %v273, %v282
      %v313 = vmul.f32 %v274, %v282
      %v314 = vmul.f32 %v275, %v282
      %v315 = vmul.f32 %v276, %v282
      %v316 = vld [vmem:[%s2] sm:$0x1]
      %v318 = vlaneseq
      %v319 = vshrl.u32 %v318, 7
      %v320 = vsub.s32 0, %v319
      %v321 = vrot.slane %v316, %v320
      %v323 = vadd.f32 %v284, %v321
      %v324 = vadd.f32 %v285, %v321
      %v325 = vadd.f32 %v286, %v321
      %v326 = vadd.f32 %v287, %v321
      %v327 = vadd.f32 %v288, %v321
      %v328 = vadd.f32 %v289, %v321
      %v329 = vadd.f32 %v290, %v321
      %v330 = vadd.f32 %v291, %v321
      %v331 = vadd.f32 %v292, %v321
      %v332 = vadd.f32 %v293, %v321
      %v333 = vadd.f32 %v294, %v321
      %v334 = vadd.f32 %v295, %v321
      %v335 = vadd.f32 %v296, %v321
      %v336 = vadd.f32 %v297, %v321
      %v337 = vadd.f32 %v298, %v321
      %v338 = vadd.f32 %v299, %v321
      %v339 = vadd.f32 %v300, %v321
      %v340 = vadd.f32 %v301, %v321
      %v341 = vadd.f32 %v302, %v321
      %v342 = vadd.f32 %v303, %v321
      %v343 = vadd.f32 %v304, %v321
      %v344 = vadd.f32 %v305, %v321
      %v345 = vadd.f32 %v306, %v321
      %v346 = vadd.f32 %v307, %v321
      %v347 = vadd.f32 %v308, %v321
      %v348 = vadd.f32 %v309, %v321
      %v349 = vadd.f32 %v310, %v321
      %v350 = vadd.f32 %v311, %v321
      %v351 = vadd.f32 %v312, %v321
      %v352 = vadd.f32 %v313, %v321
      %v353 = vadd.f32 %v314, %v321
      %v354 = vadd.f32 %v315, %v321
      %s355 = scalar_lea.vmem [#allocation2], 24
      %356 = vst.msk [vmem:[%s355 + $0x1] sm:$0xff] %vm199, %v323
      %357 = vst.msk [vmem:[%s355 + $0x9] sm:$0xff] %vm199, %v324
      %358 = vst.msk [vmem:[%s355 + $0x19] sm:$0xff] %vm199, %v325
      %359 = vst.msk [vmem:[%s355 + $0x21] sm:$0xff] %vm199, %v326
      %360 = vst.msk [vmem:[%s355 + $0x31] sm:$0xff] %vm199, %v327
      %361 = vst.msk [vmem:[%s355 + $0x39] sm:$0xff] %vm199, %v328
      %362 = vst.msk [vmem:[%s355 + $0x49] sm:$0xff] %vm199, %v329
      %363 = vst.msk [vmem:[%s355 + $0x51] sm:$0xff] %vm199, %v330
      %364 = vst.msk [vmem:[%s355 + $0x61] sm:$0xff] %vm199, %v331
      %365 = vst.msk [vmem:[%s355 + $0x69] sm:$0xff] %vm199, %v332
      %366 = vst.msk [vmem:[%s355 + $0x79] sm:$0xff] %vm199, %v333
      %367 = vst.msk [vmem:[%s355 + $0x81] sm:$0xff] %vm199, %v334
      %368 = vst.msk [vmem:[%s355 + $0x91] sm:$0xff] %vm199, %v335
      %369 = vst.msk [vmem:[%s355 + $0x99] sm:$0xff] %vm199, %v336
      %370 = vst.msk [vmem:[%s355 + $0xa9] sm:$0xff] %vm199, %v337
      %371 = vst.msk [vmem:[%s355 + $0xb1] sm:$0xff] %vm199, %v338
      %372 = vst.msk [vmem:[%s355 + $0xc1] sm:$0xff] %vm199, %v339
      %373 = vst.msk [vmem:[%s355 + $0xc9] sm:$0xff] %vm199, %v340
      %374 = vst.msk [vmem:[%s355 + $0xd9] sm:$0xff] %vm199, %v341
      %375 = vst.msk [vmem:[%s355 + $0xe1] sm:$0xff] %vm199, %v342
      %376 = vst.msk [vmem:[%s355 + $0xf1] sm:$0xff] %vm199, %v343
      %377 = vst.msk [vmem:[%s355 + $0xf9] sm:$0xff] %vm199, %v344
      %378 = vst.msk [vmem:[%s355 + $0x109] sm:$0xff] %vm199, %v345
      %379 = vst.msk [vmem:[%s355 + $0x111] sm:$0xff] %vm199, %v346
      %380 = vst.msk [vmem:[%s355 + $0x121] sm:$0xff] %vm199, %v347
      %381 = vst.msk [vmem:[%s355 + $0x129] sm:$0xff] %vm199, %v348
      %382 = vst.msk [vmem:[%s355 + $0x139] sm:$0xff] %vm199, %v349
      %383 = vst.msk [vmem:[%s355 + $0x141] sm:$0xff] %vm199, %v350
      %384 = vst.msk [vmem:[%s355 + $0x151] sm:$0xff] %vm199, %v351
      %385 = vst.msk [vmem:[%s355 + $0x159] sm:$0xff] %vm199, %v352
      %386 = vst.msk [vmem:[%s355 + $0x169] sm:$0xff] %vm199, %v353
      %387 = vst.msk [vmem:[%s355 + $0x171] sm:$0xff] %vm199, %v354
      %v388 = vld [vmem:[#allocation2] sm:$0xff]
      %v389 = vld [vmem:[#allocation2 + $0x8] sm:$0xff]
      %v390 = vld [vmem:[#allocation2 + $0x18] sm:$0xff]
      %v391 = vld [vmem:[#allocation2 + $0x20] sm:$0xff]
      %v392 = vld [vmem:[#allocation2 + $0x30] sm:$0xff]
      %v393 = vld [vmem:[#allocation2 + $0x38] sm:$0xff]
      %v394 = vld [vmem:[#allocation2 + $0x48] sm:$0xff]
      %v395 = vld [vmem:[#allocation2 + $0x50] sm:$0xff]
      %v396 = vld [vmem:[#allocation2 + $0x60] sm:$0xff]
      %v397 = vld [vmem:[#allocation2 + $0x68] sm:$0xff]
      %v398 = vld [vmem:[#allocation2 + $0x78] sm:$0xff]
      %v399 = vld [vmem:[#allocation2 + $0x80] sm:$0xff]
      %v400 = vld [vmem:[#allocation2 + $0x90] sm:$0xff]
      %v401 = vld [vmem:[#allocation2 + $0x98] sm:$0xff]
      %v402 = vld [vmem:[#allocation2 + $0xa8] sm:$0xff]
      %v403 = vld [vmem:[#allocation2 + $0xb0] sm:$0xff]
      %v404 = vld [vmem:[#allocation2 + $0xc0] sm:$0xff]
      %v405 = vld [vmem:[#allocation2 + $0xc8] sm:$0xff]
      %v406 = vld [vmem:[#allocation2 + $0xd8] sm:$0xff]
      %v407 = vld [vmem:[#allocation2 + $0xe0] sm:$0xff]
      %v408 = vld [vmem:[#allocation2 + $0xf0] sm:$0xff]
      %v409 = vld [vmem:[#allocation2 + $0xf8] sm:$0xff]
      %v410 = vld [vmem:[#allocation2 + $0x108] sm:$0xff]
      %v411 = vld [vmem:[#allocation2 + $0x110] sm:$0xff]
      %v412 = vld [vmem:[#allocation2 + $0x120] sm:$0xff]
      %v413 = vld [vmem:[#allocation2 + $0x128] sm:$0xff]
      %v414 = vld [vmem:[#allocation2 + $0x138] sm:$0xff]
      %v415 = vld [vmem:[#allocation2 + $0x140] sm:$0xff]
      %v416 = vld [vmem:[#allocation2 + $0x150] sm:$0xff]
      %v417 = vld [vmem:[#allocation2 + $0x158] sm:$0xff]
      %v418 = vld [vmem:[#allocation2 + $0x168] sm:$0xff]
      %v419 = vld [vmem:[#allocation2 + $0x170] sm:$0xff]
      %v420 = vpack.c.bf16 %v389, %v388
      %v421 = vpack.c.bf16 %v391, %v390
      %v422 = vpack.c.bf16 %v393, %v392
      %v423 = vpack.c.bf16 %v395, %v394
      %v424 = vpack.c.bf16 %v397, %v396
      %v425 = vpack.c.bf16 %v399, %v398
      %v426 = vpack.c.bf16 %v401, %v400
      %v427 = vpack.c.bf16 %v403, %v402
      %v428 = vpack.c.bf16 %v405, %v404
      %v429 = vpack.c.bf16 %v407, %v406
      %v430 = vpack.c.bf16 %v409, %v408
      %v431 = vpack.c.bf16 %v411, %v410
      %v432 = vpack.c.bf16 %v413, %v412
      %v433 = vpack.c.bf16 %v415, %v414
      %v434 = vpack.c.bf16 %v417, %v416
      %v435 = vpack.c.bf16 %v419, %v418
      %v436 = vld [vmem:[%s3] sm:$0x3]
      %v437 = vld [vmem:[#allocation2 + $0x1] sm:$0xff]
      %v438 = vld [vmem:[#allocation2 + $0x9] sm:$0xff]
      %v439 = vld [vmem:[#allocation2 + $0x19] sm:$0xff]
      %v440 = vld [vmem:[#allocation2 + $0x21] sm:$0xff]
      %v441 = vld [vmem:[#allocation2 + $0x31] sm:$0xff]
      %v442 = vld [vmem:[#allocation2 + $0x39] sm:$0xff]
      %v443 = vld [vmem:[#allocation2 + $0x49] sm:$0xff]
      %v444 = vld [vmem:[#allocation2 + $0x51] sm:$0xff]
      %v445 = vld [vmem:[#allocation2 + $0x61] sm:$0xff]
      %v446 = vld [vmem:[#allocation2 + $0x69] sm:$0xff]
      %v447 = vld [vmem:[#allocation2 + $0x79] sm:$0xff]
      %v448 = vld [vmem:[#allocation2 + $0x81] sm:$0xff]
      %v449 = vld [vmem:[#allocation2 + $0x91] sm:$0xff]
      %v450 = vld [vmem:[#allocation2 + $0x99] sm:$0xff]
      %v451 = vld [vmem:[#allocation2 + $0xa9] sm:$0xff]
      %v452 = vld [vmem:[#allocation2 + $0xb1] sm:$0xff]
      %v453 = vld [vmem:[#allocation2 + $0xc1] sm:$0xff]
      %v454 = vld [vmem:[#allocation2 + $0xc9] sm:$0xff]
      %v455 = vld [vmem:[#allocation2 + $0xd9] sm:$0xff]
      %v456 = vld [vmem:[#allocation2 + $0xe1] sm:$0xff]
      %v457 = vld [vmem:[#allocation2 + $0xf1] sm:$0xff]
      %v458 = vld [vmem:[#allocation2 + $0xf9] sm:$0xff]
      %v459 = vld [vmem:[#allocation2 + $0x109] sm:$0xff]
      %v460 = vld [vmem:[#allocation2 + $0x111] sm:$0xff]
      %v461 = vld [vmem:[#allocation2 + $0x121] sm:$0xff]
      %v462 = vld [vmem:[#allocation2 + $0x129] sm:$0xff]
      %v463 = vld [vmem:[#allocation2 + $0x139] sm:$0xff]
      %v464 = vld [vmem:[#allocation2 + $0x141] sm:$0xff]
      %v465 = vld [vmem:[#allocation2 + $0x151] sm:$0xff]
      %v466 = vld [vmem:[#allocation2 + $0x159] sm:$0xff]
      %v467 = vld [vmem:[#allocation2 + $0x169] sm:$0xff]
      %v468 = vld [vmem:[#allocation2 + $0x171] sm:$0xff]
      %v469 = vpack.c.bf16 %v438, %v437
      %v470 = vpack.c.bf16 %v440, %v439
      %v471 = vpack.c.bf16 %v442, %v441
      %v472 = vpack.c.bf16 %v444, %v443
      %v473 = vpack.c.bf16 %v446, %v445
      %v474 = vpack.c.bf16 %v448, %v447
      %v475 = vpack.c.bf16 %v450, %v449
      %v476 = vpack.c.bf16 %v452, %v451
      %v477 = vpack.c.bf16 %v454, %v453
      %v478 = vpack.c.bf16 %v456, %v455
      %v479 = vpack.c.bf16 %v458, %v457
      %v480 = vpack.c.bf16 %v460, %v459
      %v481 = vpack.c.bf16 %v462, %v461
      %v482 = vpack.c.bf16 %v464, %v463
      %v483 = vpack.c.bf16 %v466, %v465
      %v484 = vpack.c.bf16 %v468, %v467
      %s485 = scalar_lea.vmem %s3, 2
      %v486 = vld [vmem:[%s485] sm:$0x3]
      %v488 = vsel %vm199, %v469, 0
      %v491 = vsel %vm199, %v470, 0
      %v494 = vsel %vm199, %v471, 0
      %v497 = vsel %vm199, %v472, 0
      %v500 = vsel %vm199, %v473, 0
      %v503 = vsel %vm199, %v474, 0
      %v506 = vsel %vm199, %v475, 0
      %v509 = vsel %vm199, %v476, 0
      %v512 = vsel %vm199, %v477, 0
      %v515 = vsel %vm199, %v478, 0
      %v518 = vsel %vm199, %v479, 0
      %v521 = vsel %vm199, %v480, 0
      %v524 = vsel %vm199, %v481, 0
      %v527 = vsel %vm199, %v482, 0
      %v530 = vsel %vm199, %v483, 0
      %v533 = vsel %vm199, %v484, 0
      %vm535 = vcmask 1041408
      %v537 = vsel %vm535, %v486, 0
      %539 = vmatprep.subr.bf16.mxu0 0
      %540 = vmatpush1.bf16.msra.mxu0 %v537
      %541 = vmatprep.subr.bf16.mxu0 0
      %542 = vmatpush1.bf16.msra.mxu0 0
      %543 = vmatprep.subr.bf16.mxu0 0
      %544 = vmatpush1.bf16.msra.mxu0 0
      %545 = vmatprep.subr.bf16.mxu0 0
      %546 = vmatpush1.bf16.msra.mxu0 0
      %547 = vmatprep.subr.bf16.mxu0 0
      %548 = vmatpush1.bf16.msra.mxu0 0
      %549 = vmatprep.subr.bf16.mxu0 0
      %550 = vmatpush1.bf16.msra.mxu0 0
      %551 = vmatprep.subr.bf16.mxu0 0
      %552 = vmatpush1.bf16.msra.mxu0 0
      %553 = vmatprep.subr.bf16.mxu0 0
      %554 = vmatpush1.bf16.msra.mxu0 0
      %555 = vmatprep.subr.bf16.mxu0 0
      %556 = vmatpush1.bf16.msra.mxu0 0
      %557 = vmatprep.subr.bf16.mxu0 0
      %558 = vmatpush1.bf16.msra.mxu0 0
      %559 = vmatprep.subr.bf16.mxu0 0
      %560 = vmatpush1.bf16.msra.mxu0 0
      %561 = vmatprep.subr.bf16.mxu0 0
      %562 = vmatpush1.bf16.msra.mxu0 0
      %563 = vmatprep.subr.bf16.mxu0 0
      %564 = vmatpush1.bf16.msra.mxu0 0
      %565 = vmatprep.subr.bf16.mxu0 0
      %566 = vmatpush1.bf16.msra.mxu0 0
      %567 = vmatprep.subr.bf16.mxu0 0
      %568 = vmatpush1.bf16.msra.mxu0 0
      %569 = vmatprep.subr.bf16.mxu0 0
      %570 = vmatpush1.bf16.msra.mxu0 0
      %571 = vmatprep.mubr.bf16.mxu0 0
      %572 = vmatmul.mubr.bf16.gmra.mrb[0].mxu0 %v488
      %v573 = vpop.f32.mrb[0].mxu0
      %v574 = vadd.f32 0.0, %v573
      %v575 = vpop.f32.mrb[0].mxu0
      %v576 = vpop.f32.mrb[0].mxu0
      %v577 = vadd.f32 0.0, %v576
      %v578 = vpop.f32.mrb[0].mxu0
      %579 = vmatprep.mubr.bf16.mxu0 0
      %580 = vmatmul.mubr.bf16.gmra.mrb[0].mxu0 %v491
      %v581 = vpop.f32.mrb[0].mxu0
      %v582 = vadd.f32 0.0, %v581
      %v583 = vpop.f32.mrb[0].mxu0
      %v584 = vpop.f32.mrb[0].mxu0
      %v585 = vadd.f32 0.0, %v584
      %v586 = vpop.f32.mrb[0].mxu0
      %587 = vmatprep.mubr.bf16.mxu0 0
      %588 = vmatmul.mubr.bf16.gmra.mrb[0].mxu0 %v494
      %v589 = vpop.f32.mrb[0].mxu0
      %v590 = vadd.f32 0.0, %v589
      %v591 = vpop.f32.mrb[0].mxu0
      %v592 = vpop.f32.mrb[0].mxu0
      %v593 = vadd.f32 0.0, %v592
      %v594 = vpop.f32.mrb[0].mxu0
      %595 = vmatprep.mubr.bf16.mxu0 0
      %596 = vmatmul.mubr.bf16.gmra.mrb[0].mxu0 %v497
      %v597 = vpop.f32.mrb[0].mxu0
      %v598 = vadd.f32 0.0, %v597
      %v599 = vpop.f32.mrb[0].mxu0
      %v600 = vpop.f32.mrb[0].mxu0
      %v601 = vadd.f32 0.0, %v600
      %v602 = vpop.f32.mrb[0].mxu0
      %603 = vmatprep.mubr.bf16.mxu0 0
      %604 = vmatmul.mubr.bf16.gmra.mrb[0].mxu0 %v500
      %v605 = vpop.f32.mrb[0].mxu0
      %v606 = vadd.f32 0.0, %v605
      %v607 = vpop.f32.mrb[0].mxu0
      %v608 = vpop.f32.mrb[0].mxu0
      %v609 = vadd.f32 0.0, %v608
      %v610 = vpop.f32.mrb[0].mxu0
      %611 = vmatprep.mubr.bf16.mxu0 0
      %612 = vmatmul.mubr.bf16.gmra.mrb[0].mxu0 %v503
      %v613 = vpop.f32.mrb[0].mxu0
      %v614 = vadd.f32 0.0, %v613
      %v615 = vpop.f32.mrb[0].mxu0
      %v616 = vpop.f32.mrb[0].mxu0
      %v617 = vadd.f32 0.0, %v616
      %v618 = vpop.f32.mrb[0].mxu0
      %619 = vmatprep.mubr.bf16.mxu0 0
      %620 = vmatmul.mubr.bf16.gmra.mrb[0].mxu0 %v506
      %v621 = vpop.f32.mrb[0].mxu0
      %v622 = vadd.f32 0.0, %v621
      %v623 = vpop.f32.mrb[0].mxu0
      %v624 = vpop.f32.mrb[0].mxu0
      %v625 = vadd.f32 0.0, %v624
      %v626 = vpop.f32.mrb[0].mxu0
      %627 = vmatprep.mubr.bf16.mxu0 0
      %628 = vmatmul.mubr.bf16.gmra.mrb[0].mxu0 %v509
      %v629 = vpop.f32.mrb[0].mxu0
      %v630 = vadd.f32 0.0, %v629
      %v631 = vpop.f32.mrb[0].mxu0
      %v632 = vpop.f32.mrb[0].mxu0
      %v633 = vadd.f32 0.0, %v632
      %v634 = vpop.f32.mrb[0].mxu0
      %635 = vmatprep.mubr.bf16.mxu0 0
      %636 = vmatmul.mubr.bf16.gmra.mrb[0].mxu0 %v512
      %v637 = vpop.f32.mrb[0].mxu0
      %v638 = vadd.f32 0.0, %v637
      %v639 = vpop.f32.mrb[0].mxu0
      %v640 = vpop.f32.mrb[0].mxu0
      %v641 = vadd.f32 0.0, %v640
      %v642 = vpop.f32.mrb[0].mxu0
      %643 = vmatprep.mubr.bf16.mxu0 0
      %644 = vmatmul.mubr.bf16.gmra.mrb[0].mxu0 %v515
      %v645 = vpop.f32.mrb[0].mxu0
      %v646 = vadd.f32 0.0, %v645
      %v647 = vpop.f32.mrb[0].mxu0
      %v648 = vpop.f32.mrb[0].mxu0
      %v649 = vadd.f32 0.0, %v648
      %v650 = vpop.f32.mrb[0].mxu0
      %651 = vmatprep.mubr.bf16.mxu0 0
      %652 = vmatmul.mubr.bf16.gmra.mrb[0].mxu0 %v518
      %v653 = vpop.f32.mrb[0].mxu0
      %v654 = vadd.f32 0.0, %v653
      %v655 = vpop.f32.mrb[0].mxu0
      %v656 = vpop.f32.mrb[0].mxu0
      %v657 = vadd.f32 0.0, %v656
      %v658 = vpop.f32.mrb[0].mxu0
      %659 = vmatprep.mubr.bf16.mxu0 0
      %660 = vmatmul.mubr.bf16.gmra.mrb[0].mxu0 %v521
      %v661 = vpop.f32.mrb[0].mxu0
      %v662 = vadd.f32 0.0, %v661
      %v663 = vpop.f32.mrb[0].mxu0
      %v664 = vpop.f32.mrb[0].mxu0
      %v665 = vadd.f32 0.0, %v664
      %v666 = vpop.f32.mrb[0].mxu0
      %667 = vmatprep.mubr.bf16.mxu0 0
      %668 = vmatmul.mubr.bf16.gmra.mrb[0].mxu0 %v524
      %v669 = vpop.f32.mrb[0].mxu0
      %v670 = vadd.f32 0.0, %v669
      %v671 = vpop.f32.mrb[0].mxu0
      %v672 = vpop.f32.mrb[0].mxu0
      %v673 = vadd.f32 0.0, %v672
      %v674 = vpop.f32.mrb[0].mxu0
      %675 = vmatprep.mubr.bf16.mxu0 0
      %676 = vmatmul.mubr.bf16.gmra.mrb[0].mxu0 %v527
      %v677 = vpop.f32.mrb[0].mxu0
      %v678 = vadd.f32 0.0, %v677
      %v679 = vpop.f32.mrb[0].mxu0
      %v680 = vpop.f32.mrb[0].mxu0
      %v681 = vadd.f32 0.0, %v680
      %v682 = vpop.f32.mrb[0].mxu0
      %683 = vmatprep.mubr.bf16.mxu0 0
      %684 = vmatmul.mubr.bf16.gmra.mrb[0].mxu0 %v530
      %v685 = vpop.f32.mrb[0].mxu0
      %v686 = vadd.f32 0.0, %v685
      %v687 = vpop.f32.mrb[0].mxu0
      %v688 = vpop.f32.mrb[0].mxu0
      %v689 = vadd.f32 0.0, %v688
      %v690 = vpop.f32.mrb[0].mxu0
      %691 = vmatprep.mubr.bf16.mxu0 0
      %692 = vmatmul.mubr.bf16.gmra.mrb[0].mxu0 %v533
      %v693 = vpop.f32.mrb[0].mxu0
      %v694 = vadd.f32 0.0, %v693
      %v695 = vpop.f32.mrb[0].mxu0
      %v696 = vpop.f32.mrb[0].mxu0
      %v697 = vadd.f32 0.0, %v696
      %v698 = vpop.f32.mrb[0].mxu0
      %699 = vdwg.mxu0
      %v701 = vsel %vm199, %v420, 0
      %v704 = vsel %vm199, %v421, 0
      %v707 = vsel %vm199, %v422, 0
      %v710 = vsel %vm199, %v423, 0
      %v713 = vsel %vm199, %v424, 0
      %v716 = vsel %vm199, %v425, 0
      %v719 = vsel %vm199, %v426, 0
      %v722 = vsel %vm199, %v427, 0
      %v725 = vsel %vm199, %v428, 0
      %v728 = vsel %vm199, %v429, 0
      %v731 = vsel %vm199, %v430, 0
      %v734 = vsel %vm199, %v431, 0
      %v737 = vsel %vm199, %v432, 0
      %v740 = vsel %vm199, %v433, 0
      %v743 = vsel %vm199, %v434, 0
      %v746 = vsel %vm199, %v435, 0
      %v749 = vsel %vm535, %v436, 0
      %751 = vmatprep.subr.bf16.mxu0 0
      %752 = vmatpush1.bf16.msra.mxu0 %v749
      %753 = vmatprep.subr.bf16.mxu0 0
      %754 = vmatpush1.bf16.msra.mxu0 0
      %755 = vmatprep.subr.bf16.mxu0 0
      %756 = vmatpush1.bf16.msra.mxu0 0
      %757 = vmatprep.subr.bf16.mxu0 0
      %758 = vmatpush1.bf16.msra.mxu0 0
      %759 = vmatprep.subr.bf16.mxu0 0
      %760 = vmatpush1.bf16.msra.mxu0 0
      %761 = vmatprep.subr.bf16.mxu0 0
      %762 = vmatpush1.bf16.msra.mxu0 0
      %763 = vmatprep.subr.bf16.mxu0 0
      %764 = vmatpush1.bf16.msra.mxu0 0
      %765 = vmatprep.subr.bf16.mxu0 0
      %766 = vmatpush1.bf16.msra.mxu0 0
      %767 = vmatprep.subr.bf16.mxu0 0
      %768 = vmatpush1.bf16.msra.mxu0 0
      %769 = vmatprep.subr.bf16.mxu0 0
      %770 = vmatpush1.bf16.msra.mxu0 0
      %771 = vmatprep.subr.bf16.mxu0 0
      %772 = vmatpush1.bf16.msra.mxu0 0
      %773 = vmatprep.subr.bf16.mxu0 0
      %774 = vmatpush1.bf16.msra.mxu0 0
      %775 = vmatprep.subr.bf16.mxu0 0
      %776 = vmatpush1.bf16.msra.mxu0 0
      %777 = vmatprep.subr.bf16.mxu0 0
      %778 = vmatpush1.bf16.msra.mxu0 0
      %779 = vmatprep.subr.bf16.mxu0 0
      %780 = vmatpush1.bf16.msra.mxu0 0
      %781 = vmatprep.subr.bf16.mxu0 0
      %782 = vmatpush1.bf16.msra.mxu0 0
      %783 = vmatprep.mubr.bf16.mxu0 0
      %784 = vmatmul.mubr.bf16.gmra.mrb[0].mxu0 %v701
      %v785 = vpop.f32.mrb[0].mxu0
      %v786 = vadd.f32 %v574, %v785
      %v787 = vpop.f32.mrb[0].mxu0
      %v788 = vpop.f32.mrb[0].mxu0
      %v789 = vadd.f32 %v577, %v788
      %v790 = vpop.f32.mrb[0].mxu0
      %791 = vmatprep.mubr.bf16.mxu0 0
      %792 = vmatmul.mubr.bf16.gmra.mrb[0].mxu0 %v704
      %v793 = vpop.f32.mrb[0].mxu0
      %v794 = vadd.f32 %v582, %v793
      %v795 = vpop.f32.mrb[0].mxu0
      %v796 = vpop.f32.mrb[0].mxu0
      %v797 = vadd.f32 %v585, %v796
      %v798 = vpop.f32.mrb[0].mxu0
      %799 = vmatprep.mubr.bf16.mxu0 0
      %800 = vmatmul.mubr.bf16.gmra.mrb[0].mxu0 %v707
      %v801 = vpop.f32.mrb[0].mxu0
      %v802 = vadd.f32 %v590, %v801
      %v803 = vpop.f32.mrb[0].mxu0
      %v804 = vpop.f32.mrb[0].mxu0
      %v805 = vadd.f32 %v593, %v804
      %v806 = vpop.f32.mrb[0].mxu0
      %807 = vmatprep.mubr.bf16.mxu0 0
      %808 = vmatmul.mubr.bf16.gmra.mrb[0].mxu0 %v710
      %v809 = vpop.f32.mrb[0].mxu0
      %v810 = vadd.f32 %v598, %v809
      %v811 = vpop.f32.mrb[0].mxu0
      %v812 = vpop.f32.mrb[0].mxu0
      %v813 = vadd.f32 %v601, %v812
      %v814 = vpop.f32.mrb[0].mxu0
      %815 = vmatprep.mubr.bf16.mxu0 0
      %816 = vmatmul.mubr.bf16.gmra.mrb[0].mxu0 %v713
      %v817 = vpop.f32.mrb[0].mxu0
      %v818 = vadd.f32 %v606, %v817
      %v819 = vpop.f32.mrb[0].mxu0
      %v820 = vpop.f32.mrb[0].mxu0
      %v821 = vadd.f32 %v609, %v820
      %v822 = vpop.f32.mrb[0].mxu0
      %823 = vmatprep.mubr.bf16.mxu0 0
      %824 = vmatmul.mubr.bf16.gmra.mrb[0].mxu0 %v716
      %v825 = vpop.f32.mrb[0].mxu0
      %v826 = vadd.f32 %v614, %v825
      %v827 = vpop.f32.mrb[0].mxu0
      %v828 = vpop.f32.mrb[0].mxu0
      %v829 = vadd.f32 %v617, %v828
      %v830 = vpop.f32.mrb[0].mxu0
      %831 = vmatprep.mubr.bf16.mxu0 0
      %832 = vmatmul.mubr.bf16.gmra.mrb[0].mxu0 %v719
      %v833 = vpop.f32.mrb[0].mxu0
      %v834 = vadd.f32 %v622, %v833
      %v835 = vpop.f32.mrb[0].mxu0
      %v836 = vpop.f32.mrb[0].mxu0
      %v837 = vadd.f32 %v625, %v836
      %v838 = vpop.f32.mrb[0].mxu0
      %839 = vmatprep.mubr.bf16.mxu0 0
      %840 = vmatmul.mubr.bf16.gmra.mrb[0].mxu0 %v722
      %v841 = vpop.f32.mrb[0].mxu0
      %v842 = vadd.f32 %v630, %v841
      %v843 = vpop.f32.mrb[0].mxu0
      %v844 = vpop.f32.mrb[0].mxu0
      %v845 = vadd.f32 %v633, %v844
      %v846 = vpop.f32.mrb[0].mxu0
      %847 = vmatprep.mubr.bf16.mxu0 0
      %848 = vmatmul.mubr.bf16.gmra.mrb[0].mxu0 %v725
      %v849 = vpop.f32.mrb[0].mxu0
      %v850 = vadd.f32 %v638, %v849
      %v851 = vpop.f32.mrb[0].mxu0
      %v852 = vpop.f32.mrb[0].mxu0
      %v853 = vadd.f32 %v641, %v852
      %v854 = vpop.f32.mrb[0].mxu0
      %855 = vmatprep.mubr.bf16.mxu0 0
      %856 = vmatmul.mubr.bf16.gmra.mrb[0].mxu0 %v728
      %v857 = vpop.f32.mrb[0].mxu0
      %v858 = vadd.f32 %v646, %v857
      %v859 = vpop.f32.mrb[0].mxu0
      %v860 = vpop.f32.mrb[0].mxu0
      %v861 = vadd.f32 %v649, %v860
      %v862 = vpop.f32.mrb[0].mxu0
      %863 = vmatprep.mubr.bf16.mxu0 0
      %864 = vmatmul.mubr.bf16.gmra.mrb[0].mxu0 %v731
      %v865 = vpop.f32.mrb[0].mxu0
      %v866 = vadd.f32 %v654, %v865
      %v867 = vpop.f32.mrb[0].mxu0
      %v868 = vpop.f32.mrb[0].mxu0
      %v869 = vadd.f32 %v657, %v868
      %v870 = vpop.f32.mrb[0].mxu0
      %871 = vmatprep.mubr.bf16.mxu0 0
      %872 = vmatmul.mubr.bf16.gmra.mrb[0].mxu0 %v734
      %v873 = vpop.f32.mrb[0].mxu0
      %v874 = vadd.f32 %v662, %v873
      %v875 = vpop.f32.mrb[0].mxu0
      %v876 = vpop.f32.mrb[0].mxu0
      %v877 = vadd.f32 %v665, %v876
      %v878 = vpop.f32.mrb[0].mxu0
      %879 = vmatprep.mubr.bf16.mxu0 0
      %880 = vmatmul.mubr.bf16.gmra.mrb[0].mxu0 %v737
      %v881 = vpop.f32.mrb[0].mxu0
      %v882 = vadd.f32 %v670, %v881
      %v883 = vpop.f32.mrb[0].mxu0
      %v884 = vpop.f32.mrb[0].mxu0
      %v885 = vadd.f32 %v673, %v884
      %v886 = vpop.f32.mrb[0].mxu0
      %887 = vmatprep.mubr.bf16.mxu0 0
      %888 = vmatmul.mubr.bf16.gmra.mrb[0].mxu0 %v740
      %v889 = vpop.f32.mrb[0].mxu0
      %v890 = vadd.f32 %v678, %v889
      %v891 = vpop.f32.mrb[0].mxu0
      %v892 = vpop.f32.mrb[0].mxu0
      %v893 = vadd.f32 %v681, %v892
      %v894 = vpop.f32.mrb[0].mxu0
      %895 = vmatprep.mubr.bf16.mxu0 0
      %896 = vmatmul.mubr.bf16.gmra.mrb[0].mxu0 %v743
      %v897 = vpop.f32.mrb[0].mxu0
      %v898 = vadd.f32 %v686, %v897
      %v899 = vpop.f32.mrb[0].mxu0
      %v900 = vpop.f32.mrb[0].mxu0
      %v901 = vadd.f32 %v689, %v900
      %v902 = vpop.f32.mrb[0].mxu0
      %903 = vmatprep.mubr.bf16.mxu0 0
      %904 = vmatmul.mubr.bf16.gmra.mrb[0].mxu0 %v746
      %v905 = vpop.f32.mrb[0].mxu0
      %v906 = vadd.f32 %v694, %v905
      %v907 = vpop.f32.mrb[0].mxu0
      %v908 = vpop.f32.mrb[0].mxu0
      %v909 = vadd.f32 %v697, %v908
      %v910 = vpop.f32.mrb[0].mxu0
      %911 = vdwg.mxu0
      %v912 = vld [vmem:[#allocation2 + $0x2] sm:$0xff]
      %v913 = vld [vmem:[#allocation2 + $0xa] sm:$0xff]
      %v914 = vld [vmem:[#allocation2 + $0x1a] sm:$0xff]
      %v915 = vld [vmem:[#allocation2 + $0x22] sm:$0xff]
      %v916 = vld [vmem:[#allocation2 + $0x32] sm:$0xff]
      %v917 = vld [vmem:[#allocation2 + $0x3a] sm:$0xff]
      %v918 = vld [vmem:[#allocation2 + $0x4a] sm:$0xff]
      %v919 = vld [vmem:[#allocation2 + $0x52] sm:$0xff]
      %v920 = vld [vmem:[#allocation2 + $0x62] sm:$0xff]
      %v921 = vld [vmem:[#allocation2 + $0x6a] sm:$0xff]
      %v922 = vld [vmem:[#allocation2 + $0x7a] sm:$0xff]
      %v923 = vld [vmem:[#allocation2 + $0x82] sm:$0xff]
      %v924 = vld [vmem:[#allocation2 + $0x92] sm:$0xff]
      %v925 = vld [vmem:[#allocation2 + $0x9a] sm:$0xff]
      %v926 = vld [vmem:[#allocation2 + $0xaa] sm:$0xff]
      %v927 = vld [vmem:[#allocation2 + $0xb2] sm:$0xff]
      %v928 = vld [vmem:[#allocation2 + $0xc2] sm:$0xff]
      %v929 = vld [vmem:[#allocation2 + $0xca] sm:$0xff]
      %v930 = vld [vmem:[#allocation2 + $0xda] sm:$0xff]
      %v931 = vld [vmem:[#allocation2 + $0xe2] sm:$0xff]
      %v932 = vld [vmem:[#allocation2 + $0xf2] sm:$0xff]
      %v933 = vld [vmem:[#allocation2 + $0xfa] sm:$0xff]
      %v934 = vld [vmem:[#allocation2 + $0x10a] sm:$0xff]
      %v935 = vld [vmem:[#allocation2 + $0x112] sm:$0xff]
      %v936 = vld [vmem:[#allocation2 + $0x122] sm:$0xff]
      %v937 = vld [vmem:[#allocation2 + $0x12a] sm:$0xff]
      %v938 = vld [vmem:[#allocation2 + $0x13a] sm:$0xff]
      %v939 = vld [vmem:[#allocation2 + $0x142] sm:$0xff]
      %v940 = vld [vmem:[#allocation2 + $0x152] sm:$0xff]
      %v941 = vld [vmem:[#allocation2 + $0x15a] sm:$0xff]
      %v942 = vld [vmem:[#allocation2 + $0x16a] sm:$0xff]
      %v943 = vld [vmem:[#allocation2 + $0x172] sm:$0xff]
      %v944 = vpack.c.bf16 %v913, %v912
      %v945 = vpack.c.bf16 %v915, %v914
      %v946 = vpack.c.bf16 %v917, %v916
      %v947 = vpack.c.bf16 %v919, %v918
      %v948 = vpack.c.bf16 %v921, %v920
      %v949 = vpack.c.bf16 %v923, %v922
      %v950 = vpack.c.bf16 %v925, %v924
      %v951 = vpack.c.bf16 %v927, %v926
      %v952 = vpack.c.bf16 %v929, %v928
      %v953 = vpack.c.bf16 %v931, %v930
      %v954 = vpack.c.bf16 %v933, %v932
      %v955 = vpack.c.bf16 %v935, %v934
      %v956 = vpack.c.bf16 %v937, %v936
      %v957 = vpack.c.bf16 %v939, %v938
      %v958 = vpack.c.bf16 %v941, %v940
      %v959 = vpack.c.bf16 %v943, %v942
      %s960 = scalar_lea.vmem %s3, 4
      %v961 = vld [vmem:[%s960] sm:$0x3]
      %v963 = vsel %vm199, %v944, 0
      %v966 = vsel %vm199, %v945, 0
      %v969 = vsel %vm199, %v946, 0
      %v972 = vsel %vm199, %v947, 0
      %v975 = vsel %vm199, %v948, 0
      %v978 = vsel %vm199, %v949, 0
      %v981 = vsel %vm199, %v950, 0
      %v984 = vsel %vm199, %v951, 0
      %v987 = vsel %vm199, %v952, 0
      %v990 = vsel %vm199, %v953, 0
      %v993 = vsel %vm199, %v954, 0
      %v996 = vsel %vm199, %v955, 0
      %v999 = vsel %vm199, %v956, 0
      %v1002 = vsel %vm199, %v957, 0
      %v1005 = vsel %vm199, %v958, 0
      %v1008 = vsel %vm199, %v959, 0
      %v1011 = vsel %vm535, %v961, 0
      %1013 = vmatprep.subr.bf16.mxu0 0
      %1014 = vmatpush1.bf16.msra.mxu0 %v1011
      %1015 = vmatprep.subr.bf16.mxu0 0
      %1016 = vmatpush1.bf16.msra.mxu0 0
      %1017 = vmatprep.subr.bf16.mxu0 0
      %1018 = vmatpush1.bf16.msra.mxu0 0
      %1019 = vmatprep.subr.bf16.mxu0 0
      %1020 = vmatpush1.bf16.msra.mxu0 0
      %1021 = vmatprep.subr.bf16.mxu0 0
      %1022 = vmatpush1.bf16.msra.mxu0 0
      %1023 = vmatprep.subr.bf16.mxu0 0
      %1024 = vmatpush1.bf16.msra.mxu0 0
      %1025 = vmatprep.subr.bf16.mxu0 0
      %1026 = vmatpush1.bf16.msra.mxu0 0
      %1027 = vmatprep.subr.bf16.mxu0 0
      %1028 = vmatpush1.bf16.msra.mxu0 0
      %1029 = vmatprep.subr.bf16.mxu0 0
      %1030 = vmatpush1.bf16.msra.mxu0 0
      %1031 = vmatprep.subr.bf16.mxu0 0
      %1032 = vmatpush1.bf16.msra.mxu0 0
      %1033 = vmatprep.subr.bf16.mxu0 0
      %1034 = vmatpush1.bf16.msra.mxu0 0
      %1035 = vmatprep.subr.bf16.mxu0 0
      %1036 = vmatpush1.bf16.msra.mxu0 0
      %1037 = vmatprep.subr.bf16.mxu0 0
      %1038 = vmatpush1.bf16.msra.mxu0 0
      %1039 = vmatprep.subr.bf16.mxu0 0
      %1040 = vmatpush1.bf16.msra.mxu0 0
      %1041 = vmatprep.subr.bf16.mxu0 0
      %1042 = vmatpush1.bf16.msra.mxu0 0
      %1043 = vmatprep.subr.bf16.mxu0 0
      %1044 = vmatpush1.bf16.msra.mxu0 0
      %1045 = vmatprep.mubr.bf16.mxu0 0
      %1046 = vmatmul.mubr.bf16.gmra.mrb[0].mxu0 %v963
      %v1047 = vpop.f32.mrb[0].mxu0
      %v1048 = vadd.f32 0.0, %v1047
      %v1049 = vpop.f32.mrb[0].mxu0
      %v1050 = vpop.f32.mrb[0].mxu0
      %v1051 = vadd.f32 0.0, %v1050
      %v1052 = vpop.f32.mrb[0].mxu0
      %1053 = vmatprep.mubr.bf16.mxu0 0
      %1054 = vmatmul.mubr.bf16.gmra.mrb[0].mxu0 %v966
      %v1055 = vpop.f32.mrb[0].mxu0
      %v1056 = vadd.f32 0.0, %v1055
      %v1057 = vpop.f32.mrb[0].mxu0
      %v1058 = vpop.f32.mrb[0].mxu0
      %v1059 = vadd.f32 0.0, %v1058
      %v1060 = vpop.f32.mrb[0].mxu0
      %1061 = vmatprep.mubr.bf16.mxu0 0
      %1062 = vmatmul.mubr.bf16.gmra.mrb[0].mxu0 %v969
      %v1063 = vpop.f32.mrb[0].mxu0
      %v1064 = vadd.f32 0.0, %v1063
      %v1065 = vpop.f32.mrb[0].mxu0
      %v1066 = vpop.f32.mrb[0].mxu0
      %v1067 = vadd.f32 0.0, %v1066
      %v1068 = vpop.f32.mrb[0].mxu0
      %1069 = vmatprep.mubr.bf16.mxu0 0
      %1070 = vmatmul.mubr.bf16.gmra.mrb[0].mxu0 %v972
      %v1071 = vpop.f32.mrb[0].mxu0
      %v1072 = vadd.f32 0.0, %v1071
      %v1073 = vpop.f32.mrb[0].mxu0
      %v1074 = vpop.f32.mrb[0].mxu0
      %v1075 = vadd.f32 0.0, %v1074
      %v1076 = vpop.f32.mrb[0].mxu0
      %1077 = vmatprep.mubr.bf16.mxu0 0
      %1078 = vmatmul.mubr.bf16.gmra.mrb[0].mxu0 %v975
      %v1079 = vpop.f32.mrb[0].mxu0
      %v1080 = vadd.f32 0.0, %v1079
      %v1081 = vpop.f32.mrb[0].mxu0
      %v1082 = vpop.f32.mrb[0].mxu0
      %v1083 = vadd.f32 0.0, %v1082
      %v1084 = vpop.f32.mrb[0].mxu0
      %1085 = vmatprep.mubr.bf16.mxu0 0
      %1086 = vmatmul.mubr.bf16.gmra.mrb[0].mxu0 %v978
      %v1087 = vpop.f32.mrb[0].mxu0
      %v1088 = vadd.f32 0.0, %v1087
      %v1089 = vpop.f32.mrb[0].mxu0
      %v1090 = vpop.f32.mrb[0].mxu0
      %v1091 = vadd.f32 0.0, %v1090
      %v1092 = vpop.f32.mrb[0].mxu0
      %1093 = vmatprep.mubr.bf16.mxu0 0
      %1094 = vmatmul.mubr.bf16.gmra.mrb[0].mxu0 %v981
      %v1095 = vpop.f32.mrb[0].mxu0
      %v1096 = vadd.f32 0.0, %v1095
      %v1097 = vpop.f32.mrb[0].mxu0
      %v1098 = vpop.f32.mrb[0].mxu0
      %v1099 = vadd.f32 0.0, %v1098
      %v1100 = vpop.f32.mrb[0].mxu0
      %1101 = vmatprep.mubr.bf16.mxu0 0
      %1102 = vmatmul.mubr.bf16.gmra.mrb[0].mxu0 %v984
      %v1103 = vpop.f32.mrb[0].mxu0
      %v1104 = vadd.f32 0.0, %v1103
      %v1105 = vpop.f32.mrb[0].mxu0
      %v1106 = vpop.f32.mrb[0].mxu0
      %v1107 = vadd.f32 0.0, %v1106
      %v1108 = vpop.f32.mrb[0].mxu0
      %1109 = vmatprep.mubr.bf16.mxu0 0
      %1110 = vmatmul.mubr.bf16.gmra.mrb[0].mxu0 %v987
      %v1111 = vpop.f32.mrb[0].mxu0
      %v1112 = vadd.f32 0.0, %v1111
      %v1113 = vpop.f32.mrb[0].mxu0
      %v1114 = vpop.f32.mrb[0].mxu0
      %v1115 = vadd.f32 0.0, %v1114
      %v1116 = vpop.f32.mrb[0].mxu0
      %1117 = vmatprep.mubr.bf16.mxu0 0
      %1118 = vmatmul.mubr.bf16.gmra.mrb[0].mxu0 %v990
      %v1119 = vpop.f32.mrb[0].mxu0
      %v1120 = vadd.f32 0.0, %v1119
      %v1121 = vpop.f32.mrb[0].mxu0
      %v1122 = vpop.f32.mrb[0].mxu0
      %v1123 = vadd.f32 0.0, %v1122
      %v1124 = vpop.f32.mrb[0].mxu0
      %1125 = vmatprep.mubr.bf16.mxu0 0
      %1126 = vmatmul.mubr.bf16.gmra.mrb[0].mxu0 %v993
      %v1127 = vpop.f32.mrb[0].mxu0
      %v1128 = vadd.f32 0.0, %v1127
      %v1129 = vpop.f32.mrb[0].mxu0
      %v1130 = vpop.f32.mrb[0].mxu0
      %v1131 = vadd.f32 0.0, %v1130
      %v1132 = vpop.f32.mrb[0].mxu0
      %1133 = vmatprep.mubr.bf16.mxu0 0
      %1134 = vmatmul.mubr.bf16.gmra.mrb[0].mxu0 %v996
      %v1135 = vpop.f32.mrb[0].mxu0
      %v1136 = vadd.f32 0.0, %v1135
      %v1137 = vpop.f32.mrb[0].mxu0
      %v1138 = vpop.f32.mrb[0].mxu0
      %v1139 = vadd.f32 0.0, %v1138
      %v1140 = vpop.f32.mrb[0].mxu0
      %1141 = vmatprep.mubr.bf16.mxu0 0
      %1142 = vmatmul.mubr.bf16.gmra.mrb[0].mxu0 %v999
      %v1143 = vpop.f32.mrb[0].mxu0
      %v1144 = vadd.f32 0.0, %v1143
      %v1145 = vpop.f32.mrb[0].mxu0
      %v1146 = vpop.f32.mrb[0].mxu0
      %v1147 = vadd.f32 0.0, %v1146
      %v1148 = vpop.f32.mrb[0].mxu0
      %1149 = vmatprep.mubr.bf16.mxu0 0
      %1150 = vmatmul.mubr.bf16.gmra.mrb[0].mxu0 %v1002
      %v1151 = vpop.f32.mrb[0].mxu0
      %v1152 = vadd.f32 0.0, %v1151
      %v1153 = vpop.f32.mrb[0].mxu0
      %v1154 = vpop.f32.mrb[0].mxu0
      %v1155 = vadd.f32 0.0, %v1154
      %v1156 = vpop.f32.mrb[0].mxu0
      %1157 = vmatprep.mubr.bf16.mxu0 0
      %1158 = vmatmul.mubr.bf16.gmra.mrb[0].mxu0 %v1005
      %v1159 = vpop.f32.mrb[0].mxu0
      %v1160 = vadd.f32 0.0, %v1159
      %v1161 = vpop.f32.mrb[0].mxu0
      %v1162 = vpop.f32.mrb[0].mxu0
      %v1163 = vadd.f32 0.0, %v1162
      %v1164 = vpop.f32.mrb[0].mxu0
      %1165 = vmatprep.mubr.bf16.mxu0 0
      %1166 = vmatmul.mubr.bf16.gmra.mrb[0].mxu0 %v1008
      %v1167 = vpop.f32.mrb[0].mxu0
      %v1168 = vadd.f32 0.0, %v1167
      %v1169 = vpop.f32.mrb[0].mxu0
      %v1170 = vpop.f32.mrb[0].mxu0
      %v1171 = vadd.f32 0.0, %v1170
      %v1172 = vpop.f32.mrb[0].mxu0
      %1173 = vdwg.mxu0
      %v1174 = vadd.f32 %v786, %v1048
      %v1175 = vadd.f32 %v789, %v1051
      %v1176 = vadd.f32 %v794, %v1056
      %v1177 = vadd.f32 %v797, %v1059
      %v1178 = vadd.f32 %v802, %v1064
      %v1179 = vadd.f32 %v805, %v1067
      %v1180 = vadd.f32 %v810, %v1072
      %v1181 = vadd.f32 %v813, %v1075
      %v1182 = vadd.f32 %v818, %v1080
      %v1183 = vadd.f32 %v821, %v1083
      %v1184 = vadd.f32 %v826, %v1088
      %v1185 = vadd.f32 %v829, %v1091
      %v1186 = vadd.f32 %v834, %v1096
      %v1187 = vadd.f32 %v837, %v1099
      %v1188 = vadd.f32 %v842, %v1104
      %v1189 = vadd.f32 %v845, %v1107
      %v1190 = vadd.f32 %v850, %v1112
      %v1191 = vadd.f32 %v853, %v1115
      %v1192 = vadd.f32 %v858, %v1120
      %v1193 = vadd.f32 %v861, %v1123
      %v1194 = vadd.f32 %v866, %v1128
      %v1195 = vadd.f32 %v869, %v1131
      %v1196 = vadd.f32 %v874, %v1136
      %v1197 = vadd.f32 %v877, %v1139
      %v1198 = vadd.f32 %v882, %v1144
      %v1199 = vadd.f32 %v885, %v1147
      %v1200 = vadd.f32 %v890, %v1152
      %v1201 = vadd.f32 %v893, %v1155
      %v1202 = vadd.f32 %v898, %v1160
      %v1203 = vadd.f32 %v901, %v1163
      %v1204 = vadd.f32 %v906, %v1168
      %v1205 = vadd.f32 %v909, %v1171
      %v1206 = vld [vmem:[%s355] sm:$0xff]
      %v1207 = vld [vmem:[%s355 + $0x8] sm:$0xff]
      %v1208 = vld [vmem:[%s355 + $0x18] sm:$0xff]
      %v1209 = vld [vmem:[%s355 + $0x20] sm:$0xff]
      %v1210 = vld [vmem:[%s355 + $0x30] sm:$0xff]
      %v1211 = vld [vmem:[%s355 + $0x38] sm:$0xff]
      %v1212 = vld [vmem:[%s355 + $0x48] sm:$0xff]
      %v1213 = vld [vmem:[%s355 + $0x50] sm:$0xff]
      %v1214 = vld [vmem:[%s355 + $0x60] sm:$0xff]
      %v1215 = vld [vmem:[%s355 + $0x68] sm:$0xff]
      %v1216 = vld [vmem:[%s355 + $0x78] sm:$0xff]
      %v1217 = vld [vmem:[%s355 + $0x80] sm:$0xff]
      %v1218 = vld [vmem:[%s355 + $0x90] sm:$0xff]
      %v1219 = vld [vmem:[%s355 + $0x98] sm:$0xff]
      %v1220 = vld [vmem:[%s355 + $0xa8] sm:$0xff]
      %v1221 = vld [vmem:[%s355 + $0xb0] sm:$0xff]
      %v1222 = vld [vmem:[%s355 + $0xc0] sm:$0xff]
      %v1223 = vld [vmem:[%s355 + $0xc8] sm:$0xff]
      %v1224 = vld [vmem:[%s355 + $0xd8] sm:$0xff]
      %v1225 = vld [vmem:[%s355 + $0xe0] sm:$0xff]
      %v1226 = vld [vmem:[%s355 + $0xf0] sm:$0xff]
      %v1227 = vld [vmem:[%s355 + $0xf8] sm:$0xff]
      %v1228 = vld [vmem:[%s355 + $0x108] sm:$0xff]
      %v1229 = vld [vmem:[%s355 + $0x110] sm:$0xff]
      %v1230 = vld [vmem:[%s355 + $0x120] sm:$0xff]
      %v1231 = vld [vmem:[%s355 + $0x128] sm:$0xff]
      %v1232 = vld [vmem:[%s355 + $0x138] sm:$0xff]
      %v1233 = vld [vmem:[%s355 + $0x140] sm:$0xff]
      %v1234 = vld [vmem:[%s355 + $0x150] sm:$0xff]
      %v1235 = vld [vmem:[%s355 + $0x158] sm:$0xff]
      %v1236 = vld [vmem:[%s355 + $0x168] sm:$0xff]
      %v1237 = vld [vmem:[%s355 + $0x170] sm:$0xff]
      %v1238 = vpack.c.bf16 %v1207, %v1206
      %v1239 = vpack.c.bf16 %v1209, %v1208
      %v1240 = vpack.c.bf16 %v1211, %v1210
      %v1241 = vpack.c.bf16 %v1213, %v1212
      %v1242 = vpack.c.bf16 %v1215, %v1214
      %v1243 = vpack.c.bf16 %v1217, %v1216
      %v1244 = vpack.c.bf16 %v1219, %v1218
      %v1245 = vpack.c.bf16 %v1221, %v1220
      %v1246 = vpack.c.bf16 %v1223, %v1222
      %v1247 = vpack.c.bf16 %v1225, %v1224
      %v1248 = vpack.c.bf16 %v1227, %v1226
      %v1249 = vpack.c.bf16 %v1229, %v1228
      %v1250 = vpack.c.bf16 %v1231, %v1230
      %v1251 = vpack.c.bf16 %v1233, %v1232
      %v1252 = vpack.c.bf16 %v1235, %v1234
      %v1253 = vpack.c.bf16 %v1237, %v1236
      %s1254 = scalar_lea.vmem %s3, 6
      %v1255 = vld [vmem:[%s1254] sm:$0x3]
      %v1257 = vsel %vm199, %v1238, 0
      %v1260 = vsel %vm199, %v1239, 0
      %v1263 = vsel %vm199, %v1240, 0
      %v1266 = vsel %vm199, %v1241, 0
      %v1269 = vsel %vm199, %v1242, 0
      %v1272 = vsel %vm199, %v1243, 0
      %v1275 = vsel %vm199, %v1244, 0
      %v1278 = vsel %vm199, %v1245, 0
      %v1281 = vsel %vm199, %v1246, 0
      %v1284 = vsel %vm199, %v1247, 0
      %v1287 = vsel %vm199, %v1248, 0
      %v1290 = vsel %vm199, %v1249, 0
      %v1293 = vsel %vm199, %v1250, 0
      %v1296 = vsel %vm199, %v1251, 0
      %v1299 = vsel %vm199, %v1252, 0
      %v1302 = vsel %vm199, %v1253, 0
      %v1305 = vsel %vm535, %v1255, 0
      %1307 = vmatprep.subr.bf16.mxu0 0
      %1308 = vmatpush1.bf16.msra.mxu0 %v1305
      %1309 = vmatprep.subr.bf16.mxu0 0
      %1310 = vmatpush1.bf16.msra.mxu0 0
      %1311 = vmatprep.subr.bf16.mxu0 0
      %1312 = vmatpush1.bf16.msra.mxu0 0
      %1313 = vmatprep.subr.bf16.mxu0 0
      %1314 = vmatpush1.bf16.msra.mxu0 0
      %1315 = vmatprep.subr.bf16.mxu0 0
      %1316 = vmatpush1.bf16.msra.mxu0 0
      %1317 = vmatprep.subr.bf16.mxu0 0
      %1318 = vmatpush1.bf16.msra.mxu0 0
      %1319 = vmatprep.subr.bf16.mxu0 0
      %1320 = vmatpush1.bf16.msra.mxu0 0
      %1321 = vmatprep.subr.bf16.mxu0 0
      %1322 = vmatpush1.bf16.msra.mxu0 0
      %1323 = vmatprep.subr.bf16.mxu0 0
      %1324 = vmatpush1.bf16.msra.mxu0 0
      %1325 = vmatprep.subr.bf16.mxu0 0
      %1326 = vmatpush1.bf16.msra.mxu0 0
      %1327 = vmatprep.subr.bf16.mxu0 0
      %1328 = vmatpush1.bf16.msra.mxu0 0
      %1329 = vmatprep.subr.bf16.mxu0 0
      %1330 = vmatpush1.bf16.msra.mxu0 0
      %1331 = vmatprep.subr.bf16.mxu0 0
      %1332 = vmatpush1.bf16.msra.mxu0 0
      %1333 = vmatprep.subr.bf16.mxu0 0
      %1334 = vmatpush1.bf16.msra.mxu0 0
      %1335 = vmatprep.subr.bf16.mxu0 0
      %1336 = vmatpush1.bf16.msra.mxu0 0
      %1337 = vmatprep.subr.bf16.mxu0 0
      %1338 = vmatpush1.bf16.msra.mxu0 0
      %1339 = vmatprep.mubr.bf16.mxu0 0
      %1340 = vmatmul.mubr.bf16.gmra.mrb[0].mxu0 %v1257
      %v1341 = vpop.f32.mrb[0].mxu0
      %v1342 = vadd.f32 0.0, %v1341
      %v1343 = vpop.f32.mrb[0].mxu0
      %v1344 = vpop.f32.mrb[0].mxu0
      %v1345 = vadd.f32 0.0, %v1344
      %v1346 = vpop.f32.mrb[0].mxu0
      %1347 = vmatprep.mubr.bf16.mxu0 0
      %1348 = vmatmul.mubr.bf16.gmra.mrb[0].mxu0 %v1260
      %v1349 = vpop.f32.mrb[0].mxu0
      %v1350 = vadd.f32 0.0, %v1349
      %v1351 = vpop.f32.mrb[0].mxu0
      %v1352 = vpop.f32.mrb[0].mxu0
      %v1353 = vadd.f32 0.0, %v1352
      %v1354 = vpop.f32.mrb[0].mxu0
      %1355 = vmatprep.mubr.bf16.mxu0 0
      %1356 = vmatmul.mubr.bf16.gmra.mrb[0].mxu0 %v1263
      %v1357 = vpop.f32.mrb[0].mxu0
      %v1358 = vadd.f32 0.0, %v1357
      %v1359 = vpop.f32.mrb[0].mxu0
      %v1360 = vpop.f32.mrb[0].mxu0
      %v1361 = vadd.f32 0.0, %v1360
      %v1362 = vpop.f32.mrb[0].mxu0
      %1363 = vmatprep.mubr.bf16.mxu0 0
      %1364 = vmatmul.mubr.bf16.gmra.mrb[0].mxu0 %v1266
      %v1365 = vpop.f32.mrb[0].mxu0
      %v1366 = vadd.f32 0.0, %v1365
      %v1367 = vpop.f32.mrb[0].mxu0
      %v1368 = vpop.f32.mrb[0].mxu0
      %v1369 = vadd.f32 0.0, %v1368
      %v1370 = vpop.f32.mrb[0].mxu0
      %1371 = vmatprep.mubr.bf16.mxu0 0
      %1372 = vmatmul.mubr.bf16.gmra.mrb[0].mxu0 %v1269
      %v1373 = vpop.f32.mrb[0].mxu0
      %v1374 = vadd.f32 0.0, %v1373
      %v1375 = vpop.f32.mrb[0].mxu0
      %v1376 = vpop.f32.mrb[0].mxu0
      %v1377 = vadd.f32 0.0, %v1376
      %v1378 = vpop.f32.mrb[0].mxu0
      %1379 = vmatprep.mubr.bf16.mxu0 0
      %1380 = vmatmul.mubr.bf16.gmra.mrb[0].mxu0 %v1272
      %v1381 = vpop.f32.mrb[0].mxu0
      %v1382 = vadd.f32 0.0, %v1381
      %v1383 = vpop.f32.mrb[0].mxu0
      %v1384 = vpop.f32.mrb[0].mxu0
      %v1385 = vadd.f32 0.0, %v1384
      %v1386 = vpop.f32.mrb[0].mxu0
      %1387 = vmatprep.mubr.bf16.mxu0 0
      %1388 = vmatmul.mubr.bf16.gmra.mrb[0].mxu0 %v1275
      %v1389 = vpop.f32.mrb[0].mxu0
      %v1390 = vadd.f32 0.0, %v1389
      %v1391 = vpop.f32.mrb[0].mxu0
      %v1392 = vpop.f32.mrb[0].mxu0
      %v1393 = vadd.f32 0.0, %v1392
      %v1394 = vpop.f32.mrb[0].mxu0
      %1395 = vmatprep.mubr.bf16.mxu0 0
      %1396 = vmatmul.mubr.bf16.gmra.mrb[0].mxu0 %v1278
      %v1397 = vpop.f32.mrb[0].mxu0
      %v1398 = vadd.f32 0.0, %v1397
      %v1399 = vpop.f32.mrb[0].mxu0
      %v1400 = vpop.f32.mrb[0].mxu0
      %v1401 = vadd.f32 0.0, %v1400
      %v1402 = vpop.f32.mrb[0].mxu0
      %1403 = vmatprep.mubr.bf16.mxu0 0
      %1404 = vmatmul.mubr.bf16.gmra.mrb[0].mxu0 %v1281
      %v1405 = vpop.f32.mrb[0].mxu0
      %v1406 = vadd.f32 0.0, %v1405
      %v1407 = vpop.f32.mrb[0].mxu0
      %v1408 = vpop.f32.mrb[0].mxu0
      %v1409 = vadd.f32 0.0, %v1408
      %v1410 = vpop.f32.mrb[0].mxu0
      %1411 = vmatprep.mubr.bf16.mxu0 0
      %1412 = vmatmul.mubr.bf16.gmra.mrb[0].mxu0 %v1284
      %v1413 = vpop.f32.mrb[0].mxu0
      %v1414 = vadd.f32 0.0, %v1413
      %v1415 = vpop.f32.mrb[0].mxu0
      %v1416 = vpop.f32.mrb[0].mxu0
      %v1417 = vadd.f32 0.0, %v1416
      %v1418 = vpop.f32.mrb[0].mxu0
      %1419 = vmatprep.mubr.bf16.mxu0 0
      %1420 = vmatmul.mubr.bf16.gmra.mrb[0].mxu0 %v1287
      %v1421 = vpop.f32.mrb[0].mxu0
      %v1422 = vadd.f32 0.0, %v1421
      %v1423 = vpop.f32.mrb[0].mxu0
      %v1424 = vpop.f32.mrb[0].mxu0
      %v1425 = vadd.f32 0.0, %v1424
      %v1426 = vpop.f32.mrb[0].mxu0
      %1427 = vmatprep.mubr.bf16.mxu0 0
      %1428 = vmatmul.mubr.bf16.gmra.mrb[0].mxu0 %v1290
      %v1429 = vpop.f32.mrb[0].mxu0
      %v1430 = vadd.f32 0.0, %v1429
      %v1431 = vpop.f32.mrb[0].mxu0
      %v1432 = vpop.f32.mrb[0].mxu0
      %v1433 = vadd.f32 0.0, %v1432
      %v1434 = vpop.f32.mrb[0].mxu0
      %1435 = vmatprep.mubr.bf16.mxu0 0
      %1436 = vmatmul.mubr.bf16.gmra.mrb[0].mxu0 %v1293
      %v1437 = vpop.f32.mrb[0].mxu0
      %v1438 = vadd.f32 0.0, %v1437
      %v1439 = vpop.f32.mrb[0].mxu0
      %v1440 = vpop.f32.mrb[0].mxu0
      %v1441 = vadd.f32 0.0, %v1440
      %v1442 = vpop.f32.mrb[0].mxu0
      %1443 = vmatprep.mubr.bf16.mxu0 0
      %1444 = vmatmul.mubr.bf16.gmra.mrb[0].mxu0 %v1296
      %v1445 = vpop.f32.mrb[0].mxu0
      %v1446 = vadd.f32 0.0, %v1445
      %v1447 = vpop.f32.mrb[0].mxu0
      %v1448 = vpop.f32.mrb[0].mxu0
      %v1449 = vadd.f32 0.0, %v1448
      %v1450 = vpop.f32.mrb[0].mxu0
      %1451 = vmatprep.mubr.bf16.mxu0 0
      %1452 = vmatmul.mubr.bf16.gmra.mrb[0].mxu0 %v1299
      %v1453 = vpop.f32.mrb[0].mxu0
      %v1454 = vadd.f32 0.0, %v1453
      %v1455 = vpop.f32.mrb[0].mxu0
      %v1456 = vpop.f32.mrb[0].mxu0
      %v1457 = vadd.f32 0.0, %v1456
      %v1458 = vpop.f32.mrb[0].mxu0
      %1459 = vmatprep.mubr.bf16.mxu0 0
      %1460 = vmatmul.mubr.bf16.gmra.mrb[0].mxu0 %v1302
      %v1461 = vpop.f32.mrb[0].mxu0
      %v1462 = vadd.f32 0.0, %v1461
      %v1463 = vpop.f32.mrb[0].mxu0
      %v1464 = vpop.f32.mrb[0].mxu0
      %v1465 = vadd.f32 0.0, %v1464
      %v1466 = vpop.f32.mrb[0].mxu0
      %1467 = vdwg.mxu0
      %v1468 = vadd.f32 %v1174, %v1342
      %v1469 = vadd.f32 %v1175, %v1345
      %v1470 = vadd.f32 %v1176, %v1350
      %v1471 = vadd.f32 %v1177, %v1353
      %v1472 = vadd.f32 %v1178, %v1358
      %v1473 = vadd.f32 %v1179, %v1361
      %v1474 = vadd.f32 %v1180, %v1366
      %v1475 = vadd.f32 %v1181, %v1369
      %v1476 = vadd.f32 %v1182, %v1374
      %v1477 = vadd.f32 %v1183, %v1377
      %v1478 = vadd.f32 %v1184, %v1382
      %v1479 = vadd.f32 %v1185, %v1385
      %v1480 = vadd.f32 %v1186, %v1390
      %v1481 = vadd.f32 %v1187, %v1393
      %v1482 = vadd.f32 %v1188, %v1398
      %v1483 = vadd.f32 %v1189, %v1401
      %v1484 = vadd.f32 %v1190, %v1406
      %v1485 = vadd.f32 %v1191, %v1409
      %v1486 = vadd.f32 %v1192, %v1414
      %v1487 = vadd.f32 %v1193, %v1417
      %v1488 = vadd.f32 %v1194, %v1422
      %v1489 = vadd.f32 %v1195, %v1425
      %v1490 = vadd.f32 %v1196, %v1430
      %v1491 = vadd.f32 %v1197, %v1433
      %v1492 = vadd.f32 %v1198, %v1438
      %v1493 = vadd.f32 %v1199, %v1441
      %v1494 = vadd.f32 %v1200, %v1446
      %v1495 = vadd.f32 %v1201, %v1449
      %v1496 = vadd.f32 %v1202, %v1454
      %v1497 = vadd.f32 %v1203, %v1457
      %v1498 = vadd.f32 %v1204, %v1462
      %v1499 = vadd.f32 %v1205, %v1465
      %v1500 = vld [vmem:[%s355 + $0x1] sm:$0xff]
      %v1501 = vld [vmem:[%s355 + $0x9] sm:$0xff]
      %v1502 = vld [vmem:[%s355 + $0x19] sm:$0xff]
      %v1503 = vld [vmem:[%s355 + $0x21] sm:$0xff]
      %v1504 = vld [vmem:[%s355 + $0x31] sm:$0xff]
      %v1505 = vld [vmem:[%s355 + $0x39] sm:$0xff]
      %v1506 = vld [vmem:[%s355 + $0x49] sm:$0xff]
      %v1507 = vld [vmem:[%s355 + $0x51] sm:$0xff]
      %v1508 = vld [vmem:[%s355 + $0x61] sm:$0xff]
      %v1509 = vld [vmem:[%s355 + $0x69] sm:$0xff]
      %v1510 = vld [vmem:[%s355 + $0x79] sm:$0xff]
      %v1511 = vld [vmem:[%s355 + $0x81] sm:$0xff]
      %v1512 = vld [vmem:[%s355 + $0x91] sm:$0xff]
      %v1513 = vld [vmem:[%s355 + $0x99] sm:$0xff]
      %v1514 = vld [vmem:[%s355 + $0xa9] sm:$0xff]
      %v1515 = vld [vmem:[%s355 + $0xb1] sm:$0xff]
      %v1516 = vld [vmem:[%s355 + $0xc1] sm:$0xff]
      %v1517 = vld [vmem:[%s355 + $0xc9] sm:$0xff]
      %v1518 = vld [vmem:[%s355 + $0xd9] sm:$0xff]
      %v1519 = vld [vmem:[%s355 + $0xe1] sm:$0xff]
      %v1520 = vld [vmem:[%s355 + $0xf1] sm:$0xff]
      %v1521 = vld [vmem:[%s355 + $0xf9] sm:$0xff]
      %v1522 = vld [vmem:[%s355 + $0x109] sm:$0xff]
      %v1523 = vld [vmem:[%s355 + $0x111] sm:$0xff]
      %v1524 = vld [vmem:[%s355 + $0x121] sm:$0xff]
      %v1525 = vld [vmem:[%s355 + $0x129] sm:$0xff]
      %v1526 = vld [vmem:[%s355 + $0x139] sm:$0xff]
      %v1527 = vld [vmem:[%s355 + $0x141] sm:$0xff]
      %v1528 = vld [vmem:[%s355 + $0x151] sm:$0xff]
      %v1529 = vld [vmem:[%s355 + $0x159] sm:$0xff]
      %v1530 = vld [vmem:[%s355 + $0x169] sm:$0xff]
      %v1531 = vld [vmem:[%s355 + $0x171] sm:$0xff]
      %v1532 = vpack.c.bf16 %v1501, %v1500
      %v1533 = vpack.c.bf16 %v1503, %v1502
      %v1534 = vpack.c.bf16 %v1505, %v1504
      %v1535 = vpack.c.bf16 %v1507, %v1506
      %v1536 = vpack.c.bf16 %v1509, %v1508
      %v1537 = vpack.c.bf16 %v1511, %v1510
      %v1538 = vpack.c.bf16 %v1513, %v1512
      %v1539 = vpack.c.bf16 %v1515, %v1514
      %v1540 = vpack.c.bf16 %v1517, %v1516
      %v1541 = vpack.c.bf16 %v1519, %v1518
      %v1542 = vpack.c.bf16 %v1521, %v1520
      %v1543 = vpack.c.bf16 %v1523, %v1522
      %v1544 = vpack.c.bf16 %v1525, %v1524
      %v1545 = vpack.c.bf16 %v1527, %v1526
      %v1546 = vpack.c.bf16 %v1529, %v1528
      %v1547 = vpack.c.bf16 %v1531, %v1530
      %s1548 = scalar_lea.vmem %s3, 8
      %v1549 = vld [vmem:[%s1548] sm:$0x3]
      %v1551 = vsel %vm199, %v1532, 0
      %v1554 = vsel %vm199, %v1533, 0
      %v1557 = vsel %vm199, %v1534, 0
      %v1560 = vsel %vm199, %v1535, 0
      %v1563 = vsel %vm199, %v1536, 0
      %v1566 = vsel %vm199, %v1537, 0
      %v1569 = vsel %vm199, %v1538, 0
      %v1572 = vsel %vm199, %v1539, 0
      %v1575 = vsel %vm199, %v1540, 0
      %v1578 = vsel %vm199, %v1541, 0
      %v1581 = vsel %vm199, %v1542, 0
      %v1584 = vsel %vm199, %v1543, 0
      %v1587 = vsel %vm199, %v1544, 0
      %v1590 = vsel %vm199, %v1545, 0
      %v1593 = vsel %vm199, %v1546, 0
      %v1596 = vsel %vm199, %v1547, 0
      %v1599 = vsel %vm535, %v1549, 0
      %1601 = vmatprep.subr.bf16.mxu0 0
      %1602 = vmatpush1.bf16.msra.mxu0 %v1599
      %1603 = vmatprep.subr.bf16.mxu0 0
      %1604 = vmatpush1.bf16.msra.mxu0 0
      %1605 = vmatprep.subr.bf16.mxu0 0
      %1606 = vmatpush1.bf16.msra.mxu0 0
      %1607 = vmatprep.subr.bf16.mxu0 0
      %1608 = vmatpush1.bf16.msra.mxu0 0
      %1609 = vmatprep.subr.bf16.mxu0 0
      %1610 = vmatpush1.bf16.msra.mxu0 0
      %1611 = vmatprep.subr.bf16.mxu0 0
      %1612 = vmatpush1.bf16.msra.mxu0 0
      %1613 = vmatprep.subr.bf16.mxu0 0
      %1614 = vmatpush1.bf16.msra.mxu0 0
      %1615 = vmatprep.subr.bf16.mxu0 0
      %1616 = vmatpush1.bf16.msra.mxu0 0
      %1617 = vmatprep.subr.bf16.mxu0 0
      %1618 = vmatpush1.bf16.msra.mxu0 0
      %1619 = vmatprep.subr.bf16.mxu0 0
      %1620 = vmatpush1.bf16.msra.mxu0 0
      %1621 = vmatprep.subr.bf16.mxu0 0
      %1622 = vmatpush1.bf16.msra.mxu0 0
      %1623 = vmatprep.subr.bf16.mxu0 0
      %1624 = vmatpush1.bf16.msra.mxu0 0
      %1625 = vmatprep.subr.bf16.mxu0 0
      %1626 = vmatpush1.bf16.msra.mxu0 0
      %1627 = vmatprep.subr.bf16.mxu0 0
      %1628 = vmatpush1.bf16.msra.mxu0 0
      %1629 = vmatprep.subr.bf16.mxu0 0
      %1630 = vmatpush1.bf16.msra.mxu0 0
      %1631 = vmatprep.subr.bf16.mxu0 0
      %1632 = vmatpush1.bf16.msra.mxu0 0
      %1633 = vmatprep.mubr.bf16.mxu0 0
      %1634 = vmatmul.mubr.bf16.gmra.mrb[0].mxu0 %v1551
      %v1635 = vpop.f32.mrb[0].mxu0
      %v1636 = vadd.f32 0.0, %v1635
      %v1637 = vpop.f32.mrb[0].mxu0
      %v1638 = vpop.f32.mrb[0].mxu0
      %v1639 = vadd.f32 0.0, %v1638
      %v1640 = vpop.f32.mrb[0].mxu0
      %1641 = vmatprep.mubr.bf16.mxu0 0
      %1642 = vmatmul.mubr.bf16.gmra.mrb[0].mxu0 %v1554
      %v1643 = vpop.f32.mrb[0].mxu0
      %v1644 = vadd.f32 0.0, %v1643
      %v1645 = vpop.f32.mrb[0].mxu0
      %v1646 = vpop.f32.mrb[0].mxu0
      %v1647 = vadd.f32 0.0, %v1646
      %v1648 = vpop.f32.mrb[0].mxu0
      %1649 = vmatprep.mubr.bf16.mxu0 0
      %1650 = vmatmul.mubr.bf16.gmra.mrb[0].mxu0 %v1557
      %v1651 = vpop.f32.mrb[0].mxu0
      %v1652 = vadd.f32 0.0, %v1651
      %v1653 = vpop.f32.mrb[0].mxu0
      %v1654 = vpop.f32.mrb[0].mxu0
      %v1655 = vadd.f32 0.0, %v1654
      %v1656 = vpop.f32.mrb[0].mxu0
      %1657 = vmatprep.mubr.bf16.mxu0 0
      %1658 = vmatmul.mubr.bf16.gmra.mrb[0].mxu0 %v1560
      %v1659 = vpop.f32.mrb[0].mxu0
      %v1660 = vadd.f32 0.0, %v1659
      %v1661 = vpop.f32.mrb[0].mxu0
      %v1662 = vpop.f32.mrb[0].mxu0
      %v1663 = vadd.f32 0.0, %v1662
      %v1664 = vpop.f32.mrb[0].mxu0
      %1665 = vmatprep.mubr.bf16.mxu0 0
      %1666 = vmatmul.mubr.bf16.gmra.mrb[0].mxu0 %v1563
      %v1667 = vpop.f32.mrb[0].mxu0
      %v1668 = vadd.f32 0.0, %v1667
      %v1669 = vpop.f32.mrb[0].mxu0
      %v1670 = vpop.f32.mrb[0].mxu0
      %v1671 = vadd.f32 0.0, %v1670
      %v1672 = vpop.f32.mrb[0].mxu0
      %1673 = vmatprep.mubr.bf16.mxu0 0
      %1674 = vmatmul.mubr.bf16.gmra.mrb[0].mxu0 %v1566
      %v1675 = vpop.f32.mrb[0].mxu0
      %v1676 = vadd.f32 0.0, %v1675
      %v1677 = vpop.f32.mrb[0].mxu0
      %v1678 = vpop.f32.mrb[0].mxu0
      %v1679 = vadd.f32 0.0, %v1678
      %v1680 = vpop.f32.mrb[0].mxu0
      %1681 = vmatprep.mubr.bf16.mxu0 0
      %1682 = vmatmul.mubr.bf16.gmra.mrb[0].mxu0 %v1569
      %v1683 = vpop.f32.mrb[0].mxu0
      %v1684 = vadd.f32 0.0, %v1683
      %v1685 = vpop.f32.mrb[0].mxu0
      %v1686 = vpop.f32.mrb[0].mxu0
      %v1687 = vadd.f32 0.0, %v1686
      %v1688 = vpop.f32.mrb[0].mxu0
      %1689 = vmatprep.mubr.bf16.mxu0 0
      %1690 = vmatmul.mubr.bf16.gmra.mrb[0].mxu0 %v1572
      %v1691 = vpop.f32.mrb[0].mxu0
      %v1692 = vadd.f32 0.0, %v1691
      %v1693 = vpop.f32.mrb[0].mxu0
      %v1694 = vpop.f32.mrb[0].mxu0
      %v1695 = vadd.f32 0.0, %v1694
      %v1696 = vpop.f32.mrb[0].mxu0
      %1697 = vmatprep.mubr.bf16.mxu0 0
      %1698 = vmatmul.mubr.bf16.gmra.mrb[0].mxu0 %v1575
      %v1699 = vpop.f32.mrb[0].mxu0
      %v1700 = vadd.f32 0.0, %v1699
      %v1701 = vpop.f32.mrb[0].mxu0
      %v1702 = vpop.f32.mrb[0].mxu0
      %v1703 = vadd.f32 0.0, %v1702
      %v1704 = vpop.f32.mrb[0].mxu0
      %1705 = vmatprep.mubr.bf16.mxu0 0
      %1706 = vmatmul.mubr.bf16.gmra.mrb[0].mxu0 %v1578
      %v1707 = vpop.f32.mrb[0].mxu0
      %v1708 = vadd.f32 0.0, %v1707
      %v1709 = vpop.f32.mrb[0].mxu0
      %v1710 = vpop.f32.mrb[0].mxu0
      %v1711 = vadd.f32 0.0, %v1710
      %v1712 = vpop.f32.mrb[0].mxu0
      %1713 = vmatprep.mubr.bf16.mxu0 0
      %1714 = vmatmul.mubr.bf16.gmra.mrb[0].mxu0 %v1581
      %v1715 = vpop.f32.mrb[0].mxu0
      %v1716 = vadd.f32 0.0, %v1715
      %v1717 = vpop.f32.mrb[0].mxu0
      %v1718 = vpop.f32.mrb[0].mxu0
      %v1719 = vadd.f32 0.0, %v1718
      %v1720 = vpop.f32.mrb[0].mxu0
      %1721 = vmatprep.mubr.bf16.mxu0 0
      %1722 = vmatmul.mubr.bf16.gmra.mrb[0].mxu0 %v1584
      %v1723 = vpop.f32.mrb[0].mxu0
      %v1724 = vadd.f32 0.0, %v1723
      %v1725 = vpop.f32.mrb[0].mxu0
      %v1726 = vpop.f32.mrb[0].mxu0
      %v1727 = vadd.f32 0.0, %v1726
      %v1728 = vpop.f32.mrb[0].mxu0
      %1729 = vmatprep.mubr.bf16.mxu0 0
      %1730 = vmatmul.mubr.bf16.gmra.mrb[0].mxu0 %v1587
      %v1731 = vpop.f32.mrb[0].mxu0
      %v1732 = vadd.f32 0.0, %v1731
      %v1733 = vpop.f32.mrb[0].mxu0
      %v1734 = vpop.f32.mrb[0].mxu0
      %v1735 = vadd.f32 0.0, %v1734
      %v1736 = vpop.f32.mrb[0].mxu0
      %1737 = vmatprep.mubr.bf16.mxu0 0
      %1738 = vmatmul.mubr.bf16.gmra.mrb[0].mxu0 %v1590
      %v1739 = vpop.f32.mrb[0].mxu0
      %v1740 = vadd.f32 0.0, %v1739
      %v1741 = vpop.f32.mrb[0].mxu0
      %v1742 = vpop.f32.mrb[0].mxu0
      %v1743 = vadd.f32 0.0, %v1742
      %v1744 = vpop.f32.mrb[0].mxu0
      %1745 = vmatprep.mubr.bf16.mxu0 0
      %1746 = vmatmul.mubr.bf16.gmra.mrb[0].mxu0 %v1593
      %v1747 = vpop.f32.mrb[0].mxu0
      %v1748 = vadd.f32 0.0, %v1747
      %v1749 = vpop.f32.mrb[0].mxu0
      %v1750 = vpop.f32.mrb[0].mxu0
      %v1751 = vadd.f32 0.0, %v1750
      %v1752 = vpop.f32.mrb[0].mxu0
      %1753 = vmatprep.mubr.bf16.mxu0 0
      %1754 = vmatmul.mubr.bf16.gmra.mrb[0].mxu0 %v1596
      %v1755 = vpop.f32.mrb[0].mxu0
      %v1756 = vadd.f32 0.0, %v1755
      %v1757 = vpop.f32.mrb[0].mxu0
      %v1758 = vpop.f32.mrb[0].mxu0
      %v1759 = vadd.f32 0.0, %v1758
      %v1760 = vpop.f32.mrb[0].mxu0
      %1761 = vdwg.mxu0
      %v1762 = vadd.f32 %v1468, %v1636
      %v1763 = vadd.f32 %v1469, %v1639
      %v1764 = vadd.f32 %v1470, %v1644
      %v1765 = vadd.f32 %v1471, %v1647
      %v1766 = vadd.f32 %v1472, %v1652
      %v1767 = vadd.f32 %v1473, %v1655
      %v1768 = vadd.f32 %v1474, %v1660
      %v1769 = vadd.f32 %v1475, %v1663
      %v1770 = vadd.f32 %v1476, %v1668
      %v1771 = vadd.f32 %v1477, %v1671
      %v1772 = vadd.f32 %v1478, %v1676
      %v1773 = vadd.f32 %v1479, %v1679
      %v1774 = vadd.f32 %v1480, %v1684
      %v1775 = vadd.f32 %v1481, %v1687
      %v1776 = vadd.f32 %v1482, %v1692
      %v1777 = vadd.f32 %v1483, %v1695
      %v1778 = vadd.f32 %v1484, %v1700
      %v1779 = vadd.f32 %v1485, %v1703
      %v1780 = vadd.f32 %v1486, %v1708
      %v1781 = vadd.f32 %v1487, %v1711
      %v1782 = vadd.f32 %v1488, %v1716
      %v1783 = vadd.f32 %v1489, %v1719
      %v1784 = vadd.f32 %v1490, %v1724
      %v1785 = vadd.f32 %v1491, %v1727
      %v1786 = vadd.f32 %v1492, %v1732
      %v1787 = vadd.f32 %v1493, %v1735
      %v1788 = vadd.f32 %v1494, %v1740
      %v1789 = vadd.f32 %v1495, %v1743
      %v1790 = vadd.f32 %v1496, %v1748
      %v1791 = vadd.f32 %v1497, %v1751
      %v1792 = vadd.f32 %v1498, %v1756
      %v1793 = vadd.f32 %v1499, %v1759
      %v1794 = vld [vmem:[%s355 + $0x2] sm:$0xff]
      %v1795 = vld [vmem:[%s355 + $0xa] sm:$0xff]
      %v1796 = vld [vmem:[%s355 + $0x1a] sm:$0xff]
      %v1797 = vld [vmem:[%s355 + $0x22] sm:$0xff]
      %v1798 = vld [vmem:[%s355 + $0x32] sm:$0xff]
      %v1799 = vld [vmem:[%s355 + $0x3a] sm:$0xff]
      %v1800 = vld [vmem:[%s355 + $0x4a] sm:$0xff]
      %v1801 = vld [vmem:[%s355 + $0x52] sm:$0xff]
      %v1802 = vld [vmem:[%s355 + $0x62] sm:$0xff]
      %v1803 = vld [vmem:[%s355 + $0x6a] sm:$0xff]
      %v1804 = vld [vmem:[%s355 + $0x7a] sm:$0xff]
      %v1805 = vld [vmem:[%s355 + $0x82] sm:$0xff]
      %v1806 = vld [vmem:[%s355 + $0x92] sm:$0xff]
      %v1807 = vld [vmem:[%s355 + $0x9a] sm:$0xff]
      %v1808 = vld [vmem:[%s355 + $0xaa] sm:$0xff]
      %v1809 = vld [vmem:[%s355 + $0xb2] sm:$0xff]
      %v1810 = vld [vmem:[%s355 + $0xc2] sm:$0xff]
      %v1811 = vld [vmem:[%s355 + $0xca] sm:$0xff]
      %v1812 = vld [vmem:[%s355 + $0xda] sm:$0xff]
      %v1813 = vld [vmem:[%s355 + $0xe2] sm:$0xff]
      %v1814 = vld [vmem:[%s355 + $0xf2] sm:$0xff]
      %v1815 = vld [vmem:[%s355 + $0xfa] sm:$0xff]
      %v1816 = vld [vmem:[%s355 + $0x10a] sm:$0xff]
      %v1817 = vld [vmem:[%s355 + $0x112] sm:$0xff]
      %v1818 = vld [vmem:[%s355 + $0x122] sm:$0xff]
      %v1819 = vld [vmem:[%s355 + $0x12a] sm:$0xff]
      %v1820 = vld [vmem:[%s355 + $0x13a] sm:$0xff]
      %v1821 = vld [vmem:[%s355 + $0x142] sm:$0xff]
      %v1822 = vld [vmem:[%s355 + $0x152] sm:$0xff]
      %v1823 = vld [vmem:[%s355 + $0x15a] sm:$0xff]
      %v1824 = vld [vmem:[%s355 + $0x16a] sm:$0xff]
      %v1825 = vld [vmem:[%s355 + $0x172] sm:$0xff]
      %v1826 = vpack.c.bf16 %v1795, %v1794
      %v1827 = vpack.c.bf16 %v1797, %v1796
      %v1828 = vpack.c.bf16 %v1799, %v1798
      %v1829 = vpack.c.bf16 %v1801, %v1800
      %v1830 = vpack.c.bf16 %v1803, %v1802
      %v1831 = vpack.c.bf16 %v1805, %v1804
      %v1832 = vpack.c.bf16 %v1807, %v1806
      %v1833 = vpack.c.bf16 %v1809, %v1808
      %v1834 = vpack.c.bf16 %v1811, %v1810
      %v1835 = vpack.c.bf16 %v1813, %v1812
      %v1836 = vpack.c.bf16 %v1815, %v1814
      %v1837 = vpack.c.bf16 %v1817, %v1816
      %v1838 = vpack.c.bf16 %v1819, %v1818
      %v1839 = vpack.c.bf16 %v1821, %v1820
      %v1840 = vpack.c.bf16 %v1823, %v1822
      %v1841 = vpack.c.bf16 %v1825, %v1824
      %s1842 = scalar_lea.vmem %s3, 10
      %v1843 = vld [vmem:[%s1842] sm:$0x3]
      %v1845 = vsel %vm199, %v1826, 0
      %v1848 = vsel %vm199, %v1827, 0
      %v1851 = vsel %vm199, %v1828, 0
      %v1854 = vsel %vm199, %v1829, 0
      %v1857 = vsel %vm199, %v1830, 0
      %v1860 = vsel %vm199, %v1831, 0
      %v1863 = vsel %vm199, %v1832, 0
      %v1866 = vsel %vm199, %v1833, 0
      %v1869 = vsel %vm199, %v1834, 0
      %v1872 = vsel %vm199, %v1835, 0
      %v1875 = vsel %vm199, %v1836, 0
      %v1878 = vsel %vm199, %v1837, 0
      %v1881 = vsel %vm199, %v1838, 0
      %v1884 = vsel %vm199, %v1839, 0
      %v1887 = vsel %vm199, %v1840, 0
      %v1890 = vsel %vm199, %v1841, 0
      %v1893 = vsel %vm535, %v1843, 0
      %1895 = vmatprep.subr.bf16.mxu0 0
      %1896 = vmatpush1.bf16.msra.mxu0 %v1893
      %1897 = vmatprep.subr.bf16.mxu0 0
      %1898 = vmatpush1.bf16.msra.mxu0 0
      %1899 = vmatprep.subr.bf16.mxu0 0
      %1900 = vmatpush1.bf16.msra.mxu0 0
      %1901 = vmatprep.subr.bf16.mxu0 0
      %1902 = vmatpush1.bf16.msra.mxu0 0
      %1903 = vmatprep.subr.bf16.mxu0 0
      %1904 = vmatpush1.bf16.msra.mxu0 0
      %1905 = vmatprep.subr.bf16.mxu0 0
      %1906 = vmatpush1.bf16.msra.mxu0 0
      %1907 = vmatprep.subr.bf16.mxu0 0
      %1908 = vmatpush1.bf16.msra.mxu0 0
      %1909 = vmatprep.subr.bf16.mxu0 0
      %1910 = vmatpush1.bf16.msra.mxu0 0
      %1911 = vmatprep.subr.bf16.mxu0 0
      %1912 = vmatpush1.bf16.msra.mxu0 0
      %1913 = vmatprep.subr.bf16.mxu0 0
      %1914 = vmatpush1.bf16.msra.mxu0 0
      %1915 = vmatprep.subr.bf16.mxu0 0
      %1916 = vmatpush1.bf16.msra.mxu0 0
      %1917 = vmatprep.subr.bf16.mxu0 0
      %1918 = vmatpush1.bf16.msra.mxu0 0
      %1919 = vmatprep.subr.bf16.mxu0 0
      %1920 = vmatpush1.bf16.msra.mxu0 0
      %1921 = vmatprep.subr.bf16.mxu0 0
      %1922 = vmatpush1.bf16.msra.mxu0 0
      %1923 = vmatprep.subr.bf16.mxu0 0
      %1924 = vmatpush1.bf16.msra.mxu0 0
      %1925 = vmatprep.subr.bf16.mxu0 0
      %1926 = vmatpush1.bf16.msra.mxu0 0
      %1927 = vmatprep.mubr.bf16.mxu0 0
      %1928 = vmatmul.mubr.bf16.gmra.mrb[0].mxu0 %v1845
      %v1929 = vpop.f32.mrb[0].mxu0
      %v1930 = vadd.f32 0.0, %v1929
      %v1931 = vpop.f32.mrb[0].mxu0
      %v1932 = vpop.f32.mrb[0].mxu0
      %v1933 = vadd.f32 0.0, %v1932
      %v1934 = vpop.f32.mrb[0].mxu0
      %1935 = vmatprep.mubr.bf16.mxu0 0
      %1936 = vmatmul.mubr.bf16.gmra.mrb[0].mxu0 %v1848
      %v1937 = vpop.f32.mrb[0].mxu0
      %v1938 = vadd.f32 0.0, %v1937
      %v1939 = vpop.f32.mrb[0].mxu0
      %v1940 = vpop.f32.mrb[0].mxu0
      %v1941 = vadd.f32 0.0, %v1940
      %v1942 = vpop.f32.mrb[0].mxu0
      %1943 = vmatprep.mubr.bf16.mxu0 0
      %1944 = vmatmul.mubr.bf16.gmra.mrb[0].mxu0 %v1851
      %v1945 = vpop.f32.mrb[0].mxu0
      %v1946 = vadd.f32 0.0, %v1945
      %v1947 = vpop.f32.mrb[0].mxu0
      %v1948 = vpop.f32.mrb[0].mxu0
      %v1949 = vadd.f32 0.0, %v1948
      %v1950 = vpop.f32.mrb[0].mxu0
      %1951 = vmatprep.mubr.bf16.mxu0 0
      %1952 = vmatmul.mubr.bf16.gmra.mrb[0].mxu0 %v1854
      %v1953 = vpop.f32.mrb[0].mxu0
      %v1954 = vadd.f32 0.0, %v1953
      %v1955 = vpop.f32.mrb[0].mxu0
      %v1956 = vpop.f32.mrb[0].mxu0
      %v1957 = vadd.f32 0.0, %v1956
      %v1958 = vpop.f32.mrb[0].mxu0
      %1959 = vmatprep.mubr.bf16.mxu0 0
      %1960 = vmatmul.mubr.bf16.gmra.mrb[0].mxu0 %v1857
      %v1961 = vpop.f32.mrb[0].mxu0
      %v1962 = vadd.f32 0.0, %v1961
      %v1963 = vpop.f32.mrb[0].mxu0
      %v1964 = vpop.f32.mrb[0].mxu0
      %v1965 = vadd.f32 0.0, %v1964
      %v1966 = vpop.f32.mrb[0].mxu0
      %1967 = vmatprep.mubr.bf16.mxu0 0
      %1968 = vmatmul.mubr.bf16.gmra.mrb[0].mxu0 %v1860
      %v1969 = vpop.f32.mrb[0].mxu0
      %v1970 = vadd.f32 0.0, %v1969
      %v1971 = vpop.f32.mrb[0].mxu0
      %v1972 = vpop.f32.mrb[0].mxu0
      %v1973 = vadd.f32 0.0, %v1972
      %v1974 = vpop.f32.mrb[0].mxu0
      %1975 = vmatprep.mubr.bf16.mxu0 0
      %1976 = vmatmul.mubr.bf16.gmra.mrb[0].mxu0 %v1863
      %v1977 = vpop.f32.mrb[0].mxu0
      %v1978 = vadd.f32 0.0, %v1977
      %v1979 = vpop.f32.mrb[0].mxu0
      %v1980 = vpop.f32.mrb[0].mxu0
      %v1981 = vadd.f32 0.0, %v1980
      %v1982 = vpop.f32.mrb[0].mxu0
      %1983 = vmatprep.mubr.bf16.mxu0 0
      %1984 = vmatmul.mubr.bf16.gmra.mrb[0].mxu0 %v1866
      %v1985 = vpop.f32.mrb[0].mxu0
      %v1986 = vadd.f32 0.0, %v1985
      %v1987 = vpop.f32.mrb[0].mxu0
      %v1988 = vpop.f32.mrb[0].mxu0
      %v1989 = vadd.f32 0.0, %v1988
      %v1990 = vpop.f32.mrb[0].mxu0
      %1991 = vmatprep.mubr.bf16.mxu0 0
      %1992 = vmatmul.mubr.bf16.gmra.mrb[0].mxu0 %v1869
      %v1993 = vpop.f32.mrb[0].mxu0
      %v1994 = vadd.f32 0.0, %v1993
      %v1995 = vpop.f32.mrb[0].mxu0
      %v1996 = vpop.f32.mrb[0].mxu0
      %v1997 = vadd.f32 0.0, %v1996
      %v1998 = vpop.f32.mrb[0].mxu0
      %1999 = vmatprep.mubr.bf16.mxu0 0
      %2000 = vmatmul.mubr.bf16.gmra.mrb[0].mxu0 %v1872
      %v2001 = vpop.f32.mrb[0].mxu0
      %v2002 = vadd.f32 0.0, %v2001
      %v2003 = vpop.f32.mrb[0].mxu0
      %v2004 = vpop.f32.mrb[0].mxu0
      %v2005 = vadd.f32 0.0, %v2004
      %v2006 = vpop.f32.mrb[0].mxu0
      %2007 = vmatprep.mubr.bf16.mxu0 0
      %2008 = vmatmul.mubr.bf16.gmra.mrb[0].mxu0 %v1875
      %v2009 = vpop.f32.mrb[0].mxu0
      %v2010 = vadd.f32 0.0, %v2009
      %v2011 = vpop.f32.mrb[0].mxu0
      %v2012 = vpop.f32.mrb[0].mxu0
      %v2013 = vadd.f32 0.0, %v2012
      %v2014 = vpop.f32.mrb[0].mxu0
      %2015 = vmatprep.mubr.bf16.mxu0 0
      %2016 = vmatmul.mubr.bf16.gmra.mrb[0].mxu0 %v1878
      %v2017 = vpop.f32.mrb[0].mxu0
      %v2018 = vadd.f32 0.0, %v2017
      %v2019 = vpop.f32.mrb[0].mxu0
      %v2020 = vpop.f32.mrb[0].mxu0
      %v2021 = vadd.f32 0.0, %v2020
      %v2022 = vpop.f32.mrb[0].mxu0
      %2023 = vmatprep.mubr.bf16.mxu0 0
      %2024 = vmatmul.mubr.bf16.gmra.mrb[0].mxu0 %v1881
      %v2025 = vpop.f32.mrb[0].mxu0
      %v2026 = vadd.f32 0.0, %v2025
      %v2027 = vpop.f32.mrb[0].mxu0
      %v2028 = vpop.f32.mrb[0].mxu0
      %v2029 = vadd.f32 0.0, %v2028
      %v2030 = vpop.f32.mrb[0].mxu0
      %2031 = vmatprep.mubr.bf16.mxu0 0
      %2032 = vmatmul.mubr.bf16.gmra.mrb[0].mxu0 %v1884
      %v2033 = vpop.f32.mrb[0].mxu0
      %v2034 = vadd.f32 0.0, %v2033
      %v2035 = vpop.f32.mrb[0].mxu0
      %v2036 = vpop.f32.mrb[0].mxu0
      %v2037 = vadd.f32 0.0, %v2036
      %v2038 = vpop.f32.mrb[0].mxu0
      %2039 = vmatprep.mubr.bf16.mxu0 0
      %2040 = vmatmul.mubr.bf16.gmra.mrb[0].mxu0 %v1887
      %v2041 = vpop.f32.mrb[0].mxu0
      %v2042 = vadd.f32 0.0, %v2041
      %v2043 = vpop.f32.mrb[0].mxu0
      %v2044 = vpop.f32.mrb[0].mxu0
      %v2045 = vadd.f32 0.0, %v2044
      %v2046 = vpop.f32.mrb[0].mxu0
      %2047 = vmatprep.mubr.bf16.mxu0 0
      %2048 = vmatmul.mubr.bf16.gmra.mrb[0].mxu0 %v1890
      %v2049 = vpop.f32.mrb[0].mxu0
      %v2050 = vadd.f32 0.0, %v2049
      %v2051 = vpop.f32.mrb[0].mxu0
      %v2052 = vpop.f32.mrb[0].mxu0
      %v2053 = vadd.f32 0.0, %v2052
      %v2054 = vpop.f32.mrb[0].mxu0
      %2055 = vdwg.mxu0
      %v2056 = vadd.f32 %v1762, %v1930
      %v2057 = vadd.f32 %v1763, %v1933
      %v2058 = vadd.f32 %v1764, %v1938
      %v2059 = vadd.f32 %v1765, %v1941
      %v2060 = vadd.f32 %v1766, %v1946
      %v2061 = vadd.f32 %v1767, %v1949
      %v2062 = vadd.f32 %v1768, %v1954
      %v2063 = vadd.f32 %v1769, %v1957
      %v2064 = vadd.f32 %v1770, %v1962
      %v2065 = vadd.f32 %v1771, %v1965
      %v2066 = vadd.f32 %v1772, %v1970
      %v2067 = vadd.f32 %v1773, %v1973
      %v2068 = vadd.f32 %v1774, %v1978
      %v2069 = vadd.f32 %v1775, %v1981
      %v2070 = vadd.f32 %v1776, %v1986
      %v2071 = vadd.f32 %v1777, %v1989
      %v2072 = vadd.f32 %v1778, %v1994
      %v2073 = vadd.f32 %v1779, %v1997
      %v2074 = vadd.f32 %v1780, %v2002
      %v2075 = vadd.f32 %v1781, %v2005
      %v2076 = vadd.f32 %v1782, %v2010
      %v2077 = vadd.f32 %v1783, %v2013
      %v2078 = vadd.f32 %v1784, %v2018
      %v2079 = vadd.f32 %v1785, %v2021
      %v2080 = vadd.f32 %v1786, %v2026
      %v2081 = vadd.f32 %v1787, %v2029
      %v2082 = vadd.f32 %v1788, %v2034
      %v2083 = vadd.f32 %v1789, %v2037
      %v2084 = vadd.f32 %v1790, %v2042
      %v2085 = vadd.f32 %v1791, %v2045
      %v2086 = vadd.f32 %v1792, %v2050
      %v2087 = vadd.f32 %v1793, %v2053
      %s2088 = scalar_lea.vmem [#allocation2], 48
      %v2089 = vld [vmem:[%s2088] sm:$0xff]
      %v2090 = vld [vmem:[%s2088 + $0x8] sm:$0xff]
      %v2091 = vld [vmem:[%s2088 + $0x18] sm:$0xff]
      %v2092 = vld [vmem:[%s2088 + $0x20] sm:$0xff]
      %v2093 = vld [vmem:[%s2088 + $0x30] sm:$0xff]
      %v2094 = vld [vmem:[%s2088 + $0x38] sm:$0xff]
      %v2095 = vld [vmem:[%s2088 + $0x48] sm:$0xff]
      %v2096 = vld [vmem:[%s2088 + $0x50] sm:$0xff]
      %v2097 = vld [vmem:[%s2088 + $0x60] sm:$0xff]
      %v2098 = vld [vmem:[%s2088 + $0x68] sm:$0xff]
      %v2099 = vld [vmem:[%s2088 + $0x78] sm:$0xff]
      %v2100 = vld [vmem:[%s2088 + $0x80] sm:$0xff]
      %v2101 = vld [vmem:[%s2088 + $0x90] sm:$0xff]
      %v2102 = vld [vmem:[%s2088 + $0x98] sm:$0xff]
      %v2103 = vld [vmem:[%s2088 + $0xa8] sm:$0xff]
      %v2104 = vld [vmem:[%s2088 + $0xb0] sm:$0xff]
      %v2105 = vld [vmem:[%s2088 + $0xc0] sm:$0xff]
      %v2106 = vld [vmem:[%s2088 + $0xc8] sm:$0xff]
      %v2107 = vld [vmem:[%s2088 + $0xd8] sm:$0xff]
      %v2108 = vld [vmem:[%s2088 + $0xe0] sm:$0xff]
      %v2109 = vld [vmem:[%s2088 + $0xf0] sm:$0xff]
      %v2110 = vld [vmem:[%s2088 + $0xf8] sm:$0xff]
      %v2111 = vld [vmem:[%s2088 + $0x108] sm:$0xff]
      %v2112 = vld [vmem:[%s2088 + $0x110] sm:$0xff]
      %v2113 = vld [vmem:[%s2088 + $0x120] sm:$0xff]
      %v2114 = vld [vmem:[%s2088 + $0x128] sm:$0xff]
      %v2115 = vld [vmem:[%s2088 + $0x138] sm:$0xff]
      %v2116 = vld [vmem:[%s2088 + $0x140] sm:$0xff]
      %v2117 = vld [vmem:[%s2088 + $0x150] sm:$0xff]
      %v2118 = vld [vmem:[%s2088 + $0x158] sm:$0xff]
      %v2119 = vld [vmem:[%s2088 + $0x168] sm:$0xff]
      %v2120 = vld [vmem:[%s2088 + $0x170] sm:$0xff]
      %v2121 = vpack.c.bf16 %v2090, %v2089
      %v2122 = vpack.c.bf16 %v2092, %v2091
      %v2123 = vpack.c.bf16 %v2094, %v2093
      %v2124 = vpack.c.bf16 %v2096, %v2095
      %v2125 = vpack.c.bf16 %v2098, %v2097
      %v2126 = vpack.c.bf16 %v2100, %v2099
      %v2127 = vpack.c.bf16 %v2102, %v2101
      %v2128 = vpack.c.bf16 %v2104, %v2103
      %v2129 = vpack.c.bf16 %v2106, %v2105
      %v2130 = vpack.c.bf16 %v2108, %v2107
      %v2131 = vpack.c.bf16 %v2110, %v2109
      %v2132 = vpack.c.bf16 %v2112, %v2111
      %v2133 = vpack.c.bf16 %v2114, %v2113
      %v2134 = vpack.c.bf16 %v2116, %v2115
      %v2135 = vpack.c.bf16 %v2118, %v2117
      %v2136 = vpack.c.bf16 %v2120, %v2119
      %s2137 = scalar_lea.vmem %s3, 12
      %v2138 = vld [vmem:[%s2137] sm:$0x3]
      %v2140 = vsel %vm199, %v2121, 0
      %v2143 = vsel %vm199, %v2122, 0
      %v2146 = vsel %vm199, %v2123, 0
      %v2149 = vsel %vm199, %v2124, 0
      %v2152 = vsel %vm199, %v2125, 0
      %v2155 = vsel %vm199, %v2126, 0
      %v2158 = vsel %vm199, %v2127, 0
      %v2161 = vsel %vm199, %v2128, 0
      %v2164 = vsel %vm199, %v2129, 0
      %v2167 = vsel %vm199, %v2130, 0
      %v2170 = vsel %vm199, %v2131, 0
      %v2173 = vsel %vm199, %v2132, 0
      %v2176 = vsel %vm199, %v2133, 0
      %v2179 = vsel %vm199, %v2134, 0
      %v2182 = vsel %vm199, %v2135, 0
      %v2185 = vsel %vm199, %v2136, 0
      %v2188 = vsel %vm535, %v2138, 0
      %2190 = vmatprep.subr.bf16.mxu0 0
      %2191 = vmatpush1.bf16.msra.mxu0 %v2188
      %2192 = vmatprep.subr.bf16.mxu0 0
      %2193 = vmatpush1.bf16.msra.mxu0 0
      %2194 = vmatprep.subr.bf16.mxu0 0
      %2195 = vmatpush1.bf16.msra.mxu0 0
      %2196 = vmatprep.subr.bf16.mxu0 0
      %2197 = vmatpush1.bf16.msra.mxu0 0
      %2198 = vmatprep.subr.bf16.mxu0 0
      %2199 = vmatpush1.bf16.msra.mxu0 0
      %2200 = vmatprep.subr.bf16.mxu0 0
      %2201 = vmatpush1.bf16.msra.mxu0 0
      %2202 = vmatprep.subr.bf16.mxu0 0
      %2203 = vmatpush1.bf16.msra.mxu0 0
      %2204 = vmatprep.subr.bf16.mxu0 0
      %2205 = vmatpush1.bf16.msra.mxu0 0
      %2206 = vmatprep.subr.bf16.mxu0 0
      %2207 = vmatpush1.bf16.msra.mxu0 0
      %2208 = vmatprep.subr.bf16.mxu0 0
      %2209 = vmatpush1.bf16.msra.mxu0 0
      %2210 = vmatprep.subr.bf16.mxu0 0
      %2211 = vmatpush1.bf16.msra.mxu0 0
      %2212 = vmatprep.subr.bf16.mxu0 0
      %2213 = vmatpush1.bf16.msra.mxu0 0
      %2214 = vmatprep.subr.bf16.mxu0 0
      %2215 = vmatpush1.bf16.msra.mxu0 0
      %2216 = vmatprep.subr.bf16.mxu0 0
      %2217 = vmatpush1.bf16.msra.mxu0 0
      %2218 = vmatprep.subr.bf16.mxu0 0
      %2219 = vmatpush1.bf16.msra.mxu0 0
      %2220 = vmatprep.subr.bf16.mxu0 0
      %2221 = vmatpush1.bf16.msra.mxu0 0
      %2222 = vmatprep.mubr.bf16.mxu0 0
      %2223 = vmatmul.mubr.bf16.gmra.mrb[0].mxu0 %v2140
      %v2224 = vpop.f32.mrb[0].mxu0
      %v2225 = vadd.f32 0.0, %v2224
      %v2226 = vpop.f32.mrb[0].mxu0
      %v2227 = vpop.f32.mrb[0].mxu0
      %v2228 = vadd.f32 0.0, %v2227
      %v2229 = vpop.f32.mrb[0].mxu0
      %2230 = vmatprep.mubr.bf16.mxu0 0
      %2231 = vmatmul.mubr.bf16.gmra.mrb[0].mxu0 %v2143
      %v2232 = vpop.f32.mrb[0].mxu0
      %v2233 = vadd.f32 0.0, %v2232
      %v2234 = vpop.f32.mrb[0].mxu0
      %v2235 = vpop.f32.mrb[0].mxu0
      %v2236 = vadd.f32 0.0, %v2235
      %v2237 = vpop.f32.mrb[0].mxu0
      %2238 = vmatprep.mubr.bf16.mxu0 0
      %2239 = vmatmul.mubr.bf16.gmra.mrb[0].mxu0 %v2146
      %v2240 = vpop.f32.mrb[0].mxu0
      %v2241 = vadd.f32 0.0, %v2240
      %v2242 = vpop.f32.mrb[0].mxu0
      %v2243 = vpop.f32.mrb[0].mxu0
      %v2244 = vadd.f32 0.0, %v2243
      %v2245 = vpop.f32.mrb[0].mxu0
      %2246 = vmatprep.mubr.bf16.mxu0 0
      %2247 = vmatmul.mubr.bf16.gmra.mrb[0].mxu0 %v2149
      %v2248 = vpop.f32.mrb[0].mxu0
      %v2249 = vadd.f32 0.0, %v2248
      %v2250 = vpop.f32.mrb[0].mxu0
      %v2251 = vpop.f32.mrb[0].mxu0
      %v2252 = vadd.f32 0.0, %v2251
      %v2253 = vpop.f32.mrb[0].mxu0
      %2254 = vmatprep.mubr.bf16.mxu0 0
      %2255 = vmatmul.mubr.bf16.gmra.mrb[0].mxu0 %v2152
      %v2256 = vpop.f32.mrb[0].mxu0
      %v2257 = vadd.f32 0.0, %v2256
      %v2258 = vpop.f32.mrb[0].mxu0
      %v2259 = vpop.f32.mrb[0].mxu0
      %v2260 = vadd.f32 0.0, %v2259
      %v2261 = vpop.f32.mrb[0].mxu0
      %2262 = vmatprep.mubr.bf16.mxu0 0
      %2263 = vmatmul.mubr.bf16.gmra.mrb[0].mxu0 %v2155
      %v2264 = vpop.f32.mrb[0].mxu0
      %v2265 = vadd.f32 0.0, %v2264
      %v2266 = vpop.f32.mrb[0].mxu0
      %v2267 = vpop.f32.mrb[0].mxu0
      %v2268 = vadd.f32 0.0, %v2267
      %v2269 = vpop.f32.mrb[0].mxu0
      %2270 = vmatprep.mubr.bf16.mxu0 0
      %2271 = vmatmul.mubr.bf16.gmra.mrb[0].mxu0 %v2158
      %v2272 = vpop.f32.mrb[0].mxu0
      %v2273 = vadd.f32 0.0, %v2272
      %v2274 = vpop.f32.mrb[0].mxu0
      %v2275 = vpop.f32.mrb[0].mxu0
      %v2276 = vadd.f32 0.0, %v2275
      %v2277 = vpop.f32.mrb[0].mxu0
      %2278 = vmatprep.mubr.bf16.mxu0 0
      %2279 = vmatmul.mubr.bf16.gmra.mrb[0].mxu0 %v2161
      %v2280 = vpop.f32.mrb[0].mxu0
      %v2281 = vadd.f32 0.0, %v2280
      %v2282 = vpop.f32.mrb[0].mxu0
      %v2283 = vpop.f32.mrb[0].mxu0
      %v2284 = vadd.f32 0.0, %v2283
      %v2285 = vpop.f32.mrb[0].mxu0
      %2286 = vmatprep.mubr.bf16.mxu0 0
      %2287 = vmatmul.mubr.bf16.gmra.mrb[0].mxu0 %v2164
      %v2288 = vpop.f32.mrb[0].mxu0
      %v2289 = vadd.f32 0.0, %v2288
      %v2290 = vpop.f32.mrb[0].mxu0
      %v2291 = vpop.f32.mrb[0].mxu0
      %v2292 = vadd.f32 0.0, %v2291
      %v2293 = vpop.f32.mrb[0].mxu0
      %2294 = vmatprep.mubr.bf16.mxu0 0
      %2295 = vmatmul.mubr.bf16.gmra.mrb[0].mxu0 %v2167
      %v2296 = vpop.f32.mrb[0].mxu0
      %v2297 = vadd.f32 0.0, %v2296
      %v2298 = vpop.f32.mrb[0].mxu0
      %v2299 = vpop.f32.mrb[0].mxu0
      %v2300 = vadd.f32 0.0, %v2299
      %v2301 = vpop.f32.mrb[0].mxu0
      %2302 = vmatprep.mubr.bf16.mxu0 0
      %2303 = vmatmul.mubr.bf16.gmra.mrb[0].mxu0 %v2170
      %v2304 = vpop.f32.mrb[0].mxu0
      %v2305 = vadd.f32 0.0, %v2304
      %v2306 = vpop.f32.mrb[0].mxu0
      %v2307 = vpop.f32.mrb[0].mxu0
      %v2308 = vadd.f32 0.0, %v2307
      %v2309 = vpop.f32.mrb[0].mxu0
      %2310 = vmatprep.mubr.bf16.mxu0 0
      %2311 = vmatmul.mubr.bf16.gmra.mrb[0].mxu0 %v2173
      %v2312 = vpop.f32.mrb[0].mxu0
      %v2313 = vadd.f32 0.0, %v2312
      %v2314 = vpop.f32.mrb[0].mxu0
      %v2315 = vpop.f32.mrb[0].mxu0
      %v2316 = vadd.f32 0.0, %v2315
      %v2317 = vpop.f32.mrb[0].mxu0
      %2318 = vmatprep.mubr.bf16.mxu0 0
      %2319 = vmatmul.mubr.bf16.gmra.mrb[0].mxu0 %v2176
      %v2320 = vpop.f32.mrb[0].mxu0
      %v2321 = vadd.f32 0.0, %v2320
      %v2322 = vpop.f32.mrb[0].mxu0
      %v2323 = vpop.f32.mrb[0].mxu0
      %v2324 = vadd.f32 0.0, %v2323
      %v2325 = vpop.f32.mrb[0].mxu0
      %2326 = vmatprep.mubr.bf16.mxu0 0
      %2327 = vmatmul.mubr.bf16.gmra.mrb[0].mxu0 %v2179
      %v2328 = vpop.f32.mrb[0].mxu0
      %v2329 = vadd.f32 0.0, %v2328
      %v2330 = vpop.f32.mrb[0].mxu0
      %v2331 = vpop.f32.mrb[0].mxu0
      %v2332 = vadd.f32 0.0, %v2331
      %v2333 = vpop.f32.mrb[0].mxu0
      %2334 = vmatprep.mubr.bf16.mxu0 0
      %2335 = vmatmul.mubr.bf16.gmra.mrb[0].mxu0 %v2182
      %v2336 = vpop.f32.mrb[0].mxu0
      %v2337 = vadd.f32 0.0, %v2336
      %v2338 = vpop.f32.mrb[0].mxu0
      %v2339 = vpop.f32.mrb[0].mxu0
      %v2340 = vadd.f32 0.0, %v2339
      %v2341 = vpop.f32.mrb[0].mxu0
      %2342 = vmatprep.mubr.bf16.mxu0 0
      %2343 = vmatmul.mubr.bf16.gmra.mrb[0].mxu0 %v2185
      %v2344 = vpop.f32.mrb[0].mxu0
      %v2345 = vadd.f32 0.0, %v2344
      %v2346 = vpop.f32.mrb[0].mxu0
      %v2347 = vpop.f32.mrb[0].mxu0
      %v2348 = vadd.f32 0.0, %v2347
      %v2349 = vpop.f32.mrb[0].mxu0
      %2350 = vdwg.mxu0
      %v2351 = vadd.f32 %v2056, %v2225
      %v2352 = vadd.f32 %v2057, %v2228
      %v2353 = vadd.f32 %v2058, %v2233
      %v2354 = vadd.f32 %v2059, %v2236
      %v2355 = vadd.f32 %v2060, %v2241
      %v2356 = vadd.f32 %v2061, %v2244
      %v2357 = vadd.f32 %v2062, %v2249
      %v2358 = vadd.f32 %v2063, %v2252
      %v2359 = vadd.f32 %v2064, %v2257
      %v2360 = vadd.f32 %v2065, %v2260
      %v2361 = vadd.f32 %v2066, %v2265
      %v2362 = vadd.f32 %v2067, %v2268
      %v2363 = vadd.f32 %v2068, %v2273
      %v2364 = vadd.f32 %v2069, %v2276
      %v2365 = vadd.f32 %v2070, %v2281
      %v2366 = vadd.f32 %v2071, %v2284
      %v2367 = vadd.f32 %v2072, %v2289
      %v2368 = vadd.f32 %v2073, %v2292
      %v2369 = vadd.f32 %v2074, %v2297
      %v2370 = vadd.f32 %v2075, %v2300
      %v2371 = vadd.f32 %v2076, %v2305
      %v2372 = vadd.f32 %v2077, %v2308
      %v2373 = vadd.f32 %v2078, %v2313
      %v2374 = vadd.f32 %v2079, %v2316
      %v2375 = vadd.f32 %v2080, %v2321
      %v2376 = vadd.f32 %v2081, %v2324
      %v2377 = vadd.f32 %v2082, %v2329
      %v2378 = vadd.f32 %v2083, %v2332
      %v2379 = vadd.f32 %v2084, %v2337
      %v2380 = vadd.f32 %v2085, %v2340
      %v2381 = vadd.f32 %v2086, %v2345
      %v2382 = vadd.f32 %v2087, %v2348
      %v2383 = vld [vmem:[%s2088 + $0x1] sm:$0xff]
      %v2384 = vld [vmem:[%s2088 + $0x9] sm:$0xff]
      %v2385 = vld [vmem:[%s2088 + $0x19] sm:$0xff]
      %v2386 = vld [vmem:[%s2088 + $0x21] sm:$0xff]
      %v2387 = vld [vmem:[%s2088 + $0x31] sm:$0xff]
      %v2388 = vld [vmem:[%s2088 + $0x39] sm:$0xff]
      %v2389 = vld [vmem:[%s2088 + $0x49] sm:$0xff]
      %v2390 = vld [vmem:[%s2088 + $0x51] sm:$0xff]
      %v2391 = vld [vmem:[%s2088 + $0x61] sm:$0xff]
      %v2392 = vld [vmem:[%s2088 + $0x69] sm:$0xff]
      %v2393 = vld [vmem:[%s2088 + $0x79] sm:$0xff]
      %v2394 = vld [vmem:[%s2088 + $0x81] sm:$0xff]
      %v2395 = vld [vmem:[%s2088 + $0x91] sm:$0xff]
      %v2396 = vld [vmem:[%s2088 + $0x99] sm:$0xff]
      %v2397 = vld [vmem:[%s2088 + $0xa9] sm:$0xff]
      %v2398 = vld [vmem:[%s2088 + $0xb1] sm:$0xff]
      %v2399 = vld [vmem:[%s2088 + $0xc1] sm:$0xff]
      %v2400 = vld [vmem:[%s2088 + $0xc9] sm:$0xff]
      %v2401 = vld [vmem:[%s2088 + $0xd9] sm:$0xff]
      %v2402 = vld [vmem:[%s2088 + $0xe1] sm:$0xff]
      %v2403 = vld [vmem:[%s2088 + $0xf1] sm:$0xff]
      %v2404 = vld [vmem:[%s2088 + $0xf9] sm:$0xff]
      %v2405 = vld [vmem:[%s2088 + $0x109] sm:$0xff]
      %v2406 = vld [vmem:[%s2088 + $0x111] sm:$0xff]
      %v2407 = vld [vmem:[%s2088 + $0x121] sm:$0xff]
      %v2408 = vld [vmem:[%s2088 + $0x129] sm:$0xff]
      %v2409 = vld [vmem:[%s2088 + $0x139] sm:$0xff]
      %v2410 = vld [vmem:[%s2088 + $0x141] sm:$0xff]
      %v2411 = vld [vmem:[%s2088 + $0x151] sm:$0xff]
      %v2412 = vld [vmem:[%s2088 + $0x159] sm:$0xff]
      %v2413 = vld [vmem:[%s2088 + $0x169] sm:$0xff]
      %v2414 = vld [vmem:[%s2088 + $0x171] sm:$0xff]
      %v2415 = vpack.c.bf16 %v2384, %v2383
      %v2416 = vpack.c.bf16 %v2386, %v2385
      %v2417 = vpack.c.bf16 %v2388, %v2387
      %v2418 = vpack.c.bf16 %v2390, %v2389
      %v2419 = vpack.c.bf16 %v2392, %v2391
      %v2420 = vpack.c.bf16 %v2394, %v2393
      %v2421 = vpack.c.bf16 %v2396, %v2395
      %v2422 = vpack.c.bf16 %v2398, %v2397
      %v2423 = vpack.c.bf16 %v2400, %v2399
      %v2424 = vpack.c.bf16 %v2402, %v2401
      %v2425 = vpack.c.bf16 %v2404, %v2403
      %v2426 = vpack.c.bf16 %v2406, %v2405
      %v2427 = vpack.c.bf16 %v2408, %v2407
      %v2428 = vpack.c.bf16 %v2410, %v2409
      %v2429 = vpack.c.bf16 %v2412, %v2411
      %v2430 = vpack.c.bf16 %v2414, %v2413
      %s2431 = scalar_lea.vmem %s3, 14
      %v2432 = vld [vmem:[%s2431] sm:$0x3]
      %v2434 = vsel %vm199, %v2415, 0
      %v2437 = vsel %vm199, %v2416, 0
      %v2440 = vsel %vm199, %v2417, 0
      %v2443 = vsel %vm199, %v2418, 0
      %v2446 = vsel %vm199, %v2419, 0
      %v2449 = vsel %vm199, %v2420, 0
      %v2452 = vsel %vm199, %v2421, 0
      %v2455 = vsel %vm199, %v2422, 0
      %v2458 = vsel %vm199, %v2423, 0
      %v2461 = vsel %vm199, %v2424, 0
      %v2464 = vsel %vm199, %v2425, 0
      %v2467 = vsel %vm199, %v2426, 0
      %v2470 = vsel %vm199, %v2427, 0
      %v2473 = vsel %vm199, %v2428, 0
      %v2476 = vsel %vm199, %v2429, 0
      %v2479 = vsel %vm199, %v2430, 0
      %v2482 = vsel %vm535, %v2432, 0
      %2484 = vmatprep.subr.bf16.mxu0 0
      %2485 = vmatpush1.bf16.msra.mxu0 %v2482
      %2486 = vmatprep.subr.bf16.mxu0 0
      %2487 = vmatpush1.bf16.msra.mxu0 0
      %2488 = vmatprep.subr.bf16.mxu0 0
      %2489 = vmatpush1.bf16.msra.mxu0 0
      %2490 = vmatprep.subr.bf16.mxu0 0
      %2491 = vmatpush1.bf16.msra.mxu0 0
      %2492 = vmatprep.subr.bf16.mxu0 0
      %2493 = vmatpush1.bf16.msra.mxu0 0
      %2494 = vmatprep.subr.bf16.mxu0 0
      %2495 = vmatpush1.bf16.msra.mxu0 0
      %2496 = vmatprep.subr.bf16.mxu0 0
      %2497 = vmatpush1.bf16.msra.mxu0 0
      %2498 = vmatprep.subr.bf16.mxu0 0
      %2499 = vmatpush1.bf16.msra.mxu0 0
      %2500 = vmatprep.subr.bf16.mxu0 0
      %2501 = vmatpush1.bf16.msra.mxu0 0
      %2502 = vmatprep.subr.bf16.mxu0 0
      %2503 = vmatpush1.bf16.msra.mxu0 0
      %2504 = vmatprep.subr.bf16.mxu0 0
      %2505 = vmatpush1.bf16.msra.mxu0 0
      %2506 = vmatprep.subr.bf16.mxu0 0
      %2507 = vmatpush1.bf16.msra.mxu0 0
      %2508 = vmatprep.subr.bf16.mxu0 0
      %2509 = vmatpush1.bf16.msra.mxu0 0
      %2510 = vmatprep.subr.bf16.mxu0 0
      %2511 = vmatpush1.bf16.msra.mxu0 0
      %2512 = vmatprep.subr.bf16.mxu0 0
      %2513 = vmatpush1.bf16.msra.mxu0 0
      %2514 = vmatprep.subr.bf16.mxu0 0
      %2515 = vmatpush1.bf16.msra.mxu0 0
      %2516 = vmatprep.mubr.bf16.mxu0 0
      %2517 = vmatmul.mubr.bf16.gmra.mrb[0].mxu0 %v2434
      %v2518 = vpop.f32.mrb[0].mxu0
      %v2519 = vadd.f32 0.0, %v2518
      %v2520 = vpop.f32.mrb[0].mxu0
      %v2521 = vpop.f32.mrb[0].mxu0
      %v2522 = vadd.f32 0.0, %v2521
      %v2523 = vpop.f32.mrb[0].mxu0
      %2524 = vmatprep.mubr.bf16.mxu0 0
      %2525 = vmatmul.mubr.bf16.gmra.mrb[0].mxu0 %v2437
      %v2526 = vpop.f32.mrb[0].mxu0
      %v2527 = vadd.f32 0.0, %v2526
      %v2528 = vpop.f32.mrb[0].mxu0
      %v2529 = vpop.f32.mrb[0].mxu0
      %v2530 = vadd.f32 0.0, %v2529
      %v2531 = vpop.f32.mrb[0].mxu0
      %2532 = vmatprep.mubr.bf16.mxu0 0
      %2533 = vmatmul.mubr.bf16.gmra.mrb[0].mxu0 %v2440
      %v2534 = vpop.f32.mrb[0].mxu0
      %v2535 = vadd.f32 0.0, %v2534
      %v2536 = vpop.f32.mrb[0].mxu0
      %v2537 = vpop.f32.mrb[0].mxu0
      %v2538 = vadd.f32 0.0, %v2537
      %v2539 = vpop.f32.mrb[0].mxu0
      %2540 = vmatprep.mubr.bf16.mxu0 0
      %2541 = vmatmul.mubr.bf16.gmra.mrb[0].mxu0 %v2443
      %v2542 = vpop.f32.mrb[0].mxu0
      %v2543 = vadd.f32 0.0, %v2542
      %v2544 = vpop.f32.mrb[0].mxu0
      %v2545 = vpop.f32.mrb[0].mxu0
      %v2546 = vadd.f32 0.0, %v2545
      %v2547 = vpop.f32.mrb[0].mxu0
      %2548 = vmatprep.mubr.bf16.mxu0 0
      %2549 = vmatmul.mubr.bf16.gmra.mrb[0].mxu0 %v2446
      %v2550 = vpop.f32.mrb[0].mxu0
      %v2551 = vadd.f32 0.0, %v2550
      %v2552 = vpop.f32.mrb[0].mxu0
      %v2553 = vpop.f32.mrb[0].mxu0
      %v2554 = vadd.f32 0.0, %v2553
      %v2555 = vpop.f32.mrb[0].mxu0
      %2556 = vmatprep.mubr.bf16.mxu0 0
      %2557 = vmatmul.mubr.bf16.gmra.mrb[0].mxu0 %v2449
      %v2558 = vpop.f32.mrb[0].mxu0
      %v2559 = vadd.f32 0.0, %v2558
      %v2560 = vpop.f32.mrb[0].mxu0
      %v2561 = vpop.f32.mrb[0].mxu0
      %v2562 = vadd.f32 0.0, %v2561
      %v2563 = vpop.f32.mrb[0].mxu0
      %2564 = vmatprep.mubr.bf16.mxu0 0
      %2565 = vmatmul.mubr.bf16.gmra.mrb[0].mxu0 %v2452
      %v2566 = vpop.f32.mrb[0].mxu0
      %v2567 = vadd.f32 0.0, %v2566
      %v2568 = vpop.f32.mrb[0].mxu0
      %v2569 = vpop.f32.mrb[0].mxu0
      %v2570 = vadd.f32 0.0, %v2569
      %v2571 = vpop.f32.mrb[0].mxu0
      %2572 = vmatprep.mubr.bf16.mxu0 0
      %2573 = vmatmul.mubr.bf16.gmra.mrb[0].mxu0 %v2455
      %v2574 = vpop.f32.mrb[0].mxu0
      %v2575 = vadd.f32 0.0, %v2574
      %v2576 = vpop.f32.mrb[0].mxu0
      %v2577 = vpop.f32.mrb[0].mxu0
      %v2578 = vadd.f32 0.0, %v2577
      %v2579 = vpop.f32.mrb[0].mxu0
      %2580 = vmatprep.mubr.bf16.mxu0 0
      %2581 = vmatmul.mubr.bf16.gmra.mrb[0].mxu0 %v2458
      %v2582 = vpop.f32.mrb[0].mxu0
      %v2583 = vadd.f32 0.0, %v2582
      %v2584 = vpop.f32.mrb[0].mxu0
      %v2585 = vpop.f32.mrb[0].mxu0
      %v2586 = vadd.f32 0.0, %v2585
      %v2587 = vpop.f32.mrb[0].mxu0
      %2588 = vmatprep.mubr.bf16.mxu0 0
      %2589 = vmatmul.mubr.bf16.gmra.mrb[0].mxu0 %v2461
      %v2590 = vpop.f32.mrb[0].mxu0
      %v2591 = vadd.f32 0.0, %v2590
      %v2592 = vpop.f32.mrb[0].mxu0
      %v2593 = vpop.f32.mrb[0].mxu0
      %v2594 = vadd.f32 0.0, %v2593
      %v2595 = vpop.f32.mrb[0].mxu0
      %2596 = vmatprep.mubr.bf16.mxu0 0
      %2597 = vmatmul.mubr.bf16.gmra.mrb[0].mxu0 %v2464
      %v2598 = vpop.f32.mrb[0].mxu0
      %v2599 = vadd.f32 0.0, %v2598
      %v2600 = vpop.f32.mrb[0].mxu0
      %v2601 = vpop.f32.mrb[0].mxu0
      %v2602 = vadd.f32 0.0, %v2601
      %v2603 = vpop.f32.mrb[0].mxu0
      %2604 = vmatprep.mubr.bf16.mxu0 0
      %2605 = vmatmul.mubr.bf16.gmra.mrb[0].mxu0 %v2467
      %v2606 = vpop.f32.mrb[0].mxu0
      %v2607 = vadd.f32 0.0, %v2606
      %v2608 = vpop.f32.mrb[0].mxu0
      %v2609 = vpop.f32.mrb[0].mxu0
      %v2610 = vadd.f32 0.0, %v2609
      %v2611 = vpop.f32.mrb[0].mxu0
      %2612 = vmatprep.mubr.bf16.mxu0 0
      %2613 = vmatmul.mubr.bf16.gmra.mrb[0].mxu0 %v2470
      %v2614 = vpop.f32.mrb[0].mxu0
      %v2615 = vadd.f32 0.0, %v2614
      %v2616 = vpop.f32.mrb[0].mxu0
      %v2617 = vpop.f32.mrb[0].mxu0
      %v2618 = vadd.f32 0.0, %v2617
      %v2619 = vpop.f32.mrb[0].mxu0
      %2620 = vmatprep.mubr.bf16.mxu0 0
      %2621 = vmatmul.mubr.bf16.gmra.mrb[0].mxu0 %v2473
      %v2622 = vpop.f32.mrb[0].mxu0
      %v2623 = vadd.f32 0.0, %v2622
      %v2624 = vpop.f32.mrb[0].mxu0
      %v2625 = vpop.f32.mrb[0].mxu0
      %v2626 = vadd.f32 0.0, %v2625
      %v2627 = vpop.f32.mrb[0].mxu0
      %2628 = vmatprep.mubr.bf16.mxu0 0
      %2629 = vmatmul.mubr.bf16.gmra.mrb[0].mxu0 %v2476
      %v2630 = vpop.f32.mrb[0].mxu0
      %v2631 = vadd.f32 0.0, %v2630
      %v2632 = vpop.f32.mrb[0].mxu0
      %v2633 = vpop.f32.mrb[0].mxu0
      %v2634 = vadd.f32 0.0, %v2633
      %v2635 = vpop.f32.mrb[0].mxu0
      %2636 = vmatprep.mubr.bf16.mxu0 0
      %2637 = vmatmul.mubr.bf16.gmra.mrb[0].mxu0 %v2479
      %v2638 = vpop.f32.mrb[0].mxu0
      %v2639 = vadd.f32 0.0, %v2638
      %v2640 = vpop.f32.mrb[0].mxu0
      %v2641 = vpop.f32.mrb[0].mxu0
      %v2642 = vadd.f32 0.0, %v2641
      %v2643 = vpop.f32.mrb[0].mxu0
      %2644 = vdwg.mxu0
      %v2645 = vadd.f32 %v2351, %v2519
      %v2646 = vadd.f32 %v2352, %v2522
      %v2647 = vadd.f32 %v2353, %v2527
      %v2648 = vadd.f32 %v2354, %v2530
      %v2649 = vadd.f32 %v2355, %v2535
      %v2650 = vadd.f32 %v2356, %v2538
      %v2651 = vadd.f32 %v2357, %v2543
      %v2652 = vadd.f32 %v2358, %v2546
      %v2653 = vadd.f32 %v2359, %v2551
      %v2654 = vadd.f32 %v2360, %v2554
      %v2655 = vadd.f32 %v2361, %v2559
      %v2656 = vadd.f32 %v2362, %v2562
      %v2657 = vadd.f32 %v2363, %v2567
      %v2658 = vadd.f32 %v2364, %v2570
      %v2659 = vadd.f32 %v2365, %v2575
      %v2660 = vadd.f32 %v2366, %v2578
      %v2661 = vadd.f32 %v2367, %v2583
      %v2662 = vadd.f32 %v2368, %v2586
      %v2663 = vadd.f32 %v2369, %v2591
      %v2664 = vadd.f32 %v2370, %v2594
      %v2665 = vadd.f32 %v2371, %v2599
      %v2666 = vadd.f32 %v2372, %v2602
      %v2667 = vadd.f32 %v2373, %v2607
      %v2668 = vadd.f32 %v2374, %v2610
      %v2669 = vadd.f32 %v2375, %v2615
      %v2670 = vadd.f32 %v2376, %v2618
      %v2671 = vadd.f32 %v2377, %v2623
      %v2672 = vadd.f32 %v2378, %v2626
      %v2673 = vadd.f32 %v2379, %v2631
      %v2674 = vadd.f32 %v2380, %v2634
      %v2675 = vadd.f32 %v2381, %v2639
      %v2676 = vadd.f32 %v2382, %v2642
      %v2677 = vld [vmem:[%s2088 + $0x2] sm:$0xff]
      %v2678 = vld [vmem:[%s2088 + $0xa] sm:$0xff]
      %v2679 = vld [vmem:[%s2088 + $0x1a] sm:$0xff]
      %v2680 = vld [vmem:[%s2088 + $0x22] sm:$0xff]
      %v2681 = vld [vmem:[%s2088 + $0x32] sm:$0xff]
      %v2682 = vld [vmem:[%s2088 + $0x3a] sm:$0xff]
      %v2683 = vld [vmem:[%s2088 + $0x4a] sm:$0xff]
      %v2684 = vld [vmem:[%s2088 + $0x52] sm:$0xff]
      %v2685 = vld [vmem:[%s2088 + $0x62] sm:$0xff]
      %v2686 = vld [vmem:[%s2088 + $0x6a] sm:$0xff]
      %v2687 = vld [vmem:[%s2088 + $0x7a] sm:$0xff]
      %v2688 = vld [vmem:[%s2088 + $0x82] sm:$0xff]
      %v2689 = vld [vmem:[%s2088 + $0x92] sm:$0xff]
      %v2690 = vld [vmem:[%s2088 + $0x9a] sm:$0xff]
      %v2691 = vld [vmem:[%s2088 + $0xaa] sm:$0xff]
      %v2692 = vld [vmem:[%s2088 + $0xb2] sm:$0xff]
      %v2693 = vld [vmem:[%s2088 + $0xc2] sm:$0xff]
      %v2694 = vld [vmem:[%s2088 + $0xca] sm:$0xff]
      %v2695 = vld [vmem:[%s2088 + $0xda] sm:$0xff]
      %v2696 = vld [vmem:[%s2088 + $0xe2] sm:$0xff]
      %v2697 = vld [vmem:[%s2088 + $0xf2] sm:$0xff]
      %v2698 = vld [vmem:[%s2088 + $0xfa] sm:$0xff]
      %v2699 = vld [vmem:[%s2088 + $0x10a] sm:$0xff]
      %v2700 = vld [vmem:[%s2088 + $0x112] sm:$0xff]
      %v2701 = vld [vmem:[%s2088 + $0x122] sm:$0xff]
      %v2702 = vld [vmem:[%s2088 + $0x12a] sm:$0xff]
      %v2703 = vld [vmem:[%s2088 + $0x13a] sm:$0xff]
      %v2704 = vld [vmem:[%s2088 + $0x142] sm:$0xff]
      %v2705 = vld [vmem:[%s2088 + $0x152] sm:$0xff]
      %v2706 = vld [vmem:[%s2088 + $0x15a] sm:$0xff]
      %v2707 = vld [vmem:[%s2088 + $0x16a] sm:$0xff]
      %v2708 = vld [vmem:[%s2088 + $0x172] sm:$0xff]
      %v2709 = vpack.c.bf16 %v2678, %v2677
      %v2710 = vpack.c.bf16 %v2680, %v2679
      %v2711 = vpack.c.bf16 %v2682, %v2681
      %v2712 = vpack.c.bf16 %v2684, %v2683
      %v2713 = vpack.c.bf16 %v2686, %v2685
      %v2714 = vpack.c.bf16 %v2688, %v2687
      %v2715 = vpack.c.bf16 %v2690, %v2689
      %v2716 = vpack.c.bf16 %v2692, %v2691
      %v2717 = vpack.c.bf16 %v2694, %v2693
      %v2718 = vpack.c.bf16 %v2696, %v2695
      %v2719 = vpack.c.bf16 %v2698, %v2697
      %v2720 = vpack.c.bf16 %v2700, %v2699
      %v2721 = vpack.c.bf16 %v2702, %v2701
      %v2722 = vpack.c.bf16 %v2704, %v2703
      %v2723 = vpack.c.bf16 %v2706, %v2705
      %v2724 = vpack.c.bf16 %v2708, %v2707
      %s2725 = scalar_lea.vmem %s3, 16
      %v2726 = vld [vmem:[%s2725] sm:$0x3]
      %v2728 = vsel %vm199, %v2709, 0
      %v2731 = vsel %vm199, %v2710, 0
      %v2734 = vsel %vm199, %v2711, 0
      %v2737 = vsel %vm199, %v2712, 0
      %v2740 = vsel %vm199, %v2713, 0
      %v2743 = vsel %vm199, %v2714, 0
      %v2746 = vsel %vm199, %v2715, 0
      %v2749 = vsel %vm199, %v2716, 0
      %v2752 = vsel %vm199, %v2717, 0
      %v2755 = vsel %vm199, %v2718, 0
      %v2758 = vsel %vm199, %v2719, 0
      %v2761 = vsel %vm199, %v2720, 0
      %v2764 = vsel %vm199, %v2721, 0
      %v2767 = vsel %vm199, %v2722, 0
      %v2770 = vsel %vm199, %v2723, 0
      %v2773 = vsel %vm199, %v2724, 0
      %v2776 = vsel %vm535, %v2726, 0
      %2778 = vmatprep.subr.bf16.mxu0 0
      %2779 = vmatpush1.bf16.msra.mxu0 %v2776
      %2780 = vmatprep.subr.bf16.mxu0 0
      %2781 = vmatpush1.bf16.msra.mxu0 0
      %2782 = vmatprep.subr.bf16.mxu0 0
      %2783 = vmatpush1.bf16.msra.mxu0 0
      %2784 = vmatprep.subr.bf16.mxu0 0
      %2785 = vmatpush1.bf16.msra.mxu0 0
      %2786 = vmatprep.subr.bf16.mxu0 0
      %2787 = vmatpush1.bf16.msra.mxu0 0
      %2788 = vmatprep.subr.bf16.mxu0 0
      %2789 = vmatpush1.bf16.msra.mxu0 0
      %2790 = vmatprep.subr.bf16.mxu0 0
      %2791 = vmatpush1.bf16.msra.mxu0 0
      %2792 = vmatprep.subr.bf16.mxu0 0
      %2793 = vmatpush1.bf16.msra.mxu0 0
      %2794 = vmatprep.subr.bf16.mxu0 0
      %2795 = vmatpush1.bf16.msra.mxu0 0
      %2796 = vmatprep.subr.bf16.mxu0 0
      %2797 = vmatpush1.bf16.msra.mxu0 0
      %2798 = vmatprep.subr.bf16.mxu0 0
      %2799 = vmatpush1.bf16.msra.mxu0 0
      %2800 = vmatprep.subr.bf16.mxu0 0
      %2801 = vmatpush1.bf16.msra.mxu0 0
      %2802 = vmatprep.subr.bf16.mxu0 0
      %2803 = vmatpush1.bf16.msra.mxu0 0
      %2804 = vmatprep.subr.bf16.mxu0 0
      %2805 = vmatpush1.bf16.msra.mxu0 0
      %2806 = vmatprep.subr.bf16.mxu0 0
      %2807 = vmatpush1.bf16.msra.mxu0 0
      %2808 = vmatprep.subr.bf16.mxu0 0
      %2809 = vmatpush1.bf16.msra.mxu0 0
      %2810 = vmatprep.mubr.bf16.mxu0 0
      %2811 = vmatmul.mubr.bf16.gmra.mrb[0].mxu0 %v2728
      %v2812 = vpop.f32.mrb[0].mxu0
      %v2813 = vadd.f32 0.0, %v2812
      %v2814 = vpop.f32.mrb[0].mxu0
      %v2815 = vpop.f32.mrb[0].mxu0
      %v2816 = vadd.f32 0.0, %v2815
      %v2817 = vpop.f32.mrb[0].mxu0
      %2818 = vmatprep.mubr.bf16.mxu0 0
      %2819 = vmatmul.mubr.bf16.gmra.mrb[0].mxu0 %v2731
      %v2820 = vpop.f32.mrb[0].mxu0
      %v2821 = vadd.f32 0.0, %v2820
      %v2822 = vpop.f32.mrb[0].mxu0
      %v2823 = vpop.f32.mrb[0].mxu0
      %v2824 = vadd.f32 0.0, %v2823
      %v2825 = vpop.f32.mrb[0].mxu0
      %2826 = vmatprep.mubr.bf16.mxu0 0
      %2827 = vmatmul.mubr.bf16.gmra.mrb[0].mxu0 %v2734
      %v2828 = vpop.f32.mrb[0].mxu0
      %v2829 = vadd.f32 0.0, %v2828
      %v2830 = vpop.f32.mrb[0].mxu0
      %v2831 = vpop.f32.mrb[0].mxu0
      %v2832 = vadd.f32 0.0, %v2831
      %v2833 = vpop.f32.mrb[0].mxu0
      %2834 = vmatprep.mubr.bf16.mxu0 0
      %2835 = vmatmul.mubr.bf16.gmra.mrb[0].mxu0 %v2737
      %v2836 = vpop.f32.mrb[0].mxu0
      %v2837 = vadd.f32 0.0, %v2836
      %v2838 = vpop.f32.mrb[0].mxu0
      %v2839 = vpop.f32.mrb[0].mxu0
      %v2840 = vadd.f32 0.0, %v2839
      %v2841 = vpop.f32.mrb[0].mxu0
      %2842 = vmatprep.mubr.bf16.mxu0 0
      %2843 = vmatmul.mubr.bf16.gmra.mrb[0].mxu0 %v2740
      %v2844 = vpop.f32.mrb[0].mxu0
      %v2845 = vadd.f32 0.0, %v2844
      %v2846 = vpop.f32.mrb[0].mxu0
      %v2847 = vpop.f32.mrb[0].mxu0
      %v2848 = vadd.f32 0.0, %v2847
      %v2849 = vpop.f32.mrb[0].mxu0
      %2850 = vmatprep.mubr.bf16.mxu0 0
      %2851 = vmatmul.mubr.bf16.gmra.mrb[0].mxu0 %v2743
      %v2852 = vpop.f32.mrb[0].mxu0
      %v2853 = vadd.f32 0.0, %v2852
      %v2854 = vpop.f32.mrb[0].mxu0
      %v2855 = vpop.f32.mrb[0].mxu0
      %v2856 = vadd.f32 0.0, %v2855
      %v2857 = vpop.f32.mrb[0].mxu0
      %2858 = vmatprep.mubr.bf16.mxu0 0
      %2859 = vmatmul.mubr.bf16.gmra.mrb[0].mxu0 %v2746
      %v2860 = vpop.f32.mrb[0].mxu0
      %v2861 = vadd.f32 0.0, %v2860
      %v2862 = vpop.f32.mrb[0].mxu0
      %v2863 = vpop.f32.mrb[0].mxu0
      %v2864 = vadd.f32 0.0, %v2863
      %v2865 = vpop.f32.mrb[0].mxu0
      %2866 = vmatprep.mubr.bf16.mxu0 0
      %2867 = vmatmul.mubr.bf16.gmra.mrb[0].mxu0 %v2749
      %v2868 = vpop.f32.mrb[0].mxu0
      %v2869 = vadd.f32 0.0, %v2868
      %v2870 = vpop.f32.mrb[0].mxu0
      %v2871 = vpop.f32.mrb[0].mxu0
      %v2872 = vadd.f32 0.0, %v2871
      %v2873 = vpop.f32.mrb[0].mxu0
      %2874 = vmatprep.mubr.bf16.mxu0 0
      %2875 = vmatmul.mubr.bf16.gmra.mrb[0].mxu0 %v2752
      %v2876 = vpop.f32.mrb[0].mxu0
      %v2877 = vadd.f32 0.0, %v2876
      %v2878 = vpop.f32.mrb[0].mxu0
      %v2879 = vpop.f32.mrb[0].mxu0
      %v2880 = vadd.f32 0.0, %v2879
      %v2881 = vpop.f32.mrb[0].mxu0
      %2882 = vmatprep.mubr.bf16.mxu0 0
      %2883 = vmatmul.mubr.bf16.gmra.mrb[0].mxu0 %v2755
      %v2884 = vpop.f32.mrb[0].mxu0
      %v2885 = vadd.f32 0.0, %v2884
      %v2886 = vpop.f32.mrb[0].mxu0
      %v2887 = vpop.f32.mrb[0].mxu0
      %v2888 = vadd.f32 0.0, %v2887
      %v2889 = vpop.f32.mrb[0].mxu0
      %2890 = vmatprep.mubr.bf16.mxu0 0
      %2891 = vmatmul.mubr.bf16.gmra.mrb[0].mxu0 %v2758
      %v2892 = vpop.f32.mrb[0].mxu0
      %v2893 = vadd.f32 0.0, %v2892
      %v2894 = vpop.f32.mrb[0].mxu0
      %v2895 = vpop.f32.mrb[0].mxu0
      %v2896 = vadd.f32 0.0, %v2895
      %v2897 = vpop.f32.mrb[0].mxu0
      %2898 = vmatprep.mubr.bf16.mxu0 0
      %2899 = vmatmul.mubr.bf16.gmra.mrb[0].mxu0 %v2761
      %v2900 = vpop.f32.mrb[0].mxu0
      %v2901 = vadd.f32 0.0, %v2900
      %v2902 = vpop.f32.mrb[0].mxu0
      %v2903 = vpop.f32.mrb[0].mxu0
      %v2904 = vadd.f32 0.0, %v2903
      %v2905 = vpop.f32.mrb[0].mxu0
      %2906 = vmatprep.mubr.bf16.mxu0 0
      %2907 = vmatmul.mubr.bf16.gmra.mrb[0].mxu0 %v2764
      %v2908 = vpop.f32.mrb[0].mxu0
      %v2909 = vadd.f32 0.0, %v2908
      %v2910 = vpop.f32.mrb[0].mxu0
      %v2911 = vpop.f32.mrb[0].mxu0
      %v2912 = vadd.f32 0.0, %v2911
      %v2913 = vpop.f32.mrb[0].mxu0
      %2914 = vmatprep.mubr.bf16.mxu0 0
      %2915 = vmatmul.mubr.bf16.gmra.mrb[0].mxu0 %v2767
      %v2916 = vpop.f32.mrb[0].mxu0
      %v2917 = vadd.f32 0.0, %v2916
      %v2918 = vpop.f32.mrb[0].mxu0
      %v2919 = vpop.f32.mrb[0].mxu0
      %v2920 = vadd.f32 0.0, %v2919
      %v2921 = vpop.f32.mrb[0].mxu0
      %2922 = vmatprep.mubr.bf16.mxu0 0
      %2923 = vmatmul.mubr.bf16.gmra.mrb[0].mxu0 %v2770
      %v2924 = vpop.f32.mrb[0].mxu0
      %v2925 = vadd.f32 0.0, %v2924
      %v2926 = vpop.f32.mrb[0].mxu0
      %v2927 = vpop.f32.mrb[0].mxu0
      %v2928 = vadd.f32 0.0, %v2927
      %v2929 = vpop.f32.mrb[0].mxu0
      %2930 = vmatprep.mubr.bf16.mxu0 0
      %2931 = vmatmul.mubr.bf16.gmra.mrb[0].mxu0 %v2773
      %v2932 = vpop.f32.mrb[0].mxu0
      %v2933 = vadd.f32 0.0, %v2932
      %v2934 = vpop.f32.mrb[0].mxu0
      %v2935 = vpop.f32.mrb[0].mxu0
      %v2936 = vadd.f32 0.0, %v2935
      %v2937 = vpop.f32.mrb[0].mxu0
      %2938 = vdwg.mxu0
      %v2939 = vadd.f32 %v2645, %v2813
      %v2940 = vadd.f32 %v2646, %v2816
      %v2941 = vadd.f32 %v2647, %v2821
      %v2942 = vadd.f32 %v2648, %v2824
      %v2943 = vadd.f32 %v2649, %v2829
      %v2944 = vadd.f32 %v2650, %v2832
      %v2945 = vadd.f32 %v2651, %v2837
      %v2946 = vadd.f32 %v2652, %v2840
      %v2947 = vadd.f32 %v2653, %v2845
      %v2948 = vadd.f32 %v2654, %v2848
      %v2949 = vadd.f32 %v2655, %v2853
      %v2950 = vadd.f32 %v2656, %v2856
      %v2951 = vadd.f32 %v2657, %v2861
      %v2952 = vadd.f32 %v2658, %v2864
      %v2953 = vadd.f32 %v2659, %v2869
      %v2954 = vadd.f32 %v2660, %v2872
      %v2955 = vadd.f32 %v2661, %v2877
      %v2956 = vadd.f32 %v2662, %v2880
      %v2957 = vadd.f32 %v2663, %v2885
      %v2958 = vadd.f32 %v2664, %v2888
      %v2959 = vadd.f32 %v2665, %v2893
      %v2960 = vadd.f32 %v2666, %v2896
      %v2961 = vadd.f32 %v2667, %v2901
      %v2962 = vadd.f32 %v2668, %v2904
      %v2963 = vadd.f32 %v2669, %v2909
      %v2964 = vadd.f32 %v2670, %v2912
      %v2965 = vadd.f32 %v2671, %v2917
      %v2966 = vadd.f32 %v2672, %v2920
      %v2967 = vadd.f32 %v2673, %v2925
      %v2968 = vadd.f32 %v2674, %v2928
      %v2969 = vadd.f32 %v2675, %v2933
      %v2970 = vadd.f32 %v2676, %v2936
      %v2971 = vmax.f32 %v2939, 0.0
      %v2972 = vmax.f32 %v2940, 0.0
      %v2973 = vmax.f32 %v2941, 0.0
      %v2974 = vmax.f32 %v2942, 0.0
      %v2975 = vmax.f32 %v2943, 0.0
      %v2976 = vmax.f32 %v2944, 0.0
      %v2977 = vmax.f32 %v2945, 0.0
      %v2978 = vmax.f32 %v2946, 0.0
      %v2979 = vmax.f32 %v2947, 0.0
      %v2980 = vmax.f32 %v2948, 0.0
      %v2981 = vmax.f32 %v2949, 0.0
      %v2982 = vmax.f32 %v2950, 0.0
      %v2983 = vmax.f32 %v2951, 0.0
      %v2984 = vmax.f32 %v2952, 0.0
      %v2985 = vmax.f32 %v2953, 0.0
      %v2986 = vmax.f32 %v2954, 0.0
      %v2987 = vmax.f32 %v2955, 0.0
      %v2988 = vmax.f32 %v2956, 0.0
      %v2989 = vmax.f32 %v2957, 0.0
      %v2990 = vmax.f32 %v2958, 0.0
      %v2991 = vmax.f32 %v2959, 0.0
      %v2992 = vmax.f32 %v2960, 0.0
      %v2993 = vmax.f32 %v2961, 0.0
      %v2994 = vmax.f32 %v2962, 0.0
      %v2995 = vmax.f32 %v2963, 0.0
      %v2996 = vmax.f32 %v2964, 0.0
      %v2997 = vmax.f32 %v2965, 0.0
      %v2998 = vmax.f32 %v2966, 0.0
      %v2999 = vmax.f32 %v2967, 0.0
      %v3000 = vmax.f32 %v2968, 0.0
      %v3001 = vmax.f32 %v2969, 0.0
      %v3002 = vmax.f32 %v2970, 0.0
      %3003 = vst.msk [vmem:[%s197] sm:$0xff] %vm199, %v2971
      %3004 = vst.msk [vmem:[%s197 + $0x8] sm:$0xff] %vm199, %v2972
      %3005 = vst.msk [vmem:[%s197 + $0x10] sm:$0xff] %vm199, %v2973
      %3006 = vst.msk [vmem:[%s197 + $0x18] sm:$0xff] %vm199, %v2974
      %3007 = vst.msk [vmem:[%s197 + $0x20] sm:$0xff] %vm199, %v2975
      %3008 = vst.msk [vmem:[%s197 + $0x28] sm:$0xff] %vm199, %v2976
      %3009 = vst.msk [vmem:[%s197 + $0x30] sm:$0xff] %vm199, %v2977
      %3010 = vst.msk [vmem:[%s197 + $0x38] sm:$0xff] %vm199, %v2978
      %3011 = vst.msk [vmem:[%s197 + $0x40] sm:$0xff] %vm199, %v2979
      %3012 = vst.msk [vmem:[%s197 + $0x48] sm:$0xff] %vm199, %v2980
      %3013 = vst.msk [vmem:[%s197 + $0x50] sm:$0xff] %vm199, %v2981
      %3014 = vst.msk [vmem:[%s197 + $0x58] sm:$0xff] %vm199, %v2982
      %3015 = vst.msk [vmem:[%s197 + $0x60] sm:$0xff] %vm199, %v2983
      %3016 = vst.msk [vmem:[%s197 + $0x68] sm:$0xff] %vm199, %v2984
      %3017 = vst.msk [vmem:[%s197 + $0x70] sm:$0xff] %vm199, %v2985
      %3018 = vst.msk [vmem:[%s197 + $0x78] sm:$0xff] %vm199, %v2986
      %3019 = vst.msk [vmem:[%s197 + $0x80] sm:$0xff] %vm199, %v2987
      %3020 = vst.msk [vmem:[%s197 + $0x88] sm:$0xff] %vm199, %v2988
      %3021 = vst.msk [vmem:[%s197 + $0x90] sm:$0xff] %vm199, %v2989
      %3022 = vst.msk [vmem:[%s197 + $0x98] sm:$0xff] %vm199, %v2990
      %3023 = vst.msk [vmem:[%s197 + $0xa0] sm:$0xff] %vm199, %v2991
      %3024 = vst.msk [vmem:[%s197 + $0xa8] sm:$0xff] %vm199, %v2992
      %3025 = vst.msk [vmem:[%s197 + $0xb0] sm:$0xff] %vm199, %v2993
      %3026 = vst.msk [vmem:[%s197 + $0xb8] sm:$0xff] %vm199, %v2994
      %3027 = vst.msk [vmem:[%s197 + $0xc0] sm:$0xff] %vm199, %v2995
      %3028 = vst.msk [vmem:[%s197 + $0xc8] sm:$0xff] %vm199, %v2996
      %3029 = vst.msk [vmem:[%s197 + $0xd0] sm:$0xff] %vm199, %v2997
      %3030 = vst.msk [vmem:[%s197 + $0xd8] sm:$0xff] %vm199, %v2998
      %3031 = vst.msk [vmem:[%s197 + $0xe0] sm:$0xff] %vm199, %v2999
      %3032 = vst.msk [vmem:[%s197 + $0xe8] sm:$0xff] %vm199, %v3000
      %3033 = vst.msk [vmem:[%s197 + $0xf0] sm:$0xff] %vm199, %v3001
      %3034 = vst.msk [vmem:[%s197 + $0xf8] sm:$0xff] %vm199, %v3002
      %p3035 = scmp.lt.s32.totalorder %s15, 1
      %s3036 = scalar_select %p3035, %s15, 1
      %s3037 = smul.addr %s3036, 32
      %s3038 = smul.addr %s3037, 8
      %s3039 = scalar_lea.vmem %s4, %s3038
      // Predicated region
      $region37: #{pre_basic_block_nchw.2} parent=35 // pred_check
        %p3040 = pneg %p122
      $region38: #{pre_basic_block_nchw.2} parent=35 // pred_check_branch
        %3042 = sbr.rel (%p3040) target = $region40
      $region39: #{pre_basic_block_nchw.2} parent=35 // pred_region
        _
      $region40: #{pre_basic_block_nchw.2} parent=35 // pred_fallthru
        _
    $region36: #{pre_basic_block_nchw.2} parent=5 // pred_fallthru
      _
    %p3043 = scmp.le.s32.totalorder 2, %s10
    // Predicated region
    $region41: #{pre_basic_block_nchw.2} parent=5 // pred_check
      %p3044 = pneg %p3043
    $region42: #{pre_basic_block_nchw.2} parent=5 // pred_check_branch
      %3046 = sbr.rel (%p3044) target = $region44
    $region43: #{pre_basic_block_nchw.2} parent=5 // pred_region
      %s3047 = ssub.s32 %s10, 2
      // Predicated region
      $region45: #{pre_basic_block_nchw.2} parent=43 // pred_check
        %p3048 = pneg %p128
      $region46: #{pre_basic_block_nchw.2} parent=43 // pred_check_branch
        %3050 = sbr.rel (%p3048) target = $region48
      $region47: #{pre_basic_block_nchw.2} parent=43 // pred_region
        %p3051 = scmp.lt.s32.totalorder %s16, 1
        %s3052 = scalar_select %p3051, %s16, 1
        %s3053 = smul.addr %s3052, 32
        %s3054 = smul.addr %s3053, 8
        %s3055 = scalar_lea.vmem %s4, %s3054
      $region48: #{pre_basic_block_nchw.2} parent=43 // pred_fallthru
        _
    $region44: #{pre_basic_block_nchw.2} parent=5 // pred_fallthru
      _
  $region6: #{pre_basic_block_nchw.2} parent=0 // loop_footer
    %s14 = sadd.s32 1, %s10
  $region7: #{pre_basic_block_nchw.2} parent=0 // loop_footer_branch
    %9 = sbr.rel target = $region3
  $region8: #{pre_basic_block_nchw.2} parent=0 // loop_exit
    _

// kernel: pre_basic_block_nchw.3
$region0: #{pre_basic_block_nchw.3}
  #allocation0 [shape = 'u32[]', space=smem, size = 0x4, offset = 0x4, fixed_abs, tag = 'smem constant byte address 0x4 - core index']
  #allocation1 [shape = 'u32[144,128]{1,0:T(1,128)}', space=vmem, size = 0x12000, scoped, tag = 'internal scratch']
  #allocation2 [shape = 'f32[1,18,24,4]{3,2,1,0:T(8,128)}', space=vmem, size = 0x36000, scoped, tag = 'scratch operand']
  %s0 = inlined_call_operand.vmem [shape: f32[2,16,16,4], index: 0, kind: input, shape index: {}]
  %s1 = inlined_call_operand.vmem [shape: f32[1,1,1,4], index: 1, kind: input, shape index: {}]
  %s2 = inlined_call_operand.vmem [shape: f32[1,1,1,4], index: 2, kind: input, shape index: {}]
  %s3 = inlined_call_operand.vmem [shape: bf16[9,4,4], index: 3, kind: input, shape index: {}]
  %s4 = inlined_call_operand.vmem [shape: f32[2,16,16,4], index: 4, kind: input, shape index: {}]
  %s5 = inlined_call_operand.vmem [shape: f32[2,16,16,4], index: 5, kind: output, shape index: {}]
  %s6 = sld [smem:[#allocation0]]
  $region53: #{pre_basic_block_nchw.3} parent=0
    _
  %s8 = ssub.s32 1, %s6
  %s9 = scalar_select 0, %s8, %s6
  loop: start=0, step=1, limit=4
  $region2: #{pre_basic_block_nchw.3} parent=0 // loop_pre_header
    _
  $region3: #{pre_basic_block_nchw.3} parent=0 // loop_header
    %s11 = sphi 0, %s15
    %p12 = scmp.ge.s32.totalorder %s11, 4
    %s21 = sphi 0, %s23
    %s24 = sphi 0, %s21
    %s25 = sphi 0, %s24
    %s41 = sphi 0, %s25
    %s45 = sphi 0, %s45
    %s47 = sphi 0, %s45
    %s48 = sphi 0, %s47
    %s62 = sphi 0, %s48
    %s66 = sphi 0, %s66
    %s68 = sphi 0, %s66
    %s69 = sphi 0, %s68
    %s83 = sphi 0, %s69
    %s87 = sphi 0, %s87
    %s89 = sphi 0, %s87
    %s90 = sphi 0, %s89
    %s104 = sphi 0, %s90
    %s110 = sphi 0, %s112
    %s113 = sphi 0, %s110
    %s114 = sphi 0, %s113
    %s130 = sphi 0, %s114
    %s136 = sphi 0, %s138
    %s139 = sphi 0, %s136
    %s140 = sphi 0, %s139
    %s156 = sphi 0, %s140
  $region4: #{pre_basic_block_nchw.3} parent=0 // loop_header_branch
    %14 = sbr.rel (%p12) target = $region8
  $region5: #{pre_basic_block_nchw.3} parent=0 // loop_body
    %s16 = ssub.s32 %s11, 1
    %s17 = ssub.s32 %s11, 2
    %s18 = sadd.s32 %s11, 1
    %s19 = ssub.s32 %s11, %s18
    %p20 = scmp.eq.s32.totalorder %s19, 0
    %s22 = sadd.s32 %s21, 1
    %s23 = scalar_select %p20, %s21, %s22
    %p26 = pneg %p20
    %p27 = scmp.eq.s32.totalorder %s11, 1
    %p28 = por %p26, %p27
    %p29 = scmp.ne.s32.totalorder %s21, %s24
    %p30 = scmp.eq.s32.totalorder %s11, 0
    %p31 = por %p29, %p30
    %p32 = scmp.ne.s32.totalorder %s21, %s24
    %p33 = scmp.eq.s32.totalorder %s16, 1
    %p34 = por %p32, %p33
    %p35 = scmp.ne.s32.totalorder %s24, %s25
    %p36 = scmp.eq.s32.totalorder %s16, 0
    %p37 = por %p35, %p36
    %p38 = scmp.ne.s32.totalorder %s24, %s25
    %p39 = scmp.eq.s32.totalorder %s17, 1
    %p40 = por %p38, %p39
    %p42 = scmp.ne.s32.totalorder %s25, %s41
    %p43 = scmp.eq.s32.totalorder %s17, 0
    %p44 = por %p42, %p43
    %s46 = sadd.s32 %s45, 1
    %p49 = scmp.eq.s32.totalorder %s11, 1
    %p50 = scmp.ne.s32.totalorder %s45, %s47
    %p51 = scmp.eq.s32.totalorder %s11, 0
    %p52 = por %p50, %p51
    %p53 = scmp.ne.s32.totalorder %s45, %s47
    %p54 = scmp.eq.s32.totalorder %s16, 1
    %p55 = por %p53, %p54
    %p56 = scmp.ne.s32.totalorder %s47, %s48
    %p57 = scmp.eq.s32.totalorder %s16, 0
    %p58 = por %p56, %p57
    %p59 = scmp.ne.s32.totalorder %s47, %s48
    %p60 = scmp.eq.s32.totalorder %s17, 1
    %p61 = por %p59, %p60
    %p63 = scmp.ne.s32.totalorder %s48, %s62
    %p64 = scmp.eq.s32.totalorder %s17, 0
    %p65 = por %p63, %p64
    %s67 = sadd.s32 %s66, 1
    %p70 = scmp.eq.s32.totalorder %s11, 1
    %p71 = scmp.ne.s32.totalorder %s66, %s68
    %p72 = scmp.eq.s32.totalorder %s11, 0
    %p73 = por %p71, %p72
    %p74 = scmp.ne.s32.totalorder %s66, %s68
    %p75 = scmp.eq.s32.totalorder %s16, 1
    %p76 = por %p74, %p75
    %p77 = scmp.ne.s32.totalorder %s68, %s69
    %p78 = scmp.eq.s32.totalorder %s16, 0
    %p79 = por %p77, %p78
    %p80 = scmp.ne.s32.totalorder %s68, %s69
    %p81 = scmp.eq.s32.totalorder %s17, 1
    %p82 = por %p80, %p81
    %p84 = scmp.ne.s32.totalorder %s69, %s83
    %p85 = scmp.eq.s32.totalorder %s17, 0
    %p86 = por %p84, %p85
    %s88 = sadd.s32 %s87, 1
    %p91 = scmp.eq.s32.totalorder %s11, 1
    %p92 = scmp.ne.s32.totalorder %s87, %s89
    %p93 = scmp.eq.s32.totalorder %s11, 0
    %p94 = por %p92, %p93
    %p95 = scmp.ne.s32.totalorder %s87, %s89
    %p96 = scmp.eq.s32.totalorder %s16, 1
    %p97 = por %p95, %p96
    %p98 = scmp.ne.s32.totalorder %s89, %s90
    %p99 = scmp.eq.s32.totalorder %s16, 0
    %p100 = por %p98, %p99
    %p101 = scmp.ne.s32.totalorder %s89, %s90
    %p102 = scmp.eq.s32.totalorder %s17, 1
    %p103 = por %p101, %p102
    %p105 = scmp.ne.s32.totalorder %s90, %s104
    %p106 = scmp.eq.s32.totalorder %s17, 0
    %p107 = por %p105, %p106
    %s108 = ssub.s32 %s11, %s18
    %p109 = scmp.eq.s32.totalorder %s108, 0
    %s111 = sadd.s32 %s110, 1
    %s112 = scalar_select %p109, %s110, %s111
    %p115 = pneg %p109
    %p116 = scmp.eq.s32.totalorder %s11, 1
    %p117 = por %p115, %p116
    %p118 = scmp.ne.s32.totalorder %s110, %s113
    %p119 = scmp.eq.s32.totalorder %s11, 0
    %p120 = por %p118, %p119
    %p121 = scmp.ne.s32.totalorder %s110, %s113
    %p122 = scmp.eq.s32.totalorder %s16, 1
    %p123 = por %p121, %p122
    %p124 = scmp.ne.s32.totalorder %s113, %s114
    %p125 = scmp.eq.s32.totalorder %s16, 0
    %p126 = por %p124, %p125
    %p127 = scmp.ne.s32.totalorder %s113, %s114
    %p128 = scmp.eq.s32.totalorder %s17, 1
    %p129 = por %p127, %p128
    %p131 = scmp.ne.s32.totalorder %s114, %s130
    %p132 = scmp.eq.s32.totalorder %s17, 0
    %p133 = por %p131, %p132
    %s134 = ssub.s32 %s11, %s18
    %p135 = scmp.eq.s32.totalorder %s134, 0
    %s137 = sadd.s32 %s136, 1
    %s138 = scalar_select %p135, %s136, %s137
    %p141 = pneg %p135
    %p142 = scmp.eq.s32.totalorder %s11, 1
    %p143 = por %p141, %p142
    %p144 = scmp.ne.s32.totalorder %s136, %s139
    %p145 = scmp.eq.s32.totalorder %s11, 0
    %p146 = por %p144, %p145
    %p147 = scmp.ne.s32.totalorder %s136, %s139
    %p148 = scmp.eq.s32.totalorder %s16, 1
    %p149 = por %p147, %p148
    %p150 = scmp.ne.s32.totalorder %s139, %s140
    %p151 = scmp.eq.s32.totalorder %s16, 0
    %p152 = por %p150, %p151
    %p153 = scmp.ne.s32.totalorder %s139, %s140
    %p154 = scmp.eq.s32.totalorder %s17, 1
    %p155 = por %p153, %p154
    %p157 = scmp.ne.s32.totalorder %s140, %s156
    %p158 = scmp.eq.s32.totalorder %s17, 0
    %p159 = por %p157, %p158
    %p160 = scmp.le.s32.totalorder 1, %s11
    %p161 = scmp.lt.s32.totalorder %s11, 3
    %p162 = pnand %p160, %p161
    %p163 = pneg %p162
    // Predicated region
    $region9: #{pre_basic_block_nchw.3} parent=5 // pred_check
      _
    $region10: #{pre_basic_block_nchw.3} parent=5 // pred_check_branch
      %165 = sbr.rel (%p162) target = $region12
    $region11: #{pre_basic_block_nchw.3} parent=5 // pred_region
      %s166 = ssub.s32 %s11, 1
      // Predicated region
      $region13: #{pre_basic_block_nchw.3} parent=11 // pred_check
        %p167 = pneg %p58
      $region14: #{pre_basic_block_nchw.3} parent=11 // pred_check_branch
        %169 = sbr.rel (%p167) target = $region16
      $region15: #{pre_basic_block_nchw.3} parent=11 // pred_region
        _
      $region16: #{pre_basic_block_nchw.3} parent=11 // pred_fallthru
        _
      // Predicated region
      $region17: #{pre_basic_block_nchw.3} parent=11 // pred_check
        %p170 = pneg %p79
      $region18: #{pre_basic_block_nchw.3} parent=11 // pred_check_branch
        %172 = sbr.rel (%p170) target = $region20
      $region19: #{pre_basic_block_nchw.3} parent=11 // pred_region
        _
      $region20: #{pre_basic_block_nchw.3} parent=11 // pred_fallthru
        _
      // Predicated region
      $region21: #{pre_basic_block_nchw.3} parent=11 // pred_check
        %p173 = pneg %p100
      $region22: #{pre_basic_block_nchw.3} parent=11 // pred_check_branch
        %175 = sbr.rel (%p173) target = $region24
      $region23: #{pre_basic_block_nchw.3} parent=11 // pred_region
        _
      $region24: #{pre_basic_block_nchw.3} parent=11 // pred_fallthru
        _
    $region12: #{pre_basic_block_nchw.3} parent=5 // pred_fallthru
      _
    %p176 = scmp.lt.s32.totalorder %s11, 2
    // Predicated region
    $region25: #{pre_basic_block_nchw.3} parent=5 // pred_check
      %p177 = pneg %p176
    $region26: #{pre_basic_block_nchw.3} parent=5 // pred_check_branch
      %179 = sbr.rel (%p177) target = $region28
    $region27: #{pre_basic_block_nchw.3} parent=5 // pred_region
      // Predicated region
      $region29: #{pre_basic_block_nchw.3} parent=27 // pred_check
        %p180 = pneg %p31
      $region30: #{pre_basic_block_nchw.3} parent=27 // pred_check_branch
        %182 = sbr.rel (%p180) target = $region32
      $region31: #{pre_basic_block_nchw.3} parent=27 // pred_region
        %p183 = scmp.lt.s32.totalorder %s11, 1
        %s184 = scalar_select %p183, %s11, 1
        %s185 = smul.addr %s184, 32
        %s186 = smul.addr %s185, 8
        %s187 = scalar_lea.vmem %s0, %s186
      $region32: #{pre_basic_block_nchw.3} parent=27 // pred_fallthru
        _
      // Predicated region
      $region33: #{pre_basic_block_nchw.3} parent=27 // pred_check
        %p188 = pneg %p120
      $region34: #{pre_basic_block_nchw.3} parent=27 // pred_check_branch
        %190 = sbr.rel (%p188) target = $region36
      $region35: #{pre_basic_block_nchw.3} parent=27 // pred_region
        %p191 = scmp.lt.s32.totalorder %s11, 1
        %s192 = scalar_select %p191, %s11, 1
        %s193 = smul.addr %s192, 32
        %s194 = smul.addr %s193, 8
        %s195 = scalar_lea.vmem %s4, %s194
      $region36: #{pre_basic_block_nchw.3} parent=27 // pred_fallthru
        _
    $region28: #{pre_basic_block_nchw.3} parent=5 // pred_fallthru
      _
    %p196 = scmp.le.s32.totalorder 1, %s11
    %p197 = scmp.lt.s32.totalorder %s11, 3
    %p198 = pnand %p196, %p197
    %p199 = pneg %p198
    // Predicated region
    $region37: #{pre_basic_block_nchw.3} parent=5 // pred_check
      _
    $region38: #{pre_basic_block_nchw.3} parent=5 // pred_check_branch
      %201 = sbr.rel (%p198) target = $region40
    $region39: #{pre_basic_block_nchw.3} parent=5 // pred_region
      %s202 = ssub.s32 %s11, 1
      %p203 = scmp.lt.s32.totalorder %s16, 1
      %s204 = scalar_select %p203, %s16, 1
      %s205 = smul.addr %s204, 32
      %s206 = smul.addr %s205, 8
      %s207 = scalar_lea.vmem %s0, %s206
      %p208 = pneg %p37
      %p209 = pneg %p34
      %p210 = pneg %p58
      %p211 = pneg %p55
      %p212 = pneg %p79
      %p213 = pneg %p76
      %p214 = pneg %p100
      %p215 = pneg %p97
      %p216 = scmp.lt.s32.totalorder %s16, 1
      %s217 = scalar_select %p216, %s16, 1
      %s218 = smul.addr %s217, 32
      %s219 = smul.addr %s218, 8
      %s220 = scalar_lea.vmem %s4, %s219
      %p221 = pneg %p126
      %p222 = pneg %p123
      %p223 = pneg %p152
      %p224 = pneg %p149
      %p225 = scmp.lt.s32.totalorder %s16, 1
      %s226 = scalar_select %p225, %s16, 1
      %s227 = smul.addr %s226, 32
      %s228 = smul.addr %s227, 8
      %s229 = scalar_lea.vmem %s5, %s228
      %p230 = scmp.lt.s32.totalorder %s16, 1
      %s231 = scalar_select %p230, %s16, 1
      %s232 = smul.addr %s231, 32
      %s233 = smul.addr %s232, 8
      %s234 = scalar_lea.vmem %s0, %s233
      %p235 = scmp.lt.s32.totalorder %s16, 1
      %s236 = scalar_select %p235, %s16, 1
      %s237 = smul.addr %s236, 32
      %s238 = smul.addr %s237, 8
      %s239 = scalar_lea.vmem %s4, %s238
      %p240 = scmp.lt.s32.totalorder %s16, 1
      %s241 = scalar_select %p240, %s16, 1
      %s242 = smul.addr %s241, 32
      %s243 = smul.addr %s242, 8
      %s244 = scalar_lea.vmem %s5, %s243
      %vm246 = vcmask 31744
      %247 = vst.msk [vmem:[#allocation2] sm:$0xff] %vm246, 0.0
      %248 = vst.msk [vmem:[#allocation2 + $0x8] sm:$0xff] %vm246, 0.0
      %249 = vst.msk [vmem:[#allocation2 + $0x10] sm:$0xff] %vm246, 0.0
      %s250 = scalar_lea.vmem [#allocation2], 408
      %251 = vst.msk [vmem:[%s250] sm:$0xff] %vm246, 0.0
      %252 = vst.msk [vmem:[%s250 + $0x8] sm:$0xff] %vm246, 0.0
      %253 = vst.msk [vmem:[%s250 + $0x10] sm:$0xff] %vm246, 0.0
      %vm254 = vcmask 24576
      %255 = vst.msk [vmem:[#allocation2] sm:$0x1] %vm254, 0.0
      %256 = vst.msk [vmem:[#allocation2 + $0x18] sm:$0x1] %vm254, 0.0
      %257 = vst.msk [vmem:[#allocation2 + $0x30] sm:$0x1] %vm254, 0.0
      %258 = vst.msk [vmem:[#allocation2 + $0x48] sm:$0x1] %vm254, 0.0
      %259 = vst.msk [vmem:[#allocation2 + $0x60] sm:$0x1] %vm254, 0.0
      %260 = vst.msk [vmem:[#allocation2 + $0x78] sm:$0x1] %vm254, 0.0
      %261 = vst.msk [vmem:[#allocation2 + $0x90] sm:$0x1] %vm254, 0.0
      %262 = vst.msk [vmem:[#allocation2 + $0xa8] sm:$0x1] %vm254, 0.0
      %263 = vst.msk [vmem:[#allocation2 + $0xc0] sm:$0x1] %vm254, 0.0
      %264 = vst.msk [vmem:[#allocation2 + $0xd8] sm:$0x1] %vm254, 0.0
      %265 = vst.msk [vmem:[#allocation2 + $0xf0] sm:$0x1] %vm254, 0.0
      %266 = vst.msk [vmem:[#allocation2 + $0x108] sm:$0x1] %vm254, 0.0
      %267 = vst.msk [vmem:[#allocation2 + $0x120] sm:$0x1] %vm254, 0.0
      %268 = vst.msk [vmem:[#allocation2 + $0x138] sm:$0x1] %vm254, 0.0
      %269 = vst.msk [vmem:[#allocation2 + $0x150] sm:$0x1] %vm254, 0.0
      %270 = vst.msk [vmem:[#allocation2 + $0x168] sm:$0x1] %vm254, 0.0
      %271 = vst.msk [vmem:[#allocation2 + $0x180] sm:$0x1] %vm254, 0.0
      %272 = vst.msk [vmem:[#allocation2 + $0x198] sm:$0x1] %vm254, 0.0
      %vm273 = vcmask 30720
      %274 = vst.msk [vmem:[#allocation2 + $0x11] sm:$0x7f] %vm273, 0.0
      %275 = vst.msk [vmem:[#allocation2 + $0x29] sm:$0x7f] %vm273, 0.0
      %276 = vst.msk [vmem:[#allocation2 + $0x41] sm:$0x7f] %vm273, 0.0
      %277 = vst.msk [vmem:[#allocation2 + $0x59] sm:$0x7f] %vm273, 0.0
      %278 = vst.msk [vmem:[#allocation2 + $0x71] sm:$0x7f] %vm273, 0.0
      %279 = vst.msk [vmem:[#allocation2 + $0x89] sm:$0x7f] %vm273, 0.0
      %280 = vst.msk [vmem:[#allocation2 + $0xa1] sm:$0x7f] %vm273, 0.0
      %281 = vst.msk [vmem:[#allocation2 + $0xb9] sm:$0x7f] %vm273, 0.0
      %282 = vst.msk [vmem:[#allocation2 + $0xd1] sm:$0x7f] %vm273, 0.0
      %283 = vst.msk [vmem:[#allocation2 + $0xe9] sm:$0x7f] %vm273, 0.0
      %284 = vst.msk [vmem:[#allocation2 + $0x101] sm:$0x7f] %vm273, 0.0
      %285 = vst.msk [vmem:[#allocation2 + $0x119] sm:$0x7f] %vm273, 0.0
      %286 = vst.msk [vmem:[#allocation2 + $0x131] sm:$0x7f] %vm273, 0.0
      %287 = vst.msk [vmem:[#allocation2 + $0x149] sm:$0x7f] %vm273, 0.0
      %288 = vst.msk [vmem:[#allocation2 + $0x161] sm:$0x7f] %vm273, 0.0
      %289 = vst.msk [vmem:[#allocation2 + $0x179] sm:$0x7f] %vm273, 0.0
      %290 = vst.msk [vmem:[#allocation2 + $0x191] sm:$0x7f] %vm273, 0.0
      %291 = vst.msk [vmem:[#allocation2 + $0x1a9] sm:$0x7f] %vm273, 0.0
      %v292 = vld [vmem:[%s234] sm:$0xff]
      %v293 = vld [vmem:[%s234 + $0x8] sm:$0xff]
      %v294 = vld [vmem:[%s234 + $0x10] sm:$0xff]
      %v295 = vld [vmem:[%s234 + $0x18] sm:$0xff]
      %v296 = vld [vmem:[%s234 + $0x20] sm:$0xff]
      %v297 = vld [vmem:[%s234 + $0x28] sm:$0xff]
      %v298 = vld [vmem:[%s234 + $0x30] sm:$0xff]
      %v299 = vld [vmem:[%s234 + $0x38] sm:$0xff]
      %v300 = vld [vmem:[%s234 + $0x40] sm:$0xff]
      %v301 = vld [vmem:[%s234 + $0x48] sm:$0xff]
      %v302 = vld [vmem:[%s234 + $0x50] sm:$0xff]
      %v303 = vld [vmem:[%s234 + $0x58] sm:$0xff]
      %v304 = vld [vmem:[%s234 + $0x60] sm:$0xff]
      %v305 = vld [vmem:[%s234 + $0x68] sm:$0xff]
      %v306 = vld [vmem:[%s234 + $0x70] sm:$0xff]
      %v307 = vld [vmem:[%s234 + $0x78] sm:$0xff]
      %v308 = vld [vmem:[%s234 + $0x80] sm:$0xff]
      %v309 = vld [vmem:[%s234 + $0x88] sm:$0xff]
      %v310 = vld [vmem:[%s234 + $0x90] sm:$0xff]
      %v311 = vld [vmem:[%s234 + $0x98] sm:$0xff]
      %v312 = vld [vmem:[%s234 + $0xa0] sm:$0xff]
      %v313 = vld [vmem:[%s234 + $0xa8] sm:$0xff]
      %v314 = vld [vmem:[%s234 + $0xb0] sm:$0xff]
      %v315 = vld [vmem:[%s234 + $0xb8] sm:$0xff]
      %v316 = vld [vmem:[%s234 + $0xc0] sm:$0xff]
      %v317 = vld [vmem:[%s234 + $0xc8] sm:$0xff]
      %v318 = vld [vmem:[%s234 + $0xd0] sm:$0xff]
      %v319 = vld [vmem:[%s234 + $0xd8] sm:$0xff]
      %v320 = vld [vmem:[%s234 + $0xe0] sm:$0xff]
      %v321 = vld [vmem:[%s234 + $0xe8] sm:$0xff]
      %v322 = vld [vmem:[%s234 + $0xf0] sm:$0xff]
      %v323 = vld [vmem:[%s234 + $0xf8] sm:$0xff]
      %v324 = vld [vmem:[%s1] sm:$0x1]
      %v326 = vlaneseq
      %v327 = vshrl.u32 %v326, 7
      %v328 = vsub.s32 0, %v327
      %v329 = vrot.slane %v324, %v328
      %v331 = vmul.f32 %v292, %v329
      %v332 = vmul.f32 %v293, %v329
      %v333 = vmul.f32 %v294, %v329
      %v334 = vmul.f32 %v295, %v329
      %v335 = vmul.f32 %v296, %v329
      %v336 = vmul.f32 %v297, %v329
      %v337 = vmul.f32 %v298, %v329
      %v338 = vmul.f32 %v299, %v329
      %v339 = vmul.f32 %v300, %v329
      %v340 = vmul.f32 %v301, %v329
      %v341 = vmul.f32 %v302, %v329
      %v342 = vmul.f32 %v303, %v329
      %v343 = vmul.f32 %v304, %v329
      %v344 = vmul.f32 %v305, %v329
      %v345 = vmul.f32 %v306, %v329
      %v346 = vmul.f32 %v307, %v329
      %v347 = vmul.f32 %v308, %v329
      %v348 = vmul.f32 %v309, %v329
      %v349 = vmul.f32 %v310, %v329
      %v350 = vmul.f32 %v311, %v329
      %v351 = vmul.f32 %v312, %v329
      %v352 = vmul.f32 %v313, %v329
      %v353 = vmul.f32 %v314, %v329
      %v354 = vmul.f32 %v315, %v329
      %v355 = vmul.f32 %v316, %v329
      %v356 = vmul.f32 %v317, %v329
      %v357 = vmul.f32 %v318, %v329
      %v358 = vmul.f32 %v319, %v329
      %v359 = vmul.f32 %v320, %v329
      %v360 = vmul.f32 %v321, %v329
      %v361 = vmul.f32 %v322, %v329
      %v362 = vmul.f32 %v323, %v329
      %v363 = vld [vmem:[%s2] sm:$0x1]
      %v365 = vlaneseq
      %v366 = vshrl.u32 %v365, 7
      %v367 = vsub.s32 0, %v366
      %v368 = vrot.slane %v363, %v367
      %v370 = vadd.f32 %v331, %v368
      %v371 = vadd.f32 %v332, %v368
      %v372 = vadd.f32 %v333, %v368
      %v373 = vadd.f32 %v334, %v368
      %v374 = vadd.f32 %v335, %v368
      %v375 = vadd.f32 %v336, %v368
      %v376 = vadd.f32 %v337, %v368
      %v377 = vadd.f32 %v338, %v368
      %v378 = vadd.f32 %v339, %v368
      %v379 = vadd.f32 %v340, %v368
      %v380 = vadd.f32 %v341, %v368
      %v381 = vadd.f32 %v342, %v368
      %v382 = vadd.f32 %v343, %v368
      %v383 = vadd.f32 %v344, %v368
      %v384 = vadd.f32 %v345, %v368
      %v385 = vadd.f32 %v346, %v368
      %v386 = vadd.f32 %v347, %v368
      %v387 = vadd.f32 %v348, %v368
      %v388 = vadd.f32 %v349, %v368
      %v389 = vadd.f32 %v350, %v368
      %v390 = vadd.f32 %v351, %v368
      %v391 = vadd.f32 %v352, %v368
      %v392 = vadd.f32 %v353, %v368
      %v393 = vadd.f32 %v354, %v368
      %v394 = vadd.f32 %v355, %v368
      %v395 = vadd.f32 %v356, %v368
      %v396 = vadd.f32 %v357, %v368
      %v397 = vadd.f32 %v358, %v368
      %v398 = vadd.f32 %v359, %v368
      %v399 = vadd.f32 %v360, %v368
      %v400 = vadd.f32 %v361, %v368
      %v401 = vadd.f32 %v362, %v368
      %s402 = scalar_lea.vmem [#allocation2], 24
      %403 = vst.msk [vmem:[%s402 + $0x1] sm:$0xff] %vm246, %v370
      %404 = vst.msk [vmem:[%s402 + $0x9] sm:$0xff] %vm246, %v371
      %405 = vst.msk [vmem:[%s402 + $0x19] sm:$0xff] %vm246, %v372
      %406 = vst.msk [vmem:[%s402 + $0x21] sm:$0xff] %vm246, %v373
      %407 = vst.msk [vmem:[%s402 + $0x31] sm:$0xff] %vm246, %v374
      %408 = vst.msk [vmem:[%s402 + $0x39] sm:$0xff] %vm246, %v375
      %409 = vst.msk [vmem:[%s402 + $0x49] sm:$0xff] %vm246, %v376
      %410 = vst.msk [vmem:[%s402 + $0x51] sm:$0xff] %vm246, %v377
      %411 = vst.msk [vmem:[%s402 + $0x61] sm:$0xff] %vm246, %v378
      %412 = vst.msk [vmem:[%s402 + $0x69] sm:$0xff] %vm246, %v379
      %413 = vst.msk [vmem:[%s402 + $0x79] sm:$0xff] %vm246, %v380
      %414 = vst.msk [vmem:[%s402 + $0x81] sm:$0xff] %vm246, %v381
      %415 = vst.msk [vmem:[%s402 + $0x91] sm:$0xff] %vm246, %v382
      %416 = vst.msk [vmem:[%s402 + $0x99] sm:$0xff] %vm246, %v383
      %417 = vst.msk [vmem:[%s402 + $0xa9] sm:$0xff] %vm246, %v384
      %418 = vst.msk [vmem:[%s402 + $0xb1] sm:$0xff] %vm246, %v385
      %419 = vst.msk [vmem:[%s402 + $0xc1] sm:$0xff] %vm246, %v386
      %420 = vst.msk [vmem:[%s402 + $0xc9] sm:$0xff] %vm246, %v387
      %421 = vst.msk [vmem:[%s402 + $0xd9] sm:$0xff] %vm246, %v388
      %422 = vst.msk [vmem:[%s402 + $0xe1] sm:$0xff] %vm246, %v389
      %423 = vst.msk [vmem:[%s402 + $0xf1] sm:$0xff] %vm246, %v390
      %424 = vst.msk [vmem:[%s402 + $0xf9] sm:$0xff] %vm246, %v391
      %425 = vst.msk [vmem:[%s402 + $0x109] sm:$0xff] %vm246, %v392
      %426 = vst.msk [vmem:[%s402 + $0x111] sm:$0xff] %vm246, %v393
      %427 = vst.msk [vmem:[%s402 + $0x121] sm:$0xff] %vm246, %v394
      %428 = vst.msk [vmem:[%s402 + $0x129] sm:$0xff] %vm246, %v395
      %429 = vst.msk [vmem:[%s402 + $0x139] sm:$0xff] %vm246, %v396
      %430 = vst.msk [vmem:[%s402 + $0x141] sm:$0xff] %vm246, %v397
      %431 = vst.msk [vmem:[%s402 + $0x151] sm:$0xff] %vm246, %v398
      %432 = vst.msk [vmem:[%s402 + $0x159] sm:$0xff] %vm246, %v399
      %433 = vst.msk [vmem:[%s402 + $0x169] sm:$0xff] %vm246, %v400
      %434 = vst.msk [vmem:[%s402 + $0x171] sm:$0xff] %vm246, %v401
      %v435 = vld [vmem:[#allocation2] sm:$0xff]
      %v436 = vld [vmem:[#allocation2 + $0x8] sm:$0xff]
      %v437 = vld [vmem:[#allocation2 + $0x18] sm:$0xff]
      %v438 = vld [vmem:[#allocation2 + $0x20] sm:$0xff]
      %v439 = vld [vmem:[#allocation2 + $0x30] sm:$0xff]
      %v440 = vld [vmem:[#allocation2 + $0x38] sm:$0xff]
      %v441 = vld [vmem:[#allocation2 + $0x48] sm:$0xff]
      %v442 = vld [vmem:[#allocation2 + $0x50] sm:$0xff]
      %v443 = vld [vmem:[#allocation2 + $0x60] sm:$0xff]
      %v444 = vld [vmem:[#allocation2 + $0x68] sm:$0xff]
      %v445 = vld [vmem:[#allocation2 + $0x78] sm:$0xff]
      %v446 = vld [vmem:[#allocation2 + $0x80] sm:$0xff]
      %v447 = vld [vmem:[#allocation2 + $0x90] sm:$0xff]
      %v448 = vld [vmem:[#allocation2 + $0x98] sm:$0xff]
      %v449 = vld [vmem:[#allocation2 + $0xa8] sm:$0xff]
      %v450 = vld [vmem:[#allocation2 + $0xb0] sm:$0xff]
      %v451 = vld [vmem:[#allocation2 + $0xc0] sm:$0xff]
      %v452 = vld [vmem:[#allocation2 + $0xc8] sm:$0xff]
      %v453 = vld [vmem:[#allocation2 + $0xd8] sm:$0xff]
      %v454 = vld [vmem:[#allocation2 + $0xe0] sm:$0xff]
      %v455 = vld [vmem:[#allocation2 + $0xf0] sm:$0xff]
      %v456 = vld [vmem:[#allocation2 + $0xf8] sm:$0xff]
      %v457 = vld [vmem:[#allocation2 + $0x108] sm:$0xff]
      %v458 = vld [vmem:[#allocation2 + $0x110] sm:$0xff]
      %v459 = vld [vmem:[#allocation2 + $0x120] sm:$0xff]
      %v460 = vld [vmem:[#allocation2 + $0x128] sm:$0xff]
      %v461 = vld [vmem:[#allocation2 + $0x138] sm:$0xff]
      %v462 = vld [vmem:[#allocation2 + $0x140] sm:$0xff]
      %v463 = vld [vmem:[#allocation2 + $0x150] sm:$0xff]
      %v464 = vld [vmem:[#allocation2 + $0x158] sm:$0xff]
      %v465 = vld [vmem:[#allocation2 + $0x168] sm:$0xff]
      %v466 = vld [vmem:[#allocation2 + $0x170] sm:$0xff]
      %v467 = vpack.c.bf16 %v436, %v435
      %v468 = vpack.c.bf16 %v438, %v437
      %v469 = vpack.c.bf16 %v440, %v439
      %v470 = vpack.c.bf16 %v442, %v441
      %v471 = vpack.c.bf16 %v444, %v443
      %v472 = vpack.c.bf16 %v446, %v445
      %v473 = vpack.c.bf16 %v448, %v447
      %v474 = vpack.c.bf16 %v450, %v449
      %v475 = vpack.c.bf16 %v452, %v451
      %v476 = vpack.c.bf16 %v454, %v453
      %v477 = vpack.c.bf16 %v456, %v455
      %v478 = vpack.c.bf16 %v458, %v457
      %v479 = vpack.c.bf16 %v460, %v459
      %v480 = vpack.c.bf16 %v462, %v461
      %v481 = vpack.c.bf16 %v464, %v463
      %v482 = vpack.c.bf16 %v466, %v465
      %v483 = vld [vmem:[%s3] sm:$0x3]
      %v484 = vld [vmem:[#allocation2 + $0x1] sm:$0xff]
      %v485 = vld [vmem:[#allocation2 + $0x9] sm:$0xff]
      %v486 = vld [vmem:[#allocation2 + $0x19] sm:$0xff]
      %v487 = vld [vmem:[#allocation2 + $0x21] sm:$0xff]
      %v488 = vld [vmem:[#allocation2 + $0x31] sm:$0xff]
      %v489 = vld [vmem:[#allocation2 + $0x39] sm:$0xff]
      %v490 = vld [vmem:[#allocation2 + $0x49] sm:$0xff]
      %v491 = vld [vmem:[#allocation2 + $0x51] sm:$0xff]
      %v492 = vld [vmem:[#allocation2 + $0x61] sm:$0xff]
      %v493 = vld [vmem:[#allocation2 + $0x69] sm:$0xff]
      %v494 = vld [vmem:[#allocation2 + $0x79] sm:$0xff]
      %v495 = vld [vmem:[#allocation2 + $0x81] sm:$0xff]
      %v496 = vld [vmem:[#allocation2 + $0x91] sm:$0xff]
      %v497 = vld [vmem:[#allocation2 + $0x99] sm:$0xff]
      %v498 = vld [vmem:[#allocation2 + $0xa9] sm:$0xff]
      %v499 = vld [vmem:[#allocation2 + $0xb1] sm:$0xff]
      %v500 = vld [vmem:[#allocation2 + $0xc1] sm:$0xff]
      %v501 = vld [vmem:[#allocation2 + $0xc9] sm:$0xff]
      %v502 = vld [vmem:[#allocation2 + $0xd9] sm:$0xff]
      %v503 = vld [vmem:[#allocation2 + $0xe1] sm:$0xff]
      %v504 = vld [vmem:[#allocation2 + $0xf1] sm:$0xff]
      %v505 = vld [vmem:[#allocation2 + $0xf9] sm:$0xff]
      %v506 = vld [vmem:[#allocation2 + $0x109] sm:$0xff]
      %v507 = vld [vmem:[#allocation2 + $0x111] sm:$0xff]
      %v508 = vld [vmem:[#allocation2 + $0x121] sm:$0xff]
      %v509 = vld [vmem:[#allocation2 + $0x129] sm:$0xff]
      %v510 = vld [vmem:[#allocation2 + $0x139] sm:$0xff]
      %v511 = vld [vmem:[#allocation2 + $0x141] sm:$0xff]
      %v512 = vld [vmem:[#allocation2 + $0x151] sm:$0xff]
      %v513 = vld [vmem:[#allocation2 + $0x159] sm:$0xff]
      %v514 = vld [vmem:[#allocation2 + $0x169] sm:$0xff]
      %v515 = vld [vmem:[#allocation2 + $0x171] sm:$0xff]
      %v516 = vpack.c.bf16 %v485, %v484
      %v517 = vpack.c.bf16 %v487, %v486
      %v518 = vpack.c.bf16 %v489, %v488
      %v519 = vpack.c.bf16 %v491, %v490
      %v520 = vpack.c.bf16 %v493, %v492
      %v521 = vpack.c.bf16 %v495, %v494
      %v522 = vpack.c.bf16 %v497, %v496
      %v523 = vpack.c.bf16 %v499, %v498
      %v524 = vpack.c.bf16 %v501, %v500
      %v525 = vpack.c.bf16 %v503, %v502
      %v526 = vpack.c.bf16 %v505, %v504
      %v527 = vpack.c.bf16 %v507, %v506
      %v528 = vpack.c.bf16 %v509, %v508
      %v529 = vpack.c.bf16 %v511, %v510
      %v530 = vpack.c.bf16 %v513, %v512
      %v531 = vpack.c.bf16 %v515, %v514
      %s532 = scalar_lea.vmem %s3, 2
      %v533 = vld [vmem:[%s532] sm:$0x3]
      %v535 = vsel %vm246, %v516, 0
      %v538 = vsel %vm246, %v517, 0
      %v541 = vsel %vm246, %v518, 0
      %v544 = vsel %vm246, %v519, 0
      %v547 = vsel %vm246, %v520, 0
      %v550 = vsel %vm246, %v521, 0
      %v553 = vsel %vm246, %v522, 0
      %v556 = vsel %vm246, %v523, 0
      %v559 = vsel %vm246, %v524, 0
      %v562 = vsel %vm246, %v525, 0
      %v565 = vsel %vm246, %v526, 0
      %v568 = vsel %vm246, %v527, 0
      %v571 = vsel %vm246, %v528, 0
      %v574 = vsel %vm246, %v529, 0
      %v577 = vsel %vm246, %v530, 0
      %v580 = vsel %vm246, %v531, 0
      %vm582 = vcmask 1041408
      %v584 = vsel %vm582, %v533, 0
      %586 = vmatprep.subr.bf16.mxu0 0
      %587 = vmatpush1.bf16.msra.mxu0 %v584
      %588 = vmatprep.subr.bf16.mxu0 0
      %589 = vmatpush1.bf16.msra.mxu0 0
      %590 = vmatprep.subr.bf16.mxu0 0
      %591 = vmatpush1.bf16.msra.mxu0 0
      %592 = vmatprep.subr.bf16.mxu0 0
      %593 = vmatpush1.bf16.msra.mxu0 0
      %594 = vmatprep.subr.bf16.mxu0 0
      %595 = vmatpush1.bf16.msra.mxu0 0
      %596 = vmatprep.subr.bf16.mxu0 0
      %597 = vmatpush1.bf16.msra.mxu0 0
      %598 = vmatprep.subr.bf16.mxu0 0
      %599 = vmatpush1.bf16.msra.mxu0 0
      %600 = vmatprep.subr.bf16.mxu0 0
      %601 = vmatpush1.bf16.msra.mxu0 0
      %602 = vmatprep.subr.bf16.mxu0 0
      %603 = vmatpush1.bf16.msra.mxu0 0
      %604 = vmatprep.subr.bf16.mxu0 0
      %605 = vmatpush1.bf16.msra.mxu0 0
      %606 = vmatprep.subr.bf16.mxu0 0
      %607 = vmatpush1.bf16.msra.mxu0 0
      %608 = vmatprep.subr.bf16.mxu0 0
      %609 = vmatpush1.bf16.msra.mxu0 0
      %610 = vmatprep.subr.bf16.mxu0 0
      %611 = vmatpush1.bf16.msra.mxu0 0
      %612 = vmatprep.subr.bf16.mxu0 0
      %613 = vmatpush1.bf16.msra.mxu0 0
      %614 = vmatprep.subr.bf16.mxu0 0
      %615 = vmatpush1.bf16.msra.mxu0 0
      %616 = vmatprep.subr.bf16.mxu0 0
      %617 = vmatpush1.bf16.msra.mxu0 0
      %618 = vmatprep.mubr.bf16.mxu0 0
      %619 = vmatmul.mubr.bf16.gmra.mrb[0].mxu0 %v535
      %v620 = vpop.f32.mrb[0].mxu0
      %v621 = vadd.f32 0.0, %v620
      %v622 = vpop.f32.mrb[0].mxu0
      %v623 = vpop.f32.mrb[0].mxu0
      %v624 = vadd.f32 0.0, %v623
      %v625 = vpop.f32.mrb[0].mxu0
      %626 = vmatprep.mubr.bf16.mxu0 0
      %627 = vmatmul.mubr.bf16.gmra.mrb[0].mxu0 %v538
      %v628 = vpop.f32.mrb[0].mxu0
      %v629 = vadd.f32 0.0, %v628
      %v630 = vpop.f32.mrb[0].mxu0
      %v631 = vpop.f32.mrb[0].mxu0
      %v632 = vadd.f32 0.0, %v631
      %v633 = vpop.f32.mrb[0].mxu0
      %634 = vmatprep.mubr.bf16.mxu0 0
      %635 = vmatmul.mubr.bf16.gmra.mrb[0].mxu0 %v541
      %v636 = vpop.f32.mrb[0].mxu0
      %v637 = vadd.f32 0.0, %v636
      %v638 = vpop.f32.mrb[0].mxu0
      %v639 = vpop.f32.mrb[0].mxu0
      %v640 = vadd.f32 0.0, %v639
      %v641 = vpop.f32.mrb[0].mxu0
      %642 = vmatprep.mubr.bf16.mxu0 0
      %643 = vmatmul.mubr.bf16.gmra.mrb[0].mxu0 %v544
      %v644 = vpop.f32.mrb[0].mxu0
      %v645 = vadd.f32 0.0, %v644
      %v646 = vpop.f32.mrb[0].mxu0
      %v647 = vpop.f32.mrb[0].mxu0
      %v648 = vadd.f32 0.0, %v647
      %v649 = vpop.f32.mrb[0].mxu0
      %650 = vmatprep.mubr.bf16.mxu0 0
      %651 = vmatmul.mubr.bf16.gmra.mrb[0].mxu0 %v547
      %v652 = vpop.f32.mrb[0].mxu0
      %v653 = vadd.f32 0.0, %v652
      %v654 = vpop.f32.mrb[0].mxu0
      %v655 = vpop.f32.mrb[0].mxu0
      %v656 = vadd.f32 0.0, %v655
      %v657 = vpop.f32.mrb[0].mxu0
      %658 = vmatprep.mubr.bf16.mxu0 0
      %659 = vmatmul.mubr.bf16.gmra.mrb[0].mxu0 %v550
      %v660 = vpop.f32.mrb[0].mxu0
      %v661 = vadd.f32 0.0, %v660
      %v662 = vpop.f32.mrb[0].mxu0
      %v663 = vpop.f32.mrb[0].mxu0
      %v664 = vadd.f32 0.0, %v663
      %v665 = vpop.f32.mrb[0].mxu0
      %666 = vmatprep.mubr.bf16.mxu0 0
      %667 = vmatmul.mubr.bf16.gmra.mrb[0].mxu0 %v553
      %v668 = vpop.f32.mrb[0].mxu0
      %v669 = vadd.f32 0.0, %v668
      %v670 = vpop.f32.mrb[0].mxu0
      %v671 = vpop.f32.mrb[0].mxu0
      %v672 = vadd.f32 0.0, %v671
      %v673 = vpop.f32.mrb[0].mxu0
      %674 = vmatprep.mubr.bf16.mxu0 0
      %675 = vmatmul.mubr.bf16.gmra.mrb[0].mxu0 %v556
      %v676 = vpop.f32.mrb[0].mxu0
      %v677 = vadd.f32 0.0, %v676
      %v678 = vpop.f32.mrb[0].mxu0
      %v679 = vpop.f32.mrb[0].mxu0
      %v680 = vadd.f32 0.0, %v679
      %v681 = vpop.f32.mrb[0].mxu0
      %682 = vmatprep.mubr.bf16.mxu0 0
      %683 = vmatmul.mubr.bf16.gmra.mrb[0].mxu0 %v559
      %v684 = vpop.f32.mrb[0].mxu0
      %v685 = vadd.f32 0.0, %v684
      %v686 = vpop.f32.mrb[0].mxu0
      %v687 = vpop.f32.mrb[0].mxu0
      %v688 = vadd.f32 0.0, %v687
      %v689 = vpop.f32.mrb[0].mxu0
      %690 = vmatprep.mubr.bf16.mxu0 0
      %691 = vmatmul.mubr.bf16.gmra.mrb[0].mxu0 %v562
      %v692 = vpop.f32.mrb[0].mxu0
      %v693 = vadd.f32 0.0, %v692
      %v694 = vpop.f32.mrb[0].mxu0
      %v695 = vpop.f32.mrb[0].mxu0
      %v696 = vadd.f32 0.0, %v695
      %v697 = vpop.f32.mrb[0].mxu0
      %698 = vmatprep.mubr.bf16.mxu0 0
      %699 = vmatmul.mubr.bf16.gmra.mrb[0].mxu0 %v565
      %v700 = vpop.f32.mrb[0].mxu0
      %v701 = vadd.f32 0.0, %v700
      %v702 = vpop.f32.mrb[0].mxu0
      %v703 = vpop.f32.mrb[0].mxu0
      %v704 = vadd.f32 0.0, %v703
      %v705 = vpop.f32.mrb[0].mxu0
      %706 = vmatprep.mubr.bf16.mxu0 0
      %707 = vmatmul.mubr.bf16.gmra.mrb[0].mxu0 %v568
      %v708 = vpop.f32.mrb[0].mxu0
      %v709 = vadd.f32 0.0, %v708
      %v710 = vpop.f32.mrb[0].mxu0
      %v711 = vpop.f32.mrb[0].mxu0
      %v712 = vadd.f32 0.0, %v711
      %v713 = vpop.f32.mrb[0].mxu0
      %714 = vmatprep.mubr.bf16.mxu0 0
      %715 = vmatmul.mubr.bf16.gmra.mrb[0].mxu0 %v571
      %v716 = vpop.f32.mrb[0].mxu0
      %v717 = vadd.f32 0.0, %v716
      %v718 = vpop.f32.mrb[0].mxu0
      %v719 = vpop.f32.mrb[0].mxu0
      %v720 = vadd.f32 0.0, %v719
      %v721 = vpop.f32.mrb[0].mxu0
      %722 = vmatprep.mubr.bf16.mxu0 0
      %723 = vmatmul.mubr.bf16.gmra.mrb[0].mxu0 %v574
      %v724 = vpop.f32.mrb[0].mxu0
      %v725 = vadd.f32 0.0, %v724
      %v726 = vpop.f32.mrb[0].mxu0
      %v727 = vpop.f32.mrb[0].mxu0
      %v728 = vadd.f32 0.0, %v727
      %v729 = vpop.f32.mrb[0].mxu0
      %730 = vmatprep.mubr.bf16.mxu0 0
      %731 = vmatmul.mubr.bf16.gmra.mrb[0].mxu0 %v577
      %v732 = vpop.f32.mrb[0].mxu0
      %v733 = vadd.f32 0.0, %v732
      %v734 = vpop.f32.mrb[0].mxu0
      %v735 = vpop.f32.mrb[0].mxu0
      %v736 = vadd.f32 0.0, %v735
      %v737 = vpop.f32.mrb[0].mxu0
      %738 = vmatprep.mubr.bf16.mxu0 0
      %739 = vmatmul.mubr.bf16.gmra.mrb[0].mxu0 %v580
      %v740 = vpop.f32.mrb[0].mxu0
      %v741 = vadd.f32 0.0, %v740
      %v742 = vpop.f32.mrb[0].mxu0
      %v743 = vpop.f32.mrb[0].mxu0
      %v744 = vadd.f32 0.0, %v743
      %v745 = vpop.f32.mrb[0].mxu0
      %746 = vdwg.mxu0
      %v748 = vsel %vm246, %v467, 0
      %v751 = vsel %vm246, %v468, 0
      %v754 = vsel %vm246, %v469, 0
      %v757 = vsel %vm246, %v470, 0
      %v760 = vsel %vm246, %v471, 0
      %v763 = vsel %vm246, %v472, 0
      %v766 = vsel %vm246, %v473, 0
      %v769 = vsel %vm246, %v474, 0
      %v772 = vsel %vm246, %v475, 0
      %v775 = vsel %vm246, %v476, 0
      %v778 = vsel %vm246, %v477, 0
      %v781 = vsel %vm246, %v478, 0
      %v784 = vsel %vm246, %v479, 0
      %v787 = vsel %vm246, %v480, 0
      %v790 = vsel %vm246, %v481, 0
      %v793 = vsel %vm246, %v482, 0
      %v796 = vsel %vm582, %v483, 0
      %798 = vmatprep.subr.bf16.mxu0 0
      %799 = vmatpush1.bf16.msra.mxu0 %v796
      %800 = vmatprep.subr.bf16.mxu0 0
      %801 = vmatpush1.bf16.msra.mxu0 0
      %802 = vmatprep.subr.bf16.mxu0 0
      %803 = vmatpush1.bf16.msra.mxu0 0
      %804 = vmatprep.subr.bf16.mxu0 0
      %805 = vmatpush1.bf16.msra.mxu0 0
      %806 = vmatprep.subr.bf16.mxu0 0
      %807 = vmatpush1.bf16.msra.mxu0 0
      %808 = vmatprep.subr.bf16.mxu0 0
      %809 = vmatpush1.bf16.msra.mxu0 0
      %810 = vmatprep.subr.bf16.mxu0 0
      %811 = vmatpush1.bf16.msra.mxu0 0
      %812 = vmatprep.subr.bf16.mxu0 0
      %813 = vmatpush1.bf16.msra.mxu0 0
      %814 = vmatprep.subr.bf16.mxu0 0
      %815 = vmatpush1.bf16.msra.mxu0 0
      %816 = vmatprep.subr.bf16.mxu0 0
      %817 = vmatpush1.bf16.msra.mxu0 0
      %818 = vmatprep.subr.bf16.mxu0 0
      %819 = vmatpush1.bf16.msra.mxu0 0
      %820 = vmatprep.subr.bf16.mxu0 0
      %821 = vmatpush1.bf16.msra.mxu0 0
      %822 = vmatprep.subr.bf16.mxu0 0
      %823 = vmatpush1.bf16.msra.mxu0 0
      %824 = vmatprep.subr.bf16.mxu0 0
      %825 = vmatpush1.bf16.msra.mxu0 0
      %826 = vmatprep.subr.bf16.mxu0 0
      %827 = vmatpush1.bf16.msra.mxu0 0
      %828 = vmatprep.subr.bf16.mxu0 0
      %829 = vmatpush1.bf16.msra.mxu0 0
      %830 = vmatprep.mubr.bf16.mxu0 0
      %831 = vmatmul.mubr.bf16.gmra.mrb[0].mxu0 %v748
      %v832 = vpop.f32.mrb[0].mxu0
      %v833 = vadd.f32 %v621, %v832
      %v834 = vpop.f32.mrb[0].mxu0
      %v835 = vpop.f32.mrb[0].mxu0
      %v836 = vadd.f32 %v624, %v835
      %v837 = vpop.f32.mrb[0].mxu0
      %838 = vmatprep.mubr.bf16.mxu0 0
      %839 = vmatmul.mubr.bf16.gmra.mrb[0].mxu0 %v751
      %v840 = vpop.f32.mrb[0].mxu0
      %v841 = vadd.f32 %v629, %v840
      %v842 = vpop.f32.mrb[0].mxu0
      %v843 = vpop.f32.mrb[0].mxu0
      %v844 = vadd.f32 %v632, %v843
      %v845 = vpop.f32.mrb[0].mxu0
      %846 = vmatprep.mubr.bf16.mxu0 0
      %847 = vmatmul.mubr.bf16.gmra.mrb[0].mxu0 %v754
      %v848 = vpop.f32.mrb[0].mxu0
      %v849 = vadd.f32 %v637, %v848
      %v850 = vpop.f32.mrb[0].mxu0
      %v851 = vpop.f32.mrb[0].mxu0
      %v852 = vadd.f32 %v640, %v851
      %v853 = vpop.f32.mrb[0].mxu0
      %854 = vmatprep.mubr.bf16.mxu0 0
      %855 = vmatmul.mubr.bf16.gmra.mrb[0].mxu0 %v757
      %v856 = vpop.f32.mrb[0].mxu0
      %v857 = vadd.f32 %v645, %v856
      %v858 = vpop.f32.mrb[0].mxu0
      %v859 = vpop.f32.mrb[0].mxu0
      %v860 = vadd.f32 %v648, %v859
      %v861 = vpop.f32.mrb[0].mxu0
      %862 = vmatprep.mubr.bf16.mxu0 0
      %863 = vmatmul.mubr.bf16.gmra.mrb[0].mxu0 %v760
      %v864 = vpop.f32.mrb[0].mxu0
      %v865 = vadd.f32 %v653, %v864
      %v866 = vpop.f32.mrb[0].mxu0
      %v867 = vpop.f32.mrb[0].mxu0
      %v868 = vadd.f32 %v656, %v867
      %v869 = vpop.f32.mrb[0].mxu0
      %870 = vmatprep.mubr.bf16.mxu0 0
      %871 = vmatmul.mubr.bf16.gmra.mrb[0].mxu0 %v763
      %v872 = vpop.f32.mrb[0].mxu0
      %v873 = vadd.f32 %v661, %v872
      %v874 = vpop.f32.mrb[0].mxu0
      %v875 = vpop.f32.mrb[0].mxu0
      %v876 = vadd.f32 %v664, %v875
      %v877 = vpop.f32.mrb[0].mxu0
      %878 = vmatprep.mubr.bf16.mxu0 0
      %879 = vmatmul.mubr.bf16.gmra.mrb[0].mxu0 %v766
      %v880 = vpop.f32.mrb[0].mxu0
      %v881 = vadd.f32 %v669, %v880
      %v882 = vpop.f32.mrb[0].mxu0
      %v883 = vpop.f32.mrb[0].mxu0
      %v884 = vadd.f32 %v672, %v883
      %v885 = vpop.f32.mrb[0].mxu0
      %886 = vmatprep.mubr.bf16.mxu0 0
      %887 = vmatmul.mubr.bf16.gmra.mrb[0].mxu0 %v769
      %v888 = vpop.f32.mrb[0].mxu0
      %v889 = vadd.f32 %v677, %v888
      %v890 = vpop.f32.mrb[0].mxu0
      %v891 = vpop.f32.mrb[0].mxu0
      %v892 = vadd.f32 %v680, %v891
      %v893 = vpop.f32.mrb[0].mxu0
      %894 = vmatprep.mubr.bf16.mxu0 0
      %895 = vmatmul.mubr.bf16.gmra.mrb[0].mxu0 %v772
      %v896 = vpop.f32.mrb[0].mxu0
      %v897 = vadd.f32 %v685, %v896
      %v898 = vpop.f32.mrb[0].mxu0
      %v899 = vpop.f32.mrb[0].mxu0
      %v900 = vadd.f32 %v688, %v899
      %v901 = vpop.f32.mrb[0].mxu0
      %902 = vmatprep.mubr.bf16.mxu0 0
      %903 = vmatmul.mubr.bf16.gmra.mrb[0].mxu0 %v775
      %v904 = vpop.f32.mrb[0].mxu0
      %v905 = vadd.f32 %v693, %v904
      %v906 = vpop.f32.mrb[0].mxu0
      %v907 = vpop.f32.mrb[0].mxu0
      %v908 = vadd.f32 %v696, %v907
      %v909 = vpop.f32.mrb[0].mxu0
      %910 = vmatprep.mubr.bf16.mxu0 0
      %911 = vmatmul.mubr.bf16.gmra.mrb[0].mxu0 %v778
      %v912 = vpop.f32.mrb[0].mxu0
      %v913 = vadd.f32 %v701, %v912
      %v914 = vpop.f32.mrb[0].mxu0
      %v915 = vpop.f32.mrb[0].mxu0
      %v916 = vadd.f32 %v704, %v915
      %v917 = vpop.f32.mrb[0].mxu0
      %918 = vmatprep.mubr.bf16.mxu0 0
      %919 = vmatmul.mubr.bf16.gmra.mrb[0].mxu0 %v781
      %v920 = vpop.f32.mrb[0].mxu0
      %v921 = vadd.f32 %v709, %v920
      %v922 = vpop.f32.mrb[0].mxu0
      %v923 = vpop.f32.mrb[0].mxu0
      %v924 = vadd.f32 %v712, %v923
      %v925 = vpop.f32.mrb[0].mxu0
      %926 = vmatprep.mubr.bf16.mxu0 0
      %927 = vmatmul.mubr.bf16.gmra.mrb[0].mxu0 %v784
      %v928 = vpop.f32.mrb[0].mxu0
      %v929 = vadd.f32 %v717, %v928
      %v930 = vpop.f32.mrb[0].mxu0
      %v931 = vpop.f32.mrb[0].mxu0
      %v932 = vadd.f32 %v720, %v931
      %v933 = vpop.f32.mrb[0].mxu0
      %934 = vmatprep.mubr.bf16.mxu0 0
      %935 = vmatmul.mubr.bf16.gmra.mrb[0].mxu0 %v787
      %v936 = vpop.f32.mrb[0].mxu0
      %v937 = vadd.f32 %v725, %v936
      %v938 = vpop.f32.mrb[0].mxu0
      %v939 = vpop.f32.mrb[0].mxu0
      %v940 = vadd.f32 %v728, %v939
      %v941 = vpop.f32.mrb[0].mxu0
      %942 = vmatprep.mubr.bf16.mxu0 0
      %943 = vmatmul.mubr.bf16.gmra.mrb[0].mxu0 %v790
      %v944 = vpop.f32.mrb[0].mxu0
      %v945 = vadd.f32 %v733, %v944
      %v946 = vpop.f32.mrb[0].mxu0
      %v947 = vpop.f32.mrb[0].mxu0
      %v948 = vadd.f32 %v736, %v947
      %v949 = vpop.f32.mrb[0].mxu0
      %950 = vmatprep.mubr.bf16.mxu0 0
      %951 = vmatmul.mubr.bf16.gmra.mrb[0].mxu0 %v793
      %v952 = vpop.f32.mrb[0].mxu0
      %v953 = vadd.f32 %v741, %v952
      %v954 = vpop.f32.mrb[0].mxu0
      %v955 = vpop.f32.mrb[0].mxu0
      %v956 = vadd.f32 %v744, %v955
      %v957 = vpop.f32.mrb[0].mxu0
      %958 = vdwg.mxu0
      %v959 = vld [vmem:[#allocation2 + $0x2] sm:$0xff]
      %v960 = vld [vmem:[#allocation2 + $0xa] sm:$0xff]
      %v961 = vld [vmem:[#allocation2 + $0x1a] sm:$0xff]
      %v962 = vld [vmem:[#allocation2 + $0x22] sm:$0xff]
      %v963 = vld [vmem:[#allocation2 + $0x32] sm:$0xff]
      %v964 = vld [vmem:[#allocation2 + $0x3a] sm:$0xff]
      %v965 = vld [vmem:[#allocation2 + $0x4a] sm:$0xff]
      %v966 = vld [vmem:[#allocation2 + $0x52] sm:$0xff]
      %v967 = vld [vmem:[#allocation2 + $0x62] sm:$0xff]
      %v968 = vld [vmem:[#allocation2 + $0x6a] sm:$0xff]
      %v969 = vld [vmem:[#allocation2 + $0x7a] sm:$0xff]
      %v970 = vld [vmem:[#allocation2 + $0x82] sm:$0xff]
      %v971 = vld [vmem:[#allocation2 + $0x92] sm:$0xff]
      %v972 = vld [vmem:[#allocation2 + $0x9a] sm:$0xff]
      %v973 = vld [vmem:[#allocation2 + $0xaa] sm:$0xff]
      %v974 = vld [vmem:[#allocation2 + $0xb2] sm:$0xff]
      %v975 = vld [vmem:[#allocation2 + $0xc2] sm:$0xff]
      %v976 = vld [vmem:[#allocation2 + $0xca] sm:$0xff]
      %v977 = vld [vmem:[#allocation2 + $0xda] sm:$0xff]
      %v978 = vld [vmem:[#allocation2 + $0xe2] sm:$0xff]
      %v979 = vld [vmem:[#allocation2 + $0xf2] sm:$0xff]
      %v980 = vld [vmem:[#allocation2 + $0xfa] sm:$0xff]
      %v981 = vld [vmem:[#allocation2 + $0x10a] sm:$0xff]
      %v982 = vld [vmem:[#allocation2 + $0x112] sm:$0xff]
      %v983 = vld [vmem:[#allocation2 + $0x122] sm:$0xff]
      %v984 = vld [vmem:[#allocation2 + $0x12a] sm:$0xff]
      %v985 = vld [vmem:[#allocation2 + $0x13a] sm:$0xff]
      %v986 = vld [vmem:[#allocation2 + $0x142] sm:$0xff]
      %v987 = vld [vmem:[#allocation2 + $0x152] sm:$0xff]
      %v988 = vld [vmem:[#allocation2 + $0x15a] sm:$0xff]
      %v989 = vld [vmem:[#allocation2 + $0x16a] sm:$0xff]
      %v990 = vld [vmem:[#allocation2 + $0x172] sm:$0xff]
      %v991 = vpack.c.bf16 %v960, %v959
      %v992 = vpack.c.bf16 %v962, %v961
      %v993 = vpack.c.bf16 %v964, %v963
      %v994 = vpack.c.bf16 %v966, %v965
      %v995 = vpack.c.bf16 %v968, %v967
      %v996 = vpack.c.bf16 %v970, %v969
      %v997 = vpack.c.bf16 %v972, %v971
      %v998 = vpack.c.bf16 %v974, %v973
      %v999 = vpack.c.bf16 %v976, %v975
      %v1000 = vpack.c.bf16 %v978, %v977
      %v1001 = vpack.c.bf16 %v980, %v979
      %v1002 = vpack.c.bf16 %v982, %v981
      %v1003 = vpack.c.bf16 %v984, %v983
      %v1004 = vpack.c.bf16 %v986, %v985
      %v1005 = vpack.c.bf16 %v988, %v987
      %v1006 = vpack.c.bf16 %v990, %v989
      %s1007 = scalar_lea.vmem %s3, 4
      %v1008 = vld [vmem:[%s1007] sm:$0x3]
      %v1010 = vsel %vm246, %v991, 0
      %v1013 = vsel %vm246, %v992, 0
      %v1016 = vsel %vm246, %v993, 0
      %v1019 = vsel %vm246, %v994, 0
      %v1022 = vsel %vm246, %v995, 0
      %v1025 = vsel %vm246, %v996, 0
      %v1028 = vsel %vm246, %v997, 0
      %v1031 = vsel %vm246, %v998, 0
      %v1034 = vsel %vm246, %v999, 0
      %v1037 = vsel %vm246, %v1000, 0
      %v1040 = vsel %vm246, %v1001, 0
      %v1043 = vsel %vm246, %v1002, 0
      %v1046 = vsel %vm246, %v1003, 0
      %v1049 = vsel %vm246, %v1004, 0
      %v1052 = vsel %vm246, %v1005, 0
      %v1055 = vsel %vm246, %v1006, 0
      %v1058 = vsel %vm582, %v1008, 0
      %1060 = vmatprep.subr.bf16.mxu0 0
      %1061 = vmatpush1.bf16.msra.mxu0 %v1058
      %1062 = vmatprep.subr.bf16.mxu0 0
      %1063 = vmatpush1.bf16.msra.mxu0 0
      %1064 = vmatprep.subr.bf16.mxu0 0
      %1065 = vmatpush1.bf16.msra.mxu0 0
      %1066 = vmatprep.subr.bf16.mxu0 0
      %1067 = vmatpush1.bf16.msra.mxu0 0
      %1068 = vmatprep.subr.bf16.mxu0 0
      %1069 = vmatpush1.bf16.msra.mxu0 0
      %1070 = vmatprep.subr.bf16.mxu0 0
      %1071 = vmatpush1.bf16.msra.mxu0 0
      %1072 = vmatprep.subr.bf16.mxu0 0
      %1073 = vmatpush1.bf16.msra.mxu0 0
      %1074 = vmatprep.subr.bf16.mxu0 0
      %1075 = vmatpush1.bf16.msra.mxu0 0
      %1076 = vmatprep.subr.bf16.mxu0 0
      %1077 = vmatpush1.bf16.msra.mxu0 0
      %1078 = vmatprep.subr.bf16.mxu0 0
      %1079 = vmatpush1.bf16.msra.mxu0 0
      %1080 = vmatprep.subr.bf16.mxu0 0
      %1081 = vmatpush1.bf16.msra.mxu0 0
      %1082 = vmatprep.subr.bf16.mxu0 0
      %1083 = vmatpush1.bf16.msra.mxu0 0
      %1084 = vmatprep.subr.bf16.mxu0 0
      %1085 = vmatpush1.bf16.msra.mxu0 0
      %1086 = vmatprep.subr.bf16.mxu0 0
      %1087 = vmatpush1.bf16.msra.mxu0 0
      %1088 = vmatprep.subr.bf16.mxu0 0
      %1089 = vmatpush1.bf16.msra.mxu0 0
      %1090 = vmatprep.subr.bf16.mxu0 0
      %1091 = vmatpush1.bf16.msra.mxu0 0
      %1092 = vmatprep.mubr.bf16.mxu0 0
      %1093 = vmatmul.mubr.bf16.gmra.mrb[0].mxu0 %v1010
      %v1094 = vpop.f32.mrb[0].mxu0
      %v1095 = vadd.f32 0.0, %v1094
      %v1096 = vpop.f32.mrb[0].mxu0
      %v1097 = vpop.f32.mrb[0].mxu0
      %v1098 = vadd.f32 0.0, %v1097
      %v1099 = vpop.f32.mrb[0].mxu0
      %1100 = vmatprep.mubr.bf16.mxu0 0
      %1101 = vmatmul.mubr.bf16.gmra.mrb[0].mxu0 %v1013
      %v1102 = vpop.f32.mrb[0].mxu0
      %v1103 = vadd.f32 0.0, %v1102
      %v1104 = vpop.f32.mrb[0].mxu0
      %v1105 = vpop.f32.mrb[0].mxu0
      %v1106 = vadd.f32 0.0, %v1105
      %v1107 = vpop.f32.mrb[0].mxu0
      %1108 = vmatprep.mubr.bf16.mxu0 0
      %1109 = vmatmul.mubr.bf16.gmra.mrb[0].mxu0 %v1016
      %v1110 = vpop.f32.mrb[0].mxu0
      %v1111 = vadd.f32 0.0, %v1110
      %v1112 = vpop.f32.mrb[0].mxu0
      %v1113 = vpop.f32.mrb[0].mxu0
      %v1114 = vadd.f32 0.0, %v1113
      %v1115 = vpop.f32.mrb[0].mxu0
      %1116 = vmatprep.mubr.bf16.mxu0 0
      %1117 = vmatmul.mubr.bf16.gmra.mrb[0].mxu0 %v1019
      %v1118 = vpop.f32.mrb[0].mxu0
      %v1119 = vadd.f32 0.0, %v1118
      %v1120 = vpop.f32.mrb[0].mxu0
      %v1121 = vpop.f32.mrb[0].mxu0
      %v1122 = vadd.f32 0.0, %v1121
      %v1123 = vpop.f32.mrb[0].mxu0
      %1124 = vmatprep.mubr.bf16.mxu0 0
      %1125 = vmatmul.mubr.bf16.gmra.mrb[0].mxu0 %v1022
      %v1126 = vpop.f32.mrb[0].mxu0
      %v1127 = vadd.f32 0.0, %v1126
      %v1128 = vpop.f32.mrb[0].mxu0
      %v1129 = vpop.f32.mrb[0].mxu0
      %v1130 = vadd.f32 0.0, %v1129
      %v1131 = vpop.f32.mrb[0].mxu0
      %1132 = vmatprep.mubr.bf16.mxu0 0
      %1133 = vmatmul.mubr.bf16.gmra.mrb[0].mxu0 %v1025
      %v1134 = vpop.f32.mrb[0].mxu0
      %v1135 = vadd.f32 0.0, %v1134
      %v1136 = vpop.f32.mrb[0].mxu0
      %v1137 = vpop.f32.mrb[0].mxu0
      %v1138 = vadd.f32 0.0, %v1137
      %v1139 = vpop.f32.mrb[0].mxu0
      %1140 = vmatprep.mubr.bf16.mxu0 0
      %1141 = vmatmul.mubr.bf16.gmra.mrb[0].mxu0 %v1028
      %v1142 = vpop.f32.mrb[0].mxu0
      %v1143 = vadd.f32 0.0, %v1142
      %v1144 = vpop.f32.mrb[0].mxu0
      %v1145 = vpop.f32.mrb[0].mxu0
      %v1146 = vadd.f32 0.0, %v1145
      %v1147 = vpop.f32.mrb[0].mxu0
      %1148 = vmatprep.mubr.bf16.mxu0 0
      %1149 = vmatmul.mubr.bf16.gmra.mrb[0].mxu0 %v1031
      %v1150 = vpop.f32.mrb[0].mxu0
      %v1151 = vadd.f32 0.0, %v1150
      %v1152 = vpop.f32.mrb[0].mxu0
      %v1153 = vpop.f32.mrb[0].mxu0
      %v1154 = vadd.f32 0.0, %v1153
      %v1155 = vpop.f32.mrb[0].mxu0
      %1156 = vmatprep.mubr.bf16.mxu0 0
      %1157 = vmatmul.mubr.bf16.gmra.mrb[0].mxu0 %v1034
      %v1158 = vpop.f32.mrb[0].mxu0
      %v1159 = vadd.f32 0.0, %v1158
      %v1160 = vpop.f32.mrb[0].mxu0
      %v1161 = vpop.f32.mrb[0].mxu0
      %v1162 = vadd.f32 0.0, %v1161
      %v1163 = vpop.f32.mrb[0].mxu0
      %1164 = vmatprep.mubr.bf16.mxu0 0
      %1165 = vmatmul.mubr.bf16.gmra.mrb[0].mxu0 %v1037
      %v1166 = vpop.f32.mrb[0].mxu0
      %v1167 = vadd.f32 0.0, %v1166
      %v1168 = vpop.f32.mrb[0].mxu0
      %v1169 = vpop.f32.mrb[0].mxu0
      %v1170 = vadd.f32 0.0, %v1169
      %v1171 = vpop.f32.mrb[0].mxu0
      %1172 = vmatprep.mubr.bf16.mxu0 0
      %1173 = vmatmul.mubr.bf16.gmra.mrb[0].mxu0 %v1040
      %v1174 = vpop.f32.mrb[0].mxu0
      %v1175 = vadd.f32 0.0, %v1174
      %v1176 = vpop.f32.mrb[0].mxu0
      %v1177 = vpop.f32.mrb[0].mxu0
      %v1178 = vadd.f32 0.0, %v1177
      %v1179 = vpop.f32.mrb[0].mxu0
      %1180 = vmatprep.mubr.bf16.mxu0 0
      %1181 = vmatmul.mubr.bf16.gmra.mrb[0].mxu0 %v1043
      %v1182 = vpop.f32.mrb[0].mxu0
      %v1183 = vadd.f32 0.0, %v1182
      %v1184 = vpop.f32.mrb[0].mxu0
      %v1185 = vpop.f32.mrb[0].mxu0
      %v1186 = vadd.f32 0.0, %v1185
      %v1187 = vpop.f32.mrb[0].mxu0
      %1188 = vmatprep.mubr.bf16.mxu0 0
      %1189 = vmatmul.mubr.bf16.gmra.mrb[0].mxu0 %v1046
      %v1190 = vpop.f32.mrb[0].mxu0
      %v1191 = vadd.f32 0.0, %v1190
      %v1192 = vpop.f32.mrb[0].mxu0
      %v1193 = vpop.f32.mrb[0].mxu0
      %v1194 = vadd.f32 0.0, %v1193
      %v1195 = vpop.f32.mrb[0].mxu0
      %1196 = vmatprep.mubr.bf16.mxu0 0
      %1197 = vmatmul.mubr.bf16.gmra.mrb[0].mxu0 %v1049
      %v1198 = vpop.f32.mrb[0].mxu0
      %v1199 = vadd.f32 0.0, %v1198
      %v1200 = vpop.f32.mrb[0].mxu0
      %v1201 = vpop.f32.mrb[0].mxu0
      %v1202 = vadd.f32 0.0, %v1201
      %v1203 = vpop.f32.mrb[0].mxu0
      %1204 = vmatprep.mubr.bf16.mxu0 0
      %1205 = vmatmul.mubr.bf16.gmra.mrb[0].mxu0 %v1052
      %v1206 = vpop.f32.mrb[0].mxu0
      %v1207 = vadd.f32 0.0, %v1206
      %v1208 = vpop.f32.mrb[0].mxu0
      %v1209 = vpop.f32.mrb[0].mxu0
      %v1210 = vadd.f32 0.0, %v1209
      %v1211 = vpop.f32.mrb[0].mxu0
      %1212 = vmatprep.mubr.bf16.mxu0 0
      %1213 = vmatmul.mubr.bf16.gmra.mrb[0].mxu0 %v1055
      %v1214 = vpop.f32.mrb[0].mxu0
      %v1215 = vadd.f32 0.0, %v1214
      %v1216 = vpop.f32.mrb[0].mxu0
      %v1217 = vpop.f32.mrb[0].mxu0
      %v1218 = vadd.f32 0.0, %v1217
      %v1219 = vpop.f32.mrb[0].mxu0
      %1220 = vdwg.mxu0
      %v1221 = vadd.f32 %v833, %v1095
      %v1222 = vadd.f32 %v836, %v1098
      %v1223 = vadd.f32 %v841, %v1103
      %v1224 = vadd.f32 %v844, %v1106
      %v1225 = vadd.f32 %v849, %v1111
      %v1226 = vadd.f32 %v852, %v1114
      %v1227 = vadd.f32 %v857, %v1119
      %v1228 = vadd.f32 %v860, %v1122
      %v1229 = vadd.f32 %v865, %v1127
      %v1230 = vadd.f32 %v868, %v1130
      %v1231 = vadd.f32 %v873, %v1135
      %v1232 = vadd.f32 %v876, %v1138
      %v1233 = vadd.f32 %v881, %v1143
      %v1234 = vadd.f32 %v884, %v1146
      %v1235 = vadd.f32 %v889, %v1151
      %v1236 = vadd.f32 %v892, %v1154
      %v1237 = vadd.f32 %v897, %v1159
      %v1238 = vadd.f32 %v900, %v1162
      %v1239 = vadd.f32 %v905, %v1167
      %v1240 = vadd.f32 %v908, %v1170
      %v1241 = vadd.f32 %v913, %v1175
      %v1242 = vadd.f32 %v916, %v1178
      %v1243 = vadd.f32 %v921, %v1183
      %v1244 = vadd.f32 %v924, %v1186
      %v1245 = vadd.f32 %v929, %v1191
      %v1246 = vadd.f32 %v932, %v1194
      %v1247 = vadd.f32 %v937, %v1199
      %v1248 = vadd.f32 %v940, %v1202
      %v1249 = vadd.f32 %v945, %v1207
      %v1250 = vadd.f32 %v948, %v1210
      %v1251 = vadd.f32 %v953, %v1215
      %v1252 = vadd.f32 %v956, %v1218
      %v1253 = vld [vmem:[%s402] sm:$0xff]
      %v1254 = vld [vmem:[%s402 + $0x8] sm:$0xff]
      %v1255 = vld [vmem:[%s402 + $0x18] sm:$0xff]
      %v1256 = vld [vmem:[%s402 + $0x20] sm:$0xff]
      %v1257 = vld [vmem:[%s402 + $0x30] sm:$0xff]
      %v1258 = vld [vmem:[%s402 + $0x38] sm:$0xff]
      %v1259 = vld [vmem:[%s402 + $0x48] sm:$0xff]
      %v1260 = vld [vmem:[%s402 + $0x50] sm:$0xff]
      %v1261 = vld [vmem:[%s402 + $0x60] sm:$0xff]
      %v1262 = vld [vmem:[%s402 + $0x68] sm:$0xff]
      %v1263 = vld [vmem:[%s402 + $0x78] sm:$0xff]
      %v1264 = vld [vmem:[%s402 + $0x80] sm:$0xff]
      %v1265 = vld [vmem:[%s402 + $0x90] sm:$0xff]
      %v1266 = vld [vmem:[%s402 + $0x98] sm:$0xff]
      %v1267 = vld [vmem:[%s402 + $0xa8] sm:$0xff]
      %v1268 = vld [vmem:[%s402 + $0xb0] sm:$0xff]
      %v1269 = vld [vmem:[%s402 + $0xc0] sm:$0xff]
      %v1270 = vld [vmem:[%s402 + $0xc8] sm:$0xff]
      %v1271 = vld [vmem:[%s402 + $0xd8] sm:$0xff]
      %v1272 = vld [vmem:[%s402 + $0xe0] sm:$0xff]
      %v1273 = vld [vmem:[%s402 + $0xf0] sm:$0xff]
      %v1274 = vld [vmem:[%s402 + $0xf8] sm:$0xff]
      %v1275 = vld [vmem:[%s402 + $0x108] sm:$0xff]
      %v1276 = vld [vmem:[%s402 + $0x110] sm:$0xff]
      %v1277 = vld [vmem:[%s402 + $0x120] sm:$0xff]
      %v1278 = vld [vmem:[%s402 + $0x128] sm:$0xff]
      %v1279 = vld [vmem:[%s402 + $0x138] sm:$0xff]
      %v1280 = vld [vmem:[%s402 + $0x140] sm:$0xff]
      %v1281 = vld [vmem:[%s402 + $0x150] sm:$0xff]
      %v1282 = vld [vmem:[%s402 + $0x158] sm:$0xff]
      %v1283 = vld [vmem:[%s402 + $0x168] sm:$0xff]
      %v1284 = vld [vmem:[%s402 + $0x170] sm:$0xff]
      %v1285 = vpack.c.bf16 %v1254, %v1253
      %v1286 = vpack.c.bf16 %v1256, %v1255
      %v1287 = vpack.c.bf16 %v1258, %v1257
      %v1288 = vpack.c.bf16 %v1260, %v1259
      %v1289 = vpack.c.bf16 %v1262, %v1261
      %v1290 = vpack.c.bf16 %v1264, %v1263
      %v1291 = vpack.c.bf16 %v1266, %v1265
      %v1292 = vpack.c.bf16 %v1268, %v1267
      %v1293 = vpack.c.bf16 %v1270, %v1269
      %v1294 = vpack.c.bf16 %v1272, %v1271
      %v1295 = vpack.c.bf16 %v1274, %v1273
      %v1296 = vpack.c.bf16 %v1276, %v1275
      %v1297 = vpack.c.bf16 %v1278, %v1277
      %v1298 = vpack.c.bf16 %v1280, %v1279
      %v1299 = vpack.c.bf16 %v1282, %v1281
      %v1300 = vpack.c.bf16 %v1284, %v1283
      %s1301 = scalar_lea.vmem %s3, 6
      %v1302 = vld [vmem:[%s1301] sm:$0x3]
      %v1304 = vsel %vm246, %v1285, 0
      %v1307 = vsel %vm246, %v1286, 0
      %v1310 = vsel %vm246, %v1287, 0
      %v1313 = vsel %vm246, %v1288, 0
      %v1316 = vsel %vm246, %v1289, 0
      %v1319 = vsel %vm246, %v1290, 0
      %v1322 = vsel %vm246, %v1291, 0
      %v1325 = vsel %vm246, %v1292, 0
      %v1328 = vsel %vm246, %v1293, 0
      %v1331 = vsel %vm246, %v1294, 0
      %v1334 = vsel %vm246, %v1295, 0
      %v1337 = vsel %vm246, %v1296, 0
      %v1340 = vsel %vm246, %v1297, 0
      %v1343 = vsel %vm246, %v1298, 0
      %v1346 = vsel %vm246, %v1299, 0
      %v1349 = vsel %vm246, %v1300, 0
      %v1352 = vsel %vm582, %v1302, 0
      %1354 = vmatprep.subr.bf16.mxu0 0
      %1355 = vmatpush1.bf16.msra.mxu0 %v1352
      %1356 = vmatprep.subr.bf16.mxu0 0
      %1357 = vmatpush1.bf16.msra.mxu0 0
      %1358 = vmatprep.subr.bf16.mxu0 0
      %1359 = vmatpush1.bf16.msra.mxu0 0
      %1360 = vmatprep.subr.bf16.mxu0 0
      %1361 = vmatpush1.bf16.msra.mxu0 0
      %1362 = vmatprep.subr.bf16.mxu0 0
      %1363 = vmatpush1.bf16.msra.mxu0 0
      %1364 = vmatprep.subr.bf16.mxu0 0
      %1365 = vmatpush1.bf16.msra.mxu0 0
      %1366 = vmatprep.subr.bf16.mxu0 0
      %1367 = vmatpush1.bf16.msra.mxu0 0
      %1368 = vmatprep.subr.bf16.mxu0 0
      %1369 = vmatpush1.bf16.msra.mxu0 0
      %1370 = vmatprep.subr.bf16.mxu0 0
      %1371 = vmatpush1.bf16.msra.mxu0 0
      %1372 = vmatprep.subr.bf16.mxu0 0
      %1373 = vmatpush1.bf16.msra.mxu0 0
      %1374 = vmatprep.subr.bf16.mxu0 0
      %1375 = vmatpush1.bf16.msra.mxu0 0
      %1376 = vmatprep.subr.bf16.mxu0 0
      %1377 = vmatpush1.bf16.msra.mxu0 0
      %1378 = vmatprep.subr.bf16.mxu0 0
      %1379 = vmatpush1.bf16.msra.mxu0 0
      %1380 = vmatprep.subr.bf16.mxu0 0
      %1381 = vmatpush1.bf16.msra.mxu0 0
      %1382 = vmatprep.subr.bf16.mxu0 0
      %1383 = vmatpush1.bf16.msra.mxu0 0
      %1384 = vmatprep.subr.bf16.mxu0 0
      %1385 = vmatpush1.bf16.msra.mxu0 0
      %1386 = vmatprep.mubr.bf16.mxu0 0
      %1387 = vmatmul.mubr.bf16.gmra.mrb[0].mxu0 %v1304
      %v1388 = vpop.f32.mrb[0].mxu0
      %v1389 = vadd.f32 0.0, %v1388
      %v1390 = vpop.f32.mrb[0].mxu0
      %v1391 = vpop.f32.mrb[0].mxu0
      %v1392 = vadd.f32 0.0, %v1391
      %v1393 = vpop.f32.mrb[0].mxu0
      %1394 = vmatprep.mubr.bf16.mxu0 0
      %1395 = vmatmul.mubr.bf16.gmra.mrb[0].mxu0 %v1307
      %v1396 = vpop.f32.mrb[0].mxu0
      %v1397 = vadd.f32 0.0, %v1396
      %v1398 = vpop.f32.mrb[0].mxu0
      %v1399 = vpop.f32.mrb[0].mxu0
      %v1400 = vadd.f32 0.0, %v1399
      %v1401 = vpop.f32.mrb[0].mxu0
      %1402 = vmatprep.mubr.bf16.mxu0 0
      %1403 = vmatmul.mubr.bf16.gmra.mrb[0].mxu0 %v1310
      %v1404 = vpop.f32.mrb[0].mxu0
      %v1405 = vadd.f32 0.0, %v1404
      %v1406 = vpop.f32.mrb[0].mxu0
      %v1407 = vpop.f32.mrb[0].mxu0
      %v1408 = vadd.f32 0.0, %v1407
      %v1409 = vpop.f32.mrb[0].mxu0
      %1410 = vmatprep.mubr.bf16.mxu0 0
      %1411 = vmatmul.mubr.bf16.gmra.mrb[0].mxu0 %v1313
      %v1412 = vpop.f32.mrb[0].mxu0
      %v1413 = vadd.f32 0.0, %v1412
      %v1414 = vpop.f32.mrb[0].mxu0
      %v1415 = vpop.f32.mrb[0].mxu0
      %v1416 = vadd.f32 0.0, %v1415
      %v1417 = vpop.f32.mrb[0].mxu0
      %1418 = vmatprep.mubr.bf16.mxu0 0
      %1419 = vmatmul.mubr.bf16.gmra.mrb[0].mxu0 %v1316
      %v1420 = vpop.f32.mrb[0].mxu0
      %v1421 = vadd.f32 0.0, %v1420
      %v1422 = vpop.f32.mrb[0].mxu0
      %v1423 = vpop.f32.mrb[0].mxu0
      %v1424 = vadd.f32 0.0, %v1423
      %v1425 = vpop.f32.mrb[0].mxu0
      %1426 = vmatprep.mubr.bf16.mxu0 0
      %1427 = vmatmul.mubr.bf16.gmra.mrb[0].mxu0 %v1319
      %v1428 = vpop.f32.mrb[0].mxu0
      %v1429 = vadd.f32 0.0, %v1428
      %v1430 = vpop.f32.mrb[0].mxu0
      %v1431 = vpop.f32.mrb[0].mxu0
      %v1432 = vadd.f32 0.0, %v1431
      %v1433 = vpop.f32.mrb[0].mxu0
      %1434 = vmatprep.mubr.bf16.mxu0 0
      %1435 = vmatmul.mubr.bf16.gmra.mrb[0].mxu0 %v1322
      %v1436 = vpop.f32.mrb[0].mxu0
      %v1437 = vadd.f32 0.0, %v1436
      %v1438 = vpop.f32.mrb[0].mxu0
      %v1439 = vpop.f32.mrb[0].mxu0
      %v1440 = vadd.f32 0.0, %v1439
      %v1441 = vpop.f32.mrb[0].mxu0
      %1442 = vmatprep.mubr.bf16.mxu0 0
      %1443 = vmatmul.mubr.bf16.gmra.mrb[0].mxu0 %v1325
      %v1444 = vpop.f32.mrb[0].mxu0
      %v1445 = vadd.f32 0.0, %v1444
      %v1446 = vpop.f32.mrb[0].mxu0
      %v1447 = vpop.f32.mrb[0].mxu0
      %v1448 = vadd.f32 0.0, %v1447
      %v1449 = vpop.f32.mrb[0].mxu0
      %1450 = vmatprep.mubr.bf16.mxu0 0
      %1451 = vmatmul.mubr.bf16.gmra.mrb[0].mxu0 %v1328
      %v1452 = vpop.f32.mrb[0].mxu0
      %v1453 = vadd.f32 0.0, %v1452
      %v1454 = vpop.f32.mrb[0].mxu0
      %v1455 = vpop.f32.mrb[0].mxu0
      %v1456 = vadd.f32 0.0, %v1455
      %v1457 = vpop.f32.mrb[0].mxu0
      %1458 = vmatprep.mubr.bf16.mxu0 0
      %1459 = vmatmul.mubr.bf16.gmra.mrb[0].mxu0 %v1331
      %v1460 = vpop.f32.mrb[0].mxu0
      %v1461 = vadd.f32 0.0, %v1460
      %v1462 = vpop.f32.mrb[0].mxu0
      %v1463 = vpop.f32.mrb[0].mxu0
      %v1464 = vadd.f32 0.0, %v1463
      %v1465 = vpop.f32.mrb[0].mxu0
      %1466 = vmatprep.mubr.bf16.mxu0 0
      %1467 = vmatmul.mubr.bf16.gmra.mrb[0].mxu0 %v1334
      %v1468 = vpop.f32.mrb[0].mxu0
      %v1469 = vadd.f32 0.0, %v1468
      %v1470 = vpop.f32.mrb[0].mxu0
      %v1471 = vpop.f32.mrb[0].mxu0
      %v1472 = vadd.f32 0.0, %v1471
      %v1473 = vpop.f32.mrb[0].mxu0
      %1474 = vmatprep.mubr.bf16.mxu0 0
      %1475 = vmatmul.mubr.bf16.gmra.mrb[0].mxu0 %v1337
      %v1476 = vpop.f32.mrb[0].mxu0
      %v1477 = vadd.f32 0.0, %v1476
      %v1478 = vpop.f32.mrb[0].mxu0
      %v1479 = vpop.f32.mrb[0].mxu0
      %v1480 = vadd.f32 0.0, %v1479
      %v1481 = vpop.f32.mrb[0].mxu0
      %1482 = vmatprep.mubr.bf16.mxu0 0
      %1483 = vmatmul.mubr.bf16.gmra.mrb[0].mxu0 %v1340
      %v1484 = vpop.f32.mrb[0].mxu0
      %v1485 = vadd.f32 0.0, %v1484
      %v1486 = vpop.f32.mrb[0].mxu0
      %v1487 = vpop.f32.mrb[0].mxu0
      %v1488 = vadd.f32 0.0, %v1487
      %v1489 = vpop.f32.mrb[0].mxu0
      %1490 = vmatprep.mubr.bf16.mxu0 0
      %1491 = vmatmul.mubr.bf16.gmra.mrb[0].mxu0 %v1343
      %v1492 = vpop.f32.mrb[0].mxu0
      %v1493 = vadd.f32 0.0, %v1492
      %v1494 = vpop.f32.mrb[0].mxu0
      %v1495 = vpop.f32.mrb[0].mxu0
      %v1496 = vadd.f32 0.0, %v1495
      %v1497 = vpop.f32.mrb[0].mxu0
      %1498 = vmatprep.mubr.bf16.mxu0 0
      %1499 = vmatmul.mubr.bf16.gmra.mrb[0].mxu0 %v1346
      %v1500 = vpop.f32.mrb[0].mxu0
      %v1501 = vadd.f32 0.0, %v1500
      %v1502 = vpop.f32.mrb[0].mxu0
      %v1503 = vpop.f32.mrb[0].mxu0
      %v1504 = vadd.f32 0.0, %v1503
      %v1505 = vpop.f32.mrb[0].mxu0
      %1506 = vmatprep.mubr.bf16.mxu0 0
      %1507 = vmatmul.mubr.bf16.gmra.mrb[0].mxu0 %v1349
      %v1508 = vpop.f32.mrb[0].mxu0
      %v1509 = vadd.f32 0.0, %v1508
      %v1510 = vpop.f32.mrb[0].mxu0
      %v1511 = vpop.f32.mrb[0].mxu0
      %v1512 = vadd.f32 0.0, %v1511
      %v1513 = vpop.f32.mrb[0].mxu0
      %1514 = vdwg.mxu0
      %v1515 = vadd.f32 %v1221, %v1389
      %v1516 = vadd.f32 %v1222, %v1392
      %v1517 = vadd.f32 %v1223, %v1397
      %v1518 = vadd.f32 %v1224, %v1400
      %v1519 = vadd.f32 %v1225, %v1405
      %v1520 = vadd.f32 %v1226, %v1408
      %v1521 = vadd.f32 %v1227, %v1413
      %v1522 = vadd.f32 %v1228, %v1416
      %v1523 = vadd.f32 %v1229, %v1421
      %v1524 = vadd.f32 %v1230, %v1424
      %v1525 = vadd.f32 %v1231, %v1429
      %v1526 = vadd.f32 %v1232, %v1432
      %v1527 = vadd.f32 %v1233, %v1437
      %v1528 = vadd.f32 %v1234, %v1440
      %v1529 = vadd.f32 %v1235, %v1445
      %v1530 = vadd.f32 %v1236, %v1448
      %v1531 = vadd.f32 %v1237, %v1453
      %v1532 = vadd.f32 %v1238, %v1456
      %v1533 = vadd.f32 %v1239, %v1461
      %v1534 = vadd.f32 %v1240, %v1464
      %v1535 = vadd.f32 %v1241, %v1469
      %v1536 = vadd.f32 %v1242, %v1472
      %v1537 = vadd.f32 %v1243, %v1477
      %v1538 = vadd.f32 %v1244, %v1480
      %v1539 = vadd.f32 %v1245, %v1485
      %v1540 = vadd.f32 %v1246, %v1488
      %v1541 = vadd.f32 %v1247, %v1493
      %v1542 = vadd.f32 %v1248, %v1496
      %v1543 = vadd.f32 %v1249, %v1501
      %v1544 = vadd.f32 %v1250, %v1504
      %v1545 = vadd.f32 %v1251, %v1509
      %v1546 = vadd.f32 %v1252, %v1512
      %v1547 = vld [vmem:[%s402 + $0x1] sm:$0xff]
      %v1548 = vld [vmem:[%s402 + $0x9] sm:$0xff]
      %v1549 = vld [vmem:[%s402 + $0x19] sm:$0xff]
      %v1550 = vld [vmem:[%s402 + $0x21] sm:$0xff]
      %v1551 = vld [vmem:[%s402 + $0x31] sm:$0xff]
      %v1552 = vld [vmem:[%s402 + $0x39] sm:$0xff]
      %v1553 = vld [vmem:[%s402 + $0x49] sm:$0xff]
      %v1554 = vld [vmem:[%s402 + $0x51] sm:$0xff]
      %v1555 = vld [vmem:[%s402 + $0x61] sm:$0xff]
      %v1556 = vld [vmem:[%s402 + $0x69] sm:$0xff]
      %v1557 = vld [vmem:[%s402 + $0x79] sm:$0xff]
      %v1558 = vld [vmem:[%s402 + $0x81] sm:$0xff]
      %v1559 = vld [vmem:[%s402 + $0x91] sm:$0xff]
      %v1560 = vld [vmem:[%s402 + $0x99] sm:$0xff]
      %v1561 = vld [vmem:[%s402 + $0xa9] sm:$0xff]
      %v1562 = vld [vmem:[%s402 + $0xb1] sm:$0xff]
      %v1563 = vld [vmem:[%s402 + $0xc1] sm:$0xff]
      %v1564 = vld [vmem:[%s402 + $0xc9] sm:$0xff]
      %v1565 = vld [vmem:[%s402 + $0xd9] sm:$0xff]
      %v1566 = vld [vmem:[%s402 + $0xe1] sm:$0xff]
      %v1567 = vld [vmem:[%s402 + $0xf1] sm:$0xff]
      %v1568 = vld [vmem:[%s402 + $0xf9] sm:$0xff]
      %v1569 = vld [vmem:[%s402 + $0x109] sm:$0xff]
      %v1570 = vld [vmem:[%s402 + $0x111] sm:$0xff]
      %v1571 = vld [vmem:[%s402 + $0x121] sm:$0xff]
      %v1572 = vld [vmem:[%s402 + $0x129] sm:$0xff]
      %v1573 = vld [vmem:[%s402 + $0x139] sm:$0xff]
      %v1574 = vld [vmem:[%s402 + $0x141] sm:$0xff]
      %v1575 = vld [vmem:[%s402 + $0x151] sm:$0xff]
      %v1576 = vld [vmem:[%s402 + $0x159] sm:$0xff]
      %v1577 = vld [vmem:[%s402 + $0x169] sm:$0xff]
      %v1578 = vld [vmem:[%s402 + $0x171] sm:$0xff]
      %v1579 = vpack.c.bf16 %v1548, %v1547
      %v1580 = vpack.c.bf16 %v1550, %v1549
      %v1581 = vpack.c.bf16 %v1552, %v1551
      %v1582 = vpack.c.bf16 %v1554, %v1553
      %v1583 = vpack.c.bf16 %v1556, %v1555
      %v1584 = vpack.c.bf16 %v1558, %v1557
      %v1585 = vpack.c.bf16 %v1560, %v1559
      %v1586 = vpack.c.bf16 %v1562, %v1561
      %v1587 = vpack.c.bf16 %v1564, %v1563
      %v1588 = vpack.c.bf16 %v1566, %v1565
      %v1589 = vpack.c.bf16 %v1568, %v1567
      %v1590 = vpack.c.bf16 %v1570, %v1569
      %v1591 = vpack.c.bf16 %v1572, %v1571
      %v1592 = vpack.c.bf16 %v1574, %v1573
      %v1593 = vpack.c.bf16 %v1576, %v1575
      %v1594 = vpack.c.bf16 %v1578, %v1577
      %s1595 = scalar_lea.vmem %s3, 8
      %v1596 = vld [vmem:[%s1595] sm:$0x3]
      %v1598 = vsel %vm246, %v1579, 0
      %v1601 = vsel %vm246, %v1580, 0
      %v1604 = vsel %vm246, %v1581, 0
      %v1607 = vsel %vm246, %v1582, 0
      %v1610 = vsel %vm246, %v1583, 0
      %v1613 = vsel %vm246, %v1584, 0
      %v1616 = vsel %vm246, %v1585, 0
      %v1619 = vsel %vm246, %v1586, 0
      %v1622 = vsel %vm246, %v1587, 0
      %v1625 = vsel %vm246, %v1588, 0
      %v1628 = vsel %vm246, %v1589, 0
      %v1631 = vsel %vm246, %v1590, 0
      %v1634 = vsel %vm246, %v1591, 0
      %v1637 = vsel %vm246, %v1592, 0
      %v1640 = vsel %vm246, %v1593, 0
      %v1643 = vsel %vm246, %v1594, 0
      %v1646 = vsel %vm582, %v1596, 0
      %1648 = vmatprep.subr.bf16.mxu0 0
      %1649 = vmatpush1.bf16.msra.mxu0 %v1646
      %1650 = vmatprep.subr.bf16.mxu0 0
      %1651 = vmatpush1.bf16.msra.mxu0 0
      %1652 = vmatprep.subr.bf16.mxu0 0
      %1653 = vmatpush1.bf16.msra.mxu0 0
      %1654 = vmatprep.subr.bf16.mxu0 0
      %1655 = vmatpush1.bf16.msra.mxu0 0
      %1656 = vmatprep.subr.bf16.mxu0 0
      %1657 = vmatpush1.bf16.msra.mxu0 0
      %1658 = vmatprep.subr.bf16.mxu0 0
      %1659 = vmatpush1.bf16.msra.mxu0 0
      %1660 = vmatprep.subr.bf16.mxu0 0
      %1661 = vmatpush1.bf16.msra.mxu0 0
      %1662 = vmatprep.subr.bf16.mxu0 0
      %1663 = vmatpush1.bf16.msra.mxu0 0
      %1664 = vmatprep.subr.bf16.mxu0 0
      %1665 = vmatpush1.bf16.msra.mxu0 0
      %1666 = vmatprep.subr.bf16.mxu0 0
      %1667 = vmatpush1.bf16.msra.mxu0 0
      %1668 = vmatprep.subr.bf16.mxu0 0
      %1669 = vmatpush1.bf16.msra.mxu0 0
      %1670 = vmatprep.subr.bf16.mxu0 0
      %1671 = vmatpush1.bf16.msra.mxu0 0
      %1672 = vmatprep.subr.bf16.mxu0 0
      %1673 = vmatpush1.bf16.msra.mxu0 0
      %1674 = vmatprep.subr.bf16.mxu0 0
      %1675 = vmatpush1.bf16.msra.mxu0 0
      %1676 = vmatprep.subr.bf16.mxu0 0
      %1677 = vmatpush1.bf16.msra.mxu0 0
      %1678 = vmatprep.subr.bf16.mxu0 0
      %1679 = vmatpush1.bf16.msra.mxu0 0
      %1680 = vmatprep.mubr.bf16.mxu0 0
      %1681 = vmatmul.mubr.bf16.gmra.mrb[0].mxu0 %v1598
      %v1682 = vpop.f32.mrb[0].mxu0
      %v1683 = vadd.f32 0.0, %v1682
      %v1684 = vpop.f32.mrb[0].mxu0
      %v1685 = vpop.f32.mrb[0].mxu0
      %v1686 = vadd.f32 0.0, %v1685
      %v1687 = vpop.f32.mrb[0].mxu0
      %1688 = vmatprep.mubr.bf16.mxu0 0
      %1689 = vmatmul.mubr.bf16.gmra.mrb[0].mxu0 %v1601
      %v1690 = vpop.f32.mrb[0].mxu0
      %v1691 = vadd.f32 0.0, %v1690
      %v1692 = vpop.f32.mrb[0].mxu0
      %v1693 = vpop.f32.mrb[0].mxu0
      %v1694 = vadd.f32 0.0, %v1693
      %v1695 = vpop.f32.mrb[0].mxu0
      %1696 = vmatprep.mubr.bf16.mxu0 0
      %1697 = vmatmul.mubr.bf16.gmra.mrb[0].mxu0 %v1604
      %v1698 = vpop.f32.mrb[0].mxu0
      %v1699 = vadd.f32 0.0, %v1698
      %v1700 = vpop.f32.mrb[0].mxu0
      %v1701 = vpop.f32.mrb[0].mxu0
      %v1702 = vadd.f32 0.0, %v1701
      %v1703 = vpop.f32.mrb[0].mxu0
      %1704 = vmatprep.mubr.bf16.mxu0 0
      %1705 = vmatmul.mubr.bf16.gmra.mrb[0].mxu0 %v1607
      %v1706 = vpop.f32.mrb[0].mxu0
      %v1707 = vadd.f32 0.0, %v1706
      %v1708 = vpop.f32.mrb[0].mxu0
      %v1709 = vpop.f32.mrb[0].mxu0
      %v1710 = vadd.f32 0.0, %v1709
      %v1711 = vpop.f32.mrb[0].mxu0
      %1712 = vmatprep.mubr.bf16.mxu0 0
      %1713 = vmatmul.mubr.bf16.gmra.mrb[0].mxu0 %v1610
      %v1714 = vpop.f32.mrb[0].mxu0
      %v1715 = vadd.f32 0.0, %v1714
      %v1716 = vpop.f32.mrb[0].mxu0
      %v1717 = vpop.f32.mrb[0].mxu0
      %v1718 = vadd.f32 0.0, %v1717
      %v1719 = vpop.f32.mrb[0].mxu0
      %1720 = vmatprep.mubr.bf16.mxu0 0
      %1721 = vmatmul.mubr.bf16.gmra.mrb[0].mxu0 %v1613
      %v1722 = vpop.f32.mrb[0].mxu0
      %v1723 = vadd.f32 0.0, %v1722
      %v1724 = vpop.f32.mrb[0].mxu0
      %v1725 = vpop.f32.mrb[0].mxu0
      %v1726 = vadd.f32 0.0, %v1725
      %v1727 = vpop.f32.mrb[0].mxu0
      %1728 = vmatprep.mubr.bf16.mxu0 0
      %1729 = vmatmul.mubr.bf16.gmra.mrb[0].mxu0 %v1616
      %v1730 = vpop.f32.mrb[0].mxu0
      %v1731 = vadd.f32 0.0, %v1730
      %v1732 = vpop.f32.mrb[0].mxu0
      %v1733 = vpop.f32.mrb[0].mxu0
      %v1734 = vadd.f32 0.0, %v1733
      %v1735 = vpop.f32.mrb[0].mxu0
      %1736 = vmatprep.mubr.bf16.mxu0 0
      %1737 = vmatmul.mubr.bf16.gmra.mrb[0].mxu0 %v1619
      %v1738 = vpop.f32.mrb[0].mxu0
      %v1739 = vadd.f32 0.0, %v1738
      %v1740 = vpop.f32.mrb[0].mxu0
      %v1741 = vpop.f32.mrb[0].mxu0
      %v1742 = vadd.f32 0.0, %v1741
      %v1743 = vpop.f32.mrb[0].mxu0
      %1744 = vmatprep.mubr.bf16.mxu0 0
      %1745 = vmatmul.mubr.bf16.gmra.mrb[0].mxu0 %v1622
      %v1746 = vpop.f32.mrb[0].mxu0
      %v1747 = vadd.f32 0.0, %v1746
      %v1748 = vpop.f32.mrb[0].mxu0
      %v1749 = vpop.f32.mrb[0].mxu0
      %v1750 = vadd.f32 0.0, %v1749
      %v1751 = vpop.f32.mrb[0].mxu0
      %1752 = vmatprep.mubr.bf16.mxu0 0
      %1753 = vmatmul.mubr.bf16.gmra.mrb[0].mxu0 %v1625
      %v1754 = vpop.f32.mrb[0].mxu0
      %v1755 = vadd.f32 0.0, %v1754
      %v1756 = vpop.f32.mrb[0].mxu0
      %v1757 = vpop.f32.mrb[0].mxu0
      %v1758 = vadd.f32 0.0, %v1757
      %v1759 = vpop.f32.mrb[0].mxu0
      %1760 = vmatprep.mubr.bf16.mxu0 0
      %1761 = vmatmul.mubr.bf16.gmra.mrb[0].mxu0 %v1628
      %v1762 = vpop.f32.mrb[0].mxu0
      %v1763 = vadd.f32 0.0, %v1762
      %v1764 = vpop.f32.mrb[0].mxu0
      %v1765 = vpop.f32.mrb[0].mxu0
      %v1766 = vadd.f32 0.0, %v1765
      %v1767 = vpop.f32.mrb[0].mxu0
      %1768 = vmatprep.mubr.bf16.mxu0 0
      %1769 = vmatmul.mubr.bf16.gmra.mrb[0].mxu0 %v1631
      %v1770 = vpop.f32.mrb[0].mxu0
      %v1771 = vadd.f32 0.0, %v1770
      %v1772 = vpop.f32.mrb[0].mxu0
      %v1773 = vpop.f32.mrb[0].mxu0
      %v1774 = vadd.f32 0.0, %v1773
      %v1775 = vpop.f32.mrb[0].mxu0
      %1776 = vmatprep.mubr.bf16.mxu0 0
      %1777 = vmatmul.mubr.bf16.gmra.mrb[0].mxu0 %v1634
      %v1778 = vpop.f32.mrb[0].mxu0
      %v1779 = vadd.f32 0.0, %v1778
      %v1780 = vpop.f32.mrb[0].mxu0
      %v1781 = vpop.f32.mrb[0].mxu0
      %v1782 = vadd.f32 0.0, %v1781
      %v1783 = vpop.f32.mrb[0].mxu0
      %1784 = vmatprep.mubr.bf16.mxu0 0
      %1785 = vmatmul.mubr.bf16.gmra.mrb[0].mxu0 %v1637
      %v1786 = vpop.f32.mrb[0].mxu0
      %v1787 = vadd.f32 0.0, %v1786
      %v1788 = vpop.f32.mrb[0].mxu0
      %v1789 = vpop.f32.mrb[0].mxu0
      %v1790 = vadd.f32 0.0, %v1789
      %v1791 = vpop.f32.mrb[0].mxu0
      %1792 = vmatprep.mubr.bf16.mxu0 0
      %1793 = vmatmul.mubr.bf16.gmra.mrb[0].mxu0 %v1640
      %v1794 = vpop.f32.mrb[0].mxu0
      %v1795 = vadd.f32 0.0, %v1794
      %v1796 = vpop.f32.mrb[0].mxu0
      %v1797 = vpop.f32.mrb[0].mxu0
      %v1798 = vadd.f32 0.0, %v1797
      %v1799 = vpop.f32.mrb[0].mxu0
      %1800 = vmatprep.mubr.bf16.mxu0 0
      %1801 = vmatmul.mubr.bf16.gmra.mrb[0].mxu0 %v1643
      %v1802 = vpop.f32.mrb[0].mxu0
      %v1803 = vadd.f32 0.0, %v1802
      %v1804 = vpop.f32.mrb[0].mxu0
      %v1805 = vpop.f32.mrb[0].mxu0
      %v1806 = vadd.f32 0.0, %v1805
      %v1807 = vpop.f32.mrb[0].mxu0
      %1808 = vdwg.mxu0
      %v1809 = vadd.f32 %v1515, %v1683
      %v1810 = vadd.f32 %v1516, %v1686
      %v1811 = vadd.f32 %v1517, %v1691
      %v1812 = vadd.f32 %v1518, %v1694
      %v1813 = vadd.f32 %v1519, %v1699
      %v1814 = vadd.f32 %v1520, %v1702
      %v1815 = vadd.f32 %v1521, %v1707
      %v1816 = vadd.f32 %v1522, %v1710
      %v1817 = vadd.f32 %v1523, %v1715
      %v1818 = vadd.f32 %v1524, %v1718
      %v1819 = vadd.f32 %v1525, %v1723
      %v1820 = vadd.f32 %v1526, %v1726
      %v1821 = vadd.f32 %v1527, %v1731
      %v1822 = vadd.f32 %v1528, %v1734
      %v1823 = vadd.f32 %v1529, %v1739
      %v1824 = vadd.f32 %v1530, %v1742
      %v1825 = vadd.f32 %v1531, %v1747
      %v1826 = vadd.f32 %v1532, %v1750
      %v1827 = vadd.f32 %v1533, %v1755
      %v1828 = vadd.f32 %v1534, %v1758
      %v1829 = vadd.f32 %v1535, %v1763
      %v1830 = vadd.f32 %v1536, %v1766
      %v1831 = vadd.f32 %v1537, %v1771
      %v1832 = vadd.f32 %v1538, %v1774
      %v1833 = vadd.f32 %v1539, %v1779
      %v1834 = vadd.f32 %v1540, %v1782
      %v1835 = vadd.f32 %v1541, %v1787
      %v1836 = vadd.f32 %v1542, %v1790
      %v1837 = vadd.f32 %v1543, %v1795
      %v1838 = vadd.f32 %v1544, %v1798
      %v1839 = vadd.f32 %v1545, %v1803
      %v1840 = vadd.f32 %v1546, %v1806
      %v1841 = vld [vmem:[%s402 + $0x2] sm:$0xff]
      %v1842 = vld [vmem:[%s402 + $0xa] sm:$0xff]
      %v1843 = vld [vmem:[%s402 + $0x1a] sm:$0xff]
      %v1844 = vld [vmem:[%s402 + $0x22] sm:$0xff]
      %v1845 = vld [vmem:[%s402 + $0x32] sm:$0xff]
      %v1846 = vld [vmem:[%s402 + $0x3a] sm:$0xff]
      %v1847 = vld [vmem:[%s402 + $0x4a] sm:$0xff]
      %v1848 = vld [vmem:[%s402 + $0x52] sm:$0xff]
      %v1849 = vld [vmem:[%s402 + $0x62] sm:$0xff]
      %v1850 = vld [vmem:[%s402 + $0x6a] sm:$0xff]
      %v1851 = vld [vmem:[%s402 + $0x7a] sm:$0xff]
      %v1852 = vld [vmem:[%s402 + $0x82] sm:$0xff]
      %v1853 = vld [vmem:[%s402 + $0x92] sm:$0xff]
      %v1854 = vld [vmem:[%s402 + $0x9a] sm:$0xff]
      %v1855 = vld [vmem:[%s402 + $0xaa] sm:$0xff]
      %v1856 = vld [vmem:[%s402 + $0xb2] sm:$0xff]
      %v1857 = vld [vmem:[%s402 + $0xc2] sm:$0xff]
      %v1858 = vld [vmem:[%s402 + $0xca] sm:$0xff]
      %v1859 = vld [vmem:[%s402 + $0xda] sm:$0xff]
      %v1860 = vld [vmem:[%s402 + $0xe2] sm:$0xff]
      %v1861 = vld [vmem:[%s402 + $0xf2] sm:$0xff]
      %v1862 = vld [vmem:[%s402 + $0xfa] sm:$0xff]
      %v1863 = vld [vmem:[%s402 + $0x10a] sm:$0xff]
      %v1864 = vld [vmem:[%s402 + $0x112] sm:$0xff]
      %v1865 = vld [vmem:[%s402 + $0x122] sm:$0xff]
      %v1866 = vld [vmem:[%s402 + $0x12a] sm:$0xff]
      %v1867 = vld [vmem:[%s402 + $0x13a] sm:$0xff]
      %v1868 = vld [vmem:[%s402 + $0x142] sm:$0xff]
      %v1869 = vld [vmem:[%s402 + $0x152] sm:$0xff]
      %v1870 = vld [vmem:[%s402 + $0x15a] sm:$0xff]
      %v1871 = vld [vmem:[%s402 + $0x16a] sm:$0xff]
      %v1872 = vld [vmem:[%s402 + $0x172] sm:$0xff]
      %v1873 = vpack.c.bf16 %v1842, %v1841
      %v1874 = vpack.c.bf16 %v1844, %v1843
      %v1875 = vpack.c.bf16 %v1846, %v1845
      %v1876 = vpack.c.bf16 %v1848, %v1847
      %v1877 = vpack.c.bf16 %v1850, %v1849
      %v1878 = vpack.c.bf16 %v1852, %v1851
      %v1879 = vpack.c.bf16 %v1854, %v1853
      %v1880 = vpack.c.bf16 %v1856, %v1855
      %v1881 = vpack.c.bf16 %v1858, %v1857
      %v1882 = vpack.c.bf16 %v1860, %v1859
      %v1883 = vpack.c.bf16 %v1862, %v1861
      %v1884 = vpack.c.bf16 %v1864, %v1863
      %v1885 = vpack.c.bf16 %v1866, %v1865
      %v1886 = vpack.c.bf16 %v1868, %v1867
      %v1887 = vpack.c.bf16 %v1870, %v1869
      %v1888 = vpack.c.bf16 %v1872, %v1871
      %s1889 = scalar_lea.vmem %s3, 10
      %v1890 = vld [vmem:[%s1889] sm:$0x3]
      %v1892 = vsel %vm246, %v1873, 0
      %v1895 = vsel %vm246, %v1874, 0
      %v1898 = vsel %vm246, %v1875, 0
      %v1901 = vsel %vm246, %v1876, 0
      %v1904 = vsel %vm246, %v1877, 0
      %v1907 = vsel %vm246, %v1878, 0
      %v1910 = vsel %vm246, %v1879, 0
      %v1913 = vsel %vm246, %v1880, 0
      %v1916 = vsel %vm246, %v1881, 0
      %v1919 = vsel %vm246, %v1882, 0
      %v1922 = vsel %vm246, %v1883, 0
      %v1925 = vsel %vm246, %v1884, 0
      %v1928 = vsel %vm246, %v1885, 0
      %v1931 = vsel %vm246, %v1886, 0
      %v1934 = vsel %vm246, %v1887, 0
      %v1937 = vsel %vm246, %v1888, 0
      %v1940 = vsel %vm582, %v1890, 0
      %1942 = vmatprep.subr.bf16.mxu0 0
      %1943 = vmatpush1.bf16.msra.mxu0 %v1940
      %1944 = vmatprep.subr.bf16.mxu0 0
      %1945 = vmatpush1.bf16.msra.mxu0 0
      %1946 = vmatprep.subr.bf16.mxu0 0
      %1947 = vmatpush1.bf16.msra.mxu0 0
      %1948 = vmatprep.subr.bf16.mxu0 0
      %1949 = vmatpush1.bf16.msra.mxu0 0
      %1950 = vmatprep.subr.bf16.mxu0 0
      %1951 = vmatpush1.bf16.msra.mxu0 0
      %1952 = vmatprep.subr.bf16.mxu0 0
      %1953 = vmatpush1.bf16.msra.mxu0 0
      %1954 = vmatprep.subr.bf16.mxu0 0
      %1955 = vmatpush1.bf16.msra.mxu0 0
      %1956 = vmatprep.subr.bf16.mxu0 0
      %1957 = vmatpush1.bf16.msra.mxu0 0
      %1958 = vmatprep.subr.bf16.mxu0 0
      %1959 = vmatpush1.bf16.msra.mxu0 0
      %1960 = vmatprep.subr.bf16.mxu0 0
      %1961 = vmatpush1.bf16.msra.mxu0 0
      %1962 = vmatprep.subr.bf16.mxu0 0
      %1963 = vmatpush1.bf16.msra.mxu0 0
      %1964 = vmatprep.subr.bf16.mxu0 0
      %1965 = vmatpush1.bf16.msra.mxu0 0
      %1966 = vmatprep.subr.bf16.mxu0 0
      %1967 = vmatpush1.bf16.msra.mxu0 0
      %1968 = vmatprep.subr.bf16.mxu0 0
      %1969 = vmatpush1.bf16.msra.mxu0 0
      %1970 = vmatprep.subr.bf16.mxu0 0
      %1971 = vmatpush1.bf16.msra.mxu0 0
      %1972 = vmatprep.subr.bf16.mxu0 0
      %1973 = vmatpush1.bf16.msra.mxu0 0
      %1974 = vmatprep.mubr.bf16.mxu0 0
      %1975 = vmatmul.mubr.bf16.gmra.mrb[0].mxu0 %v1892
      %v1976 = vpop.f32.mrb[0].mxu0
      %v1977 = vadd.f32 0.0, %v1976
      %v1978 = vpop.f32.mrb[0].mxu0
      %v1979 = vpop.f32.mrb[0].mxu0
      %v1980 = vadd.f32 0.0, %v1979
      %v1981 = vpop.f32.mrb[0].mxu0
      %1982 = vmatprep.mubr.bf16.mxu0 0
      %1983 = vmatmul.mubr.bf16.gmra.mrb[0].mxu0 %v1895
      %v1984 = vpop.f32.mrb[0].mxu0
      %v1985 = vadd.f32 0.0, %v1984
      %v1986 = vpop.f32.mrb[0].mxu0
      %v1987 = vpop.f32.mrb[0].mxu0
      %v1988 = vadd.f32 0.0, %v1987
      %v1989 = vpop.f32.mrb[0].mxu0
      %1990 = vmatprep.mubr.bf16.mxu0 0
      %1991 = vmatmul.mubr.bf16.gmra.mrb[0].mxu0 %v1898
      %v1992 = vpop.f32.mrb[0].mxu0
      %v1993 = vadd.f32 0.0, %v1992
      %v1994 = vpop.f32.mrb[0].mxu0
      %v1995 = vpop.f32.mrb[0].mxu0
      %v1996 = vadd.f32 0.0, %v1995
      %v1997 = vpop.f32.mrb[0].mxu0
      %1998 = vmatprep.mubr.bf16.mxu0 0
      %1999 = vmatmul.mubr.bf16.gmra.mrb[0].mxu0 %v1901
      %v2000 = vpop.f32.mrb[0].mxu0
      %v2001 = vadd.f32 0.0, %v2000
      %v2002 = vpop.f32.mrb[0].mxu0
      %v2003 = vpop.f32.mrb[0].mxu0
      %v2004 = vadd.f32 0.0, %v2003
      %v2005 = vpop.f32.mrb[0].mxu0
      %2006 = vmatprep.mubr.bf16.mxu0 0
      %2007 = vmatmul.mubr.bf16.gmra.mrb[0].mxu0 %v1904
      %v2008 = vpop.f32.mrb[0].mxu0
      %v2009 = vadd.f32 0.0, %v2008
      %v2010 = vpop.f32.mrb[0].mxu0
      %v2011 = vpop.f32.mrb[0].mxu0
      %v2012 = vadd.f32 0.0, %v2011
      %v2013 = vpop.f32.mrb[0].mxu0
      %2014 = vmatprep.mubr.bf16.mxu0 0
      %2015 = vmatmul.mubr.bf16.gmra.mrb[0].mxu0 %v1907
      %v2016 = vpop.f32.mrb[0].mxu0
      %v2017 = vadd.f32 0.0, %v2016
      %v2018 = vpop.f32.mrb[0].mxu0
      %v2019 = vpop.f32.mrb[0].mxu0
      %v2020 = vadd.f32 0.0, %v2019
      %v2021 = vpop.f32.mrb[0].mxu0
      %2022 = vmatprep.mubr.bf16.mxu0 0
      %2023 = vmatmul.mubr.bf16.gmra.mrb[0].mxu0 %v1910
      %v2024 = vpop.f32.mrb[0].mxu0
      %v2025 = vadd.f32 0.0, %v2024
      %v2026 = vpop.f32.mrb[0].mxu0
      %v2027 = vpop.f32.mrb[0].mxu0
      %v2028 = vadd.f32 0.0, %v2027
      %v2029 = vpop.f32.mrb[0].mxu0
      %2030 = vmatprep.mubr.bf16.mxu0 0
      %2031 = vmatmul.mubr.bf16.gmra.mrb[0].mxu0 %v1913
      %v2032 = vpop.f32.mrb[0].mxu0
      %v2033 = vadd.f32 0.0, %v2032
      %v2034 = vpop.f32.mrb[0].mxu0
      %v2035 = vpop.f32.mrb[0].mxu0
      %v2036 = vadd.f32 0.0, %v2035
      %v2037 = vpop.f32.mrb[0].mxu0
      %2038 = vmatprep.mubr.bf16.mxu0 0
      %2039 = vmatmul.mubr.bf16.gmra.mrb[0].mxu0 %v1916
      %v2040 = vpop.f32.mrb[0].mxu0
      %v2041 = vadd.f32 0.0, %v2040
      %v2042 = vpop.f32.mrb[0].mxu0
      %v2043 = vpop.f32.mrb[0].mxu0
      %v2044 = vadd.f32 0.0, %v2043
      %v2045 = vpop.f32.mrb[0].mxu0
      %2046 = vmatprep.mubr.bf16.mxu0 0
      %2047 = vmatmul.mubr.bf16.gmra.mrb[0].mxu0 %v1919
      %v2048 = vpop.f32.mrb[0].mxu0
      %v2049 = vadd.f32 0.0, %v2048
      %v2050 = vpop.f32.mrb[0].mxu0
      %v2051 = vpop.f32.mrb[0].mxu0
      %v2052 = vadd.f32 0.0, %v2051
      %v2053 = vpop.f32.mrb[0].mxu0
      %2054 = vmatprep.mubr.bf16.mxu0 0
      %2055 = vmatmul.mubr.bf16.gmra.mrb[0].mxu0 %v1922
      %v2056 = vpop.f32.mrb[0].mxu0
      %v2057 = vadd.f32 0.0, %v2056
      %v2058 = vpop.f32.mrb[0].mxu0
      %v2059 = vpop.f32.mrb[0].mxu0
      %v2060 = vadd.f32 0.0, %v2059
      %v2061 = vpop.f32.mrb[0].mxu0
      %2062 = vmatprep.mubr.bf16.mxu0 0
      %2063 = vmatmul.mubr.bf16.gmra.mrb[0].mxu0 %v1925
      %v2064 = vpop.f32.mrb[0].mxu0
      %v2065 = vadd.f32 0.0, %v2064
      %v2066 = vpop.f32.mrb[0].mxu0
      %v2067 = vpop.f32.mrb[0].mxu0
      %v2068 = vadd.f32 0.0, %v2067
      %v2069 = vpop.f32.mrb[0].mxu0
      %2070 = vmatprep.mubr.bf16.mxu0 0
      %2071 = vmatmul.mubr.bf16.gmra.mrb[0].mxu0 %v1928
      %v2072 = vpop.f32.mrb[0].mxu0
      %v2073 = vadd.f32 0.0, %v2072
      %v2074 = vpop.f32.mrb[0].mxu0
      %v2075 = vpop.f32.mrb[0].mxu0
      %v2076 = vadd.f32 0.0, %v2075
      %v2077 = vpop.f32.mrb[0].mxu0
      %2078 = vmatprep.mubr.bf16.mxu0 0
      %2079 = vmatmul.mubr.bf16.gmra.mrb[0].mxu0 %v1931
      %v2080 = vpop.f32.mrb[0].mxu0
      %v2081 = vadd.f32 0.0, %v2080
      %v2082 = vpop.f32.mrb[0].mxu0
      %v2083 = vpop.f32.mrb[0].mxu0
      %v2084 = vadd.f32 0.0, %v2083
      %v2085 = vpop.f32.mrb[0].mxu0
      %2086 = vmatprep.mubr.bf16.mxu0 0
      %2087 = vmatmul.mubr.bf16.gmra.mrb[0].mxu0 %v1934
      %v2088 = vpop.f32.mrb[0].mxu0
      %v2089 = vadd.f32 0.0, %v2088
      %v2090 = vpop.f32.mrb[0].mxu0
      %v2091 = vpop.f32.mrb[0].mxu0
      %v2092 = vadd.f32 0.0, %v2091
      %v2093 = vpop.f32.mrb[0].mxu0
      %2094 = vmatprep.mubr.bf16.mxu0 0
      %2095 = vmatmul.mubr.bf16.gmra.mrb[0].mxu0 %v1937
      %v2096 = vpop.f32.mrb[0].mxu0
      %v2097 = vadd.f32 0.0, %v2096
      %v2098 = vpop.f32.mrb[0].mxu0
      %v2099 = vpop.f32.mrb[0].mxu0
      %v2100 = vadd.f32 0.0, %v2099
      %v2101 = vpop.f32.mrb[0].mxu0
      %2102 = vdwg.mxu0
      %v2103 = vadd.f32 %v1809, %v1977
      %v2104 = vadd.f32 %v1810, %v1980
      %v2105 = vadd.f32 %v1811, %v1985
      %v2106 = vadd.f32 %v1812, %v1988
      %v2107 = vadd.f32 %v1813, %v1993
      %v2108 = vadd.f32 %v1814, %v1996
      %v2109 = vadd.f32 %v1815, %v2001
      %v2110 = vadd.f32 %v1816, %v2004
      %v2111 = vadd.f32 %v1817, %v2009
      %v2112 = vadd.f32 %v1818, %v2012
      %v2113 = vadd.f32 %v1819, %v2017
      %v2114 = vadd.f32 %v1820, %v2020
      %v2115 = vadd.f32 %v1821, %v2025
      %v2116 = vadd.f32 %v1822, %v2028
      %v2117 = vadd.f32 %v1823, %v2033
      %v2118 = vadd.f32 %v1824, %v2036
      %v2119 = vadd.f32 %v1825, %v2041
      %v2120 = vadd.f32 %v1826, %v2044
      %v2121 = vadd.f32 %v1827, %v2049
      %v2122 = vadd.f32 %v1828, %v2052
      %v2123 = vadd.f32 %v1829, %v2057
      %v2124 = vadd.f32 %v1830, %v2060
      %v2125 = vadd.f32 %v1831, %v2065
      %v2126 = vadd.f32 %v1832, %v2068
      %v2127 = vadd.f32 %v1833, %v2073
      %v2128 = vadd.f32 %v1834, %v2076
      %v2129 = vadd.f32 %v1835, %v2081
      %v2130 = vadd.f32 %v1836, %v2084
      %v2131 = vadd.f32 %v1837, %v2089
      %v2132 = vadd.f32 %v1838, %v2092
      %v2133 = vadd.f32 %v1839, %v2097
      %v2134 = vadd.f32 %v1840, %v2100
      %s2135 = scalar_lea.vmem [#allocation2], 48
      %v2136 = vld [vmem:[%s2135] sm:$0xff]
      %v2137 = vld [vmem:[%s2135 + $0x8] sm:$0xff]
      %v2138 = vld [vmem:[%s2135 + $0x18] sm:$0xff]
      %v2139 = vld [vmem:[%s2135 + $0x20] sm:$0xff]
      %v2140 = vld [vmem:[%s2135 + $0x30] sm:$0xff]
      %v2141 = vld [vmem:[%s2135 + $0x38] sm:$0xff]
      %v2142 = vld [vmem:[%s2135 + $0x48] sm:$0xff]
      %v2143 = vld [vmem:[%s2135 + $0x50] sm:$0xff]
      %v2144 = vld [vmem:[%s2135 + $0x60] sm:$0xff]
      %v2145 = vld [vmem:[%s2135 + $0x68] sm:$0xff]
      %v2146 = vld [vmem:[%s2135 + $0x78] sm:$0xff]
      %v2147 = vld [vmem:[%s2135 + $0x80] sm:$0xff]
      %v2148 = vld [vmem:[%s2135 + $0x90] sm:$0xff]
      %v2149 = vld [vmem:[%s2135 + $0x98] sm:$0xff]
      %v2150 = vld [vmem:[%s2135 + $0xa8] sm:$0xff]
      %v2151 = vld [vmem:[%s2135 + $0xb0] sm:$0xff]
      %v2152 = vld [vmem:[%s2135 + $0xc0] sm:$0xff]
      %v2153 = vld [vmem:[%s2135 + $0xc8] sm:$0xff]
      %v2154 = vld [vmem:[%s2135 + $0xd8] sm:$0xff]
      %v2155 = vld [vmem:[%s2135 + $0xe0] sm:$0xff]
      %v2156 = vld [vmem:[%s2135 + $0xf0] sm:$0xff]
      %v2157 = vld [vmem:[%s2135 + $0xf8] sm:$0xff]
      %v2158 = vld [vmem:[%s2135 + $0x108] sm:$0xff]
      %v2159 = vld [vmem:[%s2135 + $0x110] sm:$0xff]
      %v2160 = vld [vmem:[%s2135 + $0x120] sm:$0xff]
      %v2161 = vld [vmem:[%s2135 + $0x128] sm:$0xff]
      %v2162 = vld [vmem:[%s2135 + $0x138] sm:$0xff]
      %v2163 = vld [vmem:[%s2135 + $0x140] sm:$0xff]
      %v2164 = vld [vmem:[%s2135 + $0x150] sm:$0xff]
      %v2165 = vld [vmem:[%s2135 + $0x158] sm:$0xff]
      %v2166 = vld [vmem:[%s2135 + $0x168] sm:$0xff]
      %v2167 = vld [vmem:[%s2135 + $0x170] sm:$0xff]
      %v2168 = vpack.c.bf16 %v2137, %v2136
      %v2169 = vpack.c.bf16 %v2139, %v2138
      %v2170 = vpack.c.bf16 %v2141, %v2140
      %v2171 = vpack.c.bf16 %v2143, %v2142
      %v2172 = vpack.c.bf16 %v2145, %v2144
      %v2173 = vpack.c.bf16 %v2147, %v2146
      %v2174 = vpack.c.bf16 %v2149, %v2148
      %v2175 = vpack.c.bf16 %v2151, %v2150
      %v2176 = vpack.c.bf16 %v2153, %v2152
      %v2177 = vpack.c.bf16 %v2155, %v2154
      %v2178 = vpack.c.bf16 %v2157, %v2156
      %v2179 = vpack.c.bf16 %v2159, %v2158
      %v2180 = vpack.c.bf16 %v2161, %v2160
      %v2181 = vpack.c.bf16 %v2163, %v2162
      %v2182 = vpack.c.bf16 %v2165, %v2164
      %v2183 = vpack.c.bf16 %v2167, %v2166
      %s2184 = scalar_lea.vmem %s3, 12
      %v2185 = vld [vmem:[%s2184] sm:$0x3]
      %v2187 = vsel %vm246, %v2168, 0
      %v2190 = vsel %vm246, %v2169, 0
      %v2193 = vsel %vm246, %v2170, 0
      %v2196 = vsel %vm246, %v2171, 0
      %v2199 = vsel %vm246, %v2172, 0
      %v2202 = vsel %vm246, %v2173, 0
      %v2205 = vsel %vm246, %v2174, 0
      %v2208 = vsel %vm246, %v2175, 0
      %v2211 = vsel %vm246, %v2176, 0
      %v2214 = vsel %vm246, %v2177, 0
      %v2217 = vsel %vm246, %v2178, 0
      %v2220 = vsel %vm246, %v2179, 0
      %v2223 = vsel %vm246, %v2180, 0
      %v2226 = vsel %vm246, %v2181, 0
      %v2229 = vsel %vm246, %v2182, 0
      %v2232 = vsel %vm246, %v2183, 0
      %v2235 = vsel %vm582, %v2185, 0
      %2237 = vmatprep.subr.bf16.mxu0 0
      %2238 = vmatpush1.bf16.msra.mxu0 %v2235
      %2239 = vmatprep.subr.bf16.mxu0 0
      %2240 = vmatpush1.bf16.msra.mxu0 0
      %2241 = vmatprep.subr.bf16.mxu0 0
      %2242 = vmatpush1.bf16.msra.mxu0 0
      %2243 = vmatprep.subr.bf16.mxu0 0
      %2244 = vmatpush1.bf16.msra.mxu0 0
      %2245 = vmatprep.subr.bf16.mxu0 0
      %2246 = vmatpush1.bf16.msra.mxu0 0
      %2247 = vmatprep.subr.bf16.mxu0 0
      %2248 = vmatpush1.bf16.msra.mxu0 0
      %2249 = vmatprep.subr.bf16.mxu0 0
      %2250 = vmatpush1.bf16.msra.mxu0 0
      %2251 = vmatprep.subr.bf16.mxu0 0
      %2252 = vmatpush1.bf16.msra.mxu0 0
      %2253 = vmatprep.subr.bf16.mxu0 0
      %2254 = vmatpush1.bf16.msra.mxu0 0
      %2255 = vmatprep.subr.bf16.mxu0 0
      %2256 = vmatpush1.bf16.msra.mxu0 0
      %2257 = vmatprep.subr.bf16.mxu0 0
      %2258 = vmatpush1.bf16.msra.mxu0 0
      %2259 = vmatprep.subr.bf16.mxu0 0
      %2260 = vmatpush1.bf16.msra.mxu0 0
      %2261 = vmatprep.subr.bf16.mxu0 0
      %2262 = vmatpush1.bf16.msra.mxu0 0
      %2263 = vmatprep.subr.bf16.mxu0 0
      %2264 = vmatpush1.bf16.msra.mxu0 0
      %2265 = vmatprep.subr.bf16.mxu0 0
      %2266 = vmatpush1.bf16.msra.mxu0 0
      %2267 = vmatprep.subr.bf16.mxu0 0
      %2268 = vmatpush1.bf16.msra.mxu0 0
      %2269 = vmatprep.mubr.bf16.mxu0 0
      %2270 = vmatmul.mubr.bf16.gmra.mrb[0].mxu0 %v2187
      %v2271 = vpop.f32.mrb[0].mxu0
      %v2272 = vadd.f32 0.0, %v2271
      %v2273 = vpop.f32.mrb[0].mxu0
      %v2274 = vpop.f32.mrb[0].mxu0
      %v2275 = vadd.f32 0.0, %v2274
      %v2276 = vpop.f32.mrb[0].mxu0
      %2277 = vmatprep.mubr.bf16.mxu0 0
      %2278 = vmatmul.mubr.bf16.gmra.mrb[0].mxu0 %v2190
      %v2279 = vpop.f32.mrb[0].mxu0
      %v2280 = vadd.f32 0.0, %v2279
      %v2281 = vpop.f32.mrb[0].mxu0
      %v2282 = vpop.f32.mrb[0].mxu0
      %v2283 = vadd.f32 0.0, %v2282
      %v2284 = vpop.f32.mrb[0].mxu0
      %2285 = vmatprep.mubr.bf16.mxu0 0
      %2286 = vmatmul.mubr.bf16.gmra.mrb[0].mxu0 %v2193
      %v2287 = vpop.f32.mrb[0].mxu0
      %v2288 = vadd.f32 0.0, %v2287
      %v2289 = vpop.f32.mrb[0].mxu0
      %v2290 = vpop.f32.mrb[0].mxu0
      %v2291 = vadd.f32 0.0, %v2290
      %v2292 = vpop.f32.mrb[0].mxu0
      %2293 = vmatprep.mubr.bf16.mxu0 0
      %2294 = vmatmul.mubr.bf16.gmra.mrb[0].mxu0 %v2196
      %v2295 = vpop.f32.mrb[0].mxu0
      %v2296 = vadd.f32 0.0, %v2295
      %v2297 = vpop.f32.mrb[0].mxu0
      %v2298 = vpop.f32.mrb[0].mxu0
      %v2299 = vadd.f32 0.0, %v2298
      %v2300 = vpop.f32.mrb[0].mxu0
      %2301 = vmatprep.mubr.bf16.mxu0 0
      %2302 = vmatmul.mubr.bf16.gmra.mrb[0].mxu0 %v2199
      %v2303 = vpop.f32.mrb[0].mxu0
      %v2304 = vadd.f32 0.0, %v2303
      %v2305 = vpop.f32.mrb[0].mxu0
      %v2306 = vpop.f32.mrb[0].mxu0
      %v2307 = vadd.f32 0.0, %v2306
      %v2308 = vpop.f32.mrb[0].mxu0
      %2309 = vmatprep.mubr.bf16.mxu0 0
      %2310 = vmatmul.mubr.bf16.gmra.mrb[0].mxu0 %v2202
      %v2311 = vpop.f32.mrb[0].mxu0
      %v2312 = vadd.f32 0.0, %v2311
      %v2313 = vpop.f32.mrb[0].mxu0
      %v2314 = vpop.f32.mrb[0].mxu0
      %v2315 = vadd.f32 0.0, %v2314
      %v2316 = vpop.f32.mrb[0].mxu0
      %2317 = vmatprep.mubr.bf16.mxu0 0
      %2318 = vmatmul.mubr.bf16.gmra.mrb[0].mxu0 %v2205
      %v2319 = vpop.f32.mrb[0].mxu0
      %v2320 = vadd.f32 0.0, %v2319
      %v2321 = vpop.f32.mrb[0].mxu0
      %v2322 = vpop.f32.mrb[0].mxu0
      %v2323 = vadd.f32 0.0, %v2322
      %v2324 = vpop.f32.mrb[0].mxu0
      %2325 = vmatprep.mubr.bf16.mxu0 0
      %2326 = vmatmul.mubr.bf16.gmra.mrb[0].mxu0 %v2208
      %v2327 = vpop.f32.mrb[0].mxu0
      %v2328 = vadd.f32 0.0, %v2327
      %v2329 = vpop.f32.mrb[0].mxu0
      %v2330 = vpop.f32.mrb[0].mxu0
      %v2331 = vadd.f32 0.0, %v2330
      %v2332 = vpop.f32.mrb[0].mxu0
      %2333 = vmatprep.mubr.bf16.mxu0 0
      %2334 = vmatmul.mubr.bf16.gmra.mrb[0].mxu0 %v2211
      %v2335 = vpop.f32.mrb[0].mxu0
      %v2336 = vadd.f32 0.0, %v2335
      %v2337 = vpop.f32.mrb[0].mxu0
      %v2338 = vpop.f32.mrb[0].mxu0
      %v2339 = vadd.f32 0.0, %v2338
      %v2340 = vpop.f32.mrb[0].mxu0
      %2341 = vmatprep.mubr.bf16.mxu0 0
      %2342 = vmatmul.mubr.bf16.gmra.mrb[0].mxu0 %v2214
      %v2343 = vpop.f32.mrb[0].mxu0
      %v2344 = vadd.f32 0.0, %v2343
      %v2345 = vpop.f32.mrb[0].mxu0
      %v2346 = vpop.f32.mrb[0].mxu0
      %v2347 = vadd.f32 0.0, %v2346
      %v2348 = vpop.f32.mrb[0].mxu0
      %2349 = vmatprep.mubr.bf16.mxu0 0
      %2350 = vmatmul.mubr.bf16.gmra.mrb[0].mxu0 %v2217
      %v2351 = vpop.f32.mrb[0].mxu0
      %v2352 = vadd.f32 0.0, %v2351
      %v2353 = vpop.f32.mrb[0].mxu0
      %v2354 = vpop.f32.mrb[0].mxu0
      %v2355 = vadd.f32 0.0, %v2354
      %v2356 = vpop.f32.mrb[0].mxu0
      %2357 = vmatprep.mubr.bf16.mxu0 0
      %2358 = vmatmul.mubr.bf16.gmra.mrb[0].mxu0 %v2220
      %v2359 = vpop.f32.mrb[0].mxu0
      %v2360 = vadd.f32 0.0, %v2359
      %v2361 = vpop.f32.mrb[0].mxu0
      %v2362 = vpop.f32.mrb[0].mxu0
      %v2363 = vadd.f32 0.0, %v2362
      %v2364 = vpop.f32.mrb[0].mxu0
      %2365 = vmatprep.mubr.bf16.mxu0 0
      %2366 = vmatmul.mubr.bf16.gmra.mrb[0].mxu0 %v2223
      %v2367 = vpop.f32.mrb[0].mxu0
      %v2368 = vadd.f32 0.0, %v2367
      %v2369 = vpop.f32.mrb[0].mxu0
      %v2370 = vpop.f32.mrb[0].mxu0
      %v2371 = vadd.f32 0.0, %v2370
      %v2372 = vpop.f32.mrb[0].mxu0
      %2373 = vmatprep.mubr.bf16.mxu0 0
      %2374 = vmatmul.mubr.bf16.gmra.mrb[0].mxu0 %v2226
      %v2375 = vpop.f32.mrb[0].mxu0
      %v2376 = vadd.f32 0.0, %v2375
      %v2377 = vpop.f32.mrb[0].mxu0
      %v2378 = vpop.f32.mrb[0].mxu0
      %v2379 = vadd.f32 0.0, %v2378
      %v2380 = vpop.f32.mrb[0].mxu0
      %2381 = vmatprep.mubr.bf16.mxu0 0
      %2382 = vmatmul.mubr.bf16.gmra.mrb[0].mxu0 %v2229
      %v2383 = vpop.f32.mrb[0].mxu0
      %v2384 = vadd.f32 0.0, %v2383
      %v2385 = vpop.f32.mrb[0].mxu0
      %v2386 = vpop.f32.mrb[0].mxu0
      %v2387 = vadd.f32 0.0, %v2386
      %v2388 = vpop.f32.mrb[0].mxu0
      %2389 = vmatprep.mubr.bf16.mxu0 0
      %2390 = vmatmul.mubr.bf16.gmra.mrb[0].mxu0 %v2232
      %v2391 = vpop.f32.mrb[0].mxu0
      %v2392 = vadd.f32 0.0, %v2391
      %v2393 = vpop.f32.mrb[0].mxu0
      %v2394 = vpop.f32.mrb[0].mxu0
      %v2395 = vadd.f32 0.0, %v2394
      %v2396 = vpop.f32.mrb[0].mxu0
      %2397 = vdwg.mxu0
      %v2398 = vadd.f32 %v2103, %v2272
      %v2399 = vadd.f32 %v2104, %v2275
      %v2400 = vadd.f32 %v2105, %v2280
      %v2401 = vadd.f32 %v2106, %v2283
      %v2402 = vadd.f32 %v2107, %v2288
      %v2403 = vadd.f32 %v2108, %v2291
      %v2404 = vadd.f32 %v2109, %v2296
      %v2405 = vadd.f32 %v2110, %v2299
      %v2406 = vadd.f32 %v2111, %v2304
      %v2407 = vadd.f32 %v2112, %v2307
      %v2408 = vadd.f32 %v2113, %v2312
      %v2409 = vadd.f32 %v2114, %v2315
      %v2410 = vadd.f32 %v2115, %v2320
      %v2411 = vadd.f32 %v2116, %v2323
      %v2412 = vadd.f32 %v2117, %v2328
      %v2413 = vadd.f32 %v2118, %v2331
      %v2414 = vadd.f32 %v2119, %v2336
      %v2415 = vadd.f32 %v2120, %v2339
      %v2416 = vadd.f32 %v2121, %v2344
      %v2417 = vadd.f32 %v2122, %v2347
      %v2418 = vadd.f32 %v2123, %v2352
      %v2419 = vadd.f32 %v2124, %v2355
      %v2420 = vadd.f32 %v2125, %v2360
      %v2421 = vadd.f32 %v2126, %v2363
      %v2422 = vadd.f32 %v2127, %v2368
      %v2423 = vadd.f32 %v2128, %v2371
      %v2424 = vadd.f32 %v2129, %v2376
      %v2425 = vadd.f32 %v2130, %v2379
      %v2426 = vadd.f32 %v2131, %v2384
      %v2427 = vadd.f32 %v2132, %v2387
      %v2428 = vadd.f32 %v2133, %v2392
      %v2429 = vadd.f32 %v2134, %v2395
      %v2430 = vld [vmem:[%s2135 + $0x1] sm:$0xff]
      %v2431 = vld [vmem:[%s2135 + $0x9] sm:$0xff]
      %v2432 = vld [vmem:[%s2135 + $0x19] sm:$0xff]
      %v2433 = vld [vmem:[%s2135 + $0x21] sm:$0xff]
      %v2434 = vld [vmem:[%s2135 + $0x31] sm:$0xff]
      %v2435 = vld [vmem:[%s2135 + $0x39] sm:$0xff]
      %v2436 = vld [vmem:[%s2135 + $0x49] sm:$0xff]
      %v2437 = vld [vmem:[%s2135 + $0x51] sm:$0xff]
      %v2438 = vld [vmem:[%s2135 + $0x61] sm:$0xff]
      %v2439 = vld [vmem:[%s2135 + $0x69] sm:$0xff]
      %v2440 = vld [vmem:[%s2135 + $0x79] sm:$0xff]
      %v2441 = vld [vmem:[%s2135 + $0x81] sm:$0xff]
      %v2442 = vld [vmem:[%s2135 + $0x91] sm:$0xff]
      %v2443 = vld [vmem:[%s2135 + $0x99] sm:$0xff]
      %v2444 = vld [vmem:[%s2135 + $0xa9] sm:$0xff]
      %v2445 = vld [vmem:[%s2135 + $0xb1] sm:$0xff]
      %v2446 = vld [vmem:[%s2135 + $0xc1] sm:$0xff]
      %v2447 = vld [vmem:[%s2135 + $0xc9] sm:$0xff]
      %v2448 = vld [vmem:[%s2135 + $0xd9] sm:$0xff]
      %v2449 = vld [vmem:[%s2135 + $0xe1] sm:$0xff]
      %v2450 = vld [vmem:[%s2135 + $0xf1] sm:$0xff]
      %v2451 = vld [vmem:[%s2135 + $0xf9] sm:$0xff]
      %v2452 = vld [vmem:[%s2135 + $0x109] sm:$0xff]
      %v2453 = vld [vmem:[%s2135 + $0x111] sm:$0xff]
      %v2454 = vld [vmem:[%s2135 + $0x121] sm:$0xff]
      %v2455 = vld [vmem:[%s2135 + $0x129] sm:$0xff]
      %v2456 = vld [vmem:[%s2135 + $0x139] sm:$0xff]
      %v2457 = vld [vmem:[%s2135 + $0x141] sm:$0xff]
      %v2458 = vld [vmem:[%s2135 + $0x151] sm:$0xff]
      %v2459 = vld [vmem:[%s2135 + $0x159] sm:$0xff]
      %v2460 = vld [vmem:[%s2135 + $0x169] sm:$0xff]
      %v2461 = vld [vmem:[%s2135 + $0x171] sm:$0xff]
      %v2462 = vpack.c.bf16 %v2431, %v2430
      %v2463 = vpack.c.bf16 %v2433, %v2432
      %v2464 = vpack.c.bf16 %v2435, %v2434
      %v2465 = vpack.c.bf16 %v2437, %v2436
      %v2466 = vpack.c.bf16 %v2439, %v2438
      %v2467 = vpack.c.bf16 %v2441, %v2440
      %v2468 = vpack.c.bf16 %v2443, %v2442
      %v2469 = vpack.c.bf16 %v2445, %v2444
      %v2470 = vpack.c.bf16 %v2447, %v2446
      %v2471 = vpack.c.bf16 %v2449, %v2448
      %v2472 = vpack.c.bf16 %v2451, %v2450
      %v2473 = vpack.c.bf16 %v2453, %v2452
      %v2474 = vpack.c.bf16 %v2455, %v2454
      %v2475 = vpack.c.bf16 %v2457, %v2456
      %v2476 = vpack.c.bf16 %v2459, %v2458
      %v2477 = vpack.c.bf16 %v2461, %v2460
      %s2478 = scalar_lea.vmem %s3, 14
      %v2479 = vld [vmem:[%s2478] sm:$0x3]
      %v2481 = vsel %vm246, %v2462, 0
      %v2484 = vsel %vm246, %v2463, 0
      %v2487 = vsel %vm246, %v2464, 0
      %v2490 = vsel %vm246, %v2465, 0
      %v2493 = vsel %vm246, %v2466, 0
      %v2496 = vsel %vm246, %v2467, 0
      %v2499 = vsel %vm246, %v2468, 0
      %v2502 = vsel %vm246, %v2469, 0
      %v2505 = vsel %vm246, %v2470, 0
      %v2508 = vsel %vm246, %v2471, 0
      %v2511 = vsel %vm246, %v2472, 0
      %v2514 = vsel %vm246, %v2473, 0
      %v2517 = vsel %vm246, %v2474, 0
      %v2520 = vsel %vm246, %v2475, 0
      %v2523 = vsel %vm246, %v2476, 0
      %v2526 = vsel %vm246, %v2477, 0
      %v2529 = vsel %vm582, %v2479, 0
      %2531 = vmatprep.subr.bf16.mxu0 0
      %2532 = vmatpush1.bf16.msra.mxu0 %v2529
      %2533 = vmatprep.subr.bf16.mxu0 0
      %2534 = vmatpush1.bf16.msra.mxu0 0
      %2535 = vmatprep.subr.bf16.mxu0 0
      %2536 = vmatpush1.bf16.msra.mxu0 0
      %2537 = vmatprep.subr.bf16.mxu0 0
      %2538 = vmatpush1.bf16.msra.mxu0 0
      %2539 = vmatprep.subr.bf16.mxu0 0
      %2540 = vmatpush1.bf16.msra.mxu0 0
      %2541 = vmatprep.subr.bf16.mxu0 0
      %2542 = vmatpush1.bf16.msra.mxu0 0
      %2543 = vmatprep.subr.bf16.mxu0 0
      %2544 = vmatpush1.bf16.msra.mxu0 0
      %2545 = vmatprep.subr.bf16.mxu0 0
      %2546 = vmatpush1.bf16.msra.mxu0 0
      %2547 = vmatprep.subr.bf16.mxu0 0
      %2548 = vmatpush1.bf16.msra.mxu0 0
      %2549 = vmatprep.subr.bf16.mxu0 0
      %2550 = vmatpush1.bf16.msra.mxu0 0
      %2551 = vmatprep.subr.bf16.mxu0 0
      %2552 = vmatpush1.bf16.msra.mxu0 0
      %2553 = vmatprep.subr.bf16.mxu0 0
      %2554 = vmatpush1.bf16.msra.mxu0 0
      %2555 = vmatprep.subr.bf16.mxu0 0
      %2556 = vmatpush1.bf16.msra.mxu0 0
      %2557 = vmatprep.subr.bf16.mxu0 0
      %2558 = vmatpush1.bf16.msra.mxu0 0
      %2559 = vmatprep.subr.bf16.mxu0 0
      %2560 = vmatpush1.bf16.msra.mxu0 0
      %2561 = vmatprep.subr.bf16.mxu0 0
      %2562 = vmatpush1.bf16.msra.mxu0 0
      %2563 = vmatprep.mubr.bf16.mxu0 0
      %2564 = vmatmul.mubr.bf16.gmra.mrb[0].mxu0 %v2481
      %v2565 = vpop.f32.mrb[0].mxu0
      %v2566 = vadd.f32 0.0, %v2565
      %v2567 = vpop.f32.mrb[0].mxu0
      %v2568 = vpop.f32.mrb[0].mxu0
      %v2569 = vadd.f32 0.0, %v2568
      %v2570 = vpop.f32.mrb[0].mxu0
      %2571 = vmatprep.mubr.bf16.mxu0 0
      %2572 = vmatmul.mubr.bf16.gmra.mrb[0].mxu0 %v2484
      %v2573 = vpop.f32.mrb[0].mxu0
      %v2574 = vadd.f32 0.0, %v2573
      %v2575 = vpop.f32.mrb[0].mxu0
      %v2576 = vpop.f32.mrb[0].mxu0
      %v2577 = vadd.f32 0.0, %v2576
      %v2578 = vpop.f32.mrb[0].mxu0
      %2579 = vmatprep.mubr.bf16.mxu0 0
      %2580 = vmatmul.mubr.bf16.gmra.mrb[0].mxu0 %v2487
      %v2581 = vpop.f32.mrb[0].mxu0
      %v2582 = vadd.f32 0.0, %v2581
      %v2583 = vpop.f32.mrb[0].mxu0
      %v2584 = vpop.f32.mrb[0].mxu0
      %v2585 = vadd.f32 0.0, %v2584
      %v2586 = vpop.f32.mrb[0].mxu0
      %2587 = vmatprep.mubr.bf16.mxu0 0
      %2588 = vmatmul.mubr.bf16.gmra.mrb[0].mxu0 %v2490
      %v2589 = vpop.f32.mrb[0].mxu0
      %v2590 = vadd.f32 0.0, %v2589
      %v2591 = vpop.f32.mrb[0].mxu0
      %v2592 = vpop.f32.mrb[0].mxu0
      %v2593 = vadd.f32 0.0, %v2592
      %v2594 = vpop.f32.mrb[0].mxu0
      %2595 = vmatprep.mubr.bf16.mxu0 0
      %2596 = vmatmul.mubr.bf16.gmra.mrb[0].mxu0 %v2493
      %v2597 = vpop.f32.mrb[0].mxu0
      %v2598 = vadd.f32 0.0, %v2597
      %v2599 = vpop.f32.mrb[0].mxu0
      %v2600 = vpop.f32.mrb[0].mxu0
      %v2601 = vadd.f32 0.0, %v2600
      %v2602 = vpop.f32.mrb[0].mxu0
      %2603 = vmatprep.mubr.bf16.mxu0 0
      %2604 = vmatmul.mubr.bf16.gmra.mrb[0].mxu0 %v2496
      %v2605 = vpop.f32.mrb[0].mxu0
      %v2606 = vadd.f32 0.0, %v2605
      %v2607 = vpop.f32.mrb[0].mxu0
      %v2608 = vpop.f32.mrb[0].mxu0
      %v2609 = vadd.f32 0.0, %v2608
      %v2610 = vpop.f32.mrb[0].mxu0
      %2611 = vmatprep.mubr.bf16.mxu0 0
      %2612 = vmatmul.mubr.bf16.gmra.mrb[0].mxu0 %v2499
      %v2613 = vpop.f32.mrb[0].mxu0
      %v2614 = vadd.f32 0.0, %v2613
      %v2615 = vpop.f32.mrb[0].mxu0
      %v2616 = vpop.f32.mrb[0].mxu0
      %v2617 = vadd.f32 0.0, %v2616
      %v2618 = vpop.f32.mrb[0].mxu0
      %2619 = vmatprep.mubr.bf16.mxu0 0
      %2620 = vmatmul.mubr.bf16.gmra.mrb[0].mxu0 %v2502
      %v2621 = vpop.f32.mrb[0].mxu0
      %v2622 = vadd.f32 0.0, %v2621
      %v2623 = vpop.f32.mrb[0].mxu0
      %v2624 = vpop.f32.mrb[0].mxu0
      %v2625 = vadd.f32 0.0, %v2624
      %v2626 = vpop.f32.mrb[0].mxu0
      %2627 = vmatprep.mubr.bf16.mxu0 0
      %2628 = vmatmul.mubr.bf16.gmra.mrb[0].mxu0 %v2505
      %v2629 = vpop.f32.mrb[0].mxu0
      %v2630 = vadd.f32 0.0, %v2629
      %v2631 = vpop.f32.mrb[0].mxu0
      %v2632 = vpop.f32.mrb[0].mxu0
      %v2633 = vadd.f32 0.0, %v2632
      %v2634 = vpop.f32.mrb[0].mxu0
      %2635 = vmatprep.mubr.bf16.mxu0 0
      %2636 = vmatmul.mubr.bf16.gmra.mrb[0].mxu0 %v2508
      %v2637 = vpop.f32.mrb[0].mxu0
      %v2638 = vadd.f32 0.0, %v2637
      %v2639 = vpop.f32.mrb[0].mxu0
      %v2640 = vpop.f32.mrb[0].mxu0
      %v2641 = vadd.f32 0.0, %v2640
      %v2642 = vpop.f32.mrb[0].mxu0
      %2643 = vmatprep.mubr.bf16.mxu0 0
      %2644 = vmatmul.mubr.bf16.gmra.mrb[0].mxu0 %v2511
      %v2645 = vpop.f32.mrb[0].mxu0
      %v2646 = vadd.f32 0.0, %v2645
      %v2647 = vpop.f32.mrb[0].mxu0
      %v2648 = vpop.f32.mrb[0].mxu0
      %v2649 = vadd.f32 0.0, %v2648
      %v2650 = vpop.f32.mrb[0].mxu0
      %2651 = vmatprep.mubr.bf16.mxu0 0
      %2652 = vmatmul.mubr.bf16.gmra.mrb[0].mxu0 %v2514
      %v2653 = vpop.f32.mrb[0].mxu0
      %v2654 = vadd.f32 0.0, %v2653
      %v2655 = vpop.f32.mrb[0].mxu0
      %v2656 = vpop.f32.mrb[0].mxu0
      %v2657 = vadd.f32 0.0, %v2656
      %v2658 = vpop.f32.mrb[0].mxu0
      %2659 = vmatprep.mubr.bf16.mxu0 0
      %2660 = vmatmul.mubr.bf16.gmra.mrb[0].mxu0 %v2517
      %v2661 = vpop.f32.mrb[0].mxu0
      %v2662 = vadd.f32 0.0, %v2661
      %v2663 = vpop.f32.mrb[0].mxu0
      %v2664 = vpop.f32.mrb[0].mxu0
      %v2665 = vadd.f32 0.0, %v2664
      %v2666 = vpop.f32.mrb[0].mxu0
      %2667 = vmatprep.mubr.bf16.mxu0 0
      %2668 = vmatmul.mubr.bf16.gmra.mrb[0].mxu0 %v2520
      %v2669 = vpop.f32.mrb[0].mxu0
      %v2670 = vadd.f32 0.0, %v2669
      %v2671 = vpop.f32.mrb[0].mxu0
      %v2672 = vpop.f32.mrb[0].mxu0
      %v2673 = vadd.f32 0.0, %v2672
      %v2674 = vpop.f32.mrb[0].mxu0
      %2675 = vmatprep.mubr.bf16.mxu0 0
      %2676 = vmatmul.mubr.bf16.gmra.mrb[0].mxu0 %v2523
      %v2677 = vpop.f32.mrb[0].mxu0
      %v2678 = vadd.f32 0.0, %v2677
      %v2679 = vpop.f32.mrb[0].mxu0
      %v2680 = vpop.f32.mrb[0].mxu0
      %v2681 = vadd.f32 0.0, %v2680
      %v2682 = vpop.f32.mrb[0].mxu0
      %2683 = vmatprep.mubr.bf16.mxu0 0
      %2684 = vmatmul.mubr.bf16.gmra.mrb[0].mxu0 %v2526
      %v2685 = vpop.f32.mrb[0].mxu0
      %v2686 = vadd.f32 0.0, %v2685
      %v2687 = vpop.f32.mrb[0].mxu0
      %v2688 = vpop.f32.mrb[0].mxu0
      %v2689 = vadd.f32 0.0, %v2688
      %v2690 = vpop.f32.mrb[0].mxu0
      %2691 = vdwg.mxu0
      %v2692 = vadd.f32 %v2398, %v2566
      %v2693 = vadd.f32 %v2399, %v2569
      %v2694 = vadd.f32 %v2400, %v2574
      %v2695 = vadd.f32 %v2401, %v2577
      %v2696 = vadd.f32 %v2402, %v2582
      %v2697 = vadd.f32 %v2403, %v2585
      %v2698 = vadd.f32 %v2404, %v2590
      %v2699 = vadd.f32 %v2405, %v2593
      %v2700 = vadd.f32 %v2406, %v2598
      %v2701 = vadd.f32 %v2407, %v2601
      %v2702 = vadd.f32 %v2408, %v2606
      %v2703 = vadd.f32 %v2409, %v2609
      %v2704 = vadd.f32 %v2410, %v2614
      %v2705 = vadd.f32 %v2411, %v2617
      %v2706 = vadd.f32 %v2412, %v2622
      %v2707 = vadd.f32 %v2413, %v2625
      %v2708 = vadd.f32 %v2414, %v2630
      %v2709 = vadd.f32 %v2415, %v2633
      %v2710 = vadd.f32 %v2416, %v2638
      %v2711 = vadd.f32 %v2417, %v2641
      %v2712 = vadd.f32 %v2418, %v2646
      %v2713 = vadd.f32 %v2419, %v2649
      %v2714 = vadd.f32 %v2420, %v2654
      %v2715 = vadd.f32 %v2421, %v2657
      %v2716 = vadd.f32 %v2422, %v2662
      %v2717 = vadd.f32 %v2423, %v2665
      %v2718 = vadd.f32 %v2424, %v2670
      %v2719 = vadd.f32 %v2425, %v2673
      %v2720 = vadd.f32 %v2426, %v2678
      %v2721 = vadd.f32 %v2427, %v2681
      %v2722 = vadd.f32 %v2428, %v2686
      %v2723 = vadd.f32 %v2429, %v2689
      %v2724 = vld [vmem:[%s2135 + $0x2] sm:$0xff]
      %v2725 = vld [vmem:[%s2135 + $0xa] sm:$0xff]
      %v2726 = vld [vmem:[%s2135 + $0x1a] sm:$0xff]
      %v2727 = vld [vmem:[%s2135 + $0x22] sm:$0xff]
      %v2728 = vld [vmem:[%s2135 + $0x32] sm:$0xff]
      %v2729 = vld [vmem:[%s2135 + $0x3a] sm:$0xff]
      %v2730 = vld [vmem:[%s2135 + $0x4a] sm:$0xff]
      %v2731 = vld [vmem:[%s2135 + $0x52] sm:$0xff]
      %v2732 = vld [vmem:[%s2135 + $0x62] sm:$0xff]
      %v2733 = vld [vmem:[%s2135 + $0x6a] sm:$0xff]
      %v2734 = vld [vmem:[%s2135 + $0x7a] sm:$0xff]
      %v2735 = vld [vmem:[%s2135 + $0x82] sm:$0xff]
      %v2736 = vld [vmem:[%s2135 + $0x92] sm:$0xff]
      %v2737 = vld [vmem:[%s2135 + $0x9a] sm:$0xff]
      %v2738 = vld [vmem:[%s2135 + $0xaa] sm:$0xff]
      %v2739 = vld [vmem:[%s2135 + $0xb2] sm:$0xff]
      %v2740 = vld [vmem:[%s2135 + $0xc2] sm:$0xff]
      %v2741 = vld [vmem:[%s2135 + $0xca] sm:$0xff]
      %v2742 = vld [vmem:[%s2135 + $0xda] sm:$0xff]
      %v2743 = vld [vmem:[%s2135 + $0xe2] sm:$0xff]
      %v2744 = vld [vmem:[%s2135 + $0xf2] sm:$0xff]
      %v2745 = vld [vmem:[%s2135 + $0xfa] sm:$0xff]
      %v2746 = vld [vmem:[%s2135 + $0x10a] sm:$0xff]
      %v2747 = vld [vmem:[%s2135 + $0x112] sm:$0xff]
      %v2748 = vld [vmem:[%s2135 + $0x122] sm:$0xff]
      %v2749 = vld [vmem:[%s2135 + $0x12a] sm:$0xff]
      %v2750 = vld [vmem:[%s2135 + $0x13a] sm:$0xff]
      %v2751 = vld [vmem:[%s2135 + $0x142] sm:$0xff]
      %v2752 = vld [vmem:[%s2135 + $0x152] sm:$0xff]
      %v2753 = vld [vmem:[%s2135 + $0x15a] sm:$0xff]
      %v2754 = vld [vmem:[%s2135 + $0x16a] sm:$0xff]
      %v2755 = vld [vmem:[%s2135 + $0x172] sm:$0xff]
      %v2756 = vpack.c.bf16 %v2725, %v2724
      %v2757 = vpack.c.bf16 %v2727, %v2726
      %v2758 = vpack.c.bf16 %v2729, %v2728
      %v2759 = vpack.c.bf16 %v2731, %v2730
      %v2760 = vpack.c.bf16 %v2733, %v2732
      %v2761 = vpack.c.bf16 %v2735, %v2734
      %v2762 = vpack.c.bf16 %v2737, %v2736
      %v2763 = vpack.c.bf16 %v2739, %v2738
      %v2764 = vpack.c.bf16 %v2741, %v2740
      %v2765 = vpack.c.bf16 %v2743, %v2742
      %v2766 = vpack.c.bf16 %v2745, %v2744
      %v2767 = vpack.c.bf16 %v2747, %v2746
      %v2768 = vpack.c.bf16 %v2749, %v2748
      %v2769 = vpack.c.bf16 %v2751, %v2750
      %v2770 = vpack.c.bf16 %v2753, %v2752
      %v2771 = vpack.c.bf16 %v2755, %v2754
      %s2772 = scalar_lea.vmem %s3, 16
      %v2773 = vld [vmem:[%s2772] sm:$0x3]
      %v2775 = vsel %vm246, %v2756, 0
      %v2778 = vsel %vm246, %v2757, 0
      %v2781 = vsel %vm246, %v2758, 0
      %v2784 = vsel %vm246, %v2759, 0
      %v2787 = vsel %vm246, %v2760, 0
      %v2790 = vsel %vm246, %v2761, 0
      %v2793 = vsel %vm246, %v2762, 0
      %v2796 = vsel %vm246, %v2763, 0
      %v2799 = vsel %vm246, %v2764, 0
      %v2802 = vsel %vm246, %v2765, 0
      %v2805 = vsel %vm246, %v2766, 0
      %v2808 = vsel %vm246, %v2767, 0
      %v2811 = vsel %vm246, %v2768, 0
      %v2814 = vsel %vm246, %v2769, 0
      %v2817 = vsel %vm246, %v2770, 0
      %v2820 = vsel %vm246, %v2771, 0
      %v2823 = vsel %vm582, %v2773, 0
      %2825 = vmatprep.subr.bf16.mxu0 0
      %2826 = vmatpush1.bf16.msra.mxu0 %v2823
      %2827 = vmatprep.subr.bf16.mxu0 0
      %2828 = vmatpush1.bf16.msra.mxu0 0
      %2829 = vmatprep.subr.bf16.mxu0 0
      %2830 = vmatpush1.bf16.msra.mxu0 0
      %2831 = vmatprep.subr.bf16.mxu0 0
      %2832 = vmatpush1.bf16.msra.mxu0 0
      %2833 = vmatprep.subr.bf16.mxu0 0
      %2834 = vmatpush1.bf16.msra.mxu0 0
      %2835 = vmatprep.subr.bf16.mxu0 0
      %2836 = vmatpush1.bf16.msra.mxu0 0
      %2837 = vmatprep.subr.bf16.mxu0 0
      %2838 = vmatpush1.bf16.msra.mxu0 0
      %2839 = vmatprep.subr.bf16.mxu0 0
      %2840 = vmatpush1.bf16.msra.mxu0 0
      %2841 = vmatprep.subr.bf16.mxu0 0
      %2842 = vmatpush1.bf16.msra.mxu0 0
      %2843 = vmatprep.subr.bf16.mxu0 0
      %2844 = vmatpush1.bf16.msra.mxu0 0
      %2845 = vmatprep.subr.bf16.mxu0 0
      %2846 = vmatpush1.bf16.msra.mxu0 0
      %2847 = vmatprep.subr.bf16.mxu0 0
      %2848 = vmatpush1.bf16.msra.mxu0 0
      %2849 = vmatprep.subr.bf16.mxu0 0
      %2850 = vmatpush1.bf16.msra.mxu0 0
      %2851 = vmatprep.subr.bf16.mxu0 0
      %2852 = vmatpush1.bf16.msra.mxu0 0
      %2853 = vmatprep.subr.bf16.mxu0 0
      %2854 = vmatpush1.bf16.msra.mxu0 0
      %2855 = vmatprep.subr.bf16.mxu0 0
      %2856 = vmatpush1.bf16.msra.mxu0 0
      %2857 = vmatprep.mubr.bf16.mxu0 0
      %2858 = vmatmul.mubr.bf16.gmra.mrb[0].mxu0 %v2775
      %v2859 = vpop.f32.mrb[0].mxu0
      %v2860 = vadd.f32 0.0, %v2859
      %v2861 = vpop.f32.mrb[0].mxu0
      %v2862 = vpop.f32.mrb[0].mxu0
      %v2863 = vadd.f32 0.0, %v2862
      %v2864 = vpop.f32.mrb[0].mxu0
      %2865 = vmatprep.mubr.bf16.mxu0 0
      %2866 = vmatmul.mubr.bf16.gmra.mrb[0].mxu0 %v2778
      %v2867 = vpop.f32.mrb[0].mxu0
      %v2868 = vadd.f32 0.0, %v2867
      %v2869 = vpop.f32.mrb[0].mxu0
      %v2870 = vpop.f32.mrb[0].mxu0
      %v2871 = vadd.f32 0.0, %v2870
      %v2872 = vpop.f32.mrb[0].mxu0
      %2873 = vmatprep.mubr.bf16.mxu0 0
      %2874 = vmatmul.mubr.bf16.gmra.mrb[0].mxu0 %v2781
      %v2875 = vpop.f32.mrb[0].mxu0
      %v2876 = vadd.f32 0.0, %v2875
      %v2877 = vpop.f32.mrb[0].mxu0
      %v2878 = vpop.f32.mrb[0].mxu0
      %v2879 = vadd.f32 0.0, %v2878
      %v2880 = vpop.f32.mrb[0].mxu0
      %2881 = vmatprep.mubr.bf16.mxu0 0
      %2882 = vmatmul.mubr.bf16.gmra.mrb[0].mxu0 %v2784
      %v2883 = vpop.f32.mrb[0].mxu0
      %v2884 = vadd.f32 0.0, %v2883
      %v2885 = vpop.f32.mrb[0].mxu0
      %v2886 = vpop.f32.mrb[0].mxu0
      %v2887 = vadd.f32 0.0, %v2886
      %v2888 = vpop.f32.mrb[0].mxu0
      %2889 = vmatprep.mubr.bf16.mxu0 0
      %2890 = vmatmul.mubr.bf16.gmra.mrb[0].mxu0 %v2787
      %v2891 = vpop.f32.mrb[0].mxu0
      %v2892 = vadd.f32 0.0, %v2891
      %v2893 = vpop.f32.mrb[0].mxu0
      %v2894 = vpop.f32.mrb[0].mxu0
      %v2895 = vadd.f32 0.0, %v2894
      %v2896 = vpop.f32.mrb[0].mxu0
      %2897 = vmatprep.mubr.bf16.mxu0 0
      %2898 = vmatmul.mubr.bf16.gmra.mrb[0].mxu0 %v2790
      %v2899 = vpop.f32.mrb[0].mxu0
      %v2900 = vadd.f32 0.0, %v2899
      %v2901 = vpop.f32.mrb[0].mxu0
      %v2902 = vpop.f32.mrb[0].mxu0
      %v2903 = vadd.f32 0.0, %v2902
      %v2904 = vpop.f32.mrb[0].mxu0
      %2905 = vmatprep.mubr.bf16.mxu0 0
      %2906 = vmatmul.mubr.bf16.gmra.mrb[0].mxu0 %v2793
      %v2907 = vpop.f32.mrb[0].mxu0
      %v2908 = vadd.f32 0.0, %v2907
      %v2909 = vpop.f32.mrb[0].mxu0
      %v2910 = vpop.f32.mrb[0].mxu0
      %v2911 = vadd.f32 0.0, %v2910
      %v2912 = vpop.f32.mrb[0].mxu0
      %2913 = vmatprep.mubr.bf16.mxu0 0
      %2914 = vmatmul.mubr.bf16.gmra.mrb[0].mxu0 %v2796
      %v2915 = vpop.f32.mrb[0].mxu0
      %v2916 = vadd.f32 0.0, %v2915
      %v2917 = vpop.f32.mrb[0].mxu0
      %v2918 = vpop.f32.mrb[0].mxu0
      %v2919 = vadd.f32 0.0, %v2918
      %v2920 = vpop.f32.mrb[0].mxu0
      %2921 = vmatprep.mubr.bf16.mxu0 0
      %2922 = vmatmul.mubr.bf16.gmra.mrb[0].mxu0 %v2799
      %v2923 = vpop.f32.mrb[0].mxu0
      %v2924 = vadd.f32 0.0, %v2923
      %v2925 = vpop.f32.mrb[0].mxu0
      %v2926 = vpop.f32.mrb[0].mxu0
      %v2927 = vadd.f32 0.0, %v2926
      %v2928 = vpop.f32.mrb[0].mxu0
      %2929 = vmatprep.mubr.bf16.mxu0 0
      %2930 = vmatmul.mubr.bf16.gmra.mrb[0].mxu0 %v2802
      %v2931 = vpop.f32.mrb[0].mxu0
      %v2932 = vadd.f32 0.0, %v2931
      %v2933 = vpop.f32.mrb[0].mxu0
      %v2934 = vpop.f32.mrb[0].mxu0
      %v2935 = vadd.f32 0.0, %v2934
      %v2936 = vpop.f32.mrb[0].mxu0
      %2937 = vmatprep.mubr.bf16.mxu0 0
      %2938 = vmatmul.mubr.bf16.gmra.mrb[0].mxu0 %v2805
      %v2939 = vpop.f32.mrb[0].mxu0
      %v2940 = vadd.f32 0.0, %v2939
      %v2941 = vpop.f32.mrb[0].mxu0
      %v2942 = vpop.f32.mrb[0].mxu0
      %v2943 = vadd.f32 0.0, %v2942
      %v2944 = vpop.f32.mrb[0].mxu0
      %2945 = vmatprep.mubr.bf16.mxu0 0
      %2946 = vmatmul.mubr.bf16.gmra.mrb[0].mxu0 %v2808
      %v2947 = vpop.f32.mrb[0].mxu0
      %v2948 = vadd.f32 0.0, %v2947
      %v2949 = vpop.f32.mrb[0].mxu0
      %v2950 = vpop.f32.mrb[0].mxu0
      %v2951 = vadd.f32 0.0, %v2950
      %v2952 = vpop.f32.mrb[0].mxu0
      %2953 = vmatprep.mubr.bf16.mxu0 0
      %2954 = vmatmul.mubr.bf16.gmra.mrb[0].mxu0 %v2811
      %v2955 = vpop.f32.mrb[0].mxu0
      %v2956 = vadd.f32 0.0, %v2955
      %v2957 = vpop.f32.mrb[0].mxu0
      %v2958 = vpop.f32.mrb[0].mxu0
      %v2959 = vadd.f32 0.0, %v2958
      %v2960 = vpop.f32.mrb[0].mxu0
      %2961 = vmatprep.mubr.bf16.mxu0 0
      %2962 = vmatmul.mubr.bf16.gmra.mrb[0].mxu0 %v2814
      %v2963 = vpop.f32.mrb[0].mxu0
      %v2964 = vadd.f32 0.0, %v2963
      %v2965 = vpop.f32.mrb[0].mxu0
      %v2966 = vpop.f32.mrb[0].mxu0
      %v2967 = vadd.f32 0.0, %v2966
      %v2968 = vpop.f32.mrb[0].mxu0
      %2969 = vmatprep.mubr.bf16.mxu0 0
      %2970 = vmatmul.mubr.bf16.gmra.mrb[0].mxu0 %v2817
      %v2971 = vpop.f32.mrb[0].mxu0
      %v2972 = vadd.f32 0.0, %v2971
      %v2973 = vpop.f32.mrb[0].mxu0
      %v2974 = vpop.f32.mrb[0].mxu0
      %v2975 = vadd.f32 0.0, %v2974
      %v2976 = vpop.f32.mrb[0].mxu0
      %2977 = vmatprep.mubr.bf16.mxu0 0
      %2978 = vmatmul.mubr.bf16.gmra.mrb[0].mxu0 %v2820
      %v2979 = vpop.f32.mrb[0].mxu0
      %v2980 = vadd.f32 0.0, %v2979
      %v2981 = vpop.f32.mrb[0].mxu0
      %v2982 = vpop.f32.mrb[0].mxu0
      %v2983 = vadd.f32 0.0, %v2982
      %v2984 = vpop.f32.mrb[0].mxu0
      %2985 = vdwg.mxu0
      %v2986 = vadd.f32 %v2692, %v2860
      %v2987 = vadd.f32 %v2693, %v2863
      %v2988 = vadd.f32 %v2694, %v2868
      %v2989 = vadd.f32 %v2695, %v2871
      %v2990 = vadd.f32 %v2696, %v2876
      %v2991 = vadd.f32 %v2697, %v2879
      %v2992 = vadd.f32 %v2698, %v2884
      %v2993 = vadd.f32 %v2699, %v2887
      %v2994 = vadd.f32 %v2700, %v2892
      %v2995 = vadd.f32 %v2701, %v2895
      %v2996 = vadd.f32 %v2702, %v2900
      %v2997 = vadd.f32 %v2703, %v2903
      %v2998 = vadd.f32 %v2704, %v2908
      %v2999 = vadd.f32 %v2705, %v2911
      %v3000 = vadd.f32 %v2706, %v2916
      %v3001 = vadd.f32 %v2707, %v2919
      %v3002 = vadd.f32 %v2708, %v2924
      %v3003 = vadd.f32 %v2709, %v2927
      %v3004 = vadd.f32 %v2710, %v2932
      %v3005 = vadd.f32 %v2711, %v2935
      %v3006 = vadd.f32 %v2712, %v2940
      %v3007 = vadd.f32 %v2713, %v2943
      %v3008 = vadd.f32 %v2714, %v2948
      %v3009 = vadd.f32 %v2715, %v2951
      %v3010 = vadd.f32 %v2716, %v2956
      %v3011 = vadd.f32 %v2717, %v2959
      %v3012 = vadd.f32 %v2718, %v2964
      %v3013 = vadd.f32 %v2719, %v2967
      %v3014 = vadd.f32 %v2720, %v2972
      %v3015 = vadd.f32 %v2721, %v2975
      %v3016 = vadd.f32 %v2722, %v2980
      %v3017 = vadd.f32 %v2723, %v2983
      %v3018 = vmax.f32 %v2986, 0.0
      %v3019 = vmax.f32 %v2987, 0.0
      %v3020 = vmax.f32 %v2988, 0.0
      %v3021 = vmax.f32 %v2989, 0.0
      %v3022 = vmax.f32 %v2990, 0.0
      %v3023 = vmax.f32 %v2991, 0.0
      %v3024 = vmax.f32 %v2992, 0.0
      %v3025 = vmax.f32 %v2993, 0.0
      %v3026 = vmax.f32 %v2994, 0.0
      %v3027 = vmax.f32 %v2995, 0.0
      %v3028 = vmax.f32 %v2996, 0.0
      %v3029 = vmax.f32 %v2997, 0.0
      %v3030 = vmax.f32 %v2998, 0.0
      %v3031 = vmax.f32 %v2999, 0.0
      %v3032 = vmax.f32 %v3000, 0.0
      %v3033 = vmax.f32 %v3001, 0.0
      %v3034 = vmax.f32 %v3002, 0.0
      %v3035 = vmax.f32 %v3003, 0.0
      %v3036 = vmax.f32 %v3004, 0.0
      %v3037 = vmax.f32 %v3005, 0.0
      %v3038 = vmax.f32 %v3006, 0.0
      %v3039 = vmax.f32 %v3007, 0.0
      %v3040 = vmax.f32 %v3008, 0.0
      %v3041 = vmax.f32 %v3009, 0.0
      %v3042 = vmax.f32 %v3010, 0.0
      %v3043 = vmax.f32 %v3011, 0.0
      %v3044 = vmax.f32 %v3012, 0.0
      %v3045 = vmax.f32 %v3013, 0.0
      %v3046 = vmax.f32 %v3014, 0.0
      %v3047 = vmax.f32 %v3015, 0.0
      %v3048 = vmax.f32 %v3016, 0.0
      %v3049 = vmax.f32 %v3017, 0.0
      %v3050 = vld [vmem:[%s239] sm:$0xff]
      %v3051 = vld [vmem:[%s239 + $0x8] sm:$0xff]
      %v3052 = vld [vmem:[%s239 + $0x10] sm:$0xff]
      %v3053 = vld [vmem:[%s239 + $0x18] sm:$0xff]
      %v3054 = vld [vmem:[%s239 + $0x20] sm:$0xff]
      %v3055 = vld [vmem:[%s239 + $0x28] sm:$0xff]
      %v3056 = vld [vmem:[%s239 + $0x30] sm:$0xff]
      %v3057 = vld [vmem:[%s239 + $0x38] sm:$0xff]
      %v3058 = vld [vmem:[%s239 + $0x40] sm:$0xff]
      %v3059 = vld [vmem:[%s239 + $0x48] sm:$0xff]
      %v3060 = vld [vmem:[%s239 + $0x50] sm:$0xff]
      %v3061 = vld [vmem:[%s239 + $0x58] sm:$0xff]
      %v3062 = vld [vmem:[%s239 + $0x60] sm:$0xff]
      %v3063 = vld [vmem:[%s239 + $0x68] sm:$0xff]
      %v3064 = vld [vmem:[%s239 + $0x70] sm:$0xff]
      %v3065 = vld [vmem:[%s239 + $0x78] sm:$0xff]
      %v3066 = vld [vmem:[%s239 + $0x80] sm:$0xff]
      %v3067 = vld [vmem:[%s239 + $0x88] sm:$0xff]
      %v3068 = vld [vmem:[%s239 + $0x90] sm:$0xff]
      %v3069 = vld [vmem:[%s239 + $0x98] sm:$0xff]
      %v3070 = vld [vmem:[%s239 + $0xa0] sm:$0xff]
      %v3071 = vld [vmem:[%s239 + $0xa8] sm:$0xff]
      %v3072 = vld [vmem:[%s239 + $0xb0] sm:$0xff]
      %v3073 = vld [vmem:[%s239 + $0xb8] sm:$0xff]
      %v3074 = vld [vmem:[%s239 + $0xc0] sm:$0xff]
      %v3075 = vld [vmem:[%s239 + $0xc8] sm:$0xff]
      %v3076 = vld [vmem:[%s239 + $0xd0] sm:$0xff]
      %v3077 = vld [vmem:[%s239 + $0xd8] sm:$0xff]
      %v3078 = vld [vmem:[%s239 + $0xe0] sm:$0xff]
      %v3079 = vld [vmem:[%s239 + $0xe8] sm:$0xff]
      %v3080 = vld [vmem:[%s239 + $0xf0] sm:$0xff]
      %v3081 = vld [vmem:[%s239 + $0xf8] sm:$0xff]
      %v3082 = vadd.f32 %v3018, %v3050
      %v3083 = vadd.f32 %v3019, %v3051
      %v3084 = vadd.f32 %v3020, %v3052
      %v3085 = vadd.f32 %v3021, %v3053
      %v3086 = vadd.f32 %v3022, %v3054
      %v3087 = vadd.f32 %v3023, %v3055
      %v3088 = vadd.f32 %v3024, %v3056
      %v3089 = vadd.f32 %v3025, %v3057
      %v3090 = vadd.f32 %v3026, %v3058
      %v3091 = vadd.f32 %v3027, %v3059
      %v3092 = vadd.f32 %v3028, %v3060
      %v3093 = vadd.f32 %v3029, %v3061
      %v3094 = vadd.f32 %v3030, %v3062
      %v3095 = vadd.f32 %v3031, %v3063
      %v3096 = vadd.f32 %v3032, %v3064
      %v3097 = vadd.f32 %v3033, %v3065
      %v3098 = vadd.f32 %v3034, %v3066
      %v3099 = vadd.f32 %v3035, %v3067
      %v3100 = vadd.f32 %v3036, %v3068
      %v3101 = vadd.f32 %v3037, %v3069
      %v3102 = vadd.f32 %v3038, %v3070
      %v3103 = vadd.f32 %v3039, %v3071
      %v3104 = vadd.f32 %v3040, %v3072
      %v3105 = vadd.f32 %v3041, %v3073
      %v3106 = vadd.f32 %v3042, %v3074
      %v3107 = vadd.f32 %v3043, %v3075
      %v3108 = vadd.f32 %v3044, %v3076
      %v3109 = vadd.f32 %v3045, %v3077
      %v3110 = vadd.f32 %v3046, %v3078
      %v3111 = vadd.f32 %v3047, %v3079
      %v3112 = vadd.f32 %v3048, %v3080
      %v3113 = vadd.f32 %v3049, %v3081
      %3114 = vst.msk [vmem:[%s244] sm:$0xff] %vm246, %v3082
      %3115 = vst.msk [vmem:[%s244 + $0x8] sm:$0xff] %vm246, %v3083
      %3116 = vst.msk [vmem:[%s244 + $0x10] sm:$0xff] %vm246, %v3084
      %3117 = vst.msk [vmem:[%s244 + $0x18] sm:$0xff] %vm246, %v3085
      %3118 = vst.msk [vmem:[%s244 + $0x20] sm:$0xff] %vm246, %v3086
      %3119 = vst.msk [vmem:[%s244 + $0x28] sm:$0xff] %vm246, %v3087
      %3120 = vst.msk [vmem:[%s244 + $0x30] sm:$0xff] %vm246, %v3088
      %3121 = vst.msk [vmem:[%s244 + $0x38] sm:$0xff] %vm246, %v3089
      %3122 = vst.msk [vmem:[%s244 + $0x40] sm:$0xff] %vm246, %v3090
      %3123 = vst.msk [vmem:[%s244 + $0x48] sm:$0xff] %vm246, %v3091
      %3124 = vst.msk [vmem:[%s244 + $0x50] sm:$0xff] %vm246, %v3092
      %3125 = vst.msk [vmem:[%s244 + $0x58] sm:$0xff] %vm246, %v3093
      %3126 = vst.msk [vmem:[%s244 + $0x60] sm:$0xff] %vm246, %v3094
      %3127 = vst.msk [vmem:[%s244 + $0x68] sm:$0xff] %vm246, %v3095
      %3128 = vst.msk [vmem:[%s244 + $0x70] sm:$0xff] %vm246, %v3096
      %3129 = vst.msk [vmem:[%s244 + $0x78] sm:$0xff] %vm246, %v3097
      %3130 = vst.msk [vmem:[%s244 + $0x80] sm:$0xff] %vm246, %v3098
      %3131 = vst.msk [vmem:[%s244 + $0x88] sm:$0xff] %vm246, %v3099
      %3132 = vst.msk [vmem:[%s244 + $0x90] sm:$0xff] %vm246, %v3100
      %3133 = vst.msk [vmem:[%s244 + $0x98] sm:$0xff] %vm246, %v3101
      %3134 = vst.msk [vmem:[%s244 + $0xa0] sm:$0xff] %vm246, %v3102
      %3135 = vst.msk [vmem:[%s244 + $0xa8] sm:$0xff] %vm246, %v3103
      %3136 = vst.msk [vmem:[%s244 + $0xb0] sm:$0xff] %vm246, %v3104
      %3137 = vst.msk [vmem:[%s244 + $0xb8] sm:$0xff] %vm246, %v3105
      %3138 = vst.msk [vmem:[%s244 + $0xc0] sm:$0xff] %vm246, %v3106
      %3139 = vst.msk [vmem:[%s244 + $0xc8] sm:$0xff] %vm246, %v3107
      %3140 = vst.msk [vmem:[%s244 + $0xd0] sm:$0xff] %vm246, %v3108
      %3141 = vst.msk [vmem:[%s244 + $0xd8] sm:$0xff] %vm246, %v3109
      %3142 = vst.msk [vmem:[%s244 + $0xe0] sm:$0xff] %vm246, %v3110
      %3143 = vst.msk [vmem:[%s244 + $0xe8] sm:$0xff] %vm246, %v3111
      %3144 = vst.msk [vmem:[%s244 + $0xf0] sm:$0xff] %vm246, %v3112
      %3145 = vst.msk [vmem:[%s244 + $0xf8] sm:$0xff] %vm246, %v3113
      %p3146 = scmp.lt.s32.totalorder %s16, 1
      %s3147 = scalar_select %p3146, %s16, 1
      %s3148 = smul.addr %s3147, 32
      %s3149 = smul.addr %s3148, 8
      %s3150 = scalar_lea.vmem %s5, %s3149
      // Predicated region
      $region41: #{pre_basic_block_nchw.3} parent=39 // pred_check
        %p3151 = pneg %p149
      $region42: #{pre_basic_block_nchw.3} parent=39 // pred_check_branch
        %3153 = sbr.rel (%p3151) target = $region44
      $region43: #{pre_basic_block_nchw.3} parent=39 // pred_region
        _
      $region44: #{pre_basic_block_nchw.3} parent=39 // pred_fallthru
        _
    $region40: #{pre_basic_block_nchw.3} parent=5 // pred_fallthru
      _
    %p3154 = scmp.le.s32.totalorder 2, %s11
    // Predicated region
    $region45: #{pre_basic_block_nchw.3} parent=5 // pred_check
      %p3155 = pneg %p3154
    $region46: #{pre_basic_block_nchw.3} parent=5 // pred_check_branch
      %3157 = sbr.rel (%p3155) target = $region48
    $region47: #{pre_basic_block_nchw.3} parent=5 // pred_region
      %s3158 = ssub.s32 %s11, 2
      // Predicated region
      $region49: #{pre_basic_block_nchw.3} parent=47 // pred_check
        %p3159 = pneg %p155
      $region50: #{pre_basic_block_nchw.3} parent=47 // pred_check_branch
        %3161 = sbr.rel (%p3159) target = $region52
      $region51: #{pre_basic_block_nchw.3} parent=47 // pred_region
        %p3162 = scmp.lt.s32.totalorder %s17, 1
        %s3163 = scalar_select %p3162, %s17, 1
        %s3164 = smul.addr %s3163, 32
        %s3165 = smul.addr %s3164, 8
        %s3166 = scalar_lea.vmem %s5, %s3165
      $region52: #{pre_basic_block_nchw.3} parent=47 // pred_fallthru
        _
    $region48: #{pre_basic_block_nchw.3} parent=5 // pred_fallthru
      _
  $region6: #{pre_basic_block_nchw.3} parent=0 // loop_footer
    %s15 = sadd.s32 1, %s11
  $region7: #{pre_basic_block_nchw.3} parent=0 // loop_footer_branch
    %10 = sbr.rel target = $region3
  $region8: #{pre_basic_block_nchw.3} parent=0 // loop_exit
    _

</llo_original>
